<compile_context>
chip_gen: v7x
topology: tpu7x:2x2x1
jax: 0.10.0
libtpu: 0.0.40
codegen_flags: <defaults>
</compile_context>

<pallas_src>
import jax
import jax.numpy as jnp
from jax.experimental import pallas as pl
from jax.experimental.pallas import tpu as pltpu

BIT_LENGTH = 30
_NB_PAD = 128          # fc output columns padded to one full lane tile


# ---------------------------------------------------------------------------
# In-kernel helpers
# ---------------------------------------------------------------------------
def _conv_s2(y, t_ref, b_ref):
    """Stride-2 / 3x3 / pad-1 conv + bias + ReLU as ONE MXU matmul.

    y:     (H, S, L = W*Cin) bf16 activation, lane axis = (w, cin).
    t_ref: (3*L, OW*Cout) bf16 banded weight, kh bands stacked along K.
    b_ref: (1, OW*Cout) f32 bias tiled over the output width.
    Returns (H//2, S, OW*Cout) bf16.
    """
    H, S, L = y.shape
    OH = H // 2
    N = t_ref.shape[-1]
    yr = y.reshape(OH, 2, S, L)                       # leading-dim split, layout-free
    band1 = yr[:, 0]                                  # rows 2*oh      (kh = 1)
    band2 = yr[:, 1]                                  # rows 2*oh + 1  (kh = 2)
    zrow = jnp.zeros((1, S, L), y.dtype)
    band0 = jnp.concatenate([zrow, band2[:OH - 1]], axis=0)   # rows 2*oh - 1 (kh = 0)
    lhs = jnp.concatenate([band0, band1, band2], axis=-1)     # (OH, S, 3L) lane K-concat
    lhs = lhs.reshape(OH * S, 3 * L)
    acc = jnp.dot(lhs, t_ref[...], preferred_element_type=jnp.float32)
    acc = jnp.maximum(acc + b_ref[...], 0.0)          # bias + ReLU in f32
    return acc.astype(jnp.bfloat16).reshape(OH, S, N)


def _fused_kernel(x_ref, t1_ref, b1_ref, t2_ref, b2_ref, t3_ref, b3_ref,
                  wf_ref, bf_ref, out_ref):
    y = _conv_s2(x_ref[...], t1_ref, b1_ref)          # (32, S, 512) lane = (ow, 16)
    y = _conv_s2(y, t2_ref, b2_ref)                   # (16, S, 512) lane = (ow, 32)
    y = _conv_s2(y, t3_ref, b3_ref)                   # ( 8, S, 512) lane = (ow, 64)
    # FC: lane-concat of the 8 output rows -> (S, 4096) features in (h, w, c) order.
    lhs = jnp.concatenate([y[h] for h in range(y.shape[0])], axis=-1)
    logits = jnp.dot(lhs, wf_ref[...], preferred_element_type=jnp.float32) + bf_ref[...]
    # sigmoid(logits) > 0.5  <=>  logits > 0  (exactly equivalent)
    out_ref[...] = (logits > 0.0).astype(jnp.int32)


# ---------------------------------------------------------------------------
# Wrapper-side weight preparation (tiny, plain-JAX)
# ---------------------------------------------------------------------------
def _toeplitz_bands(w_hwio, w_in):
    """(3,3,Cin,Cout) HWIO conv weight -> (3*W*Cin, (W/2)*Cout) bf16 K-stacked bands.

    Row kh*W*Cin + w*Cin + ci, col ow*Cout + co holds W[kh, kw, ci, co] with
    kw = w + 1 - 2*ow (stride 2, padding 1), zero outside 0 <= kw <= 2.
    """
    _, _, cin, cout = w_hwio.shape
    ow = w_in // 2
    w_idx = jnp.arange(w_in)[:, None]
    ow_idx = jnp.arange(ow)[None, :]
    kw = w_idx + 1 - 2 * ow_idx                        # (W, OW)
    valid = ((kw >= 0) & (kw <= 2)).astype(w_hwio.dtype)
    t = w_hwio[:, jnp.clip(kw, 0, 2)]                  # (3, W, OW, Cin, Cout)
    t = t * valid[None, :, :, None, None]
    t = jnp.transpose(t, (0, 1, 3, 2, 4))              # (3, W, Cin, OW, Cout)
    return t.reshape(3 * w_in * cin, ow * cout).astype(jnp.bfloat16)


def _pick_group(batch):
    """Images per grid step, tuned per TPU generation (all static Python)."""
    kind = jax.devices()[0].device_kind.lower()
    is_v5e = ("v5 lite" in kind) or ("v5e" in kind) or ("v5litepod" in kind)
    two_tc = ("v7" in kind) or ("7x" in kind)
    target = 16 if is_v5e else 32                      # fill 128- vs 256-row MXU
    b8 = -(-batch // 8) * 8                            # batch rounded up to f32 sublane tile
    group = 8
    while group * 2 <= min(target, b8):
        group *= 2
    if two_tc:
        # keep >= 2 grid steps when possible so "parallel" shards across both TCs
        while group > 8 and -(-batch // group) < 2:
            group //= 2
    return group


@jax.jit
def watermark_extractor(x_nchw, params):
    B, C, H, W = x_nchw.shape
    assert (C, H, W) == (4, 64, 64), "fc layer fixes the input to (B, 4, 64, 64)"
    group = _pick_group(B)
    b_pad = -(-B // group) * group
    n_groups = b_pad // group

    # NCHW -> (n_groups, H, GROUP, W*C): lane = (w, c), contiguous per-step DMA, bf16.
    xp = jnp.pad(x_nchw, ((0, b_pad - B), (0, 0), (0, 0), (0, 0)))
    xt = xp.reshape(n_groups, group, C, H, W)
    xt = jnp.transpose(xt, (0, 3, 1, 4, 2)).reshape(n_groups, H, group, W * C)
    xt = xt.astype(jnp.bfloat16)

    t1 = _toeplitz_bands(params["w1"], 64)             # (768, 512)
    t2 = _toeplitz_bands(params["w2"], 32)             # (1536, 512)
    t3 = _toeplitz_bands(params["w3"], 16)             # (1536, 512)
    b1 = jnp.tile(params["b1"], 32).reshape(1, 512)
    b2 = jnp.tile(params["b2"], 16).reshape(1, 512)
    b3 = jnp.tile(params["b3"], 8).reshape(1, 512)
    wf = jnp.pad(params["wf"], ((0, 0), (0, _NB_PAD - BIT_LENGTH))).astype(jnp.bfloat16)
    bf = jnp.pad(params["bf"], (0, _NB_PAD - BIT_LENGTH)).reshape(1, _NB_PAD)

    bits = pl.pallas_call(
        _fused_kernel,
        out_shape=jax.ShapeDtypeStruct((b_pad, _NB_PAD), jnp.int32),
        grid=(n_groups,),
        in_specs=[
            # per-group image slab: leading dim indexed -> one contiguous DMA per step
            pl.BlockSpec((None, H, group, W * C), lambda g: (g, 0, 0, 0)),
            pl.BlockSpec(t1.shape, lambda g: (0, 0)),   # weights stay VMEM-resident
            pl.BlockSpec(b1.shape, lambda g: (0, 0)),
            pl.BlockSpec(t2.shape, lambda g: (0, 0)),
            pl.BlockSpec(b2.shape, lambda g: (0, 0)),
            pl.BlockSpec(t3.shape, lambda g: (0, 0)),
            pl.BlockSpec(b3.shape, lambda g: (0, 0)),
            pl.BlockSpec(wf.shape, lambda g: (0, 0)),
            pl.BlockSpec(bf.shape, lambda g: (0, 0)),
        ],
        out_specs=pl.BlockSpec((group, _NB_PAD), lambda g: (g, 0)),
        compiler_params=pltpu.CompilerParams(
            dimension_semantics=("parallel",),          # megacore sharding on v7x
            vmem_limit_bytes=48 * 1024 * 1024,          # ~20 MiB footprint; safe on 64 MiB v7x
        ),
    )(xt, t1, b1, t2, b2, t3, b3, wf, bf)
    return bits[:B, :BIT_LENGTH]                        # (B, 30) int32 of {0, 1}


def init_params(key):
    ks = jax.random.split(key, 8)
    s = 0.05
    return {
        "w1": s * jax.random.normal(ks[0], (3, 3, 4, 16), jnp.float32),    # HWIO
        "b1": s * jax.random.normal(ks[1], (16,), jnp.float32),
        "w2": s * jax.random.normal(ks[2], (3, 3, 16, 32), jnp.float32),
        "b2": s * jax.random.normal(ks[3], (32,), jnp.float32),
        "w3": s * jax.random.normal(ks[4], (3, 3, 32, 64), jnp.float32),
        "b3": s * jax.random.normal(ks[5], (64,), jnp.float32),
        # rows ordered by the NHWC flatten (h, w, c) of the conv3 output
        "wf": s * jax.random.normal(ks[6], (8 * 8 * 64, BIT_LENGTH), jnp.float32),
        "bf": s * jax.random.normal(ks[7], (BIT_LENGTH,), jnp.float32),
    }


if __name__ == "__main__":
    key = jax.random.PRNGKey(0)
    k_x, k_p = jax.random.split(key)
    # fc expects 64*8*8 features => input spatial must be 64x64 (64/2/2/2 = 8)
    x = jax.random.normal(k_x, (2, 4, 64, 64), jnp.float32)
    params = init_params(k_p)

    bits = watermark_extractor(x, params)
    jax.block_until_ready(bits)

    assert bits.shape == (2, BIT_LENGTH)
    assert bits.dtype == jnp.int32
    print("KERNEL_OK")
</pallas_src>

<mosaic_0001>
module attributes {stable_mosaic.version = 11 : i64} {
  func.func @_fused_kernel(%arg0: i32, %arg1: memref<1x64x8x256xbf16, #tpu.memory_space<vmem>>, %arg2: memref<768x512xbf16, #tpu.memory_space<vmem>>, %arg3: memref<1x512xf32, #tpu.memory_space<vmem>>, %arg4: memref<1536x512xbf16, #tpu.memory_space<vmem>>, %arg5: memref<1x512xf32, #tpu.memory_space<vmem>>, %arg6: memref<1536x512xbf16, #tpu.memory_space<vmem>>, %arg7: memref<1x512xf32, #tpu.memory_space<vmem>>, %arg8: memref<4096x128xbf16, #tpu.memory_space<vmem>>, %arg9: memref<1x128xf32, #tpu.memory_space<vmem>>, %arg10: memref<8x128xi32, #tpu.memory_space<vmem>>) attributes {dimension_semantics = [#tpu.dimension_semantics<parallel>], iteration_bounds = array<i64: 1>, scalar_prefetch = 0 : i64, scratch_operands = 0 : i64, tpu.core_type = #tpu.core_type<tc>, window_params = [{transform_indices = @transform_0, window_bounds = array<i64: 1, 64, 8, 256>}, {pipeline_mode = #tpu.pipeline_mode<synchronous>, transform_indices = @transform_1, window_bounds = array<i64: 768, 512>}, {pipeline_mode = #tpu.pipeline_mode<synchronous>, transform_indices = @transform_2, window_bounds = array<i64: 1, 512>}, {pipeline_mode = #tpu.pipeline_mode<synchronous>, transform_indices = @transform_3, window_bounds = array<i64: 1536, 512>}, {pipeline_mode = #tpu.pipeline_mode<synchronous>, transform_indices = @transform_4, window_bounds = array<i64: 1, 512>}, {pipeline_mode = #tpu.pipeline_mode<synchronous>, transform_indices = @transform_5, window_bounds = array<i64: 1536, 512>}, {pipeline_mode = #tpu.pipeline_mode<synchronous>, transform_indices = @transform_6, window_bounds = array<i64: 1, 512>}, {pipeline_mode = #tpu.pipeline_mode<synchronous>, transform_indices = @transform_7, window_bounds = array<i64: 4096, 128>}, {pipeline_mode = #tpu.pipeline_mode<synchronous>, transform_indices = @transform_8, window_bounds = array<i64: 1, 128>}, {transform_indices = @transform_9, window_bounds = array<i64: 8, 128>}]} {
    %c0 = arith.constant 0 : index
    %c0_0 = arith.constant 0 : index
    %c0_1 = arith.constant 0 : index
    %c0_2 = arith.constant 0 : index
    %0 = vector.load %arg1[%c0, %c0_0, %c0_1, %c0_2] : memref<1x64x8x256xbf16, #tpu.memory_space<vmem>>, vector<1x64x8x256xbf16>
    %1 = vector.shape_cast %0 : vector<1x64x8x256xbf16> to vector<64x8x256xbf16>
    %2 = vector.shape_cast %1 : vector<64x8x256xbf16> to vector<32x2x8x256xbf16>
    %3 = vector.extract_strided_slice %2 {offsets = [0, 0, 0, 0], sizes = [32, 1, 8, 256], strides = [1, 1, 1, 1]} : vector<32x2x8x256xbf16> to vector<32x1x8x256xbf16>
    %4 = vector.shape_cast %3 : vector<32x1x8x256xbf16> to vector<32x8x256xbf16>
    %5 = vector.extract_strided_slice %2 {offsets = [0, 1, 0, 0], sizes = [32, 1, 8, 256], strides = [1, 1, 1, 1]} : vector<32x2x8x256xbf16> to vector<32x1x8x256xbf16>
    %6 = vector.shape_cast %5 : vector<32x1x8x256xbf16> to vector<32x8x256xbf16>
    %cst = arith.constant 0.000000e+00 : bf16
    %7 = vector.broadcast %cst : bf16 to vector<1x8x256xbf16>
    %8 = vector.extract_strided_slice %6 {offsets = [0, 0, 0], sizes = [31, 8, 256], strides = [1, 1, 1]} : vector<32x8x256xbf16> to vector<31x8x256xbf16>
    %9 = tpu.concatenate %7, %8 in 0 : vector<1x8x256xbf16>, vector<31x8x256xbf16> -> vector<32x8x256xbf16>
    %10 = tpu.concatenate %9, %4, %6 in 2 : vector<32x8x256xbf16>, vector<32x8x256xbf16>, vector<32x8x256xbf16> -> vector<32x8x768xbf16>
    %11 = vector.shape_cast %10 : vector<32x8x768xbf16> to vector<256x768xbf16>
    %c0_3 = arith.constant 0 : index
    %c0_4 = arith.constant 0 : index
    %12 = vector.load %arg2[%c0_3, %c0_4] : memref<768x512xbf16, #tpu.memory_space<vmem>>, vector<768x512xbf16>
    %cst_5 = arith.constant dense<0.000000e+00> : vector<256x512xf32>
    %13 = tpu.matmul %11, %12, %cst_5 {dimension_numbers = #tpu.dot_dimension_numbers<[1], [0], [0], [1], [0, 0, 1, 1], [], []>} : vector<256x768xbf16>, vector<768x512xbf16>, vector<256x512xf32> -> vector<256x512xf32>
    %c0_6 = arith.constant 0 : index
    %c0_7 = arith.constant 0 : index
    %14 = vector.load %arg3[%c0_6, %c0_7] : memref<1x512xf32, #tpu.memory_space<vmem>>, vector<1x512xf32>
    %15 = vector.broadcast %14 : vector<1x512xf32> to vector<256x512xf32>
    %16 = arith.addf %13, %15 : vector<256x512xf32>
    %cst_8 = arith.constant 0.000000e+00 : f32
    %17 = vector.broadcast %cst_8 : f32 to vector<256x512xf32>
    %18 = arith.maximumf %16, %17 : vector<256x512xf32>
    %19 = arith.truncf %18 : vector<256x512xf32> to vector<256x512xbf16>
    %20 = vector.shape_cast %19 : vector<256x512xbf16> to vector<32x8x512xbf16>
    %21 = vector.shape_cast %20 : vector<32x8x512xbf16> to vector<16x2x8x512xbf16>
    %22 = vector.extract_strided_slice %21 {offsets = [0, 0, 0, 0], sizes = [16, 1, 8, 512], strides = [1, 1, 1, 1]} : vector<16x2x8x512xbf16> to vector<16x1x8x512xbf16>
    %23 = vector.shape_cast %22 : vector<16x1x8x512xbf16> to vector<16x8x512xbf16>
    %24 = vector.extract_strided_slice %21 {offsets = [0, 1, 0, 0], sizes = [16, 1, 8, 512], strides = [1, 1, 1, 1]} : vector<16x2x8x512xbf16> to vector<16x1x8x512xbf16>
    %25 = vector.shape_cast %24 : vector<16x1x8x512xbf16> to vector<16x8x512xbf16>
    %cst_9 = arith.constant 0.000000e+00 : bf16
    %26 = vector.broadcast %cst_9 : bf16 to vector<1x8x512xbf16>
    %27 = vector.extract_strided_slice %25 {offsets = [0, 0, 0], sizes = [15, 8, 512], strides = [1, 1, 1]} : vector<16x8x512xbf16> to vector<15x8x512xbf16>
    %28 = tpu.concatenate %26, %27 in 0 : vector<1x8x512xbf16>, vector<15x8x512xbf16> -> vector<16x8x512xbf16>
    %29 = tpu.concatenate %28, %23, %25 in 2 : vector<16x8x512xbf16>, vector<16x8x512xbf16>, vector<16x8x512xbf16> -> vector<16x8x1536xbf16>
    %30 = vector.shape_cast %29 : vector<16x8x1536xbf16> to vector<128x1536xbf16>
    %c0_10 = arith.constant 0 : index
    %c0_11 = arith.constant 0 : index
    %31 = vector.load %arg4[%c0_10, %c0_11] : memref<1536x512xbf16, #tpu.memory_space<vmem>>, vector<1536x512xbf16>
    %cst_12 = arith.constant dense<0.000000e+00> : vector<128x512xf32>
    %32 = tpu.matmul %30, %31, %cst_12 {dimension_numbers = #tpu.dot_dimension_numbers<[1], [0], [0], [1], [0, 0, 1, 1], [], []>} : vector<128x1536xbf16>, vector<1536x512xbf16>, vector<128x512xf32> -> vector<128x512xf32>
    %c0_13 = arith.constant 0 : index
    %c0_14 = arith.constant 0 : index
    %33 = vector.load %arg5[%c0_13, %c0_14] : memref<1x512xf32, #tpu.memory_space<vmem>>, vector<1x512xf32>
    %34 = vector.broadcast %33 : vector<1x512xf32> to vector<128x512xf32>
    %35 = arith.addf %32, %34 : vector<128x512xf32>
    %cst_15 = arith.constant 0.000000e+00 : f32
    %36 = vector.broadcast %cst_15 : f32 to vector<128x512xf32>
    %37 = arith.maximumf %35, %36 : vector<128x512xf32>
    %38 = arith.truncf %37 : vector<128x512xf32> to vector<128x512xbf16>
    %39 = vector.shape_cast %38 : vector<128x512xbf16> to vector<16x8x512xbf16>
    %40 = vector.shape_cast %39 : vector<16x8x512xbf16> to vector<8x2x8x512xbf16>
    %41 = vector.extract_strided_slice %40 {offsets = [0, 0, 0, 0], sizes = [8, 1, 8, 512], strides = [1, 1, 1, 1]} : vector<8x2x8x512xbf16> to vector<8x1x8x512xbf16>
    %42 = vector.shape_cast %41 : vector<8x1x8x512xbf16> to vector<8x8x512xbf16>
    %43 = vector.extract_strided_slice %40 {offsets = [0, 1, 0, 0], sizes = [8, 1, 8, 512], strides = [1, 1, 1, 1]} : vector<8x2x8x512xbf16> to vector<8x1x8x512xbf16>
    %44 = vector.shape_cast %43 : vector<8x1x8x512xbf16> to vector<8x8x512xbf16>
    %cst_16 = arith.constant 0.000000e+00 : bf16
    %45 = vector.broadcast %cst_16 : bf16 to vector<1x8x512xbf16>
    %46 = vector.extract_strided_slice %44 {offsets = [0, 0, 0], sizes = [7, 8, 512], strides = [1, 1, 1]} : vector<8x8x512xbf16> to vector<7x8x512xbf16>
    %47 = tpu.concatenate %45, %46 in 0 : vector<1x8x512xbf16>, vector<7x8x512xbf16> -> vector<8x8x512xbf16>
    %48 = tpu.concatenate %47, %42, %44 in 2 : vector<8x8x512xbf16>, vector<8x8x512xbf16>, vector<8x8x512xbf16> -> vector<8x8x1536xbf16>
    %49 = vector.shape_cast %48 : vector<8x8x1536xbf16> to vector<64x1536xbf16>
    %c0_17 = arith.constant 0 : index
    %c0_18 = arith.constant 0 : index
    %50 = vector.load %arg6[%c0_17, %c0_18] : memref<1536x512xbf16, #tpu.memory_space<vmem>>, vector<1536x512xbf16>
    %cst_19 = arith.constant dense<0.000000e+00> : vector<64x512xf32>
    %51 = tpu.matmul %49, %50, %cst_19 {dimension_numbers = #tpu.dot_dimension_numbers<[1], [0], [0], [1], [0, 0, 1, 1], [], []>} : vector<64x1536xbf16>, vector<1536x512xbf16>, vector<64x512xf32> -> vector<64x512xf32>
    %c0_20 = arith.constant 0 : index
    %c0_21 = arith.constant 0 : index
    %52 = vector.load %arg7[%c0_20, %c0_21] : memref<1x512xf32, #tpu.memory_space<vmem>>, vector<1x512xf32>
    %53 = vector.broadcast %52 : vector<1x512xf32> to vector<64x512xf32>
    %54 = arith.addf %51, %53 : vector<64x512xf32>
    %cst_22 = arith.constant 0.000000e+00 : f32
    %55 = vector.broadcast %cst_22 : f32 to vector<64x512xf32>
    %56 = arith.maximumf %54, %55 : vector<64x512xf32>
    %57 = arith.truncf %56 : vector<64x512xf32> to vector<64x512xbf16>
    %58 = vector.shape_cast %57 : vector<64x512xbf16> to vector<8x8x512xbf16>
    %59 = vector.extract_strided_slice %58 {offsets = [0, 0, 0], sizes = [1, 8, 512], strides = [1, 1, 1]} : vector<8x8x512xbf16> to vector<1x8x512xbf16>
    %60 = vector.shape_cast %59 : vector<1x8x512xbf16> to vector<8x512xbf16>
    %61 = vector.extract_strided_slice %58 {offsets = [1, 0, 0], sizes = [1, 8, 512], strides = [1, 1, 1]} : vector<8x8x512xbf16> to vector<1x8x512xbf16>
    %62 = vector.shape_cast %61 : vector<1x8x512xbf16> to vector<8x512xbf16>
    %63 = vector.extract_strided_slice %58 {offsets = [2, 0, 0], sizes = [1, 8, 512], strides = [1, 1, 1]} : vector<8x8x512xbf16> to vector<1x8x512xbf16>
    %64 = vector.shape_cast %63 : vector<1x8x512xbf16> to vector<8x512xbf16>
    %65 = vector.extract_strided_slice %58 {offsets = [3, 0, 0], sizes = [1, 8, 512], strides = [1, 1, 1]} : vector<8x8x512xbf16> to vector<1x8x512xbf16>
    %66 = vector.shape_cast %65 : vector<1x8x512xbf16> to vector<8x512xbf16>
    %67 = vector.extract_strided_slice %58 {offsets = [4, 0, 0], sizes = [1, 8, 512], strides = [1, 1, 1]} : vector<8x8x512xbf16> to vector<1x8x512xbf16>
    %68 = vector.shape_cast %67 : vector<1x8x512xbf16> to vector<8x512xbf16>
    %69 = vector.extract_strided_slice %58 {offsets = [5, 0, 0], sizes = [1, 8, 512], strides = [1, 1, 1]} : vector<8x8x512xbf16> to vector<1x8x512xbf16>
    %70 = vector.shape_cast %69 : vector<1x8x512xbf16> to vector<8x512xbf16>
    %71 = vector.extract_strided_slice %58 {offsets = [6, 0, 0], sizes = [1, 8, 512], strides = [1, 1, 1]} : vector<8x8x512xbf16> to vector<1x8x512xbf16>
    %72 = vector.shape_cast %71 : vector<1x8x512xbf16> to vector<8x512xbf16>
    %73 = vector.extract_strided_slice %58 {offsets = [7, 0, 0], sizes = [1, 8, 512], strides = [1, 1, 1]} : vector<8x8x512xbf16> to vector<1x8x512xbf16>
    %74 = vector.shape_cast %73 : vector<1x8x512xbf16> to vector<8x512xbf16>
    %75 = tpu.concatenate %60, %62, %64, %66, %68, %70, %72, %74 in 1 : vector<8x512xbf16>, vector<8x512xbf16>, vector<8x512xbf16>, vector<8x512xbf16>, vector<8x512xbf16>, vector<8x512xbf16>, vector<8x512xbf16>, vector<8x512xbf16> -> vector<8x4096xbf16>
    %c0_23 = arith.constant 0 : index
    %c0_24 = arith.constant 0 : index
    %76 = vector.load %arg8[%c0_23, %c0_24] : memref<4096x128xbf16, #tpu.memory_space<vmem>>, vector<4096x128xbf16>
    %cst_25 = arith.constant dense<0.000000e+00> : vector<8x128xf32>
    %77 = tpu.matmul %75, %76, %cst_25 {dimension_numbers = #tpu.dot_dimension_numbers<[1], [0], [0], [1], [0, 0, 1, 1], [], []>} : vector<8x4096xbf16>, vector<4096x128xbf16>, vector<8x128xf32> -> vector<8x128xf32>
    %c0_26 = arith.constant 0 : index
    %c0_27 = arith.constant 0 : index
    %78 = vector.load %arg9[%c0_26, %c0_27] : memref<1x128xf32, #tpu.memory_space<vmem>>, vector<1x128xf32>
    %79 = vector.broadcast %78 : vector<1x128xf32> to vector<8x128xf32>
    %80 = arith.addf %77, %79 : vector<8x128xf32>
    %cst_28 = arith.constant 0.000000e+00 : f32
    %81 = vector.broadcast %cst_28 : f32 to vector<8x128xf32>
    %82 = arith.cmpf ogt, %80, %81 : vector<8x128xf32>
    %83 = arith.extui %82 : vector<8x128xi1> to vector<8x128xi32>
    %c0_29 = arith.constant 0 : index
    %c0_30 = arith.constant 0 : index
    %84 = vector.load %arg10[%c0_29, %c0_30] : memref<8x128xi32, #tpu.memory_space<vmem>>, vector<8x128xi32>
    tpu.vector_store %arg10[%c0_29, %c0_30], %83 {strides = array<i32>} : memref<8x128xi32, #tpu.memory_space<vmem>>, vector<8x128xi32>,
    return
  }
  func.func @transform_0(%arg0: i32) -> (i32, i32, i32, i32) {
    %c0_i32 = arith.constant 0 : i32
    %c0_i32_0 = arith.constant 0 : i32
    %c0_i32_1 = arith.constant 0 : i32
    %c0_i32_2 = arith.constant 0 : i32
    return %arg0, %c0_i32, %c0_i32_0, %c0_i32_1 : i32, i32, i32, i32
  }
  func.func @transform_1(%arg0: i32) -> (i32, i32) {
    %c0_i32 = arith.constant 0 : i32
    %c0_i32_0 = arith.constant 0 : i32
    %c0_i32_1 = arith.constant 0 : i32
    return %c0_i32, %c0_i32_0 : i32, i32
  }
  func.func @transform_2(%arg0: i32) -> (i32, i32) {
    %c0_i32 = arith.constant 0 : i32
    %c0_i32_0 = arith.constant 0 : i32
    %c0_i32_1 = arith.constant 0 : i32
    return %c0_i32, %c0_i32_0 : i32, i32
  }
  func.func @transform_3(%arg0: i32) -> (i32, i32) {
    %c0_i32 = arith.constant 0 : i32
    %c0_i32_0 = arith.constant 0 : i32
    %c0_i32_1 = arith.constant 0 : i32
    return %c0_i32, %c0_i32_0 : i32, i32
  }
  func.func @transform_4(%arg0: i32) -> (i32, i32) {
    %c0_i32 = arith.constant 0 : i32
    %c0_i32_0 = arith.constant 0 : i32
    %c0_i32_1 = arith.constant 0 : i32
    return %c0_i32, %c0_i32_0 : i32, i32
  }
  func.func @transform_5(%arg0: i32) -> (i32, i32) {
    %c0_i32 = arith.constant 0 : i32
    %c0_i32_0 = arith.constant 0 : i32
    %c0_i32_1 = arith.constant 0 : i32
    return %c0_i32, %c0_i32_0 : i32, i32
  }
  func.func @transform_6(%arg0: i32) -> (i32, i32) {
    %c0_i32 = arith.constant 0 : i32
    %c0_i32_0 = arith.constant 0 : i32
    %c0_i32_1 = arith.constant 0 : i32
    return %c0_i32, %c0_i32_0 : i32, i32
  }
  func.func @transform_7(%arg0: i32) -> (i32, i32) {
    %c0_i32 = arith.constant 0 : i32
    %c0_i32_0 = arith.constant 0 : i32
    %c0_i32_1 = arith.constant 0 : i32
    return %c0_i32, %c0_i32_0 : i32, i32
  }
  func.func @transform_8(%arg0: i32) -> (i32, i32) {
    %c0_i32 = arith.constant 0 : i32
    %c0_i32_0 = arith.constant 0 : i32
    %c0_i32_1 = arith.constant 0 : i32
    return %c0_i32, %c0_i32_0 : i32, i32
  }
  func.func @transform_9(%arg0: i32) -> (i32, i32) {
    %c0_i32 = arith.constant 0 : i32
    %c0_i32_0 = arith.constant 0 : i32
    return %arg0, %c0_i32 : i32, i32
  }
}

</mosaic_0001>

<llo_original>
// kernel: tile.18
$region0: #{tile.18}
  #allocation0 [shape = 's32[1]{0}', space=sflag, size = 0x4, scoped, tag = 'scoped memory for tile.18']
  %s0 = inlined_call_operand.vmem [shape: f32[16], index: 0, kind: input, shape index: {}]
  %s1 = inlined_call_operand.vmem [shape: f32[32,16], index: 1, kind: output, shape index: {}]
  // Predicated region
  $region2: #{tile.18} parent=0 // pred_check
    _
  $region3: #{tile.18} parent=0 // pred_check_branch
    %3 = sbr.rel (0) target = $region5
  $region4: #{tile.18} parent=0 // pred_region
    _
  $region5: #{tile.18} parent=0 // pred_fallthru
    _
  %v4 = vld [vmem:[%s0] ss:$0 sm:$0xff]
  %5 = vst [vmem:[%s1] sm:$0xff] %v4
  %s6 = scalar_lea.vmem %s1, 8
  %7 = vst [vmem:[%s6] sm:$0xff] %v4
  %s8 = scalar_lea.vmem %s1, 16
  %9 = vst [vmem:[%s8] sm:$0xff] %v4
  %s10 = scalar_lea.vmem %s1, 24
  %11 = vst [vmem:[%s10] sm:$0xff] %v4

// kernel: tile.19
$region0: #{tile.19}
  %s0 = inlined_call_operand.vmem [shape: f32[32,16], index: 0, kind: input, shape index: {}]
  %s1 = inlined_call_operand.vmem [shape: f32[1,512], index: 1, kind: output, shape index: {}]
  $region1: #{tile.19} parent=0
    #allocation0 [shape = 'u8[16384]{0}', space=vmem, size = 0x4000, scoped, tag = 'scoped mem for output reshape']
    %v2 = vld [vmem:[%s0] ss:$8 sm:$0xf]
    %vm3 = vcmask 130048
    %4 = vst.msk [vmem:[#allocation0] ss:$8 sm:$0xf] %vm3, %v2
    %s5 = scalar_lea.vmem %s0, 7
    %v6 = vld [vmem:[%s5] ss:$8 sm:$0xf]
    %7 = vrot.lane.b32.xlu0 %v6, 112
    %v8 = vpop.permute.xlu0 %7
    %vm9 = vcmask 1048448
    %10 = vst.msk [vmem:[#allocation0] ss:$8 sm:$0xf] %vm9, %v8
    %s11 = scalar_lea.vmem %s0, 6
    %v12 = vld [vmem:[%s11] ss:$8 sm:$0xf]
    %13 = vrot.lane.b32.xlu0 %v12, 96
    %v14 = vpop.permute.xlu0 %13
    %vm15 = vcmask 917248
    %16 = vst.msk [vmem:[#allocation0] ss:$8 sm:$0xf] %vm15, %v14
    %s17 = scalar_lea.vmem %s0, 5
    %v18 = vld [vmem:[%s17] ss:$8 sm:$0xf]
    %19 = vrot.lane.b32.xlu0 %v18, 80
    %v20 = vpop.permute.xlu0 %19
    %vm21 = vcmask 786048
    %22 = vst.msk [vmem:[#allocation0] ss:$8 sm:$0xf] %vm21, %v20
    %s23 = scalar_lea.vmem %s0, 4
    %v24 = vld [vmem:[%s23] ss:$8 sm:$0xf]
    %25 = vrot.lane.b32.xlu0 %v24, 64
    %v26 = vpop.permute.xlu0 %25
    %vm27 = vcmask 654848
    %28 = vst.msk [vmem:[#allocation0] ss:$8 sm:$0xf] %vm27, %v26
    %s29 = scalar_lea.vmem %s0, 3
    %v30 = vld [vmem:[%s29] ss:$8 sm:$0xf]
    %31 = vrot.lane.b32.xlu0 %v30, 48
    %v32 = vpop.permute.xlu0 %31
    %vm33 = vcmask 523648
    %34 = vst.msk [vmem:[#allocation0] ss:$8 sm:$0xf] %vm33, %v32
    %s35 = scalar_lea.vmem %s0, 2
    %v36 = vld [vmem:[%s35] ss:$8 sm:$0xf]
    %37 = vrot.lane.b32.xlu0 %v36, 32
    %v38 = vpop.permute.xlu0 %37
    %vm39 = vcmask 392448
    %40 = vst.msk [vmem:[#allocation0] ss:$8 sm:$0xf] %vm39, %v38
    %s41 = scalar_lea.vmem %s0, 1
    %v42 = vld [vmem:[%s41] ss:$8 sm:$0xf]
    %43 = vrot.lane.b32.xlu0 %v42, 16
    %v44 = vpop.permute.xlu0 %43
    %vm45 = vcmask 261248
    %46 = vst.msk [vmem:[#allocation0] ss:$8 sm:$0xf] %vm45, %v44
    %s48 = sshllo.u32 0, 1
    %v50 = vld [vmem:[#allocation0] sm:%s48]
    %s51 = sshllo.u32 0, 1
    %52 = vst [vmem:[%s1] sm:%s51] %v50
    %s53 = scalar_lea.vmem [#allocation0], 8
    %v54 = vld [vmem:[%s53] sm:%s48]
    %s55 = sshllo.u32 0, 1
    %s56 = scalar_lea.vmem %s1, 1
    %57 = vst [vmem:[%s56] sm:%s55] %v54
    %s58 = scalar_lea.vmem [#allocation0], 16
    %v59 = vld [vmem:[%s58] sm:%s48]
    %s60 = sshllo.u32 0, 1
    %s61 = smul.addr 1, 2
    %s62 = scalar_lea.vmem %s1, %s61
    %63 = vst [vmem:[%s62] sm:%s60] %v59
    %s64 = scalar_lea.vmem [#allocation0], 24
    %v65 = vld [vmem:[%s64] sm:%s48]
    %s66 = sshllo.u32 0, 1
    %s67 = smul.addr 1, 3
    %s68 = scalar_lea.vmem %s1, %s67
    %69 = vst [vmem:[%s68] sm:%s66] %v65

// kernel: tile.23
$region0: #{tile.23}
  #allocation0 [shape = 's32[1]{0}', space=sflag, size = 0x4, scoped, tag = 'scoped memory for tile.23']
  %s0 = inlined_call_operand.vmem [shape: f32[32], index: 0, kind: input, shape index: {}]
  %s1 = inlined_call_operand.vmem [shape: f32[16,32], index: 1, kind: output, shape index: {}]
  // Predicated region
  $region2: #{tile.23} parent=0 // pred_check
    _
  $region3: #{tile.23} parent=0 // pred_check_branch
    %3 = sbr.rel (0) target = $region5
  $region4: #{tile.23} parent=0 // pred_region
    _
  $region5: #{tile.23} parent=0 // pred_fallthru
    _
  %v4 = vld [vmem:[%s0] ss:$0 sm:$0xff]
  %5 = vst [vmem:[%s1] sm:$0xff] %v4
  %s6 = scalar_lea.vmem %s1, 8
  %7 = vst [vmem:[%s6] sm:$0xff] %v4

// kernel: tile.24
$region0: #{tile.24}
  %s0 = inlined_call_operand.vmem [shape: f32[16,32], index: 0, kind: input, shape index: {}]
  %s1 = inlined_call_operand.vmem [shape: f32[1,512], index: 1, kind: output, shape index: {}]
  $region1: #{tile.24} parent=0
    #allocation0 [shape = 'u8[16384]{0}', space=vmem, size = 0x4000, scoped, tag = 'scoped mem for output reshape']
    %v2 = vld [vmem:[%s0] ss:$4 sm:$0xf]
    %vm3 = vcmask 261120
    %4 = vst.msk [vmem:[#allocation0] ss:$8 sm:$0xf] %vm3, %v2
    %s5 = scalar_lea.vmem %s0, 3
    %v6 = vld [vmem:[%s5] ss:$4 sm:$0xf]
    %7 = vrot.lane.b32.xlu0 %v6, 96
    %v8 = vpop.permute.xlu0 %7
    %vm9 = vcmask 1048320
    %10 = vst.msk [vmem:[#allocation0] ss:$8 sm:$0xf] %vm9, %v8
    %s11 = scalar_lea.vmem %s0, 2
    %v12 = vld [vmem:[%s11] ss:$4 sm:$0xf]
    %13 = vrot.lane.b32.xlu0 %v12, 64
    %v14 = vpop.permute.xlu0 %13
    %vm15 = vcmask 785920
    %16 = vst.msk [vmem:[#allocation0] ss:$8 sm:$0xf] %vm15, %v14
    %s17 = scalar_lea.vmem %s0, 1
    %v18 = vld [vmem:[%s17] ss:$4 sm:$0xf]
    %19 = vrot.lane.b32.xlu0 %v18, 32
    %v20 = vpop.permute.xlu0 %19
    %vm21 = vcmask 523520
    %22 = vst.msk [vmem:[#allocation0] ss:$8 sm:$0xf] %vm21, %v20
    %s24 = sshllo.u32 0, 1
    %v26 = vld [vmem:[#allocation0] sm:%s24]
    %s27 = sshllo.u32 0, 1
    %28 = vst [vmem:[%s1] sm:%s27] %v26
    %s29 = scalar_lea.vmem [#allocation0], 8
    %v30 = vld [vmem:[%s29] sm:%s24]
    %s31 = sshllo.u32 0, 1
    %s32 = scalar_lea.vmem %s1, 1
    %33 = vst [vmem:[%s32] sm:%s31] %v30
    %s34 = scalar_lea.vmem [#allocation0], 16
    %v35 = vld [vmem:[%s34] sm:%s24]
    %s36 = sshllo.u32 0, 1
    %s37 = smul.addr 1, 2
    %s38 = scalar_lea.vmem %s1, %s37
    %39 = vst [vmem:[%s38] sm:%s36] %v35
    %s40 = scalar_lea.vmem [#allocation0], 24
    %v41 = vld [vmem:[%s40] sm:%s24]
    %s42 = sshllo.u32 0, 1
    %s43 = smul.addr 1, 3
    %s44 = scalar_lea.vmem %s1, %s43
    %45 = vst [vmem:[%s44] sm:%s42] %v41

// kernel: tile.28
$region0: #{tile.28}
  #allocation0 [shape = 's32[1]{0}', space=sflag, size = 0x4, scoped, tag = 'scoped memory for tile.28']
  %s0 = inlined_call_operand.vmem [shape: f32[64], index: 0, kind: input, shape index: {}]
  %s1 = inlined_call_operand.vmem [shape: f32[8,64], index: 1, kind: output, shape index: {}]
  // Predicated region
  $region2: #{tile.28} parent=0 // pred_check
    _
  $region3: #{tile.28} parent=0 // pred_check_branch
    %3 = sbr.rel (0) target = $region5
  $region4: #{tile.28} parent=0 // pred_region
    _
  $region5: #{tile.28} parent=0 // pred_fallthru
    _
  %v4 = vld [vmem:[%s0] ss:$0 sm:$0xff]
  %5 = vst [vmem:[%s1] sm:$0xff] %v4

// kernel: tile.29
$region0: #{tile.29}
  %s0 = inlined_call_operand.vmem [shape: f32[8,64], index: 0, kind: input, shape index: {}]
  %s1 = inlined_call_operand.vmem [shape: f32[1,512], index: 1, kind: output, shape index: {}]
  $region1: #{tile.29} parent=0
    #allocation0 [shape = 'u8[16384]{0}', space=vmem, size = 0x4000, scoped, tag = 'scoped mem for output reshape']
    %v2 = vld [vmem:[%s0] ss:$2 sm:$0xf]
    %vm3 = vcmask 523264
    %4 = vst.msk [vmem:[#allocation0] ss:$8 sm:$0xf] %vm3, %v2
    %s5 = scalar_lea.vmem %s0, 1
    %v6 = vld [vmem:[%s5] ss:$2 sm:$0xf]
    %7 = vrot.lane.b32.xlu0 %v6, 64
    %v8 = vpop.permute.xlu0 %7
    %vm9 = vcmask 1048064
    %10 = vst.msk [vmem:[#allocation0] ss:$8 sm:$0xf] %vm9, %v8
    %s12 = sshllo.u32 0, 1
    %v14 = vld [vmem:[#allocation0] sm:%s12]
    %s15 = sshllo.u32 0, 1
    %16 = vst [vmem:[%s1] sm:%s15] %v14
    %s17 = scalar_lea.vmem [#allocation0], 8
    %v18 = vld [vmem:[%s17] sm:%s12]
    %s19 = sshllo.u32 0, 1
    %s20 = scalar_lea.vmem %s1, 1
    %21 = vst [vmem:[%s20] sm:%s19] %v18
    %s22 = scalar_lea.vmem [#allocation0], 16
    %v23 = vld [vmem:[%s22] sm:%s12]
    %s24 = sshllo.u32 0, 1
    %s25 = smul.addr 1, 2
    %s26 = scalar_lea.vmem %s1, %s25
    %27 = vst [vmem:[%s26] sm:%s24] %v23
    %s28 = scalar_lea.vmem [#allocation0], 24
    %v29 = vld [vmem:[%s28] sm:%s12]
    %s30 = sshllo.u32 0, 1
    %s31 = smul.addr 1, 3
    %s32 = scalar_lea.vmem %s1, %s31
    %33 = vst [vmem:[%s32] sm:%s30] %v29

// kernel: watermark_extractor.1
$region0: #{watermark_extractor.1}
  #allocation0 [shape = 'u32[]', space=smem, size = 0x4, offset = 0x4, fixed_abs, tag = 'smem constant byte address 0x4 - core index']
  #allocation1 [shape = 'u32[144,128]{1,0:T(1,128)}', space=vmem, size = 0x12000, scoped, tag = 'internal scratch']
  %s0 = inlined_call_operand.vmem [shape: bf16[1,64,8,256], index: 0, kind: input, shape index: {}]
  %s1 = inlined_call_operand.vmem [shape: bf16[768,512], index: 1, kind: input, shape index: {}]
  %s2 = inlined_call_operand.vmem [shape: f32[1,512], index: 2, kind: input, shape index: {}]
  %s3 = inlined_call_operand.vmem [shape: bf16[1536,512], index: 3, kind: input, shape index: {}]
  %s4 = inlined_call_operand.vmem [shape: f32[1,512], index: 4, kind: input, shape index: {}]
  %s5 = inlined_call_operand.vmem [shape: bf16[1536,512], index: 5, kind: input, shape index: {}]
  %s6 = inlined_call_operand.vmem [shape: f32[1,512], index: 6, kind: input, shape index: {}]
  %s7 = inlined_call_operand.vmem [shape: bf16[4096,128], index: 7, kind: input, shape index: {}]
  %s8 = inlined_call_operand.vmem [shape: f32[1,128], index: 8, kind: input, shape index: {}]
  %s9 = inlined_call_operand.vmem [shape: s32[8,128], index: 9, kind: output, shape index: {}]
  %s10 = sld [smem:[#allocation0]]
  $region46: #{watermark_extractor.1} parent=0
    _
  %s12 = ssub.s32 1, %s10
  %s13 = scalar_select 0, %s12, %s10
  // Predicated region
  $region2: #{watermark_extractor.1} parent=0 // pred_check
    _
  $region3: #{watermark_extractor.1} parent=0 // pred_check_branch
    %15 = sbr.rel (0) target = $region5
  $region4: #{watermark_extractor.1} parent=0 // pred_region
    _
  $region5: #{watermark_extractor.1} parent=0 // pred_fallthru
    _
  // Predicated region
  $region6: #{watermark_extractor.1} parent=0 // pred_check
    _
  $region7: #{watermark_extractor.1} parent=0 // pred_check_branch
    %17 = sbr.rel (0) target = $region9
  $region8: #{watermark_extractor.1} parent=0 // pred_region
    _
  $region9: #{watermark_extractor.1} parent=0 // pred_fallthru
    _
  // Predicated region
  $region10: #{watermark_extractor.1} parent=0 // pred_check
    _
  $region11: #{watermark_extractor.1} parent=0 // pred_check_branch
    %19 = sbr.rel (0) target = $region13
  $region12: #{watermark_extractor.1} parent=0 // pred_region
    _
  $region13: #{watermark_extractor.1} parent=0 // pred_fallthru
    _
  // Predicated region
  $region14: #{watermark_extractor.1} parent=0 // pred_check
    _
  $region15: #{watermark_extractor.1} parent=0 // pred_check_branch
    %21 = sbr.rel (0) target = $region17
  $region16: #{watermark_extractor.1} parent=0 // pred_region
    _
  $region17: #{watermark_extractor.1} parent=0 // pred_fallthru
    _
  // Predicated region
  $region18: #{watermark_extractor.1} parent=0 // pred_check
    _
  $region19: #{watermark_extractor.1} parent=0 // pred_check_branch
    %23 = sbr.rel (0) target = $region21
  $region20: #{watermark_extractor.1} parent=0 // pred_region
    _
  $region21: #{watermark_extractor.1} parent=0 // pred_fallthru
    _
  // Predicated region
  $region22: #{watermark_extractor.1} parent=0 // pred_check
    _
  $region23: #{watermark_extractor.1} parent=0 // pred_check_branch
    %25 = sbr.rel (0) target = $region25
  $region24: #{watermark_extractor.1} parent=0 // pred_region
    _
  $region25: #{watermark_extractor.1} parent=0 // pred_fallthru
    _
  // Predicated region
  $region26: #{watermark_extractor.1} parent=0 // pred_check
    _
  $region27: #{watermark_extractor.1} parent=0 // pred_check_branch
    %27 = sbr.rel (0) target = $region29
  $region28: #{watermark_extractor.1} parent=0 // pred_region
    _
  $region29: #{watermark_extractor.1} parent=0 // pred_fallthru
    _
  // Predicated region
  $region30: #{watermark_extractor.1} parent=0 // pred_check
    _
  $region31: #{watermark_extractor.1} parent=0 // pred_check_branch
    %29 = sbr.rel (0) target = $region33
  $region32: #{watermark_extractor.1} parent=0 // pred_region
    _
  $region33: #{watermark_extractor.1} parent=0 // pred_fallthru
    _
  // Predicated region
  $region34: #{watermark_extractor.1} parent=0 // pred_check
    _
  $region35: #{watermark_extractor.1} parent=0 // pred_check_branch
    %31 = sbr.rel (0) target = $region37
  $region36: #{watermark_extractor.1} parent=0 // pred_region
    _
  $region37: #{watermark_extractor.1} parent=0 // pred_fallthru
    _
  %v33 = vld [vmem:[%s0] sm:$0xff]
  %v34 = vld [vmem:[%s0 + $0x8] sm:$0xff]
  %v35 = vld [vmem:[%s0 + $0x10] sm:$0xff]
  %v36 = vld [vmem:[%s0 + $0x18] sm:$0xff]
  %v37 = vld [vmem:[%s0 + $0x20] sm:$0xff]
  %v38 = vld [vmem:[%s0 + $0x28] sm:$0xff]
  %v39 = vld [vmem:[%s0 + $0x30] sm:$0xff]
  %v40 = vld [vmem:[%s0 + $0x38] sm:$0xff]
  %v41 = vld [vmem:[%s0 + $0x40] sm:$0xff]
  %v42 = vld [vmem:[%s0 + $0x48] sm:$0xff]
  %v43 = vld [vmem:[%s0 + $0x50] sm:$0xff]
  %v44 = vld [vmem:[%s0 + $0x58] sm:$0xff]
  %v45 = vld [vmem:[%s0 + $0x60] sm:$0xff]
  %v46 = vld [vmem:[%s0 + $0x68] sm:$0xff]
  %v47 = vld [vmem:[%s0 + $0x70] sm:$0xff]
  %v48 = vld [vmem:[%s0 + $0x78] sm:$0xff]
  %v49 = vld [vmem:[%s0 + $0x80] sm:$0xff]
  %v50 = vld [vmem:[%s0 + $0x88] sm:$0xff]
  %v51 = vld [vmem:[%s0 + $0x90] sm:$0xff]
  %v52 = vld [vmem:[%s0 + $0x98] sm:$0xff]
  %v53 = vld [vmem:[%s0 + $0xa0] sm:$0xff]
  %v54 = vld [vmem:[%s0 + $0xa8] sm:$0xff]
  %v55 = vld [vmem:[%s0 + $0xb0] sm:$0xff]
  %v56 = vld [vmem:[%s0 + $0xb8] sm:$0xff]
  %v57 = vld [vmem:[%s0 + $0xc0] sm:$0xff]
  %v58 = vld [vmem:[%s0 + $0xc8] sm:$0xff]
  %v59 = vld [vmem:[%s0 + $0xd0] sm:$0xff]
  %v60 = vld [vmem:[%s0 + $0xd8] sm:$0xff]
  %v61 = vld [vmem:[%s0 + $0xe0] sm:$0xff]
  %v62 = vld [vmem:[%s0 + $0xe8] sm:$0xff]
  %v63 = vld [vmem:[%s0 + $0xf0] sm:$0xff]
  %v64 = vld [vmem:[%s0 + $0xf8] sm:$0xff]
  %v65 = vld [vmem:[%s0 + $0x100] sm:$0xff]
  %v66 = vld [vmem:[%s0 + $0x108] sm:$0xff]
  %v67 = vld [vmem:[%s0 + $0x110] sm:$0xff]
  %v68 = vld [vmem:[%s0 + $0x118] sm:$0xff]
  %v69 = vld [vmem:[%s0 + $0x120] sm:$0xff]
  %v70 = vld [vmem:[%s0 + $0x128] sm:$0xff]
  %v71 = vld [vmem:[%s0 + $0x130] sm:$0xff]
  %v72 = vld [vmem:[%s0 + $0x138] sm:$0xff]
  %v73 = vld [vmem:[%s0 + $0x140] sm:$0xff]
  %v74 = vld [vmem:[%s0 + $0x148] sm:$0xff]
  %v75 = vld [vmem:[%s0 + $0x150] sm:$0xff]
  %v76 = vld [vmem:[%s0 + $0x158] sm:$0xff]
  %v77 = vld [vmem:[%s0 + $0x160] sm:$0xff]
  %v78 = vld [vmem:[%s0 + $0x168] sm:$0xff]
  %v79 = vld [vmem:[%s0 + $0x170] sm:$0xff]
  %v80 = vld [vmem:[%s0 + $0x178] sm:$0xff]
  %v81 = vld [vmem:[%s0 + $0x180] sm:$0xff]
  %v82 = vld [vmem:[%s0 + $0x188] sm:$0xff]
  %v83 = vld [vmem:[%s0 + $0x190] sm:$0xff]
  %v84 = vld [vmem:[%s0 + $0x198] sm:$0xff]
  %v85 = vld [vmem:[%s0 + $0x1a0] sm:$0xff]
  %v86 = vld [vmem:[%s0 + $0x1a8] sm:$0xff]
  %v87 = vld [vmem:[%s0 + $0x1b0] sm:$0xff]
  %v88 = vld [vmem:[%s0 + $0x1b8] sm:$0xff]
  %v89 = vld [vmem:[%s0 + $0x1c0] sm:$0xff]
  %v90 = vld [vmem:[%s0 + $0x1c8] sm:$0xff]
  %v91 = vld [vmem:[%s0 + $0x1d0] sm:$0xff]
  %v92 = vld [vmem:[%s0 + $0x1d8] sm:$0xff]
  %v93 = vld [vmem:[%s0 + $0x1e0] sm:$0xff]
  %v94 = vld [vmem:[%s0 + $0x1e8] sm:$0xff]
  %v95 = vld [vmem:[%s0 + $0x1f0] sm:$0xff]
  %v96 = vld [vmem:[%s0 + $0x1f8] sm:$0xff]
  %v128 = vunpack.c.l.b16 %v34
  %v129 = vunpack.c.h.b16 %v34
  %v130 = vunpack.c.l.b16 %v36
  %v131 = vunpack.c.h.b16 %v36
  %v132 = vunpack.c.l.b16 %v38
  %v133 = vunpack.c.h.b16 %v38
  %v134 = vunpack.c.l.b16 %v40
  %v135 = vunpack.c.h.b16 %v40
  %v136 = vunpack.c.l.b16 %v42
  %v137 = vunpack.c.h.b16 %v42
  %v138 = vunpack.c.l.b16 %v44
  %v139 = vunpack.c.h.b16 %v44
  %v140 = vunpack.c.l.b16 %v46
  %v141 = vunpack.c.h.b16 %v46
  %v142 = vunpack.c.l.b16 %v48
  %v143 = vunpack.c.h.b16 %v48
  %v144 = vunpack.c.l.b16 %v50
  %v145 = vunpack.c.h.b16 %v50
  %v146 = vunpack.c.l.b16 %v52
  %v147 = vunpack.c.h.b16 %v52
  %v148 = vunpack.c.l.b16 %v54
  %v149 = vunpack.c.h.b16 %v54
  %v150 = vunpack.c.l.b16 %v56
  %v151 = vunpack.c.h.b16 %v56
  %v152 = vunpack.c.l.b16 %v58
  %v153 = vunpack.c.h.b16 %v58
  %v154 = vunpack.c.l.b16 %v60
  %v155 = vunpack.c.h.b16 %v60
  %v156 = vunpack.c.l.b16 %v62
  %v157 = vunpack.c.h.b16 %v62
  %v158 = vunpack.c.l.b16 %v64
  %v159 = vunpack.c.h.b16 %v64
  %v160 = vunpack.c.l.b16 %v66
  %v161 = vunpack.c.h.b16 %v66
  %v162 = vunpack.c.l.b16 %v68
  %v163 = vunpack.c.h.b16 %v68
  %v164 = vunpack.c.l.b16 %v70
  %v165 = vunpack.c.h.b16 %v70
  %v166 = vunpack.c.l.b16 %v72
  %v167 = vunpack.c.h.b16 %v72
  %v168 = vunpack.c.l.b16 %v74
  %v169 = vunpack.c.h.b16 %v74
  %v170 = vunpack.c.l.b16 %v76
  %v171 = vunpack.c.h.b16 %v76
  %v172 = vunpack.c.l.b16 %v78
  %v173 = vunpack.c.h.b16 %v78
  %v174 = vunpack.c.l.b16 %v80
  %v175 = vunpack.c.h.b16 %v80
  %v176 = vunpack.c.l.b16 %v82
  %v177 = vunpack.c.h.b16 %v82
  %v178 = vunpack.c.l.b16 %v84
  %v179 = vunpack.c.h.b16 %v84
  %v180 = vunpack.c.l.b16 %v86
  %v181 = vunpack.c.h.b16 %v86
  %v182 = vunpack.c.l.b16 %v88
  %v183 = vunpack.c.h.b16 %v88
  %v184 = vunpack.c.l.b16 %v90
  %v185 = vunpack.c.h.b16 %v90
  %v186 = vunpack.c.l.b16 %v92
  %v187 = vunpack.c.h.b16 %v92
  %v188 = vunpack.c.l.b16 %v94
  %v189 = vunpack.c.h.b16 %v94
  %v222 = vunpack.c.l.b16 %v33
  %v223 = vunpack.c.h.b16 %v33
  %v224 = vunpack.c.l.b16 %v35
  %v225 = vunpack.c.h.b16 %v35
  %v226 = vunpack.c.l.b16 %v37
  %v227 = vunpack.c.h.b16 %v37
  %v228 = vunpack.c.l.b16 %v39
  %v229 = vunpack.c.h.b16 %v39
  %v230 = vunpack.c.l.b16 %v41
  %v231 = vunpack.c.h.b16 %v41
  %v232 = vunpack.c.l.b16 %v43
  %v233 = vunpack.c.h.b16 %v43
  %v234 = vunpack.c.l.b16 %v45
  %v235 = vunpack.c.h.b16 %v45
  %v236 = vunpack.c.l.b16 %v47
  %v237 = vunpack.c.h.b16 %v47
  %v238 = vunpack.c.l.b16 %v49
  %v239 = vunpack.c.h.b16 %v49
  %v240 = vunpack.c.l.b16 %v51
  %v241 = vunpack.c.h.b16 %v51
  %v242 = vunpack.c.l.b16 %v53
  %v243 = vunpack.c.h.b16 %v53
  %v244 = vunpack.c.l.b16 %v55
  %v245 = vunpack.c.h.b16 %v55
  %v246 = vunpack.c.l.b16 %v57
  %v247 = vunpack.c.h.b16 %v57
  %v248 = vunpack.c.l.b16 %v59
  %v249 = vunpack.c.h.b16 %v59
  %v250 = vunpack.c.l.b16 %v61
  %v251 = vunpack.c.h.b16 %v61
  %v252 = vunpack.c.l.b16 %v63
  %v253 = vunpack.c.h.b16 %v63
  %v254 = vunpack.c.l.b16 %v65
  %v255 = vunpack.c.h.b16 %v65
  %v256 = vunpack.c.l.b16 %v67
  %v257 = vunpack.c.h.b16 %v67
  %v258 = vunpack.c.l.b16 %v69
  %v259 = vunpack.c.h.b16 %v69
  %v260 = vunpack.c.l.b16 %v71
  %v261 = vunpack.c.h.b16 %v71
  %v262 = vunpack.c.l.b16 %v73
  %v263 = vunpack.c.h.b16 %v73
  %v264 = vunpack.c.l.b16 %v75
  %v265 = vunpack.c.h.b16 %v75
  %v266 = vunpack.c.l.b16 %v77
  %v267 = vunpack.c.h.b16 %v77
  %v268 = vunpack.c.l.b16 %v79
  %v269 = vunpack.c.h.b16 %v79
  %v270 = vunpack.c.l.b16 %v81
  %v271 = vunpack.c.h.b16 %v81
  %v272 = vunpack.c.l.b16 %v83
  %v273 = vunpack.c.h.b16 %v83
  %v274 = vunpack.c.l.b16 %v85
  %v275 = vunpack.c.h.b16 %v85
  %v276 = vunpack.c.l.b16 %v87
  %v277 = vunpack.c.h.b16 %v87
  %v278 = vunpack.c.l.b16 %v89
  %v279 = vunpack.c.h.b16 %v89
  %v280 = vunpack.c.l.b16 %v91
  %v281 = vunpack.c.h.b16 %v91
  %v282 = vunpack.c.l.b16 %v93
  %v283 = vunpack.c.h.b16 %v93
  %v284 = vunpack.c.l.b16 %v95
  %v285 = vunpack.c.h.b16 %v95
  %v287 = vunpack.c.l.b16 %v96
  %v288 = vunpack.c.h.b16 %v96
  %v290 = vunpack.c.l.b16 0
  %v291 = vld [vmem:[%s1] sm:$0xff]
  %v292 = vld [vmem:[%s1 + $0x8] sm:$0xff]
  %v293 = vld [vmem:[%s1 + $0x10] sm:$0xff]
  %v294 = vld [vmem:[%s1 + $0x18] sm:$0xff]
  %v295 = vld [vmem:[%s1 + $0x20] sm:$0xff]
  %v296 = vld [vmem:[%s1 + $0x28] sm:$0xff]
  %v297 = vld [vmem:[%s1 + $0x30] sm:$0xff]
  %v298 = vld [vmem:[%s1 + $0x38] sm:$0xff]
  %v299 = vld [vmem:[%s1 + $0x40] sm:$0xff]
  %v300 = vld [vmem:[%s1 + $0x48] sm:$0xff]
  %v301 = vld [vmem:[%s1 + $0x50] sm:$0xff]
  %v302 = vld [vmem:[%s1 + $0x58] sm:$0xff]
  %v303 = vld [vmem:[%s1 + $0x60] sm:$0xff]
  %v304 = vld [vmem:[%s1 + $0x68] sm:$0xff]
  %v305 = vld [vmem:[%s1 + $0x70] sm:$0xff]
  %v306 = vld [vmem:[%s1 + $0x78] sm:$0xff]
  %v307 = vld [vmem:[%s1 + $0x80] sm:$0xff]
  %v308 = vld [vmem:[%s1 + $0x88] sm:$0xff]
  %v309 = vld [vmem:[%s1 + $0x90] sm:$0xff]
  %v310 = vld [vmem:[%s1 + $0x98] sm:$0xff]
  %v311 = vld [vmem:[%s1 + $0xa0] sm:$0xff]
  %v312 = vld [vmem:[%s1 + $0xa8] sm:$0xff]
  %v313 = vld [vmem:[%s1 + $0xb0] sm:$0xff]
  %v314 = vld [vmem:[%s1 + $0xb8] sm:$0xff]
  %v315 = vld [vmem:[%s1 + $0xc0] sm:$0xff]
  %v316 = vld [vmem:[%s1 + $0xc8] sm:$0xff]
  %v317 = vld [vmem:[%s1 + $0xd0] sm:$0xff]
  %v318 = vld [vmem:[%s1 + $0xd8] sm:$0xff]
  %v319 = vld [vmem:[%s1 + $0xe0] sm:$0xff]
  %v320 = vld [vmem:[%s1 + $0xe8] sm:$0xff]
  %v321 = vld [vmem:[%s1 + $0xf0] sm:$0xff]
  %v322 = vld [vmem:[%s1 + $0xf8] sm:$0xff]
  %v323 = vld [vmem:[%s1 + $0x100] sm:$0xff]
  %v324 = vld [vmem:[%s1 + $0x108] sm:$0xff]
  %v325 = vld [vmem:[%s1 + $0x110] sm:$0xff]
  %v326 = vld [vmem:[%s1 + $0x118] sm:$0xff]
  %v327 = vld [vmem:[%s1 + $0x120] sm:$0xff]
  %v328 = vld [vmem:[%s1 + $0x128] sm:$0xff]
  %v329 = vld [vmem:[%s1 + $0x130] sm:$0xff]
  %v330 = vld [vmem:[%s1 + $0x138] sm:$0xff]
  %v331 = vld [vmem:[%s1 + $0x140] sm:$0xff]
  %v332 = vld [vmem:[%s1 + $0x148] sm:$0xff]
  %v333 = vld [vmem:[%s1 + $0x150] sm:$0xff]
  %v334 = vld [vmem:[%s1 + $0x158] sm:$0xff]
  %v335 = vld [vmem:[%s1 + $0x160] sm:$0xff]
  %v336 = vld [vmem:[%s1 + $0x168] sm:$0xff]
  %v337 = vld [vmem:[%s1 + $0x170] sm:$0xff]
  %v338 = vld [vmem:[%s1 + $0x178] sm:$0xff]
  %v339 = vld [vmem:[%s1 + $0x180] sm:$0xff]
  %v340 = vld [vmem:[%s1 + $0x188] sm:$0xff]
  %v341 = vld [vmem:[%s1 + $0x190] sm:$0xff]
  %v342 = vld [vmem:[%s1 + $0x198] sm:$0xff]
  %v343 = vld [vmem:[%s1 + $0x1a0] sm:$0xff]
  %v344 = vld [vmem:[%s1 + $0x1a8] sm:$0xff]
  %v345 = vld [vmem:[%s1 + $0x1b0] sm:$0xff]
  %v346 = vld [vmem:[%s1 + $0x1b8] sm:$0xff]
  %v347 = vld [vmem:[%s1 + $0x1c0] sm:$0xff]
  %v348 = vld [vmem:[%s1 + $0x1c8] sm:$0xff]
  %v349 = vld [vmem:[%s1 + $0x1d0] sm:$0xff]
  %v350 = vld [vmem:[%s1 + $0x1d8] sm:$0xff]
  %v351 = vld [vmem:[%s1 + $0x1e0] sm:$0xff]
  %v352 = vld [vmem:[%s1 + $0x1e8] sm:$0xff]
  %v353 = vld [vmem:[%s1 + $0x1f0] sm:$0xff]
  %v354 = vld [vmem:[%s1 + $0x1f8] sm:$0xff]
  %v355 = vld [vmem:[%s1 + $0x200] sm:$0xff]
  %v356 = vld [vmem:[%s1 + $0x208] sm:$0xff]
  %v357 = vld [vmem:[%s1 + $0x210] sm:$0xff]
  %v358 = vld [vmem:[%s1 + $0x218] sm:$0xff]
  %v359 = vld [vmem:[%s1 + $0x220] sm:$0xff]
  %v360 = vld [vmem:[%s1 + $0x228] sm:$0xff]
  %v361 = vld [vmem:[%s1 + $0x230] sm:$0xff]
  %v362 = vld [vmem:[%s1 + $0x238] sm:$0xff]
  %v363 = vld [vmem:[%s1 + $0x240] sm:$0xff]
  %v364 = vld [vmem:[%s1 + $0x248] sm:$0xff]
  %v365 = vld [vmem:[%s1 + $0x250] sm:$0xff]
  %v366 = vld [vmem:[%s1 + $0x258] sm:$0xff]
  %v367 = vld [vmem:[%s1 + $0x260] sm:$0xff]
  %v368 = vld [vmem:[%s1 + $0x268] sm:$0xff]
  %v369 = vld [vmem:[%s1 + $0x270] sm:$0xff]
  %v370 = vld [vmem:[%s1 + $0x278] sm:$0xff]
  %v371 = vld [vmem:[%s1 + $0x280] sm:$0xff]
  %v372 = vld [vmem:[%s1 + $0x288] sm:$0xff]
  %v373 = vld [vmem:[%s1 + $0x290] sm:$0xff]
  %v374 = vld [vmem:[%s1 + $0x298] sm:$0xff]
  %v375 = vld [vmem:[%s1 + $0x2a0] sm:$0xff]
  %v376 = vld [vmem:[%s1 + $0x2a8] sm:$0xff]
  %v377 = vld [vmem:[%s1 + $0x2b0] sm:$0xff]
  %v378 = vld [vmem:[%s1 + $0x2b8] sm:$0xff]
  %v379 = vld [vmem:[%s1 + $0x2c0] sm:$0xff]
  %v380 = vld [vmem:[%s1 + $0x2c8] sm:$0xff]
  %v381 = vld [vmem:[%s1 + $0x2d0] sm:$0xff]
  %v382 = vld [vmem:[%s1 + $0x2d8] sm:$0xff]
  %v383 = vld [vmem:[%s1 + $0x2e0] sm:$0xff]
  %v384 = vld [vmem:[%s1 + $0x2e8] sm:$0xff]
  %v385 = vld [vmem:[%s1 + $0x2f0] sm:$0xff]
  %v386 = vld [vmem:[%s1 + $0x2f8] sm:$0xff]
  %v387 = vld [vmem:[%s1 + $0x300] sm:$0xff]
  %v388 = vld [vmem:[%s1 + $0x308] sm:$0xff]
  %v389 = vld [vmem:[%s1 + $0x310] sm:$0xff]
  %v390 = vld [vmem:[%s1 + $0x318] sm:$0xff]
  %v391 = vld [vmem:[%s1 + $0x320] sm:$0xff]
  %v392 = vld [vmem:[%s1 + $0x328] sm:$0xff]
  %v393 = vld [vmem:[%s1 + $0x330] sm:$0xff]
  %v394 = vld [vmem:[%s1 + $0x338] sm:$0xff]
  %v395 = vld [vmem:[%s1 + $0x340] sm:$0xff]
  %v396 = vld [vmem:[%s1 + $0x348] sm:$0xff]
  %v397 = vld [vmem:[%s1 + $0x350] sm:$0xff]
  %v398 = vld [vmem:[%s1 + $0x358] sm:$0xff]
  %v399 = vld [vmem:[%s1 + $0x360] sm:$0xff]
  %v400 = vld [vmem:[%s1 + $0x368] sm:$0xff]
  %v401 = vld [vmem:[%s1 + $0x370] sm:$0xff]
  %v402 = vld [vmem:[%s1 + $0x378] sm:$0xff]
  %v403 = vld [vmem:[%s1 + $0x380] sm:$0xff]
  %v404 = vld [vmem:[%s1 + $0x388] sm:$0xff]
  %v405 = vld [vmem:[%s1 + $0x390] sm:$0xff]
  %v406 = vld [vmem:[%s1 + $0x398] sm:$0xff]
  %v407 = vld [vmem:[%s1 + $0x3a0] sm:$0xff]
  %v408 = vld [vmem:[%s1 + $0x3a8] sm:$0xff]
  %v409 = vld [vmem:[%s1 + $0x3b0] sm:$0xff]
  %v410 = vld [vmem:[%s1 + $0x3b8] sm:$0xff]
  %v411 = vld [vmem:[%s1 + $0x3c0] sm:$0xff]
  %v412 = vld [vmem:[%s1 + $0x3c8] sm:$0xff]
  %v413 = vld [vmem:[%s1 + $0x3d0] sm:$0xff]
  %v414 = vld [vmem:[%s1 + $0x3d8] sm:$0xff]
  %v415 = vld [vmem:[%s1 + $0x3e0] sm:$0xff]
  %v416 = vld [vmem:[%s1 + $0x3e8] sm:$0xff]
  %v417 = vld [vmem:[%s1 + $0x3f0] sm:$0xff]
  %v418 = vld [vmem:[%s1 + $0x3f8] sm:$0xff]
  %v419 = vld [vmem:[%s1 + $0x400] sm:$0xff]
  %v420 = vld [vmem:[%s1 + $0x408] sm:$0xff]
  %v421 = vld [vmem:[%s1 + $0x410] sm:$0xff]
  %v422 = vld [vmem:[%s1 + $0x418] sm:$0xff]
  %v423 = vld [vmem:[%s1 + $0x420] sm:$0xff]
  %v424 = vld [vmem:[%s1 + $0x428] sm:$0xff]
  %v425 = vld [vmem:[%s1 + $0x430] sm:$0xff]
  %v426 = vld [vmem:[%s1 + $0x438] sm:$0xff]
  %v427 = vld [vmem:[%s1 + $0x440] sm:$0xff]
  %v428 = vld [vmem:[%s1 + $0x448] sm:$0xff]
  %v429 = vld [vmem:[%s1 + $0x450] sm:$0xff]
  %v430 = vld [vmem:[%s1 + $0x458] sm:$0xff]
  %v431 = vld [vmem:[%s1 + $0x460] sm:$0xff]
  %v432 = vld [vmem:[%s1 + $0x468] sm:$0xff]
  %v433 = vld [vmem:[%s1 + $0x470] sm:$0xff]
  %v434 = vld [vmem:[%s1 + $0x478] sm:$0xff]
  %v435 = vld [vmem:[%s1 + $0x480] sm:$0xff]
  %v436 = vld [vmem:[%s1 + $0x488] sm:$0xff]
  %v437 = vld [vmem:[%s1 + $0x490] sm:$0xff]
  %v438 = vld [vmem:[%s1 + $0x498] sm:$0xff]
  %v439 = vld [vmem:[%s1 + $0x4a0] sm:$0xff]
  %v440 = vld [vmem:[%s1 + $0x4a8] sm:$0xff]
  %v441 = vld [vmem:[%s1 + $0x4b0] sm:$0xff]
  %v442 = vld [vmem:[%s1 + $0x4b8] sm:$0xff]
  %v443 = vld [vmem:[%s1 + $0x4c0] sm:$0xff]
  %v444 = vld [vmem:[%s1 + $0x4c8] sm:$0xff]
  %v445 = vld [vmem:[%s1 + $0x4d0] sm:$0xff]
  %v446 = vld [vmem:[%s1 + $0x4d8] sm:$0xff]
  %v447 = vld [vmem:[%s1 + $0x4e0] sm:$0xff]
  %v448 = vld [vmem:[%s1 + $0x4e8] sm:$0xff]
  %v449 = vld [vmem:[%s1 + $0x4f0] sm:$0xff]
  %v450 = vld [vmem:[%s1 + $0x4f8] sm:$0xff]
  %v451 = vld [vmem:[%s1 + $0x500] sm:$0xff]
  %v452 = vld [vmem:[%s1 + $0x508] sm:$0xff]
  %v453 = vld [vmem:[%s1 + $0x510] sm:$0xff]
  %v454 = vld [vmem:[%s1 + $0x518] sm:$0xff]
  %v455 = vld [vmem:[%s1 + $0x520] sm:$0xff]
  %v456 = vld [vmem:[%s1 + $0x528] sm:$0xff]
  %v457 = vld [vmem:[%s1 + $0x530] sm:$0xff]
  %v458 = vld [vmem:[%s1 + $0x538] sm:$0xff]
  %v459 = vld [vmem:[%s1 + $0x540] sm:$0xff]
  %v460 = vld [vmem:[%s1 + $0x548] sm:$0xff]
  %v461 = vld [vmem:[%s1 + $0x550] sm:$0xff]
  %v462 = vld [vmem:[%s1 + $0x558] sm:$0xff]
  %v463 = vld [vmem:[%s1 + $0x560] sm:$0xff]
  %v464 = vld [vmem:[%s1 + $0x568] sm:$0xff]
  %v465 = vld [vmem:[%s1 + $0x570] sm:$0xff]
  %v466 = vld [vmem:[%s1 + $0x578] sm:$0xff]
  %v467 = vld [vmem:[%s1 + $0x580] sm:$0xff]
  %v468 = vld [vmem:[%s1 + $0x588] sm:$0xff]
  %v469 = vld [vmem:[%s1 + $0x590] sm:$0xff]
  %v470 = vld [vmem:[%s1 + $0x598] sm:$0xff]
  %v471 = vld [vmem:[%s1 + $0x5a0] sm:$0xff]
  %v472 = vld [vmem:[%s1 + $0x5a8] sm:$0xff]
  %v473 = vld [vmem:[%s1 + $0x5b0] sm:$0xff]
  %v474 = vld [vmem:[%s1 + $0x5b8] sm:$0xff]
  %v475 = vld [vmem:[%s1 + $0x5c0] sm:$0xff]
  %v476 = vld [vmem:[%s1 + $0x5c8] sm:$0xff]
  %v477 = vld [vmem:[%s1 + $0x5d0] sm:$0xff]
  %v478 = vld [vmem:[%s1 + $0x5d8] sm:$0xff]
  %v479 = vld [vmem:[%s1 + $0x5e0] sm:$0xff]
  %v480 = vld [vmem:[%s1 + $0x5e8] sm:$0xff]
  %v481 = vld [vmem:[%s1 + $0x5f0] sm:$0xff]
  %v482 = vld [vmem:[%s1 + $0x5f8] sm:$0xff]
  %v483 = vld [vmem:[%s2] sm:$0xf]
  %v485 = vlaneseq
  %v486 = vshrl.u32 %v485, 7
  %v487 = vsub.s32 0, %v486
  %v488 = vrot.slane %v483, %v487
  %v489 = vlaneseq
  %v490 = vshrl.u32 %v489, 7
  %v491 = vsub.s32 1, %v490
  %v492 = vrot.slane %v483, %v491
  %v493 = vlaneseq
  %v494 = vshrl.u32 %v493, 7
  %v495 = vsub.s32 2, %v494
  %v496 = vrot.slane %v483, %v495
  %v497 = vlaneseq
  %v498 = vshrl.u32 %v497, 7
  %v499 = vsub.s32 3, %v498
  %v500 = vrot.slane %v483, %v499
  %v505 = vpack.c.b16 %v128, %v290
  %v506 = vpack.c.b16 %v129, %v290
  %v507 = vpack.c.b16 %v224, %v222
  %v508 = vpack.c.b16 %v225, %v223
  %v509 = vpack.c.b16 %v130, %v128
  %v510 = vpack.c.b16 %v131, %v129
  %v511 = vpack.c.b16 %v132, %v130
  %v512 = vpack.c.b16 %v133, %v131
  %v513 = vpack.c.b16 %v228, %v226
  %v514 = vpack.c.b16 %v229, %v227
  %v515 = vpack.c.b16 %v134, %v132
  %v516 = vpack.c.b16 %v135, %v133
  %v517 = vpack.c.b16 %v136, %v134
  %v518 = vpack.c.b16 %v137, %v135
  %v519 = vpack.c.b16 %v232, %v230
  %v520 = vpack.c.b16 %v233, %v231
  %v521 = vpack.c.b16 %v138, %v136
  %v522 = vpack.c.b16 %v139, %v137
  %v523 = vpack.c.b16 %v140, %v138
  %v524 = vpack.c.b16 %v141, %v139
  %v525 = vpack.c.b16 %v236, %v234
  %v526 = vpack.c.b16 %v237, %v235
  %v527 = vpack.c.b16 %v142, %v140
  %v528 = vpack.c.b16 %v143, %v141
  %v529 = vpack.c.b16 %v144, %v142
  %v530 = vpack.c.b16 %v145, %v143
  %v531 = vpack.c.b16 %v240, %v238
  %v532 = vpack.c.b16 %v241, %v239
  %v533 = vpack.c.b16 %v146, %v144
  %v534 = vpack.c.b16 %v147, %v145
  %v535 = vpack.c.b16 %v148, %v146
  %v536 = vpack.c.b16 %v149, %v147
  %v537 = vpack.c.b16 %v244, %v242
  %v538 = vpack.c.b16 %v245, %v243
  %v539 = vpack.c.b16 %v150, %v148
  %v540 = vpack.c.b16 %v151, %v149
  %v541 = vpack.c.b16 %v152, %v150
  %v542 = vpack.c.b16 %v153, %v151
  %v543 = vpack.c.b16 %v248, %v246
  %v544 = vpack.c.b16 %v249, %v247
  %v545 = vpack.c.b16 %v154, %v152
  %v546 = vpack.c.b16 %v155, %v153
  %v547 = vpack.c.b16 %v156, %v154
  %v548 = vpack.c.b16 %v157, %v155
  %v549 = vpack.c.b16 %v252, %v250
  %v550 = vpack.c.b16 %v253, %v251
  %v551 = vpack.c.b16 %v158, %v156
  %v552 = vpack.c.b16 %v159, %v157
  %v553 = vpack.c.b16 %v160, %v158
  %v554 = vpack.c.b16 %v161, %v159
  %v555 = vpack.c.b16 %v256, %v254
  %v556 = vpack.c.b16 %v257, %v255
  %v557 = vpack.c.b16 %v162, %v160
  %v558 = vpack.c.b16 %v163, %v161
  %v559 = vpack.c.b16 %v164, %v162
  %v560 = vpack.c.b16 %v165, %v163
  %v561 = vpack.c.b16 %v260, %v258
  %v562 = vpack.c.b16 %v261, %v259
  %v563 = vpack.c.b16 %v166, %v164
  %v564 = vpack.c.b16 %v167, %v165
  %v565 = vpack.c.b16 %v168, %v166
  %v566 = vpack.c.b16 %v169, %v167
  %v567 = vpack.c.b16 %v264, %v262
  %v568 = vpack.c.b16 %v265, %v263
  %v569 = vpack.c.b16 %v170, %v168
  %v570 = vpack.c.b16 %v171, %v169
  %v571 = vpack.c.b16 %v172, %v170
  %v572 = vpack.c.b16 %v173, %v171
  %v573 = vpack.c.b16 %v268, %v266
  %v574 = vpack.c.b16 %v269, %v267
  %v575 = vpack.c.b16 %v174, %v172
  %v576 = vpack.c.b16 %v175, %v173
  %v577 = vpack.c.b16 %v176, %v174
  %v578 = vpack.c.b16 %v177, %v175
  %v579 = vpack.c.b16 %v272, %v270
  %v580 = vpack.c.b16 %v273, %v271
  %v581 = vpack.c.b16 %v178, %v176
  %v582 = vpack.c.b16 %v179, %v177
  %v583 = vpack.c.b16 %v180, %v178
  %v584 = vpack.c.b16 %v181, %v179
  %v585 = vpack.c.b16 %v276, %v274
  %v586 = vpack.c.b16 %v277, %v275
  %v587 = vpack.c.b16 %v182, %v180
  %v588 = vpack.c.b16 %v183, %v181
  %v589 = vpack.c.b16 %v184, %v182
  %v590 = vpack.c.b16 %v185, %v183
  %v591 = vpack.c.b16 %v280, %v278
  %v592 = vpack.c.b16 %v281, %v279
  %v593 = vpack.c.b16 %v186, %v184
  %v594 = vpack.c.b16 %v187, %v185
  %v595 = vpack.c.b16 %v188, %v186
  %v596 = vpack.c.b16 %v189, %v187
  %v597 = vpack.c.b16 %v284, %v282
  %v598 = vpack.c.b16 %v285, %v283
  %v599 = vpack.c.b16 %v287, %v188
  %v600 = vpack.c.b16 %v288, %v189
  %v889 = vunpack.c.l.b16 %v291
  %v890 = vunpack.c.h.b16 %v291
  %v891 = vunpack.c.l.b16 %v292
  %v892 = vunpack.c.h.b16 %v292
  %v893 = vunpack.c.l.b16 %v293
  %v894 = vunpack.c.h.b16 %v293
  %v895 = vunpack.c.l.b16 %v294
  %v896 = vunpack.c.h.b16 %v294
  %v897 = vunpack.c.l.b16 %v295
  %v898 = vunpack.c.h.b16 %v295
  %v899 = vunpack.c.l.b16 %v296
  %v900 = vunpack.c.h.b16 %v296
  %v901 = vunpack.c.l.b16 %v297
  %v902 = vunpack.c.h.b16 %v297
  %v903 = vunpack.c.l.b16 %v298
  %v904 = vunpack.c.h.b16 %v298
  %v905 = vunpack.c.l.b16 %v299
  %v906 = vunpack.c.h.b16 %v299
  %v907 = vunpack.c.l.b16 %v300
  %v908 = vunpack.c.h.b16 %v300
  %v909 = vunpack.c.l.b16 %v301
  %v910 = vunpack.c.h.b16 %v301
  %v911 = vunpack.c.l.b16 %v302
  %v912 = vunpack.c.h.b16 %v302
  %v913 = vunpack.c.l.b16 %v303
  %v914 = vunpack.c.h.b16 %v303
  %v915 = vunpack.c.l.b16 %v304
  %v916 = vunpack.c.h.b16 %v304
  %v917 = vunpack.c.l.b16 %v305
  %v918 = vunpack.c.h.b16 %v305
  %v919 = vunpack.c.l.b16 %v306
  %v920 = vunpack.c.h.b16 %v306
  %v921 = vunpack.c.l.b16 %v307
  %v922 = vunpack.c.h.b16 %v307
  %v923 = vunpack.c.l.b16 %v308
  %v924 = vunpack.c.h.b16 %v308
  %v925 = vunpack.c.l.b16 %v309
  %v926 = vunpack.c.h.b16 %v309
  %v927 = vunpack.c.l.b16 %v310
  %v928 = vunpack.c.h.b16 %v310
  %v929 = vunpack.c.l.b16 %v311
  %v930 = vunpack.c.h.b16 %v311
  %v931 = vunpack.c.l.b16 %v312
  %v932 = vunpack.c.h.b16 %v312
  %v933 = vunpack.c.l.b16 %v313
  %v934 = vunpack.c.h.b16 %v313
  %v935 = vunpack.c.l.b16 %v314
  %v936 = vunpack.c.h.b16 %v314
  %v937 = vunpack.c.l.b16 %v315
  %v938 = vunpack.c.h.b16 %v315
  %v939 = vunpack.c.l.b16 %v316
  %v940 = vunpack.c.h.b16 %v316
  %v941 = vunpack.c.l.b16 %v317
  %v942 = vunpack.c.h.b16 %v317
  %v943 = vunpack.c.l.b16 %v318
  %v944 = vunpack.c.h.b16 %v318
  %v945 = vunpack.c.l.b16 %v319
  %v946 = vunpack.c.h.b16 %v319
  %v947 = vunpack.c.l.b16 %v320
  %v948 = vunpack.c.h.b16 %v320
  %v949 = vunpack.c.l.b16 %v321
  %v950 = vunpack.c.h.b16 %v321
  %v951 = vunpack.c.l.b16 %v322
  %v952 = vunpack.c.h.b16 %v322
  %v953 = vunpack.c.l.b16 %v323
  %v954 = vunpack.c.h.b16 %v323
  %v955 = vunpack.c.l.b16 %v324
  %v956 = vunpack.c.h.b16 %v324
  %v957 = vunpack.c.l.b16 %v325
  %v958 = vunpack.c.h.b16 %v325
  %v959 = vunpack.c.l.b16 %v326
  %v960 = vunpack.c.h.b16 %v326
  %v961 = vunpack.c.l.b16 %v327
  %v962 = vunpack.c.h.b16 %v327
  %v963 = vunpack.c.l.b16 %v328
  %v964 = vunpack.c.h.b16 %v328
  %v965 = vunpack.c.l.b16 %v329
  %v966 = vunpack.c.h.b16 %v329
  %v967 = vunpack.c.l.b16 %v330
  %v968 = vunpack.c.h.b16 %v330
  %v969 = vunpack.c.l.b16 %v331
  %v970 = vunpack.c.h.b16 %v331
  %v971 = vunpack.c.l.b16 %v332
  %v972 = vunpack.c.h.b16 %v332
  %v973 = vunpack.c.l.b16 %v333
  %v974 = vunpack.c.h.b16 %v333
  %v975 = vunpack.c.l.b16 %v334
  %v976 = vunpack.c.h.b16 %v334
  %v977 = vunpack.c.l.b16 %v335
  %v978 = vunpack.c.h.b16 %v335
  %v979 = vunpack.c.l.b16 %v336
  %v980 = vunpack.c.h.b16 %v336
  %v981 = vunpack.c.l.b16 %v337
  %v982 = vunpack.c.h.b16 %v337
  %v983 = vunpack.c.l.b16 %v338
  %v984 = vunpack.c.h.b16 %v338
  %v985 = vunpack.c.l.b16 %v339
  %v986 = vunpack.c.h.b16 %v339
  %v987 = vunpack.c.l.b16 %v340
  %v988 = vunpack.c.h.b16 %v340
  %v989 = vunpack.c.l.b16 %v341
  %v990 = vunpack.c.h.b16 %v341
  %v991 = vunpack.c.l.b16 %v342
  %v992 = vunpack.c.h.b16 %v342
  %v993 = vunpack.c.l.b16 %v343
  %v994 = vunpack.c.h.b16 %v343
  %v995 = vunpack.c.l.b16 %v344
  %v996 = vunpack.c.h.b16 %v344
  %v997 = vunpack.c.l.b16 %v345
  %v998 = vunpack.c.h.b16 %v345
  %v999 = vunpack.c.l.b16 %v346
  %v1000 = vunpack.c.h.b16 %v346
  %v1001 = vunpack.c.l.b16 %v347
  %v1002 = vunpack.c.h.b16 %v347
  %v1003 = vunpack.c.l.b16 %v348
  %v1004 = vunpack.c.h.b16 %v348
  %v1005 = vunpack.c.l.b16 %v349
  %v1006 = vunpack.c.h.b16 %v349
  %v1007 = vunpack.c.l.b16 %v350
  %v1008 = vunpack.c.h.b16 %v350
  %v1009 = vunpack.c.l.b16 %v351
  %v1010 = vunpack.c.h.b16 %v351
  %v1011 = vunpack.c.l.b16 %v352
  %v1012 = vunpack.c.h.b16 %v352
  %v1013 = vunpack.c.l.b16 %v353
  %v1014 = vunpack.c.h.b16 %v353
  %v1015 = vunpack.c.l.b16 %v354
  %v1016 = vunpack.c.h.b16 %v354
  %v1017 = vunpack.c.l.b16 %v355
  %v1018 = vunpack.c.h.b16 %v355
  %v1019 = vunpack.c.l.b16 %v356
  %v1020 = vunpack.c.h.b16 %v356
  %v1021 = vunpack.c.l.b16 %v357
  %v1022 = vunpack.c.h.b16 %v357
  %v1023 = vunpack.c.l.b16 %v358
  %v1024 = vunpack.c.h.b16 %v358
  %v1025 = vunpack.c.l.b16 %v359
  %v1026 = vunpack.c.h.b16 %v359
  %v1027 = vunpack.c.l.b16 %v360
  %v1028 = vunpack.c.h.b16 %v360
  %v1029 = vunpack.c.l.b16 %v361
  %v1030 = vunpack.c.h.b16 %v361
  %v1031 = vunpack.c.l.b16 %v362
  %v1032 = vunpack.c.h.b16 %v362
  %v1033 = vunpack.c.l.b16 %v363
  %v1034 = vunpack.c.h.b16 %v363
  %v1035 = vunpack.c.l.b16 %v364
  %v1036 = vunpack.c.h.b16 %v364
  %v1037 = vunpack.c.l.b16 %v365
  %v1038 = vunpack.c.h.b16 %v365
  %v1039 = vunpack.c.l.b16 %v366
  %v1040 = vunpack.c.h.b16 %v366
  %v1041 = vunpack.c.l.b16 %v367
  %v1042 = vunpack.c.h.b16 %v367
  %v1043 = vunpack.c.l.b16 %v368
  %v1044 = vunpack.c.h.b16 %v368
  %v1045 = vunpack.c.l.b16 %v369
  %v1046 = vunpack.c.h.b16 %v369
  %v1047 = vunpack.c.l.b16 %v370
  %v1048 = vunpack.c.h.b16 %v370
  %v1049 = vunpack.c.l.b16 %v371
  %v1050 = vunpack.c.h.b16 %v371
  %v1051 = vunpack.c.l.b16 %v372
  %v1052 = vunpack.c.h.b16 %v372
  %v1053 = vunpack.c.l.b16 %v373
  %v1054 = vunpack.c.h.b16 %v373
  %v1055 = vunpack.c.l.b16 %v374
  %v1056 = vunpack.c.h.b16 %v374
  %v1057 = vunpack.c.l.b16 %v375
  %v1058 = vunpack.c.h.b16 %v375
  %v1059 = vunpack.c.l.b16 %v376
  %v1060 = vunpack.c.h.b16 %v376
  %v1061 = vunpack.c.l.b16 %v377
  %v1062 = vunpack.c.h.b16 %v377
  %v1063 = vunpack.c.l.b16 %v378
  %v1064 = vunpack.c.h.b16 %v378
  %v1065 = vunpack.c.l.b16 %v379
  %v1066 = vunpack.c.h.b16 %v379
  %v1067 = vunpack.c.l.b16 %v380
  %v1068 = vunpack.c.h.b16 %v380
  %v1069 = vunpack.c.l.b16 %v381
  %v1070 = vunpack.c.h.b16 %v381
  %v1071 = vunpack.c.l.b16 %v382
  %v1072 = vunpack.c.h.b16 %v382
  %v1073 = vunpack.c.l.b16 %v383
  %v1074 = vunpack.c.h.b16 %v383
  %v1075 = vunpack.c.l.b16 %v384
  %v1076 = vunpack.c.h.b16 %v384
  %v1077 = vunpack.c.l.b16 %v385
  %v1078 = vunpack.c.h.b16 %v385
  %v1079 = vunpack.c.l.b16 %v386
  %v1080 = vunpack.c.h.b16 %v386
  %v1081 = vunpack.c.l.b16 %v387
  %v1082 = vunpack.c.h.b16 %v387
  %v1083 = vunpack.c.l.b16 %v388
  %v1084 = vunpack.c.h.b16 %v388
  %v1085 = vunpack.c.l.b16 %v389
  %v1086 = vunpack.c.h.b16 %v389
  %v1087 = vunpack.c.l.b16 %v390
  %v1088 = vunpack.c.h.b16 %v390
  %v1089 = vunpack.c.l.b16 %v391
  %v1090 = vunpack.c.h.b16 %v391
  %v1091 = vunpack.c.l.b16 %v392
  %v1092 = vunpack.c.h.b16 %v392
  %v1093 = vunpack.c.l.b16 %v393
  %v1094 = vunpack.c.h.b16 %v393
  %v1095 = vunpack.c.l.b16 %v394
  %v1096 = vunpack.c.h.b16 %v394
  %v1097 = vunpack.c.l.b16 %v395
  %v1098 = vunpack.c.h.b16 %v395
  %v1099 = vunpack.c.l.b16 %v396
  %v1100 = vunpack.c.h.b16 %v396
  %v1101 = vunpack.c.l.b16 %v397
  %v1102 = vunpack.c.h.b16 %v397
  %v1103 = vunpack.c.l.b16 %v398
  %v1104 = vunpack.c.h.b16 %v398
  %v1105 = vunpack.c.l.b16 %v399
  %v1106 = vunpack.c.h.b16 %v399
  %v1107 = vunpack.c.l.b16 %v400
  %v1108 = vunpack.c.h.b16 %v400
  %v1109 = vunpack.c.l.b16 %v401
  %v1110 = vunpack.c.h.b16 %v401
  %v1111 = vunpack.c.l.b16 %v402
  %v1112 = vunpack.c.h.b16 %v402
  %v1113 = vunpack.c.l.b16 %v403
  %v1114 = vunpack.c.h.b16 %v403
  %v1115 = vunpack.c.l.b16 %v404
  %v1116 = vunpack.c.h.b16 %v404
  %v1117 = vunpack.c.l.b16 %v405
  %v1118 = vunpack.c.h.b16 %v405
  %v1119 = vunpack.c.l.b16 %v406
  %v1120 = vunpack.c.h.b16 %v406
  %v1121 = vunpack.c.l.b16 %v407
  %v1122 = vunpack.c.h.b16 %v407
  %v1123 = vunpack.c.l.b16 %v408
  %v1124 = vunpack.c.h.b16 %v408
  %v1125 = vunpack.c.l.b16 %v409
  %v1126 = vunpack.c.h.b16 %v409
  %v1127 = vunpack.c.l.b16 %v410
  %v1128 = vunpack.c.h.b16 %v410
  %v1129 = vunpack.c.l.b16 %v411
  %v1130 = vunpack.c.h.b16 %v411
  %v1131 = vunpack.c.l.b16 %v412
  %v1132 = vunpack.c.h.b16 %v412
  %v1133 = vunpack.c.l.b16 %v413
  %v1134 = vunpack.c.h.b16 %v413
  %v1135 = vunpack.c.l.b16 %v414
  %v1136 = vunpack.c.h.b16 %v414
  %v1137 = vunpack.c.l.b16 %v415
  %v1138 = vunpack.c.h.b16 %v415
  %v1139 = vunpack.c.l.b16 %v416
  %v1140 = vunpack.c.h.b16 %v416
  %v1141 = vunpack.c.l.b16 %v417
  %v1142 = vunpack.c.h.b16 %v417
  %v1143 = vunpack.c.l.b16 %v418
  %v1144 = vunpack.c.h.b16 %v418
  %v1145 = vunpack.c.l.b16 %v419
  %v1146 = vunpack.c.h.b16 %v419
  %v1147 = vunpack.c.l.b16 %v420
  %v1148 = vunpack.c.h.b16 %v420
  %v1149 = vunpack.c.l.b16 %v421
  %v1150 = vunpack.c.h.b16 %v421
  %v1151 = vunpack.c.l.b16 %v422
  %v1152 = vunpack.c.h.b16 %v422
  %v1153 = vunpack.c.l.b16 %v423
  %v1154 = vunpack.c.h.b16 %v423
  %v1155 = vunpack.c.l.b16 %v424
  %v1156 = vunpack.c.h.b16 %v424
  %v1157 = vunpack.c.l.b16 %v425
  %v1158 = vunpack.c.h.b16 %v425
  %v1159 = vunpack.c.l.b16 %v426
  %v1160 = vunpack.c.h.b16 %v426
  %v1161 = vunpack.c.l.b16 %v427
  %v1162 = vunpack.c.h.b16 %v427
  %v1163 = vunpack.c.l.b16 %v428
  %v1164 = vunpack.c.h.b16 %v428
  %v1165 = vunpack.c.l.b16 %v429
  %v1166 = vunpack.c.h.b16 %v429
  %v1167 = vunpack.c.l.b16 %v430
  %v1168 = vunpack.c.h.b16 %v430
  %v1169 = vunpack.c.l.b16 %v431
  %v1170 = vunpack.c.h.b16 %v431
  %v1171 = vunpack.c.l.b16 %v432
  %v1172 = vunpack.c.h.b16 %v432
  %v1173 = vunpack.c.l.b16 %v433
  %v1174 = vunpack.c.h.b16 %v433
  %v1175 = vunpack.c.l.b16 %v434
  %v1176 = vunpack.c.h.b16 %v434
  %v1177 = vunpack.c.l.b16 %v435
  %v1178 = vunpack.c.h.b16 %v435
  %v1179 = vunpack.c.l.b16 %v436
  %v1180 = vunpack.c.h.b16 %v436
  %v1181 = vunpack.c.l.b16 %v437
  %v1182 = vunpack.c.h.b16 %v437
  %v1183 = vunpack.c.l.b16 %v438
  %v1184 = vunpack.c.h.b16 %v438
  %v1185 = vunpack.c.l.b16 %v439
  %v1186 = vunpack.c.h.b16 %v439
  %v1187 = vunpack.c.l.b16 %v440
  %v1188 = vunpack.c.h.b16 %v440
  %v1189 = vunpack.c.l.b16 %v441
  %v1190 = vunpack.c.h.b16 %v441
  %v1191 = vunpack.c.l.b16 %v442
  %v1192 = vunpack.c.h.b16 %v442
  %v1193 = vunpack.c.l.b16 %v443
  %v1194 = vunpack.c.h.b16 %v443
  %v1195 = vunpack.c.l.b16 %v444
  %v1196 = vunpack.c.h.b16 %v444
  %v1197 = vunpack.c.l.b16 %v445
  %v1198 = vunpack.c.h.b16 %v445
  %v1199 = vunpack.c.l.b16 %v446
  %v1200 = vunpack.c.h.b16 %v446
  %v1201 = vunpack.c.l.b16 %v447
  %v1202 = vunpack.c.h.b16 %v447
  %v1203 = vunpack.c.l.b16 %v448
  %v1204 = vunpack.c.h.b16 %v448
  %v1205 = vunpack.c.l.b16 %v449
  %v1206 = vunpack.c.h.b16 %v449
  %v1207 = vunpack.c.l.b16 %v450
  %v1208 = vunpack.c.h.b16 %v450
  %v1209 = vunpack.c.l.b16 %v451
  %v1210 = vunpack.c.h.b16 %v451
  %v1211 = vunpack.c.l.b16 %v452
  %v1212 = vunpack.c.h.b16 %v452
  %v1213 = vunpack.c.l.b16 %v453
  %v1214 = vunpack.c.h.b16 %v453
  %v1215 = vunpack.c.l.b16 %v454
  %v1216 = vunpack.c.h.b16 %v454
  %v1217 = vunpack.c.l.b16 %v455
  %v1218 = vunpack.c.h.b16 %v455
  %v1219 = vunpack.c.l.b16 %v456
  %v1220 = vunpack.c.h.b16 %v456
  %v1221 = vunpack.c.l.b16 %v457
  %v1222 = vunpack.c.h.b16 %v457
  %v1223 = vunpack.c.l.b16 %v458
  %v1224 = vunpack.c.h.b16 %v458
  %v1225 = vunpack.c.l.b16 %v459
  %v1226 = vunpack.c.h.b16 %v459
  %v1227 = vunpack.c.l.b16 %v460
  %v1228 = vunpack.c.h.b16 %v460
  %v1229 = vunpack.c.l.b16 %v461
  %v1230 = vunpack.c.h.b16 %v461
  %v1231 = vunpack.c.l.b16 %v462
  %v1232 = vunpack.c.h.b16 %v462
  %v1233 = vunpack.c.l.b16 %v463
  %v1234 = vunpack.c.h.b16 %v463
  %v1235 = vunpack.c.l.b16 %v464
  %v1236 = vunpack.c.h.b16 %v464
  %v1237 = vunpack.c.l.b16 %v465
  %v1238 = vunpack.c.h.b16 %v465
  %v1239 = vunpack.c.l.b16 %v466
  %v1240 = vunpack.c.h.b16 %v466
  %v1241 = vunpack.c.l.b16 %v467
  %v1242 = vunpack.c.h.b16 %v467
  %v1243 = vunpack.c.l.b16 %v468
  %v1244 = vunpack.c.h.b16 %v468
  %v1245 = vunpack.c.l.b16 %v469
  %v1246 = vunpack.c.h.b16 %v469
  %v1247 = vunpack.c.l.b16 %v470
  %v1248 = vunpack.c.h.b16 %v470
  %v1249 = vunpack.c.l.b16 %v471
  %v1250 = vunpack.c.h.b16 %v471
  %v1251 = vunpack.c.l.b16 %v472
  %v1252 = vunpack.c.h.b16 %v472
  %v1253 = vunpack.c.l.b16 %v473
  %v1254 = vunpack.c.h.b16 %v473
  %v1255 = vunpack.c.l.b16 %v474
  %v1256 = vunpack.c.h.b16 %v474
  %v1257 = vunpack.c.l.b16 %v475
  %v1258 = vunpack.c.h.b16 %v475
  %v1259 = vunpack.c.l.b16 %v476
  %v1260 = vunpack.c.h.b16 %v476
  %v1261 = vunpack.c.l.b16 %v477
  %v1262 = vunpack.c.h.b16 %v477
  %v1263 = vunpack.c.l.b16 %v478
  %v1264 = vunpack.c.h.b16 %v478
  %v1265 = vunpack.c.l.b16 %v479
  %v1266 = vunpack.c.h.b16 %v479
  %v1267 = vunpack.c.l.b16 %v480
  %v1268 = vunpack.c.h.b16 %v480
  %v1269 = vunpack.c.l.b16 %v481
  %v1270 = vunpack.c.h.b16 %v481
  %v1271 = vunpack.c.l.b16 %v482
  %v1272 = vunpack.c.h.b16 %v482
  %v1273 = vpack.c.b16 %v893, %v889
  %v1274 = vpack.c.b16 %v894, %v890
  %v1275 = vpack.c.b16 %v895, %v891
  %v1276 = vpack.c.b16 %v896, %v892
  %v1277 = vpack.c.b16 %v901, %v897
  %v1278 = vpack.c.b16 %v902, %v898
  %v1279 = vpack.c.b16 %v903, %v899
  %v1280 = vpack.c.b16 %v904, %v900
  %v1281 = vpack.c.b16 %v909, %v905
  %v1282 = vpack.c.b16 %v910, %v906
  %v1283 = vpack.c.b16 %v911, %v907
  %v1284 = vpack.c.b16 %v912, %v908
  %v1285 = vpack.c.b16 %v917, %v913
  %v1286 = vpack.c.b16 %v918, %v914
  %v1287 = vpack.c.b16 %v919, %v915
  %v1288 = vpack.c.b16 %v920, %v916
  %v1289 = vpack.c.b16 %v925, %v921
  %v1290 = vpack.c.b16 %v926, %v922
  %v1291 = vpack.c.b16 %v927, %v923
  %v1292 = vpack.c.b16 %v928, %v924
  %v1293 = vpack.c.b16 %v933, %v929
  %v1294 = vpack.c.b16 %v934, %v930
  %v1295 = vpack.c.b16 %v935, %v931
  %v1296 = vpack.c.b16 %v936, %v932
  %v1297 = vpack.c.b16 %v941, %v937
  %v1298 = vpack.c.b16 %v942, %v938
  %v1299 = vpack.c.b16 %v943, %v939
  %v1300 = vpack.c.b16 %v944, %v940
  %v1301 = vpack.c.b16 %v949, %v945
  %v1302 = vpack.c.b16 %v950, %v946
  %v1303 = vpack.c.b16 %v951, %v947
  %v1304 = vpack.c.b16 %v952, %v948
  %v1305 = vpack.c.b16 %v957, %v953
  %v1306 = vpack.c.b16 %v958, %v954
  %v1307 = vpack.c.b16 %v959, %v955
  %v1308 = vpack.c.b16 %v960, %v956
  %v1309 = vpack.c.b16 %v965, %v961
  %v1310 = vpack.c.b16 %v966, %v962
  %v1311 = vpack.c.b16 %v967, %v963
  %v1312 = vpack.c.b16 %v968, %v964
  %v1313 = vpack.c.b16 %v973, %v969
  %v1314 = vpack.c.b16 %v974, %v970
  %v1315 = vpack.c.b16 %v975, %v971
  %v1316 = vpack.c.b16 %v976, %v972
  %v1317 = vpack.c.b16 %v981, %v977
  %v1318 = vpack.c.b16 %v982, %v978
  %v1319 = vpack.c.b16 %v983, %v979
  %v1320 = vpack.c.b16 %v984, %v980
  %v1321 = vpack.c.b16 %v989, %v985
  %v1322 = vpack.c.b16 %v990, %v986
  %v1323 = vpack.c.b16 %v991, %v987
  %v1324 = vpack.c.b16 %v992, %v988
  %v1325 = vpack.c.b16 %v997, %v993
  %v1326 = vpack.c.b16 %v998, %v994
  %v1327 = vpack.c.b16 %v999, %v995
  %v1328 = vpack.c.b16 %v1000, %v996
  %v1329 = vpack.c.b16 %v1005, %v1001
  %v1330 = vpack.c.b16 %v1006, %v1002
  %v1331 = vpack.c.b16 %v1007, %v1003
  %v1332 = vpack.c.b16 %v1008, %v1004
  %v1333 = vpack.c.b16 %v1013, %v1009
  %v1334 = vpack.c.b16 %v1014, %v1010
  %v1335 = vpack.c.b16 %v1015, %v1011
  %v1336 = vpack.c.b16 %v1016, %v1012
  %v1337 = vpack.c.b16 %v1021, %v1017
  %v1338 = vpack.c.b16 %v1022, %v1018
  %v1339 = vpack.c.b16 %v1023, %v1019
  %v1340 = vpack.c.b16 %v1024, %v1020
  %v1341 = vpack.c.b16 %v1029, %v1025
  %v1342 = vpack.c.b16 %v1030, %v1026
  %v1343 = vpack.c.b16 %v1031, %v1027
  %v1344 = vpack.c.b16 %v1032, %v1028
  %v1345 = vpack.c.b16 %v1037, %v1033
  %v1346 = vpack.c.b16 %v1038, %v1034
  %v1347 = vpack.c.b16 %v1039, %v1035
  %v1348 = vpack.c.b16 %v1040, %v1036
  %v1349 = vpack.c.b16 %v1045, %v1041
  %v1350 = vpack.c.b16 %v1046, %v1042
  %v1351 = vpack.c.b16 %v1047, %v1043
  %v1352 = vpack.c.b16 %v1048, %v1044
  %v1353 = vpack.c.b16 %v1053, %v1049
  %v1354 = vpack.c.b16 %v1054, %v1050
  %v1355 = vpack.c.b16 %v1055, %v1051
  %v1356 = vpack.c.b16 %v1056, %v1052
  %v1357 = vpack.c.b16 %v1061, %v1057
  %v1358 = vpack.c.b16 %v1062, %v1058
  %v1359 = vpack.c.b16 %v1063, %v1059
  %v1360 = vpack.c.b16 %v1064, %v1060
  %v1361 = vpack.c.b16 %v1069, %v1065
  %v1362 = vpack.c.b16 %v1070, %v1066
  %v1363 = vpack.c.b16 %v1071, %v1067
  %v1364 = vpack.c.b16 %v1072, %v1068
  %v1365 = vpack.c.b16 %v1077, %v1073
  %v1366 = vpack.c.b16 %v1078, %v1074
  %v1367 = vpack.c.b16 %v1079, %v1075
  %v1368 = vpack.c.b16 %v1080, %v1076
  %v1369 = vpack.c.b16 %v1085, %v1081
  %v1370 = vpack.c.b16 %v1086, %v1082
  %v1371 = vpack.c.b16 %v1087, %v1083
  %v1372 = vpack.c.b16 %v1088, %v1084
  %v1373 = vpack.c.b16 %v1093, %v1089
  %v1374 = vpack.c.b16 %v1094, %v1090
  %v1375 = vpack.c.b16 %v1095, %v1091
  %v1376 = vpack.c.b16 %v1096, %v1092
  %v1377 = vpack.c.b16 %v1101, %v1097
  %v1378 = vpack.c.b16 %v1102, %v1098
  %v1379 = vpack.c.b16 %v1103, %v1099
  %v1380 = vpack.c.b16 %v1104, %v1100
  %v1381 = vpack.c.b16 %v1109, %v1105
  %v1382 = vpack.c.b16 %v1110, %v1106
  %v1383 = vpack.c.b16 %v1111, %v1107
  %v1384 = vpack.c.b16 %v1112, %v1108
  %v1385 = vpack.c.b16 %v1117, %v1113
  %v1386 = vpack.c.b16 %v1118, %v1114
  %v1387 = vpack.c.b16 %v1119, %v1115
  %v1388 = vpack.c.b16 %v1120, %v1116
  %v1389 = vpack.c.b16 %v1125, %v1121
  %v1390 = vpack.c.b16 %v1126, %v1122
  %v1391 = vpack.c.b16 %v1127, %v1123
  %v1392 = vpack.c.b16 %v1128, %v1124
  %v1393 = vpack.c.b16 %v1133, %v1129
  %v1394 = vpack.c.b16 %v1134, %v1130
  %v1395 = vpack.c.b16 %v1135, %v1131
  %v1396 = vpack.c.b16 %v1136, %v1132
  %v1397 = vpack.c.b16 %v1141, %v1137
  %v1398 = vpack.c.b16 %v1142, %v1138
  %v1399 = vpack.c.b16 %v1143, %v1139
  %v1400 = vpack.c.b16 %v1144, %v1140
  %v1401 = vpack.c.b16 %v1149, %v1145
  %v1402 = vpack.c.b16 %v1150, %v1146
  %v1403 = vpack.c.b16 %v1151, %v1147
  %v1404 = vpack.c.b16 %v1152, %v1148
  %v1405 = vpack.c.b16 %v1157, %v1153
  %v1406 = vpack.c.b16 %v1158, %v1154
  %v1407 = vpack.c.b16 %v1159, %v1155
  %v1408 = vpack.c.b16 %v1160, %v1156
  %v1409 = vpack.c.b16 %v1165, %v1161
  %v1410 = vpack.c.b16 %v1166, %v1162
  %v1411 = vpack.c.b16 %v1167, %v1163
  %v1412 = vpack.c.b16 %v1168, %v1164
  %v1413 = vpack.c.b16 %v1173, %v1169
  %v1414 = vpack.c.b16 %v1174, %v1170
  %v1415 = vpack.c.b16 %v1175, %v1171
  %v1416 = vpack.c.b16 %v1176, %v1172
  %v1417 = vpack.c.b16 %v1181, %v1177
  %v1418 = vpack.c.b16 %v1182, %v1178
  %v1419 = vpack.c.b16 %v1183, %v1179
  %v1420 = vpack.c.b16 %v1184, %v1180
  %v1421 = vpack.c.b16 %v1189, %v1185
  %v1422 = vpack.c.b16 %v1190, %v1186
  %v1423 = vpack.c.b16 %v1191, %v1187
  %v1424 = vpack.c.b16 %v1192, %v1188
  %v1425 = vpack.c.b16 %v1197, %v1193
  %v1426 = vpack.c.b16 %v1198, %v1194
  %v1427 = vpack.c.b16 %v1199, %v1195
  %v1428 = vpack.c.b16 %v1200, %v1196
  %v1429 = vpack.c.b16 %v1205, %v1201
  %v1430 = vpack.c.b16 %v1206, %v1202
  %v1431 = vpack.c.b16 %v1207, %v1203
  %v1432 = vpack.c.b16 %v1208, %v1204
  %v1433 = vpack.c.b16 %v1213, %v1209
  %v1434 = vpack.c.b16 %v1214, %v1210
  %v1435 = vpack.c.b16 %v1215, %v1211
  %v1436 = vpack.c.b16 %v1216, %v1212
  %v1437 = vpack.c.b16 %v1221, %v1217
  %v1438 = vpack.c.b16 %v1222, %v1218
  %v1439 = vpack.c.b16 %v1223, %v1219
  %v1440 = vpack.c.b16 %v1224, %v1220
  %v1441 = vpack.c.b16 %v1229, %v1225
  %v1442 = vpack.c.b16 %v1230, %v1226
  %v1443 = vpack.c.b16 %v1231, %v1227
  %v1444 = vpack.c.b16 %v1232, %v1228
  %v1445 = vpack.c.b16 %v1237, %v1233
  %v1446 = vpack.c.b16 %v1238, %v1234
  %v1447 = vpack.c.b16 %v1239, %v1235
  %v1448 = vpack.c.b16 %v1240, %v1236
  %v1449 = vpack.c.b16 %v1245, %v1241
  %v1450 = vpack.c.b16 %v1246, %v1242
  %v1451 = vpack.c.b16 %v1247, %v1243
  %v1452 = vpack.c.b16 %v1248, %v1244
  %v1453 = vpack.c.b16 %v1253, %v1249
  %v1454 = vpack.c.b16 %v1254, %v1250
  %v1455 = vpack.c.b16 %v1255, %v1251
  %v1456 = vpack.c.b16 %v1256, %v1252
  %v1457 = vpack.c.b16 %v1261, %v1257
  %v1458 = vpack.c.b16 %v1262, %v1258
  %v1459 = vpack.c.b16 %v1263, %v1259
  %v1460 = vpack.c.b16 %v1264, %v1260
  %v1461 = vpack.c.b16 %v1269, %v1265
  %v1462 = vpack.c.b16 %v1270, %v1266
  %v1463 = vpack.c.b16 %v1271, %v1267
  %v1464 = vpack.c.b16 %v1272, %v1268
  %1657 = vmatprep.subr.bf16.mxu0 %v1274
  %1658 = vmatpush1.bf16.msra.mxu0 %v1273
  %1659 = vmatprep.subr.bf16.mxu0 %v1278
  %1660 = vmatpush1.bf16.msra.mxu0 %v1277
  %1661 = vmatprep.subr.bf16.mxu0 %v1282
  %1662 = vmatpush1.bf16.msra.mxu0 %v1281
  %1663 = vmatprep.subr.bf16.mxu0 %v1286
  %1664 = vmatpush1.bf16.msra.mxu0 %v1285
  %1665 = vmatprep.subr.bf16.mxu0 %v1290
  %1666 = vmatpush1.bf16.msra.mxu0 %v1289
  %1667 = vmatprep.subr.bf16.mxu0 %v1294
  %1668 = vmatpush1.bf16.msra.mxu0 %v1293
  %1669 = vmatprep.subr.bf16.mxu0 %v1298
  %1670 = vmatpush1.bf16.msra.mxu0 %v1297
  %1671 = vmatprep.subr.bf16.mxu0 %v1302
  %1672 = vmatpush1.bf16.msra.mxu0 %v1301
  %1673 = vmatprep.subr.bf16.mxu0 %v1306
  %1674 = vmatpush1.bf16.msra.mxu0 %v1305
  %1675 = vmatprep.subr.bf16.mxu0 %v1310
  %1676 = vmatpush1.bf16.msra.mxu0 %v1309
  %1677 = vmatprep.subr.bf16.mxu0 %v1314
  %1678 = vmatpush1.bf16.msra.mxu0 %v1313
  %1679 = vmatprep.subr.bf16.mxu0 %v1318
  %1680 = vmatpush1.bf16.msra.mxu0 %v1317
  %1681 = vmatprep.subr.bf16.mxu0 %v1322
  %1682 = vmatpush1.bf16.msra.mxu0 %v1321
  %1683 = vmatprep.subr.bf16.mxu0 %v1326
  %1684 = vmatpush1.bf16.msra.mxu0 %v1325
  %1685 = vmatprep.subr.bf16.mxu0 %v1330
  %1686 = vmatpush1.bf16.msra.mxu0 %v1329
  %1687 = vmatprep.subr.bf16.mxu0 %v1334
  %1688 = vmatpush1.bf16.msra.mxu0 %v1333
  %1689 = vmatprep.mubr.bf16.mxu0 %v506
  %1690 = vmatmul.mubr.bf16.gmra.mrb[0].mxu0 %v505
  %v1691 = vpop.f32.mrb[0].mxu0
  %v1692 = vadd.f32 %v488, %v1691
  %v1693 = vpop.f32.mrb[0].mxu0
  %v1694 = vadd.f32 %v492, %v1693
  %v1695 = vpop.f32.mrb[0].mxu0
  %v1696 = vadd.f32 %v488, %v1695
  %v1697 = vpop.f32.mrb[0].mxu0
  %v1698 = vadd.f32 %v492, %v1697
  %1699 = vmatprep.mubr.bf16.mxu0 %v512
  %1700 = vmatmul.mubr.bf16.gmra.mrb[0].mxu0 %v511
  %v1701 = vpop.f32.mrb[0].mxu0
  %v1702 = vadd.f32 %v488, %v1701
  %v1703 = vpop.f32.mrb[0].mxu0
  %v1704 = vadd.f32 %v492, %v1703
  %v1705 = vpop.f32.mrb[0].mxu0
  %v1706 = vadd.f32 %v488, %v1705
  %v1707 = vpop.f32.mrb[0].mxu0
  %v1708 = vadd.f32 %v492, %v1707
  %1709 = vmatprep.mubr.bf16.mxu0 %v518
  %1710 = vmatmul.mubr.bf16.gmra.mrb[0].mxu0 %v517
  %v1711 = vpop.f32.mrb[0].mxu0
  %v1712 = vadd.f32 %v488, %v1711
  %v1713 = vpop.f32.mrb[0].mxu0
  %v1714 = vadd.f32 %v492, %v1713
  %v1715 = vpop.f32.mrb[0].mxu0
  %v1716 = vadd.f32 %v488, %v1715
  %v1717 = vpop.f32.mrb[0].mxu0
  %v1718 = vadd.f32 %v492, %v1717
  %1719 = vmatprep.mubr.bf16.mxu0 %v524
  %1720 = vmatmul.mubr.bf16.gmra.mrb[0].mxu0 %v523
  %v1721 = vpop.f32.mrb[0].mxu0
  %v1722 = vadd.f32 %v488, %v1721
  %v1723 = vpop.f32.mrb[0].mxu0
  %v1724 = vadd.f32 %v492, %v1723
  %v1725 = vpop.f32.mrb[0].mxu0
  %v1726 = vadd.f32 %v488, %v1725
  %v1727 = vpop.f32.mrb[0].mxu0
  %v1728 = vadd.f32 %v492, %v1727
  %1729 = vmatprep.mubr.bf16.mxu0 %v530
  %1730 = vmatmul.mubr.bf16.gmra.mrb[0].mxu0 %v529
  %v1731 = vpop.f32.mrb[0].mxu0
  %v1732 = vadd.f32 %v488, %v1731
  %v1733 = vpop.f32.mrb[0].mxu0
  %v1734 = vadd.f32 %v492, %v1733
  %v1735 = vpop.f32.mrb[0].mxu0
  %v1736 = vadd.f32 %v488, %v1735
  %v1737 = vpop.f32.mrb[0].mxu0
  %v1738 = vadd.f32 %v492, %v1737
  %1739 = vmatprep.mubr.bf16.mxu0 %v536
  %1740 = vmatmul.mubr.bf16.gmra.mrb[0].mxu0 %v535
  %v1741 = vpop.f32.mrb[0].mxu0
  %v1742 = vadd.f32 %v488, %v1741
  %v1743 = vpop.f32.mrb[0].mxu0
  %v1744 = vadd.f32 %v492, %v1743
  %v1745 = vpop.f32.mrb[0].mxu0
  %v1746 = vadd.f32 %v488, %v1745
  %v1747 = vpop.f32.mrb[0].mxu0
  %v1748 = vadd.f32 %v492, %v1747
  %1749 = vmatprep.mubr.bf16.mxu0 %v542
  %1750 = vmatmul.mubr.bf16.gmra.mrb[0].mxu0 %v541
  %v1751 = vpop.f32.mrb[0].mxu0
  %v1752 = vadd.f32 %v488, %v1751
  %v1753 = vpop.f32.mrb[0].mxu0
  %v1754 = vadd.f32 %v492, %v1753
  %v1755 = vpop.f32.mrb[0].mxu0
  %v1756 = vadd.f32 %v488, %v1755
  %v1757 = vpop.f32.mrb[0].mxu0
  %v1758 = vadd.f32 %v492, %v1757
  %1759 = vmatprep.mubr.bf16.mxu0 %v548
  %1760 = vmatmul.mubr.bf16.gmra.mrb[0].mxu0 %v547
  %v1761 = vpop.f32.mrb[0].mxu0
  %v1762 = vadd.f32 %v488, %v1761
  %v1763 = vpop.f32.mrb[0].mxu0
  %v1764 = vadd.f32 %v492, %v1763
  %v1765 = vpop.f32.mrb[0].mxu0
  %v1766 = vadd.f32 %v488, %v1765
  %v1767 = vpop.f32.mrb[0].mxu0
  %v1768 = vadd.f32 %v492, %v1767
  %1769 = vmatprep.mubr.bf16.mxu0 %v554
  %1770 = vmatmul.mubr.bf16.gmra.mrb[0].mxu0 %v553
  %v1771 = vpop.f32.mrb[0].mxu0
  %v1772 = vadd.f32 %v488, %v1771
  %v1773 = vpop.f32.mrb[0].mxu0
  %v1774 = vadd.f32 %v492, %v1773
  %v1775 = vpop.f32.mrb[0].mxu0
  %v1776 = vadd.f32 %v488, %v1775
  %v1777 = vpop.f32.mrb[0].mxu0
  %v1778 = vadd.f32 %v492, %v1777
  %1779 = vmatprep.mubr.bf16.mxu0 %v560
  %1780 = vmatmul.mubr.bf16.gmra.mrb[0].mxu0 %v559
  %v1781 = vpop.f32.mrb[0].mxu0
  %v1782 = vadd.f32 %v488, %v1781
  %v1783 = vpop.f32.mrb[0].mxu0
  %v1784 = vadd.f32 %v492, %v1783
  %v1785 = vpop.f32.mrb[0].mxu0
  %v1786 = vadd.f32 %v488, %v1785
  %v1787 = vpop.f32.mrb[0].mxu0
  %v1788 = vadd.f32 %v492, %v1787
  %1789 = vmatprep.mubr.bf16.mxu0 %v566
  %1790 = vmatmul.mubr.bf16.gmra.mrb[0].mxu0 %v565
  %v1791 = vpop.f32.mrb[0].mxu0
  %v1792 = vadd.f32 %v488, %v1791
  %v1793 = vpop.f32.mrb[0].mxu0
  %v1794 = vadd.f32 %v492, %v1793
  %v1795 = vpop.f32.mrb[0].mxu0
  %v1796 = vadd.f32 %v488, %v1795
  %v1797 = vpop.f32.mrb[0].mxu0
  %v1798 = vadd.f32 %v492, %v1797
  %1799 = vmatprep.mubr.bf16.mxu0 %v572
  %1800 = vmatmul.mubr.bf16.gmra.mrb[0].mxu0 %v571
  %v1801 = vpop.f32.mrb[0].mxu0
  %v1802 = vadd.f32 %v488, %v1801
  %v1803 = vpop.f32.mrb[0].mxu0
  %v1804 = vadd.f32 %v492, %v1803
  %v1805 = vpop.f32.mrb[0].mxu0
  %v1806 = vadd.f32 %v488, %v1805
  %v1807 = vpop.f32.mrb[0].mxu0
  %v1808 = vadd.f32 %v492, %v1807
  %1809 = vmatprep.mubr.bf16.mxu0 %v578
  %1810 = vmatmul.mubr.bf16.gmra.mrb[0].mxu0 %v577
  %v1811 = vpop.f32.mrb[0].mxu0
  %v1812 = vadd.f32 %v488, %v1811
  %v1813 = vpop.f32.mrb[0].mxu0
  %v1814 = vadd.f32 %v492, %v1813
  %v1815 = vpop.f32.mrb[0].mxu0
  %v1816 = vadd.f32 %v488, %v1815
  %v1817 = vpop.f32.mrb[0].mxu0
  %v1818 = vadd.f32 %v492, %v1817
  %1819 = vmatprep.mubr.bf16.mxu0 %v584
  %1820 = vmatmul.mubr.bf16.gmra.mrb[0].mxu0 %v583
  %v1821 = vpop.f32.mrb[0].mxu0
  %v1822 = vadd.f32 %v488, %v1821
  %v1823 = vpop.f32.mrb[0].mxu0
  %v1824 = vadd.f32 %v492, %v1823
  %v1825 = vpop.f32.mrb[0].mxu0
  %v1826 = vadd.f32 %v488, %v1825
  %v1827 = vpop.f32.mrb[0].mxu0
  %v1828 = vadd.f32 %v492, %v1827
  %1829 = vmatprep.mubr.bf16.mxu0 %v590
  %1830 = vmatmul.mubr.bf16.gmra.mrb[0].mxu0 %v589
  %v1831 = vpop.f32.mrb[0].mxu0
  %v1832 = vadd.f32 %v488, %v1831
  %v1833 = vpop.f32.mrb[0].mxu0
  %v1834 = vadd.f32 %v492, %v1833
  %v1835 = vpop.f32.mrb[0].mxu0
  %v1836 = vadd.f32 %v488, %v1835
  %v1837 = vpop.f32.mrb[0].mxu0
  %v1838 = vadd.f32 %v492, %v1837
  %1839 = vmatprep.mubr.bf16.mxu0 %v596
  %1840 = vmatmul.mubr.bf16.gmra.mrb[0].mxu0 %v595
  %v1841 = vpop.f32.mrb[0].mxu0
  %v1842 = vadd.f32 %v488, %v1841
  %v1843 = vpop.f32.mrb[0].mxu0
  %v1844 = vadd.f32 %v492, %v1843
  %v1845 = vpop.f32.mrb[0].mxu0
  %v1846 = vadd.f32 %v488, %v1845
  %v1847 = vpop.f32.mrb[0].mxu0
  %v1848 = vadd.f32 %v492, %v1847
  %1849 = vdwg.mxu0
  %1850 = vmatprep.subr.bf16.mxu0 %v1338
  %1851 = vmatpush1.bf16.msra.mxu0 %v1337
  %1852 = vmatprep.subr.bf16.mxu0 %v1342
  %1853 = vmatpush1.bf16.msra.mxu0 %v1341
  %1854 = vmatprep.subr.bf16.mxu0 %v1346
  %1855 = vmatpush1.bf16.msra.mxu0 %v1345
  %1856 = vmatprep.subr.bf16.mxu0 %v1350
  %1857 = vmatpush1.bf16.msra.mxu0 %v1349
  %1858 = vmatprep.subr.bf16.mxu0 %v1354
  %1859 = vmatpush1.bf16.msra.mxu0 %v1353
  %1860 = vmatprep.subr.bf16.mxu0 %v1358
  %1861 = vmatpush1.bf16.msra.mxu0 %v1357
  %1862 = vmatprep.subr.bf16.mxu0 %v1362
  %1863 = vmatpush1.bf16.msra.mxu0 %v1361
  %1864 = vmatprep.subr.bf16.mxu0 %v1366
  %1865 = vmatpush1.bf16.msra.mxu0 %v1365
  %1866 = vmatprep.subr.bf16.mxu0 %v1370
  %1867 = vmatpush1.bf16.msra.mxu0 %v1369
  %1868 = vmatprep.subr.bf16.mxu0 %v1374
  %1869 = vmatpush1.bf16.msra.mxu0 %v1373
  %1870 = vmatprep.subr.bf16.mxu0 %v1378
  %1871 = vmatpush1.bf16.msra.mxu0 %v1377
  %1872 = vmatprep.subr.bf16.mxu0 %v1382
  %1873 = vmatpush1.bf16.msra.mxu0 %v1381
  %1874 = vmatprep.subr.bf16.mxu0 %v1386
  %1875 = vmatpush1.bf16.msra.mxu0 %v1385
  %1876 = vmatprep.subr.bf16.mxu0 %v1390
  %1877 = vmatpush1.bf16.msra.mxu0 %v1389
  %1878 = vmatprep.subr.bf16.mxu0 %v1394
  %1879 = vmatpush1.bf16.msra.mxu0 %v1393
  %1880 = vmatprep.subr.bf16.mxu0 %v1398
  %1881 = vmatpush1.bf16.msra.mxu0 %v1397
  %1882 = vmatprep.mubr.bf16.mxu0 %v508
  %1883 = vmatmul.mubr.bf16.gmra.mrb[0].mxu0 %v507
  %v1884 = vpop.f32.mrb[0].mxu0
  %v1885 = vadd.f32 %v1692, %v1884
  %v1886 = vpop.f32.mrb[0].mxu0
  %v1887 = vadd.f32 %v1694, %v1886
  %v1888 = vpop.f32.mrb[0].mxu0
  %v1889 = vadd.f32 %v1696, %v1888
  %v1890 = vpop.f32.mrb[0].mxu0
  %v1891 = vadd.f32 %v1698, %v1890
  %1892 = vmatprep.mubr.bf16.mxu0 %v514
  %1893 = vmatmul.mubr.bf16.gmra.mrb[0].mxu0 %v513
  %v1894 = vpop.f32.mrb[0].mxu0
  %v1895 = vadd.f32 %v1702, %v1894
  %v1896 = vpop.f32.mrb[0].mxu0
  %v1897 = vadd.f32 %v1704, %v1896
  %v1898 = vpop.f32.mrb[0].mxu0
  %v1899 = vadd.f32 %v1706, %v1898
  %v1900 = vpop.f32.mrb[0].mxu0
  %v1901 = vadd.f32 %v1708, %v1900
  %1902 = vmatprep.mubr.bf16.mxu0 %v520
  %1903 = vmatmul.mubr.bf16.gmra.mrb[0].mxu0 %v519
  %v1904 = vpop.f32.mrb[0].mxu0
  %v1905 = vadd.f32 %v1712, %v1904
  %v1906 = vpop.f32.mrb[0].mxu0
  %v1907 = vadd.f32 %v1714, %v1906
  %v1908 = vpop.f32.mrb[0].mxu0
  %v1909 = vadd.f32 %v1716, %v1908
  %v1910 = vpop.f32.mrb[0].mxu0
  %v1911 = vadd.f32 %v1718, %v1910
  %1912 = vmatprep.mubr.bf16.mxu0 %v526
  %1913 = vmatmul.mubr.bf16.gmra.mrb[0].mxu0 %v525
  %v1914 = vpop.f32.mrb[0].mxu0
  %v1915 = vadd.f32 %v1722, %v1914
  %v1916 = vpop.f32.mrb[0].mxu0
  %v1917 = vadd.f32 %v1724, %v1916
  %v1918 = vpop.f32.mrb[0].mxu0
  %v1919 = vadd.f32 %v1726, %v1918
  %v1920 = vpop.f32.mrb[0].mxu0
  %v1921 = vadd.f32 %v1728, %v1920
  %1922 = vmatprep.mubr.bf16.mxu0 %v532
  %1923 = vmatmul.mubr.bf16.gmra.mrb[0].mxu0 %v531
  %v1924 = vpop.f32.mrb[0].mxu0
  %v1925 = vadd.f32 %v1732, %v1924
  %v1926 = vpop.f32.mrb[0].mxu0
  %v1927 = vadd.f32 %v1734, %v1926
  %v1928 = vpop.f32.mrb[0].mxu0
  %v1929 = vadd.f32 %v1736, %v1928
  %v1930 = vpop.f32.mrb[0].mxu0
  %v1931 = vadd.f32 %v1738, %v1930
  %1932 = vmatprep.mubr.bf16.mxu0 %v538
  %1933 = vmatmul.mubr.bf16.gmra.mrb[0].mxu0 %v537
  %v1934 = vpop.f32.mrb[0].mxu0
  %v1935 = vadd.f32 %v1742, %v1934
  %v1936 = vpop.f32.mrb[0].mxu0
  %v1937 = vadd.f32 %v1744, %v1936
  %v1938 = vpop.f32.mrb[0].mxu0
  %v1939 = vadd.f32 %v1746, %v1938
  %v1940 = vpop.f32.mrb[0].mxu0
  %v1941 = vadd.f32 %v1748, %v1940
  %1942 = vmatprep.mubr.bf16.mxu0 %v544
  %1943 = vmatmul.mubr.bf16.gmra.mrb[0].mxu0 %v543
  %v1944 = vpop.f32.mrb[0].mxu0
  %v1945 = vadd.f32 %v1752, %v1944
  %v1946 = vpop.f32.mrb[0].mxu0
  %v1947 = vadd.f32 %v1754, %v1946
  %v1948 = vpop.f32.mrb[0].mxu0
  %v1949 = vadd.f32 %v1756, %v1948
  %v1950 = vpop.f32.mrb[0].mxu0
  %v1951 = vadd.f32 %v1758, %v1950
  %1952 = vmatprep.mubr.bf16.mxu0 %v550
  %1953 = vmatmul.mubr.bf16.gmra.mrb[0].mxu0 %v549
  %v1954 = vpop.f32.mrb[0].mxu0
  %v1955 = vadd.f32 %v1762, %v1954
  %v1956 = vpop.f32.mrb[0].mxu0
  %v1957 = vadd.f32 %v1764, %v1956
  %v1958 = vpop.f32.mrb[0].mxu0
  %v1959 = vadd.f32 %v1766, %v1958
  %v1960 = vpop.f32.mrb[0].mxu0
  %v1961 = vadd.f32 %v1768, %v1960
  %1962 = vmatprep.mubr.bf16.mxu0 %v556
  %1963 = vmatmul.mubr.bf16.gmra.mrb[0].mxu0 %v555
  %v1964 = vpop.f32.mrb[0].mxu0
  %v1965 = vadd.f32 %v1772, %v1964
  %v1966 = vpop.f32.mrb[0].mxu0
  %v1967 = vadd.f32 %v1774, %v1966
  %v1968 = vpop.f32.mrb[0].mxu0
  %v1969 = vadd.f32 %v1776, %v1968
  %v1970 = vpop.f32.mrb[0].mxu0
  %v1971 = vadd.f32 %v1778, %v1970
  %1972 = vmatprep.mubr.bf16.mxu0 %v562
  %1973 = vmatmul.mubr.bf16.gmra.mrb[0].mxu0 %v561
  %v1974 = vpop.f32.mrb[0].mxu0
  %v1975 = vadd.f32 %v1782, %v1974
  %v1976 = vpop.f32.mrb[0].mxu0
  %v1977 = vadd.f32 %v1784, %v1976
  %v1978 = vpop.f32.mrb[0].mxu0
  %v1979 = vadd.f32 %v1786, %v1978
  %v1980 = vpop.f32.mrb[0].mxu0
  %v1981 = vadd.f32 %v1788, %v1980
  %1982 = vmatprep.mubr.bf16.mxu0 %v568
  %1983 = vmatmul.mubr.bf16.gmra.mrb[0].mxu0 %v567
  %v1984 = vpop.f32.mrb[0].mxu0
  %v1985 = vadd.f32 %v1792, %v1984
  %v1986 = vpop.f32.mrb[0].mxu0
  %v1987 = vadd.f32 %v1794, %v1986
  %v1988 = vpop.f32.mrb[0].mxu0
  %v1989 = vadd.f32 %v1796, %v1988
  %v1990 = vpop.f32.mrb[0].mxu0
  %v1991 = vadd.f32 %v1798, %v1990
  %1992 = vmatprep.mubr.bf16.mxu0 %v574
  %1993 = vmatmul.mubr.bf16.gmra.mrb[0].mxu0 %v573
  %v1994 = vpop.f32.mrb[0].mxu0
  %v1995 = vadd.f32 %v1802, %v1994
  %v1996 = vpop.f32.mrb[0].mxu0
  %v1997 = vadd.f32 %v1804, %v1996
  %v1998 = vpop.f32.mrb[0].mxu0
  %v1999 = vadd.f32 %v1806, %v1998
  %v2000 = vpop.f32.mrb[0].mxu0
  %v2001 = vadd.f32 %v1808, %v2000
  %2002 = vmatprep.mubr.bf16.mxu0 %v580
  %2003 = vmatmul.mubr.bf16.gmra.mrb[0].mxu0 %v579
  %v2004 = vpop.f32.mrb[0].mxu0
  %v2005 = vadd.f32 %v1812, %v2004
  %v2006 = vpop.f32.mrb[0].mxu0
  %v2007 = vadd.f32 %v1814, %v2006
  %v2008 = vpop.f32.mrb[0].mxu0
  %v2009 = vadd.f32 %v1816, %v2008
  %v2010 = vpop.f32.mrb[0].mxu0
  %v2011 = vadd.f32 %v1818, %v2010
  %2012 = vmatprep.mubr.bf16.mxu0 %v586
  %2013 = vmatmul.mubr.bf16.gmra.mrb[0].mxu0 %v585
  %v2014 = vpop.f32.mrb[0].mxu0
  %v2015 = vadd.f32 %v1822, %v2014
  %v2016 = vpop.f32.mrb[0].mxu0
  %v2017 = vadd.f32 %v1824, %v2016
  %v2018 = vpop.f32.mrb[0].mxu0
  %v2019 = vadd.f32 %v1826, %v2018
  %v2020 = vpop.f32.mrb[0].mxu0
  %v2021 = vadd.f32 %v1828, %v2020
  %2022 = vmatprep.mubr.bf16.mxu0 %v592
  %2023 = vmatmul.mubr.bf16.gmra.mrb[0].mxu0 %v591
  %v2024 = vpop.f32.mrb[0].mxu0
  %v2025 = vadd.f32 %v1832, %v2024
  %v2026 = vpop.f32.mrb[0].mxu0
  %v2027 = vadd.f32 %v1834, %v2026
  %v2028 = vpop.f32.mrb[0].mxu0
  %v2029 = vadd.f32 %v1836, %v2028
  %v2030 = vpop.f32.mrb[0].mxu0
  %v2031 = vadd.f32 %v1838, %v2030
  %2032 = vmatprep.mubr.bf16.mxu0 %v598
  %2033 = vmatmul.mubr.bf16.gmra.mrb[0].mxu0 %v597
  %v2034 = vpop.f32.mrb[0].mxu0
  %v2035 = vadd.f32 %v1842, %v2034
  %v2036 = vpop.f32.mrb[0].mxu0
  %v2037 = vadd.f32 %v1844, %v2036
  %v2038 = vpop.f32.mrb[0].mxu0
  %v2039 = vadd.f32 %v1846, %v2038
  %v2040 = vpop.f32.mrb[0].mxu0
  %v2041 = vadd.f32 %v1848, %v2040
  %2042 = vdwg.mxu0
  %2043 = vmatprep.subr.bf16.mxu0 %v1402
  %2044 = vmatpush1.bf16.msra.mxu0 %v1401
  %2045 = vmatprep.subr.bf16.mxu0 %v1406
  %2046 = vmatpush1.bf16.msra.mxu0 %v1405
  %2047 = vmatprep.subr.bf16.mxu0 %v1410
  %2048 = vmatpush1.bf16.msra.mxu0 %v1409
  %2049 = vmatprep.subr.bf16.mxu0 %v1414
  %2050 = vmatpush1.bf16.msra.mxu0 %v1413
  %2051 = vmatprep.subr.bf16.mxu0 %v1418
  %2052 = vmatpush1.bf16.msra.mxu0 %v1417
  %2053 = vmatprep.subr.bf16.mxu0 %v1422
  %2054 = vmatpush1.bf16.msra.mxu0 %v1421
  %2055 = vmatprep.subr.bf16.mxu0 %v1426
  %2056 = vmatpush1.bf16.msra.mxu0 %v1425
  %2057 = vmatprep.subr.bf16.mxu0 %v1430
  %2058 = vmatpush1.bf16.msra.mxu0 %v1429
  %2059 = vmatprep.subr.bf16.mxu0 %v1434
  %2060 = vmatpush1.bf16.msra.mxu0 %v1433
  %2061 = vmatprep.subr.bf16.mxu0 %v1438
  %2062 = vmatpush1.bf16.msra.mxu0 %v1437
  %2063 = vmatprep.subr.bf16.mxu0 %v1442
  %2064 = vmatpush1.bf16.msra.mxu0 %v1441
  %2065 = vmatprep.subr.bf16.mxu0 %v1446
  %2066 = vmatpush1.bf16.msra.mxu0 %v1445
  %2067 = vmatprep.subr.bf16.mxu0 %v1450
  %2068 = vmatpush1.bf16.msra.mxu0 %v1449
  %2069 = vmatprep.subr.bf16.mxu0 %v1454
  %2070 = vmatpush1.bf16.msra.mxu0 %v1453
  %2071 = vmatprep.subr.bf16.mxu0 %v1458
  %2072 = vmatpush1.bf16.msra.mxu0 %v1457
  %2073 = vmatprep.subr.bf16.mxu0 %v1462
  %2074 = vmatpush1.bf16.msra.mxu0 %v1461
  %2075 = vmatprep.mubr.bf16.mxu0 %v510
  %2076 = vmatmul.mubr.bf16.gmra.mrb[0].mxu0 %v509
  %v2077 = vpop.f32.mrb[0].mxu0
  %v2078 = vadd.f32 %v1885, %v2077
  %v2079 = vpop.f32.mrb[0].mxu0
  %v2080 = vadd.f32 %v1887, %v2079
  %v2081 = vpop.f32.mrb[0].mxu0
  %v2082 = vadd.f32 %v1889, %v2081
  %v2083 = vpop.f32.mrb[0].mxu0
  %v2084 = vadd.f32 %v1891, %v2083
  %2085 = vmatprep.mubr.bf16.mxu0 %v516
  %2086 = vmatmul.mubr.bf16.gmra.mrb[0].mxu0 %v515
  %v2087 = vpop.f32.mrb[0].mxu0
  %v2088 = vadd.f32 %v1895, %v2087
  %v2089 = vpop.f32.mrb[0].mxu0
  %v2090 = vadd.f32 %v1897, %v2089
  %v2091 = vpop.f32.mrb[0].mxu0
  %v2092 = vadd.f32 %v1899, %v2091
  %v2093 = vpop.f32.mrb[0].mxu0
  %v2094 = vadd.f32 %v1901, %v2093
  %2095 = vmatprep.mubr.bf16.mxu0 %v522
  %2096 = vmatmul.mubr.bf16.gmra.mrb[0].mxu0 %v521
  %v2097 = vpop.f32.mrb[0].mxu0
  %v2098 = vadd.f32 %v1905, %v2097
  %v2099 = vpop.f32.mrb[0].mxu0
  %v2100 = vadd.f32 %v1907, %v2099
  %v2101 = vpop.f32.mrb[0].mxu0
  %v2102 = vadd.f32 %v1909, %v2101
  %v2103 = vpop.f32.mrb[0].mxu0
  %v2104 = vadd.f32 %v1911, %v2103
  %2105 = vmatprep.mubr.bf16.mxu0 %v528
  %2106 = vmatmul.mubr.bf16.gmra.mrb[0].mxu0 %v527
  %v2107 = vpop.f32.mrb[0].mxu0
  %v2108 = vadd.f32 %v1915, %v2107
  %v2109 = vpop.f32.mrb[0].mxu0
  %v2110 = vadd.f32 %v1917, %v2109
  %v2111 = vpop.f32.mrb[0].mxu0
  %v2112 = vadd.f32 %v1919, %v2111
  %v2113 = vpop.f32.mrb[0].mxu0
  %v2114 = vadd.f32 %v1921, %v2113
  %2115 = vmatprep.mubr.bf16.mxu0 %v534
  %2116 = vmatmul.mubr.bf16.gmra.mrb[0].mxu0 %v533
  %v2117 = vpop.f32.mrb[0].mxu0
  %v2118 = vadd.f32 %v1925, %v2117
  %v2119 = vpop.f32.mrb[0].mxu0
  %v2120 = vadd.f32 %v1927, %v2119
  %v2121 = vpop.f32.mrb[0].mxu0
  %v2122 = vadd.f32 %v1929, %v2121
  %v2123 = vpop.f32.mrb[0].mxu0
  %v2124 = vadd.f32 %v1931, %v2123
  %2125 = vmatprep.mubr.bf16.mxu0 %v540
  %2126 = vmatmul.mubr.bf16.gmra.mrb[0].mxu0 %v539
  %v2127 = vpop.f32.mrb[0].mxu0
  %v2128 = vadd.f32 %v1935, %v2127
  %v2129 = vpop.f32.mrb[0].mxu0
  %v2130 = vadd.f32 %v1937, %v2129
  %v2131 = vpop.f32.mrb[0].mxu0
  %v2132 = vadd.f32 %v1939, %v2131
  %v2133 = vpop.f32.mrb[0].mxu0
  %v2134 = vadd.f32 %v1941, %v2133
  %2135 = vmatprep.mubr.bf16.mxu0 %v546
  %2136 = vmatmul.mubr.bf16.gmra.mrb[0].mxu0 %v545
  %v2137 = vpop.f32.mrb[0].mxu0
  %v2138 = vadd.f32 %v1945, %v2137
  %v2139 = vpop.f32.mrb[0].mxu0
  %v2140 = vadd.f32 %v1947, %v2139
  %v2141 = vpop.f32.mrb[0].mxu0
  %v2142 = vadd.f32 %v1949, %v2141
  %v2143 = vpop.f32.mrb[0].mxu0
  %v2144 = vadd.f32 %v1951, %v2143
  %2145 = vmatprep.mubr.bf16.mxu0 %v552
  %2146 = vmatmul.mubr.bf16.gmra.mrb[0].mxu0 %v551
  %v2147 = vpop.f32.mrb[0].mxu0
  %v2148 = vadd.f32 %v1955, %v2147
  %v2149 = vpop.f32.mrb[0].mxu0
  %v2150 = vadd.f32 %v1957, %v2149
  %v2151 = vpop.f32.mrb[0].mxu0
  %v2152 = vadd.f32 %v1959, %v2151
  %v2153 = vpop.f32.mrb[0].mxu0
  %v2154 = vadd.f32 %v1961, %v2153
  %2155 = vmatprep.mubr.bf16.mxu0 %v558
  %2156 = vmatmul.mubr.bf16.gmra.mrb[0].mxu0 %v557
  %v2157 = vpop.f32.mrb[0].mxu0
  %v2158 = vadd.f32 %v1965, %v2157
  %v2159 = vpop.f32.mrb[0].mxu0
  %v2160 = vadd.f32 %v1967, %v2159
  %v2161 = vpop.f32.mrb[0].mxu0
  %v2162 = vadd.f32 %v1969, %v2161
  %v2163 = vpop.f32.mrb[0].mxu0
  %v2164 = vadd.f32 %v1971, %v2163
  %2165 = vmatprep.mubr.bf16.mxu0 %v564
  %2166 = vmatmul.mubr.bf16.gmra.mrb[0].mxu0 %v563
  %v2167 = vpop.f32.mrb[0].mxu0
  %v2168 = vadd.f32 %v1975, %v2167
  %v2169 = vpop.f32.mrb[0].mxu0
  %v2170 = vadd.f32 %v1977, %v2169
  %v2171 = vpop.f32.mrb[0].mxu0
  %v2172 = vadd.f32 %v1979, %v2171
  %v2173 = vpop.f32.mrb[0].mxu0
  %v2174 = vadd.f32 %v1981, %v2173
  %2175 = vmatprep.mubr.bf16.mxu0 %v570
  %2176 = vmatmul.mubr.bf16.gmra.mrb[0].mxu0 %v569
  %v2177 = vpop.f32.mrb[0].mxu0
  %v2178 = vadd.f32 %v1985, %v2177
  %v2179 = vpop.f32.mrb[0].mxu0
  %v2180 = vadd.f32 %v1987, %v2179
  %v2181 = vpop.f32.mrb[0].mxu0
  %v2182 = vadd.f32 %v1989, %v2181
  %v2183 = vpop.f32.mrb[0].mxu0
  %v2184 = vadd.f32 %v1991, %v2183
  %2185 = vmatprep.mubr.bf16.mxu0 %v576
  %2186 = vmatmul.mubr.bf16.gmra.mrb[0].mxu0 %v575
  %v2187 = vpop.f32.mrb[0].mxu0
  %v2188 = vadd.f32 %v1995, %v2187
  %v2189 = vpop.f32.mrb[0].mxu0
  %v2190 = vadd.f32 %v1997, %v2189
  %v2191 = vpop.f32.mrb[0].mxu0
  %v2192 = vadd.f32 %v1999, %v2191
  %v2193 = vpop.f32.mrb[0].mxu0
  %v2194 = vadd.f32 %v2001, %v2193
  %2195 = vmatprep.mubr.bf16.mxu0 %v582
  %2196 = vmatmul.mubr.bf16.gmra.mrb[0].mxu0 %v581
  %v2197 = vpop.f32.mrb[0].mxu0
  %v2198 = vadd.f32 %v2005, %v2197
  %v2199 = vpop.f32.mrb[0].mxu0
  %v2200 = vadd.f32 %v2007, %v2199
  %v2201 = vpop.f32.mrb[0].mxu0
  %v2202 = vadd.f32 %v2009, %v2201
  %v2203 = vpop.f32.mrb[0].mxu0
  %v2204 = vadd.f32 %v2011, %v2203
  %2205 = vmatprep.mubr.bf16.mxu0 %v588
  %2206 = vmatmul.mubr.bf16.gmra.mrb[0].mxu0 %v587
  %v2207 = vpop.f32.mrb[0].mxu0
  %v2208 = vadd.f32 %v2015, %v2207
  %v2209 = vpop.f32.mrb[0].mxu0
  %v2210 = vadd.f32 %v2017, %v2209
  %v2211 = vpop.f32.mrb[0].mxu0
  %v2212 = vadd.f32 %v2019, %v2211
  %v2213 = vpop.f32.mrb[0].mxu0
  %v2214 = vadd.f32 %v2021, %v2213
  %2215 = vmatprep.mubr.bf16.mxu0 %v594
  %2216 = vmatmul.mubr.bf16.gmra.mrb[0].mxu0 %v593
  %v2217 = vpop.f32.mrb[0].mxu0
  %v2218 = vadd.f32 %v2025, %v2217
  %v2219 = vpop.f32.mrb[0].mxu0
  %v2220 = vadd.f32 %v2027, %v2219
  %v2221 = vpop.f32.mrb[0].mxu0
  %v2222 = vadd.f32 %v2029, %v2221
  %v2223 = vpop.f32.mrb[0].mxu0
  %v2224 = vadd.f32 %v2031, %v2223
  %2225 = vmatprep.mubr.bf16.mxu0 %v600
  %2226 = vmatmul.mubr.bf16.gmra.mrb[0].mxu0 %v599
  %v2227 = vpop.f32.mrb[0].mxu0
  %v2228 = vadd.f32 %v2035, %v2227
  %v2229 = vpop.f32.mrb[0].mxu0
  %v2230 = vadd.f32 %v2037, %v2229
  %v2231 = vpop.f32.mrb[0].mxu0
  %v2232 = vadd.f32 %v2039, %v2231
  %v2233 = vpop.f32.mrb[0].mxu0
  %v2234 = vadd.f32 %v2041, %v2233
  %2235 = vdwg.mxu0
  %2236 = vmatprep.subr.bf16.mxu0 %v1276
  %2237 = vmatpush1.bf16.msra.mxu0 %v1275
  %2238 = vmatprep.subr.bf16.mxu0 %v1280
  %2239 = vmatpush1.bf16.msra.mxu0 %v1279
  %2240 = vmatprep.subr.bf16.mxu0 %v1284
  %2241 = vmatpush1.bf16.msra.mxu0 %v1283
  %2242 = vmatprep.subr.bf16.mxu0 %v1288
  %2243 = vmatpush1.bf16.msra.mxu0 %v1287
  %2244 = vmatprep.subr.bf16.mxu0 %v1292
  %2245 = vmatpush1.bf16.msra.mxu0 %v1291
  %2246 = vmatprep.subr.bf16.mxu0 %v1296
  %2247 = vmatpush1.bf16.msra.mxu0 %v1295
  %2248 = vmatprep.subr.bf16.mxu0 %v1300
  %2249 = vmatpush1.bf16.msra.mxu0 %v1299
  %2250 = vmatprep.subr.bf16.mxu0 %v1304
  %2251 = vmatpush1.bf16.msra.mxu0 %v1303
  %2252 = vmatprep.subr.bf16.mxu0 %v1308
  %2253 = vmatpush1.bf16.msra.mxu0 %v1307
  %2254 = vmatprep.subr.bf16.mxu0 %v1312
  %2255 = vmatpush1.bf16.msra.mxu0 %v1311
  %2256 = vmatprep.subr.bf16.mxu0 %v1316
  %2257 = vmatpush1.bf16.msra.mxu0 %v1315
  %2258 = vmatprep.subr.bf16.mxu0 %v1320
  %2259 = vmatpush1.bf16.msra.mxu0 %v1319
  %2260 = vmatprep.subr.bf16.mxu0 %v1324
  %2261 = vmatpush1.bf16.msra.mxu0 %v1323
  %2262 = vmatprep.subr.bf16.mxu0 %v1328
  %2263 = vmatpush1.bf16.msra.mxu0 %v1327
  %2264 = vmatprep.subr.bf16.mxu0 %v1332
  %2265 = vmatpush1.bf16.msra.mxu0 %v1331
  %2266 = vmatprep.subr.bf16.mxu0 %v1336
  %2267 = vmatpush1.bf16.msra.mxu0 %v1335
  %2268 = vmatprep.mubr.bf16.mxu0 %v506
  %2269 = vmatmul.mubr.bf16.gmra.mrb[0].mxu0 %v505
  %v2270 = vpop.f32.mrb[0].mxu0
  %v2271 = vadd.f32 %v496, %v2270
  %v2272 = vpop.f32.mrb[0].mxu0
  %v2273 = vadd.f32 %v500, %v2272
  %v2274 = vpop.f32.mrb[0].mxu0
  %v2275 = vadd.f32 %v496, %v2274
  %v2276 = vpop.f32.mrb[0].mxu0
  %v2277 = vadd.f32 %v500, %v2276
  %2278 = vmatprep.mubr.bf16.mxu0 %v512
  %2279 = vmatmul.mubr.bf16.gmra.mrb[0].mxu0 %v511
  %v2280 = vpop.f32.mrb[0].mxu0
  %v2281 = vadd.f32 %v496, %v2280
  %v2282 = vpop.f32.mrb[0].mxu0
  %v2283 = vadd.f32 %v500, %v2282
  %v2284 = vpop.f32.mrb[0].mxu0
  %v2285 = vadd.f32 %v496, %v2284
  %v2286 = vpop.f32.mrb[0].mxu0
  %v2287 = vadd.f32 %v500, %v2286
  %2288 = vmatprep.mubr.bf16.mxu0 %v518
  %2289 = vmatmul.mubr.bf16.gmra.mrb[0].mxu0 %v517
  %v2290 = vpop.f32.mrb[0].mxu0
  %v2291 = vadd.f32 %v496, %v2290
  %v2292 = vpop.f32.mrb[0].mxu0
  %v2293 = vadd.f32 %v500, %v2292
  %v2294 = vpop.f32.mrb[0].mxu0
  %v2295 = vadd.f32 %v496, %v2294
  %v2296 = vpop.f32.mrb[0].mxu0
  %v2297 = vadd.f32 %v500, %v2296
  %2298 = vmatprep.mubr.bf16.mxu0 %v524
  %2299 = vmatmul.mubr.bf16.gmra.mrb[0].mxu0 %v523
  %v2300 = vpop.f32.mrb[0].mxu0
  %v2301 = vadd.f32 %v496, %v2300
  %v2302 = vpop.f32.mrb[0].mxu0
  %v2303 = vadd.f32 %v500, %v2302
  %v2304 = vpop.f32.mrb[0].mxu0
  %v2305 = vadd.f32 %v496, %v2304
  %v2306 = vpop.f32.mrb[0].mxu0
  %v2307 = vadd.f32 %v500, %v2306
  %2308 = vmatprep.mubr.bf16.mxu0 %v530
  %2309 = vmatmul.mubr.bf16.gmra.mrb[0].mxu0 %v529
  %v2310 = vpop.f32.mrb[0].mxu0
  %v2311 = vadd.f32 %v496, %v2310
  %v2312 = vpop.f32.mrb[0].mxu0
  %v2313 = vadd.f32 %v500, %v2312
  %v2314 = vpop.f32.mrb[0].mxu0
  %v2315 = vadd.f32 %v496, %v2314
  %v2316 = vpop.f32.mrb[0].mxu0
  %v2317 = vadd.f32 %v500, %v2316
  %2318 = vmatprep.mubr.bf16.mxu0 %v536
  %2319 = vmatmul.mubr.bf16.gmra.mrb[0].mxu0 %v535
  %v2320 = vpop.f32.mrb[0].mxu0
  %v2321 = vadd.f32 %v496, %v2320
  %v2322 = vpop.f32.mrb[0].mxu0
  %v2323 = vadd.f32 %v500, %v2322
  %v2324 = vpop.f32.mrb[0].mxu0
  %v2325 = vadd.f32 %v496, %v2324
  %v2326 = vpop.f32.mrb[0].mxu0
  %v2327 = vadd.f32 %v500, %v2326
  %2328 = vmatprep.mubr.bf16.mxu0 %v542
  %2329 = vmatmul.mubr.bf16.gmra.mrb[0].mxu0 %v541
  %v2330 = vpop.f32.mrb[0].mxu0
  %v2331 = vadd.f32 %v496, %v2330
  %v2332 = vpop.f32.mrb[0].mxu0
  %v2333 = vadd.f32 %v500, %v2332
  %v2334 = vpop.f32.mrb[0].mxu0
  %v2335 = vadd.f32 %v496, %v2334
  %v2336 = vpop.f32.mrb[0].mxu0
  %v2337 = vadd.f32 %v500, %v2336
  %2338 = vmatprep.mubr.bf16.mxu0 %v548
  %2339 = vmatmul.mubr.bf16.gmra.mrb[0].mxu0 %v547
  %v2340 = vpop.f32.mrb[0].mxu0
  %v2341 = vadd.f32 %v496, %v2340
  %v2342 = vpop.f32.mrb[0].mxu0
  %v2343 = vadd.f32 %v500, %v2342
  %v2344 = vpop.f32.mrb[0].mxu0
  %v2345 = vadd.f32 %v496, %v2344
  %v2346 = vpop.f32.mrb[0].mxu0
  %v2347 = vadd.f32 %v500, %v2346
  %2348 = vmatprep.mubr.bf16.mxu0 %v554
  %2349 = vmatmul.mubr.bf16.gmra.mrb[0].mxu0 %v553
  %v2350 = vpop.f32.mrb[0].mxu0
  %v2351 = vadd.f32 %v496, %v2350
  %v2352 = vpop.f32.mrb[0].mxu0
  %v2353 = vadd.f32 %v500, %v2352
  %v2354 = vpop.f32.mrb[0].mxu0
  %v2355 = vadd.f32 %v496, %v2354
  %v2356 = vpop.f32.mrb[0].mxu0
  %v2357 = vadd.f32 %v500, %v2356
  %2358 = vmatprep.mubr.bf16.mxu0 %v560
  %2359 = vmatmul.mubr.bf16.gmra.mrb[0].mxu0 %v559
  %v2360 = vpop.f32.mrb[0].mxu0
  %v2361 = vadd.f32 %v496, %v2360
  %v2362 = vpop.f32.mrb[0].mxu0
  %v2363 = vadd.f32 %v500, %v2362
  %v2364 = vpop.f32.mrb[0].mxu0
  %v2365 = vadd.f32 %v496, %v2364
  %v2366 = vpop.f32.mrb[0].mxu0
  %v2367 = vadd.f32 %v500, %v2366
  %2368 = vmatprep.mubr.bf16.mxu0 %v566
  %2369 = vmatmul.mubr.bf16.gmra.mrb[0].mxu0 %v565
  %v2370 = vpop.f32.mrb[0].mxu0
  %v2371 = vadd.f32 %v496, %v2370
  %v2372 = vpop.f32.mrb[0].mxu0
  %v2373 = vadd.f32 %v500, %v2372
  %v2374 = vpop.f32.mrb[0].mxu0
  %v2375 = vadd.f32 %v496, %v2374
  %v2376 = vpop.f32.mrb[0].mxu0
  %v2377 = vadd.f32 %v500, %v2376
  %2378 = vmatprep.mubr.bf16.mxu0 %v572
  %2379 = vmatmul.mubr.bf16.gmra.mrb[0].mxu0 %v571
  %v2380 = vpop.f32.mrb[0].mxu0
  %v2381 = vadd.f32 %v496, %v2380
  %v2382 = vpop.f32.mrb[0].mxu0
  %v2383 = vadd.f32 %v500, %v2382
  %v2384 = vpop.f32.mrb[0].mxu0
  %v2385 = vadd.f32 %v496, %v2384
  %v2386 = vpop.f32.mrb[0].mxu0
  %v2387 = vadd.f32 %v500, %v2386
  %2388 = vmatprep.mubr.bf16.mxu0 %v578
  %2389 = vmatmul.mubr.bf16.gmra.mrb[0].mxu0 %v577
  %v2390 = vpop.f32.mrb[0].mxu0
  %v2391 = vadd.f32 %v496, %v2390
  %v2392 = vpop.f32.mrb[0].mxu0
  %v2393 = vadd.f32 %v500, %v2392
  %v2394 = vpop.f32.mrb[0].mxu0
  %v2395 = vadd.f32 %v496, %v2394
  %v2396 = vpop.f32.mrb[0].mxu0
  %v2397 = vadd.f32 %v500, %v2396
  %2398 = vmatprep.mubr.bf16.mxu0 %v584
  %2399 = vmatmul.mubr.bf16.gmra.mrb[0].mxu0 %v583
  %v2400 = vpop.f32.mrb[0].mxu0
  %v2401 = vadd.f32 %v496, %v2400
  %v2402 = vpop.f32.mrb[0].mxu0
  %v2403 = vadd.f32 %v500, %v2402
  %v2404 = vpop.f32.mrb[0].mxu0
  %v2405 = vadd.f32 %v496, %v2404
  %v2406 = vpop.f32.mrb[0].mxu0
  %v2407 = vadd.f32 %v500, %v2406
  %2408 = vmatprep.mubr.bf16.mxu0 %v590
  %2409 = vmatmul.mubr.bf16.gmra.mrb[0].mxu0 %v589
  %v2410 = vpop.f32.mrb[0].mxu0
  %v2411 = vadd.f32 %v496, %v2410
  %v2412 = vpop.f32.mrb[0].mxu0
  %v2413 = vadd.f32 %v500, %v2412
  %v2414 = vpop.f32.mrb[0].mxu0
  %v2415 = vadd.f32 %v496, %v2414
  %v2416 = vpop.f32.mrb[0].mxu0
  %v2417 = vadd.f32 %v500, %v2416
  %2418 = vmatprep.mubr.bf16.mxu0 %v596
  %2419 = vmatmul.mubr.bf16.gmra.mrb[0].mxu0 %v595
  %v2420 = vpop.f32.mrb[0].mxu0
  %v2421 = vadd.f32 %v496, %v2420
  %v2422 = vpop.f32.mrb[0].mxu0
  %v2423 = vadd.f32 %v500, %v2422
  %v2424 = vpop.f32.mrb[0].mxu0
  %v2425 = vadd.f32 %v496, %v2424
  %v2426 = vpop.f32.mrb[0].mxu0
  %v2427 = vadd.f32 %v500, %v2426
  %2428 = vdwg.mxu0
  %2429 = vmatprep.subr.bf16.mxu0 %v1340
  %2430 = vmatpush1.bf16.msra.mxu0 %v1339
  %2431 = vmatprep.subr.bf16.mxu0 %v1344
  %2432 = vmatpush1.bf16.msra.mxu0 %v1343
  %2433 = vmatprep.subr.bf16.mxu0 %v1348
  %2434 = vmatpush1.bf16.msra.mxu0 %v1347
  %2435 = vmatprep.subr.bf16.mxu0 %v1352
  %2436 = vmatpush1.bf16.msra.mxu0 %v1351
  %2437 = vmatprep.subr.bf16.mxu0 %v1356
  %2438 = vmatpush1.bf16.msra.mxu0 %v1355
  %2439 = vmatprep.subr.bf16.mxu0 %v1360
  %2440 = vmatpush1.bf16.msra.mxu0 %v1359
  %2441 = vmatprep.subr.bf16.mxu0 %v1364
  %2442 = vmatpush1.bf16.msra.mxu0 %v1363
  %2443 = vmatprep.subr.bf16.mxu0 %v1368
  %2444 = vmatpush1.bf16.msra.mxu0 %v1367
  %2445 = vmatprep.subr.bf16.mxu0 %v1372
  %2446 = vmatpush1.bf16.msra.mxu0 %v1371
  %2447 = vmatprep.subr.bf16.mxu0 %v1376
  %2448 = vmatpush1.bf16.msra.mxu0 %v1375
  %2449 = vmatprep.subr.bf16.mxu0 %v1380
  %2450 = vmatpush1.bf16.msra.mxu0 %v1379
  %2451 = vmatprep.subr.bf16.mxu0 %v1384
  %2452 = vmatpush1.bf16.msra.mxu0 %v1383
  %2453 = vmatprep.subr.bf16.mxu0 %v1388
  %2454 = vmatpush1.bf16.msra.mxu0 %v1387
  %2455 = vmatprep.subr.bf16.mxu0 %v1392
  %2456 = vmatpush1.bf16.msra.mxu0 %v1391
  %2457 = vmatprep.subr.bf16.mxu0 %v1396
  %2458 = vmatpush1.bf16.msra.mxu0 %v1395
  %2459 = vmatprep.subr.bf16.mxu0 %v1400
  %2460 = vmatpush1.bf16.msra.mxu0 %v1399
  %2461 = vmatprep.mubr.bf16.mxu0 %v508
  %2462 = vmatmul.mubr.bf16.gmra.mrb[0].mxu0 %v507
  %v2463 = vpop.f32.mrb[0].mxu0
  %v2464 = vadd.f32 %v2271, %v2463
  %v2465 = vpop.f32.mrb[0].mxu0
  %v2466 = vadd.f32 %v2273, %v2465
  %v2467 = vpop.f32.mrb[0].mxu0
  %v2468 = vadd.f32 %v2275, %v2467
  %v2469 = vpop.f32.mrb[0].mxu0
  %v2470 = vadd.f32 %v2277, %v2469
  %2471 = vmatprep.mubr.bf16.mxu0 %v514
  %2472 = vmatmul.mubr.bf16.gmra.mrb[0].mxu0 %v513
  %v2473 = vpop.f32.mrb[0].mxu0
  %v2474 = vadd.f32 %v2281, %v2473
  %v2475 = vpop.f32.mrb[0].mxu0
  %v2476 = vadd.f32 %v2283, %v2475
  %v2477 = vpop.f32.mrb[0].mxu0
  %v2478 = vadd.f32 %v2285, %v2477
  %v2479 = vpop.f32.mrb[0].mxu0
  %v2480 = vadd.f32 %v2287, %v2479
  %2481 = vmatprep.mubr.bf16.mxu0 %v520
  %2482 = vmatmul.mubr.bf16.gmra.mrb[0].mxu0 %v519
  %v2483 = vpop.f32.mrb[0].mxu0
  %v2484 = vadd.f32 %v2291, %v2483
  %v2485 = vpop.f32.mrb[0].mxu0
  %v2486 = vadd.f32 %v2293, %v2485
  %v2487 = vpop.f32.mrb[0].mxu0
  %v2488 = vadd.f32 %v2295, %v2487
  %v2489 = vpop.f32.mrb[0].mxu0
  %v2490 = vadd.f32 %v2297, %v2489
  %2491 = vmatprep.mubr.bf16.mxu0 %v526
  %2492 = vmatmul.mubr.bf16.gmra.mrb[0].mxu0 %v525
  %v2493 = vpop.f32.mrb[0].mxu0
  %v2494 = vadd.f32 %v2301, %v2493
  %v2495 = vpop.f32.mrb[0].mxu0
  %v2496 = vadd.f32 %v2303, %v2495
  %v2497 = vpop.f32.mrb[0].mxu0
  %v2498 = vadd.f32 %v2305, %v2497
  %v2499 = vpop.f32.mrb[0].mxu0
  %v2500 = vadd.f32 %v2307, %v2499
  %2501 = vmatprep.mubr.bf16.mxu0 %v532
  %2502 = vmatmul.mubr.bf16.gmra.mrb[0].mxu0 %v531
  %v2503 = vpop.f32.mrb[0].mxu0
  %v2504 = vadd.f32 %v2311, %v2503
  %v2505 = vpop.f32.mrb[0].mxu0
  %v2506 = vadd.f32 %v2313, %v2505
  %v2507 = vpop.f32.mrb[0].mxu0
  %v2508 = vadd.f32 %v2315, %v2507
  %v2509 = vpop.f32.mrb[0].mxu0
  %v2510 = vadd.f32 %v2317, %v2509
  %2511 = vmatprep.mubr.bf16.mxu0 %v538
  %2512 = vmatmul.mubr.bf16.gmra.mrb[0].mxu0 %v537
  %v2513 = vpop.f32.mrb[0].mxu0
  %v2514 = vadd.f32 %v2321, %v2513
  %v2515 = vpop.f32.mrb[0].mxu0
  %v2516 = vadd.f32 %v2323, %v2515
  %v2517 = vpop.f32.mrb[0].mxu0
  %v2518 = vadd.f32 %v2325, %v2517
  %v2519 = vpop.f32.mrb[0].mxu0
  %v2520 = vadd.f32 %v2327, %v2519
  %2521 = vmatprep.mubr.bf16.mxu0 %v544
  %2522 = vmatmul.mubr.bf16.gmra.mrb[0].mxu0 %v543
  %v2523 = vpop.f32.mrb[0].mxu0
  %v2524 = vadd.f32 %v2331, %v2523
  %v2525 = vpop.f32.mrb[0].mxu0
  %v2526 = vadd.f32 %v2333, %v2525
  %v2527 = vpop.f32.mrb[0].mxu0
  %v2528 = vadd.f32 %v2335, %v2527
  %v2529 = vpop.f32.mrb[0].mxu0
  %v2530 = vadd.f32 %v2337, %v2529
  %2531 = vmatprep.mubr.bf16.mxu0 %v550
  %2532 = vmatmul.mubr.bf16.gmra.mrb[0].mxu0 %v549
  %v2533 = vpop.f32.mrb[0].mxu0
  %v2534 = vadd.f32 %v2341, %v2533
  %v2535 = vpop.f32.mrb[0].mxu0
  %v2536 = vadd.f32 %v2343, %v2535
  %v2537 = vpop.f32.mrb[0].mxu0
  %v2538 = vadd.f32 %v2345, %v2537
  %v2539 = vpop.f32.mrb[0].mxu0
  %v2540 = vadd.f32 %v2347, %v2539
  %2541 = vmatprep.mubr.bf16.mxu0 %v556
  %2542 = vmatmul.mubr.bf16.gmra.mrb[0].mxu0 %v555
  %v2543 = vpop.f32.mrb[0].mxu0
  %v2544 = vadd.f32 %v2351, %v2543
  %v2545 = vpop.f32.mrb[0].mxu0
  %v2546 = vadd.f32 %v2353, %v2545
  %v2547 = vpop.f32.mrb[0].mxu0
  %v2548 = vadd.f32 %v2355, %v2547
  %v2549 = vpop.f32.mrb[0].mxu0
  %v2550 = vadd.f32 %v2357, %v2549
  %2551 = vmatprep.mubr.bf16.mxu0 %v562
  %2552 = vmatmul.mubr.bf16.gmra.mrb[0].mxu0 %v561
  %v2553 = vpop.f32.mrb[0].mxu0
  %v2554 = vadd.f32 %v2361, %v2553
  %v2555 = vpop.f32.mrb[0].mxu0
  %v2556 = vadd.f32 %v2363, %v2555
  %v2557 = vpop.f32.mrb[0].mxu0
  %v2558 = vadd.f32 %v2365, %v2557
  %v2559 = vpop.f32.mrb[0].mxu0
  %v2560 = vadd.f32 %v2367, %v2559
  %2561 = vmatprep.mubr.bf16.mxu0 %v568
  %2562 = vmatmul.mubr.bf16.gmra.mrb[0].mxu0 %v567
  %v2563 = vpop.f32.mrb[0].mxu0
  %v2564 = vadd.f32 %v2371, %v2563
  %v2565 = vpop.f32.mrb[0].mxu0
  %v2566 = vadd.f32 %v2373, %v2565
  %v2567 = vpop.f32.mrb[0].mxu0
  %v2568 = vadd.f32 %v2375, %v2567
  %v2569 = vpop.f32.mrb[0].mxu0
  %v2570 = vadd.f32 %v2377, %v2569
  %2571 = vmatprep.mubr.bf16.mxu0 %v574
  %2572 = vmatmul.mubr.bf16.gmra.mrb[0].mxu0 %v573
  %v2573 = vpop.f32.mrb[0].mxu0
  %v2574 = vadd.f32 %v2381, %v2573
  %v2575 = vpop.f32.mrb[0].mxu0
  %v2576 = vadd.f32 %v2383, %v2575
  %v2577 = vpop.f32.mrb[0].mxu0
  %v2578 = vadd.f32 %v2385, %v2577
  %v2579 = vpop.f32.mrb[0].mxu0
  %v2580 = vadd.f32 %v2387, %v2579
  %2581 = vmatprep.mubr.bf16.mxu0 %v580
  %2582 = vmatmul.mubr.bf16.gmra.mrb[0].mxu0 %v579
  %v2583 = vpop.f32.mrb[0].mxu0
  %v2584 = vadd.f32 %v2391, %v2583
  %v2585 = vpop.f32.mrb[0].mxu0
  %v2586 = vadd.f32 %v2393, %v2585
  %v2587 = vpop.f32.mrb[0].mxu0
  %v2588 = vadd.f32 %v2395, %v2587
  %v2589 = vpop.f32.mrb[0].mxu0
  %v2590 = vadd.f32 %v2397, %v2589
  %2591 = vmatprep.mubr.bf16.mxu0 %v586
  %2592 = vmatmul.mubr.bf16.gmra.mrb[0].mxu0 %v585
  %v2593 = vpop.f32.mrb[0].mxu0
  %v2594 = vadd.f32 %v2401, %v2593
  %v2595 = vpop.f32.mrb[0].mxu0
  %v2596 = vadd.f32 %v2403, %v2595
  %v2597 = vpop.f32.mrb[0].mxu0
  %v2598 = vadd.f32 %v2405, %v2597
  %v2599 = vpop.f32.mrb[0].mxu0
  %v2600 = vadd.f32 %v2407, %v2599
  %2601 = vmatprep.mubr.bf16.mxu0 %v592
  %2602 = vmatmul.mubr.bf16.gmra.mrb[0].mxu0 %v591
  %v2603 = vpop.f32.mrb[0].mxu0
  %v2604 = vadd.f32 %v2411, %v2603
  %v2605 = vpop.f32.mrb[0].mxu0
  %v2606 = vadd.f32 %v2413, %v2605
  %v2607 = vpop.f32.mrb[0].mxu0
  %v2608 = vadd.f32 %v2415, %v2607
  %v2609 = vpop.f32.mrb[0].mxu0
  %v2610 = vadd.f32 %v2417, %v2609
  %2611 = vmatprep.mubr.bf16.mxu0 %v598
  %2612 = vmatmul.mubr.bf16.gmra.mrb[0].mxu0 %v597
  %v2613 = vpop.f32.mrb[0].mxu0
  %v2614 = vadd.f32 %v2421, %v2613
  %v2615 = vpop.f32.mrb[0].mxu0
  %v2616 = vadd.f32 %v2423, %v2615
  %v2617 = vpop.f32.mrb[0].mxu0
  %v2618 = vadd.f32 %v2425, %v2617
  %v2619 = vpop.f32.mrb[0].mxu0
  %v2620 = vadd.f32 %v2427, %v2619
  %2621 = vdwg.mxu0
  %2622 = vmatprep.subr.bf16.mxu0 %v1404
  %2623 = vmatpush1.bf16.msra.mxu0 %v1403
  %2624 = vmatprep.subr.bf16.mxu0 %v1408
  %2625 = vmatpush1.bf16.msra.mxu0 %v1407
  %2626 = vmatprep.subr.bf16.mxu0 %v1412
  %2627 = vmatpush1.bf16.msra.mxu0 %v1411
  %2628 = vmatprep.subr.bf16.mxu0 %v1416
  %2629 = vmatpush1.bf16.msra.mxu0 %v1415
  %2630 = vmatprep.subr.bf16.mxu0 %v1420
  %2631 = vmatpush1.bf16.msra.mxu0 %v1419
  %2632 = vmatprep.subr.bf16.mxu0 %v1424
  %2633 = vmatpush1.bf16.msra.mxu0 %v1423
  %2634 = vmatprep.subr.bf16.mxu0 %v1428
  %2635 = vmatpush1.bf16.msra.mxu0 %v1427
  %2636 = vmatprep.subr.bf16.mxu0 %v1432
  %2637 = vmatpush1.bf16.msra.mxu0 %v1431
  %2638 = vmatprep.subr.bf16.mxu0 %v1436
  %2639 = vmatpush1.bf16.msra.mxu0 %v1435
  %2640 = vmatprep.subr.bf16.mxu0 %v1440
  %2641 = vmatpush1.bf16.msra.mxu0 %v1439
  %2642 = vmatprep.subr.bf16.mxu0 %v1444
  %2643 = vmatpush1.bf16.msra.mxu0 %v1443
  %2644 = vmatprep.subr.bf16.mxu0 %v1448
  %2645 = vmatpush1.bf16.msra.mxu0 %v1447
  %2646 = vmatprep.subr.bf16.mxu0 %v1452
  %2647 = vmatpush1.bf16.msra.mxu0 %v1451
  %2648 = vmatprep.subr.bf16.mxu0 %v1456
  %2649 = vmatpush1.bf16.msra.mxu0 %v1455
  %2650 = vmatprep.subr.bf16.mxu0 %v1460
  %2651 = vmatpush1.bf16.msra.mxu0 %v1459
  %2652 = vmatprep.subr.bf16.mxu0 %v1464
  %2653 = vmatpush1.bf16.msra.mxu0 %v1463
  %2654 = vmatprep.mubr.bf16.mxu0 %v510
  %2655 = vmatmul.mubr.bf16.gmra.mrb[0].mxu0 %v509
  %v2656 = vpop.f32.mrb[0].mxu0
  %v2657 = vadd.f32 %v2464, %v2656
  %v2658 = vpop.f32.mrb[0].mxu0
  %v2659 = vadd.f32 %v2466, %v2658
  %v2660 = vpop.f32.mrb[0].mxu0
  %v2661 = vadd.f32 %v2468, %v2660
  %v2662 = vpop.f32.mrb[0].mxu0
  %v2663 = vadd.f32 %v2470, %v2662
  %2664 = vmatprep.mubr.bf16.mxu0 %v516
  %2665 = vmatmul.mubr.bf16.gmra.mrb[0].mxu0 %v515
  %v2666 = vpop.f32.mrb[0].mxu0
  %v2667 = vadd.f32 %v2474, %v2666
  %v2668 = vpop.f32.mrb[0].mxu0
  %v2669 = vadd.f32 %v2476, %v2668
  %v2670 = vpop.f32.mrb[0].mxu0
  %v2671 = vadd.f32 %v2478, %v2670
  %v2672 = vpop.f32.mrb[0].mxu0
  %v2673 = vadd.f32 %v2480, %v2672
  %2674 = vmatprep.mubr.bf16.mxu0 %v522
  %2675 = vmatmul.mubr.bf16.gmra.mrb[0].mxu0 %v521
  %v2676 = vpop.f32.mrb[0].mxu0
  %v2677 = vadd.f32 %v2484, %v2676
  %v2678 = vpop.f32.mrb[0].mxu0
  %v2679 = vadd.f32 %v2486, %v2678
  %v2680 = vpop.f32.mrb[0].mxu0
  %v2681 = vadd.f32 %v2488, %v2680
  %v2682 = vpop.f32.mrb[0].mxu0
  %v2683 = vadd.f32 %v2490, %v2682
  %2684 = vmatprep.mubr.bf16.mxu0 %v528
  %2685 = vmatmul.mubr.bf16.gmra.mrb[0].mxu0 %v527
  %v2686 = vpop.f32.mrb[0].mxu0
  %v2687 = vadd.f32 %v2494, %v2686
  %v2688 = vpop.f32.mrb[0].mxu0
  %v2689 = vadd.f32 %v2496, %v2688
  %v2690 = vpop.f32.mrb[0].mxu0
  %v2691 = vadd.f32 %v2498, %v2690
  %v2692 = vpop.f32.mrb[0].mxu0
  %v2693 = vadd.f32 %v2500, %v2692
  %2694 = vmatprep.mubr.bf16.mxu0 %v534
  %2695 = vmatmul.mubr.bf16.gmra.mrb[0].mxu0 %v533
  %v2696 = vpop.f32.mrb[0].mxu0
  %v2697 = vadd.f32 %v2504, %v2696
  %v2698 = vpop.f32.mrb[0].mxu0
  %v2699 = vadd.f32 %v2506, %v2698
  %v2700 = vpop.f32.mrb[0].mxu0
  %v2701 = vadd.f32 %v2508, %v2700
  %v2702 = vpop.f32.mrb[0].mxu0
  %v2703 = vadd.f32 %v2510, %v2702
  %2704 = vmatprep.mubr.bf16.mxu0 %v540
  %2705 = vmatmul.mubr.bf16.gmra.mrb[0].mxu0 %v539
  %v2706 = vpop.f32.mrb[0].mxu0
  %v2707 = vadd.f32 %v2514, %v2706
  %v2708 = vpop.f32.mrb[0].mxu0
  %v2709 = vadd.f32 %v2516, %v2708
  %v2710 = vpop.f32.mrb[0].mxu0
  %v2711 = vadd.f32 %v2518, %v2710
  %v2712 = vpop.f32.mrb[0].mxu0
  %v2713 = vadd.f32 %v2520, %v2712
  %2714 = vmatprep.mubr.bf16.mxu0 %v546
  %2715 = vmatmul.mubr.bf16.gmra.mrb[0].mxu0 %v545
  %v2716 = vpop.f32.mrb[0].mxu0
  %v2717 = vadd.f32 %v2524, %v2716
  %v2718 = vpop.f32.mrb[0].mxu0
  %v2719 = vadd.f32 %v2526, %v2718
  %v2720 = vpop.f32.mrb[0].mxu0
  %v2721 = vadd.f32 %v2528, %v2720
  %v2722 = vpop.f32.mrb[0].mxu0
  %v2723 = vadd.f32 %v2530, %v2722
  %2724 = vmatprep.mubr.bf16.mxu0 %v552
  %2725 = vmatmul.mubr.bf16.gmra.mrb[0].mxu0 %v551
  %v2726 = vpop.f32.mrb[0].mxu0
  %v2727 = vadd.f32 %v2534, %v2726
  %v2728 = vpop.f32.mrb[0].mxu0
  %v2729 = vadd.f32 %v2536, %v2728
  %v2730 = vpop.f32.mrb[0].mxu0
  %v2731 = vadd.f32 %v2538, %v2730
  %v2732 = vpop.f32.mrb[0].mxu0
  %v2733 = vadd.f32 %v2540, %v2732
  %2734 = vmatprep.mubr.bf16.mxu0 %v558
  %2735 = vmatmul.mubr.bf16.gmra.mrb[0].mxu0 %v557
  %v2736 = vpop.f32.mrb[0].mxu0
  %v2737 = vadd.f32 %v2544, %v2736
  %v2738 = vpop.f32.mrb[0].mxu0
  %v2739 = vadd.f32 %v2546, %v2738
  %v2740 = vpop.f32.mrb[0].mxu0
  %v2741 = vadd.f32 %v2548, %v2740
  %v2742 = vpop.f32.mrb[0].mxu0
  %v2743 = vadd.f32 %v2550, %v2742
  %2744 = vmatprep.mubr.bf16.mxu0 %v564
  %2745 = vmatmul.mubr.bf16.gmra.mrb[0].mxu0 %v563
  %v2746 = vpop.f32.mrb[0].mxu0
  %v2747 = vadd.f32 %v2554, %v2746
  %v2748 = vpop.f32.mrb[0].mxu0
  %v2749 = vadd.f32 %v2556, %v2748
  %v2750 = vpop.f32.mrb[0].mxu0
  %v2751 = vadd.f32 %v2558, %v2750
  %v2752 = vpop.f32.mrb[0].mxu0
  %v2753 = vadd.f32 %v2560, %v2752
  %2754 = vmatprep.mubr.bf16.mxu0 %v570
  %2755 = vmatmul.mubr.bf16.gmra.mrb[0].mxu0 %v569
  %v2756 = vpop.f32.mrb[0].mxu0
  %v2757 = vadd.f32 %v2564, %v2756
  %v2758 = vpop.f32.mrb[0].mxu0
  %v2759 = vadd.f32 %v2566, %v2758
  %v2760 = vpop.f32.mrb[0].mxu0
  %v2761 = vadd.f32 %v2568, %v2760
  %v2762 = vpop.f32.mrb[0].mxu0
  %v2763 = vadd.f32 %v2570, %v2762
  %2764 = vmatprep.mubr.bf16.mxu0 %v576
  %2765 = vmatmul.mubr.bf16.gmra.mrb[0].mxu0 %v575
  %v2766 = vpop.f32.mrb[0].mxu0
  %v2767 = vadd.f32 %v2574, %v2766
  %v2768 = vpop.f32.mrb[0].mxu0
  %v2769 = vadd.f32 %v2576, %v2768
  %v2770 = vpop.f32.mrb[0].mxu0
  %v2771 = vadd.f32 %v2578, %v2770
  %v2772 = vpop.f32.mrb[0].mxu0
  %v2773 = vadd.f32 %v2580, %v2772
  %2774 = vmatprep.mubr.bf16.mxu0 %v582
  %2775 = vmatmul.mubr.bf16.gmra.mrb[0].mxu0 %v581
  %v2776 = vpop.f32.mrb[0].mxu0
  %v2777 = vadd.f32 %v2584, %v2776
  %v2778 = vpop.f32.mrb[0].mxu0
  %v2779 = vadd.f32 %v2586, %v2778
  %v2780 = vpop.f32.mrb[0].mxu0
  %v2781 = vadd.f32 %v2588, %v2780
  %v2782 = vpop.f32.mrb[0].mxu0
  %v2783 = vadd.f32 %v2590, %v2782
  %2784 = vmatprep.mubr.bf16.mxu0 %v588
  %2785 = vmatmul.mubr.bf16.gmra.mrb[0].mxu0 %v587
  %v2786 = vpop.f32.mrb[0].mxu0
  %v2787 = vadd.f32 %v2594, %v2786
  %v2788 = vpop.f32.mrb[0].mxu0
  %v2789 = vadd.f32 %v2596, %v2788
  %v2790 = vpop.f32.mrb[0].mxu0
  %v2791 = vadd.f32 %v2598, %v2790
  %v2792 = vpop.f32.mrb[0].mxu0
  %v2793 = vadd.f32 %v2600, %v2792
  %2794 = vmatprep.mubr.bf16.mxu0 %v594
  %2795 = vmatmul.mubr.bf16.gmra.mrb[0].mxu0 %v593
  %v2796 = vpop.f32.mrb[0].mxu0
  %v2797 = vadd.f32 %v2604, %v2796
  %v2798 = vpop.f32.mrb[0].mxu0
  %v2799 = vadd.f32 %v2606, %v2798
  %v2800 = vpop.f32.mrb[0].mxu0
  %v2801 = vadd.f32 %v2608, %v2800
  %v2802 = vpop.f32.mrb[0].mxu0
  %v2803 = vadd.f32 %v2610, %v2802
  %2804 = vmatprep.mubr.bf16.mxu0 %v600
  %2805 = vmatmul.mubr.bf16.gmra.mrb[0].mxu0 %v599
  %v2806 = vpop.f32.mrb[0].mxu0
  %v2807 = vadd.f32 %v2614, %v2806
  %v2808 = vpop.f32.mrb[0].mxu0
  %v2809 = vadd.f32 %v2616, %v2808
  %v2810 = vpop.f32.mrb[0].mxu0
  %v2811 = vadd.f32 %v2618, %v2810
  %v2812 = vpop.f32.mrb[0].mxu0
  %v2813 = vadd.f32 %v2620, %v2812
  %2814 = vdwg.mxu0
  %v2815 = vmax.f32 %v2078, 0.0
  %v2816 = vmax.f32 %v2080, 0.0
  %v2817 = vmax.f32 %v2657, 0.0
  %v2818 = vmax.f32 %v2659, 0.0
  %v2819 = vmax.f32 %v2082, 0.0
  %v2820 = vmax.f32 %v2084, 0.0
  %v2821 = vmax.f32 %v2661, 0.0
  %v2822 = vmax.f32 %v2663, 0.0
  %v2823 = vmax.f32 %v2088, 0.0
  %v2824 = vmax.f32 %v2090, 0.0
  %v2825 = vmax.f32 %v2667, 0.0
  %v2826 = vmax.f32 %v2669, 0.0
  %v2827 = vmax.f32 %v2092, 0.0
  %v2828 = vmax.f32 %v2094, 0.0
  %v2829 = vmax.f32 %v2671, 0.0
  %v2830 = vmax.f32 %v2673, 0.0
  %v2831 = vmax.f32 %v2098, 0.0
  %v2832 = vmax.f32 %v2100, 0.0
  %v2833 = vmax.f32 %v2677, 0.0
  %v2834 = vmax.f32 %v2679, 0.0
  %v2835 = vmax.f32 %v2102, 0.0
  %v2836 = vmax.f32 %v2104, 0.0
  %v2837 = vmax.f32 %v2681, 0.0
  %v2838 = vmax.f32 %v2683, 0.0
  %v2839 = vmax.f32 %v2108, 0.0
  %v2840 = vmax.f32 %v2110, 0.0
  %v2841 = vmax.f32 %v2687, 0.0
  %v2842 = vmax.f32 %v2689, 0.0
  %v2843 = vmax.f32 %v2112, 0.0
  %v2844 = vmax.f32 %v2114, 0.0
  %v2845 = vmax.f32 %v2691, 0.0
  %v2846 = vmax.f32 %v2693, 0.0
  %v2847 = vmax.f32 %v2118, 0.0
  %v2848 = vmax.f32 %v2120, 0.0
  %v2849 = vmax.f32 %v2697, 0.0
  %v2850 = vmax.f32 %v2699, 0.0
  %v2851 = vmax.f32 %v2122, 0.0
  %v2852 = vmax.f32 %v2124, 0.0
  %v2853 = vmax.f32 %v2701, 0.0
  %v2854 = vmax.f32 %v2703, 0.0
  %v2855 = vmax.f32 %v2128, 0.0
  %v2856 = vmax.f32 %v2130, 0.0
  %v2857 = vmax.f32 %v2707, 0.0
  %v2858 = vmax.f32 %v2709, 0.0
  %v2859 = vmax.f32 %v2132, 0.0
  %v2860 = vmax.f32 %v2134, 0.0
  %v2861 = vmax.f32 %v2711, 0.0
  %v2862 = vmax.f32 %v2713, 0.0
  %v2863 = vmax.f32 %v2138, 0.0
  %v2864 = vmax.f32 %v2140, 0.0
  %v2865 = vmax.f32 %v2717, 0.0
  %v2866 = vmax.f32 %v2719, 0.0
  %v2867 = vmax.f32 %v2142, 0.0
  %v2868 = vmax.f32 %v2144, 0.0
  %v2869 = vmax.f32 %v2721, 0.0
  %v2870 = vmax.f32 %v2723, 0.0
  %v2871 = vmax.f32 %v2148, 0.0
  %v2872 = vmax.f32 %v2150, 0.0
  %v2873 = vmax.f32 %v2727, 0.0
  %v2874 = vmax.f32 %v2729, 0.0
  %v2875 = vmax.f32 %v2152, 0.0
  %v2876 = vmax.f32 %v2154, 0.0
  %v2877 = vmax.f32 %v2731, 0.0
  %v2878 = vmax.f32 %v2733, 0.0
  %v2879 = vmax.f32 %v2158, 0.0
  %v2880 = vmax.f32 %v2160, 0.0
  %v2881 = vmax.f32 %v2737, 0.0
  %v2882 = vmax.f32 %v2739, 0.0
  %v2883 = vmax.f32 %v2162, 0.0
  %v2884 = vmax.f32 %v2164, 0.0
  %v2885 = vmax.f32 %v2741, 0.0
  %v2886 = vmax.f32 %v2743, 0.0
  %v2887 = vmax.f32 %v2168, 0.0
  %v2888 = vmax.f32 %v2170, 0.0
  %v2889 = vmax.f32 %v2747, 0.0
  %v2890 = vmax.f32 %v2749, 0.0
  %v2891 = vmax.f32 %v2172, 0.0
  %v2892 = vmax.f32 %v2174, 0.0
  %v2893 = vmax.f32 %v2751, 0.0
  %v2894 = vmax.f32 %v2753, 0.0
  %v2895 = vmax.f32 %v2178, 0.0
  %v2896 = vmax.f32 %v2180, 0.0
  %v2897 = vmax.f32 %v2757, 0.0
  %v2898 = vmax.f32 %v2759, 0.0
  %v2899 = vmax.f32 %v2182, 0.0
  %v2900 = vmax.f32 %v2184, 0.0
  %v2901 = vmax.f32 %v2761, 0.0
  %v2902 = vmax.f32 %v2763, 0.0
  %v2903 = vmax.f32 %v2188, 0.0
  %v2904 = vmax.f32 %v2190, 0.0
  %v2905 = vmax.f32 %v2767, 0.0
  %v2906 = vmax.f32 %v2769, 0.0
  %v2907 = vmax.f32 %v2192, 0.0
  %v2908 = vmax.f32 %v2194, 0.0
  %v2909 = vmax.f32 %v2771, 0.0
  %v2910 = vmax.f32 %v2773, 0.0
  %v2911 = vmax.f32 %v2198, 0.0
  %v2912 = vmax.f32 %v2200, 0.0
  %v2913 = vmax.f32 %v2777, 0.0
  %v2914 = vmax.f32 %v2779, 0.0
  %v2915 = vmax.f32 %v2202, 0.0
  %v2916 = vmax.f32 %v2204, 0.0
  %v2917 = vmax.f32 %v2781, 0.0
  %v2918 = vmax.f32 %v2783, 0.0
  %v2919 = vmax.f32 %v2208, 0.0
  %v2920 = vmax.f32 %v2210, 0.0
  %v2921 = vmax.f32 %v2787, 0.0
  %v2922 = vmax.f32 %v2789, 0.0
  %v2923 = vmax.f32 %v2212, 0.0
  %v2924 = vmax.f32 %v2214, 0.0
  %v2925 = vmax.f32 %v2791, 0.0
  %v2926 = vmax.f32 %v2793, 0.0
  %v2927 = vmax.f32 %v2218, 0.0
  %v2928 = vmax.f32 %v2220, 0.0
  %v2929 = vmax.f32 %v2797, 0.0
  %v2930 = vmax.f32 %v2799, 0.0
  %v2931 = vmax.f32 %v2222, 0.0
  %v2932 = vmax.f32 %v2224, 0.0
  %v2933 = vmax.f32 %v2801, 0.0
  %v2934 = vmax.f32 %v2803, 0.0
  %v2935 = vmax.f32 %v2228, 0.0
  %v2936 = vmax.f32 %v2230, 0.0
  %v2937 = vmax.f32 %v2807, 0.0
  %v2938 = vmax.f32 %v2809, 0.0
  %v2939 = vmax.f32 %v2232, 0.0
  %v2940 = vmax.f32 %v2234, 0.0
  %v2941 = vmax.f32 %v2811, 0.0
  %v2942 = vmax.f32 %v2813, 0.0
  %v2943 = vpack.c.bf16 %v2819, %v2815
  %v2944 = vpack.c.bf16 %v2820, %v2816
  %v2945 = vpack.c.bf16 %v2821, %v2817
  %v2946 = vpack.c.bf16 %v2822, %v2818
  %v2947 = vpack.c.bf16 %v2827, %v2823
  %v2948 = vpack.c.bf16 %v2828, %v2824
  %v2949 = vpack.c.bf16 %v2829, %v2825
  %v2950 = vpack.c.bf16 %v2830, %v2826
  %v2951 = vpack.c.bf16 %v2835, %v2831
  %v2952 = vpack.c.bf16 %v2836, %v2832
  %v2953 = vpack.c.bf16 %v2837, %v2833
  %v2954 = vpack.c.bf16 %v2838, %v2834
  %v2955 = vpack.c.bf16 %v2843, %v2839
  %v2956 = vpack.c.bf16 %v2844, %v2840
  %v2957 = vpack.c.bf16 %v2845, %v2841
  %v2958 = vpack.c.bf16 %v2846, %v2842
  %v2959 = vpack.c.bf16 %v2851, %v2847
  %v2960 = vpack.c.bf16 %v2852, %v2848
  %v2961 = vpack.c.bf16 %v2853, %v2849
  %v2962 = vpack.c.bf16 %v2854, %v2850
  %v2963 = vpack.c.bf16 %v2859, %v2855
  %v2964 = vpack.c.bf16 %v2860, %v2856
  %v2965 = vpack.c.bf16 %v2861, %v2857
  %v2966 = vpack.c.bf16 %v2862, %v2858
  %v2967 = vpack.c.bf16 %v2867, %v2863
  %v2968 = vpack.c.bf16 %v2868, %v2864
  %v2969 = vpack.c.bf16 %v2869, %v2865
  %v2970 = vpack.c.bf16 %v2870, %v2866
  %v2971 = vpack.c.bf16 %v2875, %v2871
  %v2972 = vpack.c.bf16 %v2876, %v2872
  %v2973 = vpack.c.bf16 %v2877, %v2873
  %v2974 = vpack.c.bf16 %v2878, %v2874
  %v2975 = vpack.c.bf16 %v2883, %v2879
  %v2976 = vpack.c.bf16 %v2884, %v2880
  %v2977 = vpack.c.bf16 %v2885, %v2881
  %v2978 = vpack.c.bf16 %v2886, %v2882
  %v2979 = vpack.c.bf16 %v2891, %v2887
  %v2980 = vpack.c.bf16 %v2892, %v2888
  %v2981 = vpack.c.bf16 %v2893, %v2889
  %v2982 = vpack.c.bf16 %v2894, %v2890
  %v2983 = vpack.c.bf16 %v2899, %v2895
  %v2984 = vpack.c.bf16 %v2900, %v2896
  %v2985 = vpack.c.bf16 %v2901, %v2897
  %v2986 = vpack.c.bf16 %v2902, %v2898
  %v2987 = vpack.c.bf16 %v2907, %v2903
  %v2988 = vpack.c.bf16 %v2908, %v2904
  %v2989 = vpack.c.bf16 %v2909, %v2905
  %v2990 = vpack.c.bf16 %v2910, %v2906
  %v2991 = vpack.c.bf16 %v2915, %v2911
  %v2992 = vpack.c.bf16 %v2916, %v2912
  %v2993 = vpack.c.bf16 %v2917, %v2913
  %v2994 = vpack.c.bf16 %v2918, %v2914
  %v2995 = vpack.c.bf16 %v2923, %v2919
  %v2996 = vpack.c.bf16 %v2924, %v2920
  %v2997 = vpack.c.bf16 %v2925, %v2921
  %v2998 = vpack.c.bf16 %v2926, %v2922
  %v2999 = vpack.c.bf16 %v2931, %v2927
  %v3000 = vpack.c.bf16 %v2932, %v2928
  %v3001 = vpack.c.bf16 %v2933, %v2929
  %v3002 = vpack.c.bf16 %v2934, %v2930
  %v3003 = vpack.c.bf16 %v2939, %v2935
  %v3004 = vpack.c.bf16 %v2940, %v2936
  %v3005 = vpack.c.bf16 %v2941, %v2937
  %v3006 = vpack.c.bf16 %v2942, %v2938
  %v3071 = vunpack.c.l.b16 %v2943
  %v3072 = vunpack.c.l.b16 %v2944
  %v3073 = vunpack.c.l.b16 %v2945
  %v3074 = vunpack.c.l.b16 %v2946
  %v3075 = vunpack.c.h.b16 %v2943
  %v3076 = vunpack.c.h.b16 %v2944
  %v3077 = vunpack.c.h.b16 %v2945
  %v3078 = vunpack.c.h.b16 %v2946
  %v3079 = vunpack.c.l.b16 %v2947
  %v3080 = vunpack.c.l.b16 %v2948
  %v3081 = vunpack.c.l.b16 %v2949
  %v3082 = vunpack.c.l.b16 %v2950
  %v3083 = vunpack.c.h.b16 %v2947
  %v3084 = vunpack.c.h.b16 %v2948
  %v3085 = vunpack.c.h.b16 %v2949
  %v3086 = vunpack.c.h.b16 %v2950
  %v3087 = vunpack.c.l.b16 %v2951
  %v3088 = vunpack.c.l.b16 %v2952
  %v3089 = vunpack.c.l.b16 %v2953
  %v3090 = vunpack.c.l.b16 %v2954
  %v3091 = vunpack.c.h.b16 %v2951
  %v3092 = vunpack.c.h.b16 %v2952
  %v3093 = vunpack.c.h.b16 %v2953
  %v3094 = vunpack.c.h.b16 %v2954
  %v3095 = vunpack.c.l.b16 %v2955
  %v3096 = vunpack.c.l.b16 %v2956
  %v3097 = vunpack.c.l.b16 %v2957
  %v3098 = vunpack.c.l.b16 %v2958
  %v3099 = vunpack.c.h.b16 %v2955
  %v3100 = vunpack.c.h.b16 %v2956
  %v3101 = vunpack.c.h.b16 %v2957
  %v3102 = vunpack.c.h.b16 %v2958
  %v3103 = vunpack.c.l.b16 %v2959
  %v3104 = vunpack.c.l.b16 %v2960
  %v3105 = vunpack.c.l.b16 %v2961
  %v3106 = vunpack.c.l.b16 %v2962
  %v3107 = vunpack.c.h.b16 %v2959
  %v3108 = vunpack.c.h.b16 %v2960
  %v3109 = vunpack.c.h.b16 %v2961
  %v3110 = vunpack.c.h.b16 %v2962
  %v3111 = vunpack.c.l.b16 %v2963
  %v3112 = vunpack.c.l.b16 %v2964
  %v3113 = vunpack.c.l.b16 %v2965
  %v3114 = vunpack.c.l.b16 %v2966
  %v3115 = vunpack.c.h.b16 %v2963
  %v3116 = vunpack.c.h.b16 %v2964
  %v3117 = vunpack.c.h.b16 %v2965
  %v3118 = vunpack.c.h.b16 %v2966
  %v3119 = vunpack.c.l.b16 %v2967
  %v3120 = vunpack.c.l.b16 %v2968
  %v3121 = vunpack.c.l.b16 %v2969
  %v3122 = vunpack.c.l.b16 %v2970
  %v3123 = vunpack.c.h.b16 %v2967
  %v3124 = vunpack.c.h.b16 %v2968
  %v3125 = vunpack.c.h.b16 %v2969
  %v3126 = vunpack.c.h.b16 %v2970
  %v3127 = vunpack.c.l.b16 %v2971
  %v3128 = vunpack.c.l.b16 %v2972
  %v3129 = vunpack.c.l.b16 %v2973
  %v3130 = vunpack.c.l.b16 %v2974
  %v3131 = vunpack.c.h.b16 %v2971
  %v3132 = vunpack.c.h.b16 %v2972
  %v3133 = vunpack.c.h.b16 %v2973
  %v3134 = vunpack.c.h.b16 %v2974
  %v3135 = vunpack.c.l.b16 %v2975
  %v3136 = vunpack.c.l.b16 %v2976
  %v3137 = vunpack.c.l.b16 %v2977
  %v3138 = vunpack.c.l.b16 %v2978
  %v3139 = vunpack.c.h.b16 %v2975
  %v3140 = vunpack.c.h.b16 %v2976
  %v3141 = vunpack.c.h.b16 %v2977
  %v3142 = vunpack.c.h.b16 %v2978
  %v3143 = vunpack.c.l.b16 %v2979
  %v3144 = vunpack.c.l.b16 %v2980
  %v3145 = vunpack.c.l.b16 %v2981
  %v3146 = vunpack.c.l.b16 %v2982
  %v3147 = vunpack.c.h.b16 %v2979
  %v3148 = vunpack.c.h.b16 %v2980
  %v3149 = vunpack.c.h.b16 %v2981
  %v3150 = vunpack.c.h.b16 %v2982
  %v3151 = vunpack.c.l.b16 %v2983
  %v3152 = vunpack.c.l.b16 %v2984
  %v3153 = vunpack.c.l.b16 %v2985
  %v3154 = vunpack.c.l.b16 %v2986
  %v3155 = vunpack.c.h.b16 %v2983
  %v3156 = vunpack.c.h.b16 %v2984
  %v3157 = vunpack.c.h.b16 %v2985
  %v3158 = vunpack.c.h.b16 %v2986
  %v3159 = vunpack.c.l.b16 %v2987
  %v3160 = vunpack.c.l.b16 %v2988
  %v3161 = vunpack.c.l.b16 %v2989
  %v3162 = vunpack.c.l.b16 %v2990
  %v3163 = vunpack.c.h.b16 %v2987
  %v3164 = vunpack.c.h.b16 %v2988
  %v3165 = vunpack.c.h.b16 %v2989
  %v3166 = vunpack.c.h.b16 %v2990
  %v3167 = vunpack.c.l.b16 %v2991
  %v3168 = vunpack.c.l.b16 %v2992
  %v3169 = vunpack.c.l.b16 %v2993
  %v3170 = vunpack.c.l.b16 %v2994
  %v3171 = vunpack.c.h.b16 %v2991
  %v3172 = vunpack.c.h.b16 %v2992
  %v3173 = vunpack.c.h.b16 %v2993
  %v3174 = vunpack.c.h.b16 %v2994
  %v3175 = vunpack.c.l.b16 %v2995
  %v3176 = vunpack.c.l.b16 %v2996
  %v3177 = vunpack.c.l.b16 %v2997
  %v3178 = vunpack.c.l.b16 %v2998
  %v3179 = vunpack.c.h.b16 %v2995
  %v3180 = vunpack.c.h.b16 %v2996
  %v3181 = vunpack.c.h.b16 %v2997
  %v3182 = vunpack.c.h.b16 %v2998
  %v3183 = vunpack.c.l.b16 %v2999
  %v3184 = vunpack.c.l.b16 %v3000
  %v3185 = vunpack.c.l.b16 %v3001
  %v3186 = vunpack.c.l.b16 %v3002
  %v3187 = vunpack.c.h.b16 %v2999
  %v3188 = vunpack.c.h.b16 %v3000
  %v3189 = vunpack.c.h.b16 %v3001
  %v3190 = vunpack.c.h.b16 %v3002
  %v3191 = vunpack.c.l.b16 %v3003
  %v3192 = vunpack.c.l.b16 %v3004
  %v3193 = vunpack.c.l.b16 %v3005
  %v3194 = vunpack.c.l.b16 %v3006
  %v3195 = vunpack.c.h.b16 %v3003
  %v3196 = vunpack.c.h.b16 %v3004
  %v3197 = vunpack.c.h.b16 %v3005
  %v3198 = vunpack.c.h.b16 %v3006
  %v3199 = vld [vmem:[%s3] sm:$0xff]
  %v3200 = vld [vmem:[%s3 + $0x8] sm:$0xff]
  %v3201 = vld [vmem:[%s3 + $0x10] sm:$0xff]
  %v3202 = vld [vmem:[%s3 + $0x18] sm:$0xff]
  %v3203 = vld [vmem:[%s3 + $0x20] sm:$0xff]
  %v3204 = vld [vmem:[%s3 + $0x28] sm:$0xff]
  %v3205 = vld [vmem:[%s3 + $0x30] sm:$0xff]
  %v3206 = vld [vmem:[%s3 + $0x38] sm:$0xff]
  %v3207 = vld [vmem:[%s3 + $0x40] sm:$0xff]
  %v3208 = vld [vmem:[%s3 + $0x48] sm:$0xff]
  %v3209 = vld [vmem:[%s3 + $0x50] sm:$0xff]
  %v3210 = vld [vmem:[%s3 + $0x58] sm:$0xff]
  %v3211 = vld [vmem:[%s3 + $0x60] sm:$0xff]
  %v3212 = vld [vmem:[%s3 + $0x68] sm:$0xff]
  %v3213 = vld [vmem:[%s3 + $0x70] sm:$0xff]
  %v3214 = vld [vmem:[%s3 + $0x78] sm:$0xff]
  %v3215 = vld [vmem:[%s3 + $0x80] sm:$0xff]
  %v3216 = vld [vmem:[%s3 + $0x88] sm:$0xff]
  %v3217 = vld [vmem:[%s3 + $0x90] sm:$0xff]
  %v3218 = vld [vmem:[%s3 + $0x98] sm:$0xff]
  %v3219 = vld [vmem:[%s3 + $0xa0] sm:$0xff]
  %v3220 = vld [vmem:[%s3 + $0xa8] sm:$0xff]
  %v3221 = vld [vmem:[%s3 + $0xb0] sm:$0xff]
  %v3222 = vld [vmem:[%s3 + $0xb8] sm:$0xff]
  %v3223 = vld [vmem:[%s3 + $0xc0] sm:$0xff]
  %v3224 = vld [vmem:[%s3 + $0xc8] sm:$0xff]
  %v3225 = vld [vmem:[%s3 + $0xd0] sm:$0xff]
  %v3226 = vld [vmem:[%s3 + $0xd8] sm:$0xff]
  %v3227 = vld [vmem:[%s3 + $0xe0] sm:$0xff]
  %v3228 = vld [vmem:[%s3 + $0xe8] sm:$0xff]
  %v3229 = vld [vmem:[%s3 + $0xf0] sm:$0xff]
  %v3230 = vld [vmem:[%s3 + $0xf8] sm:$0xff]
  %v3231 = vld [vmem:[%s3 + $0x100] sm:$0xff]
  %v3232 = vld [vmem:[%s3 + $0x108] sm:$0xff]
  %v3233 = vld [vmem:[%s3 + $0x110] sm:$0xff]
  %v3234 = vld [vmem:[%s3 + $0x118] sm:$0xff]
  %v3235 = vld [vmem:[%s3 + $0x120] sm:$0xff]
  %v3236 = vld [vmem:[%s3 + $0x128] sm:$0xff]
  %v3237 = vld [vmem:[%s3 + $0x130] sm:$0xff]
  %v3238 = vld [vmem:[%s3 + $0x138] sm:$0xff]
  %v3239 = vld [vmem:[%s3 + $0x140] sm:$0xff]
  %v3240 = vld [vmem:[%s3 + $0x148] sm:$0xff]
  %v3241 = vld [vmem:[%s3 + $0x150] sm:$0xff]
  %v3242 = vld [vmem:[%s3 + $0x158] sm:$0xff]
  %v3243 = vld [vmem:[%s3 + $0x160] sm:$0xff]
  %v3244 = vld [vmem:[%s3 + $0x168] sm:$0xff]
  %v3245 = vld [vmem:[%s3 + $0x170] sm:$0xff]
  %v3246 = vld [vmem:[%s3 + $0x178] sm:$0xff]
  %v3247 = vld [vmem:[%s3 + $0x180] sm:$0xff]
  %v3248 = vld [vmem:[%s3 + $0x188] sm:$0xff]
  %v3249 = vld [vmem:[%s3 + $0x190] sm:$0xff]
  %v3250 = vld [vmem:[%s3 + $0x198] sm:$0xff]
  %v3251 = vld [vmem:[%s3 + $0x1a0] sm:$0xff]
  %v3252 = vld [vmem:[%s3 + $0x1a8] sm:$0xff]
  %v3253 = vld [vmem:[%s3 + $0x1b0] sm:$0xff]
  %v3254 = vld [vmem:[%s3 + $0x1b8] sm:$0xff]
  %v3255 = vld [vmem:[%s3 + $0x1c0] sm:$0xff]
  %v3256 = vld [vmem:[%s3 + $0x1c8] sm:$0xff]
  %v3257 = vld [vmem:[%s3 + $0x1d0] sm:$0xff]
  %v3258 = vld [vmem:[%s3 + $0x1d8] sm:$0xff]
  %v3259 = vld [vmem:[%s3 + $0x1e0] sm:$0xff]
  %v3260 = vld [vmem:[%s3 + $0x1e8] sm:$0xff]
  %v3261 = vld [vmem:[%s3 + $0x1f0] sm:$0xff]
  %v3262 = vld [vmem:[%s3 + $0x1f8] sm:$0xff]
  %v3263 = vld [vmem:[%s3 + $0x200] sm:$0xff]
  %v3264 = vld [vmem:[%s3 + $0x208] sm:$0xff]
  %v3265 = vld [vmem:[%s3 + $0x210] sm:$0xff]
  %v3266 = vld [vmem:[%s3 + $0x218] sm:$0xff]
  %v3267 = vld [vmem:[%s3 + $0x220] sm:$0xff]
  %v3268 = vld [vmem:[%s3 + $0x228] sm:$0xff]
  %v3269 = vld [vmem:[%s3 + $0x230] sm:$0xff]
  %v3270 = vld [vmem:[%s3 + $0x238] sm:$0xff]
  %v3271 = vld [vmem:[%s3 + $0x240] sm:$0xff]
  %v3272 = vld [vmem:[%s3 + $0x248] sm:$0xff]
  %v3273 = vld [vmem:[%s3 + $0x250] sm:$0xff]
  %v3274 = vld [vmem:[%s3 + $0x258] sm:$0xff]
  %v3275 = vld [vmem:[%s3 + $0x260] sm:$0xff]
  %v3276 = vld [vmem:[%s3 + $0x268] sm:$0xff]
  %v3277 = vld [vmem:[%s3 + $0x270] sm:$0xff]
  %v3278 = vld [vmem:[%s3 + $0x278] sm:$0xff]
  %v3279 = vld [vmem:[%s3 + $0x280] sm:$0xff]
  %v3280 = vld [vmem:[%s3 + $0x288] sm:$0xff]
  %v3281 = vld [vmem:[%s3 + $0x290] sm:$0xff]
  %v3282 = vld [vmem:[%s3 + $0x298] sm:$0xff]
  %v3283 = vld [vmem:[%s3 + $0x2a0] sm:$0xff]
  %v3284 = vld [vmem:[%s3 + $0x2a8] sm:$0xff]
  %v3285 = vld [vmem:[%s3 + $0x2b0] sm:$0xff]
  %v3286 = vld [vmem:[%s3 + $0x2b8] sm:$0xff]
  %v3287 = vld [vmem:[%s3 + $0x2c0] sm:$0xff]
  %v3288 = vld [vmem:[%s3 + $0x2c8] sm:$0xff]
  %v3289 = vld [vmem:[%s3 + $0x2d0] sm:$0xff]
  %v3290 = vld [vmem:[%s3 + $0x2d8] sm:$0xff]
  %v3291 = vld [vmem:[%s3 + $0x2e0] sm:$0xff]
  %v3292 = vld [vmem:[%s3 + $0x2e8] sm:$0xff]
  %v3293 = vld [vmem:[%s3 + $0x2f0] sm:$0xff]
  %v3294 = vld [vmem:[%s3 + $0x2f8] sm:$0xff]
  %v3295 = vld [vmem:[%s3 + $0x300] sm:$0xff]
  %v3296 = vld [vmem:[%s3 + $0x308] sm:$0xff]
  %v3297 = vld [vmem:[%s3 + $0x310] sm:$0xff]
  %v3298 = vld [vmem:[%s3 + $0x318] sm:$0xff]
  %v3299 = vld [vmem:[%s3 + $0x320] sm:$0xff]
  %v3300 = vld [vmem:[%s3 + $0x328] sm:$0xff]
  %v3301 = vld [vmem:[%s3 + $0x330] sm:$0xff]
  %v3302 = vld [vmem:[%s3 + $0x338] sm:$0xff]
  %v3303 = vld [vmem:[%s3 + $0x340] sm:$0xff]
  %v3304 = vld [vmem:[%s3 + $0x348] sm:$0xff]
  %v3305 = vld [vmem:[%s3 + $0x350] sm:$0xff]
  %v3306 = vld [vmem:[%s3 + $0x358] sm:$0xff]
  %v3307 = vld [vmem:[%s3 + $0x360] sm:$0xff]
  %v3308 = vld [vmem:[%s3 + $0x368] sm:$0xff]
  %v3309 = vld [vmem:[%s3 + $0x370] sm:$0xff]
  %v3310 = vld [vmem:[%s3 + $0x378] sm:$0xff]
  %v3311 = vld [vmem:[%s3 + $0x380] sm:$0xff]
  %v3312 = vld [vmem:[%s3 + $0x388] sm:$0xff]
  %v3313 = vld [vmem:[%s3 + $0x390] sm:$0xff]
  %v3314 = vld [vmem:[%s3 + $0x398] sm:$0xff]
  %v3315 = vld [vmem:[%s3 + $0x3a0] sm:$0xff]
  %v3316 = vld [vmem:[%s3 + $0x3a8] sm:$0xff]
  %v3317 = vld [vmem:[%s3 + $0x3b0] sm:$0xff]
  %v3318 = vld [vmem:[%s3 + $0x3b8] sm:$0xff]
  %v3319 = vld [vmem:[%s3 + $0x3c0] sm:$0xff]
  %v3320 = vld [vmem:[%s3 + $0x3c8] sm:$0xff]
  %v3321 = vld [vmem:[%s3 + $0x3d0] sm:$0xff]
  %v3322 = vld [vmem:[%s3 + $0x3d8] sm:$0xff]
  %v3323 = vld [vmem:[%s3 + $0x3e0] sm:$0xff]
  %v3324 = vld [vmem:[%s3 + $0x3e8] sm:$0xff]
  %v3325 = vld [vmem:[%s3 + $0x3f0] sm:$0xff]
  %v3326 = vld [vmem:[%s3 + $0x3f8] sm:$0xff]
  %v3327 = vld [vmem:[%s3 + $0x400] sm:$0xff]
  %v3328 = vld [vmem:[%s3 + $0x408] sm:$0xff]
  %v3329 = vld [vmem:[%s3 + $0x410] sm:$0xff]
  %v3330 = vld [vmem:[%s3 + $0x418] sm:$0xff]
  %v3331 = vld [vmem:[%s3 + $0x420] sm:$0xff]
  %v3332 = vld [vmem:[%s3 + $0x428] sm:$0xff]
  %v3333 = vld [vmem:[%s3 + $0x430] sm:$0xff]
  %v3334 = vld [vmem:[%s3 + $0x438] sm:$0xff]
  %v3335 = vld [vmem:[%s3 + $0x440] sm:$0xff]
  %v3336 = vld [vmem:[%s3 + $0x448] sm:$0xff]
  %v3337 = vld [vmem:[%s3 + $0x450] sm:$0xff]
  %v3338 = vld [vmem:[%s3 + $0x458] sm:$0xff]
  %v3339 = vld [vmem:[%s3 + $0x460] sm:$0xff]
  %v3340 = vld [vmem:[%s3 + $0x468] sm:$0xff]
  %v3341 = vld [vmem:[%s3 + $0x470] sm:$0xff]
  %v3342 = vld [vmem:[%s3 + $0x478] sm:$0xff]
  %v3343 = vld [vmem:[%s3 + $0x480] sm:$0xff]
  %v3344 = vld [vmem:[%s3 + $0x488] sm:$0xff]
  %v3345 = vld [vmem:[%s3 + $0x490] sm:$0xff]
  %v3346 = vld [vmem:[%s3 + $0x498] sm:$0xff]
  %v3347 = vld [vmem:[%s3 + $0x4a0] sm:$0xff]
  %v3348 = vld [vmem:[%s3 + $0x4a8] sm:$0xff]
  %v3349 = vld [vmem:[%s3 + $0x4b0] sm:$0xff]
  %v3350 = vld [vmem:[%s3 + $0x4b8] sm:$0xff]
  %v3351 = vld [vmem:[%s3 + $0x4c0] sm:$0xff]
  %v3352 = vld [vmem:[%s3 + $0x4c8] sm:$0xff]
  %v3353 = vld [vmem:[%s3 + $0x4d0] sm:$0xff]
  %v3354 = vld [vmem:[%s3 + $0x4d8] sm:$0xff]
  %v3355 = vld [vmem:[%s3 + $0x4e0] sm:$0xff]
  %v3356 = vld [vmem:[%s3 + $0x4e8] sm:$0xff]
  %v3357 = vld [vmem:[%s3 + $0x4f0] sm:$0xff]
  %v3358 = vld [vmem:[%s3 + $0x4f8] sm:$0xff]
  %v3359 = vld [vmem:[%s3 + $0x500] sm:$0xff]
  %v3360 = vld [vmem:[%s3 + $0x508] sm:$0xff]
  %v3361 = vld [vmem:[%s3 + $0x510] sm:$0xff]
  %v3362 = vld [vmem:[%s3 + $0x518] sm:$0xff]
  %v3363 = vld [vmem:[%s3 + $0x520] sm:$0xff]
  %v3364 = vld [vmem:[%s3 + $0x528] sm:$0xff]
  %v3365 = vld [vmem:[%s3 + $0x530] sm:$0xff]
  %v3366 = vld [vmem:[%s3 + $0x538] sm:$0xff]
  %v3367 = vld [vmem:[%s3 + $0x540] sm:$0xff]
  %v3368 = vld [vmem:[%s3 + $0x548] sm:$0xff]
  %v3369 = vld [vmem:[%s3 + $0x550] sm:$0xff]
  %v3370 = vld [vmem:[%s3 + $0x558] sm:$0xff]
  %v3371 = vld [vmem:[%s3 + $0x560] sm:$0xff]
  %v3372 = vld [vmem:[%s3 + $0x568] sm:$0xff]
  %v3373 = vld [vmem:[%s3 + $0x570] sm:$0xff]
  %v3374 = vld [vmem:[%s3 + $0x578] sm:$0xff]
  %v3375 = vld [vmem:[%s3 + $0x580] sm:$0xff]
  %v3376 = vld [vmem:[%s3 + $0x588] sm:$0xff]
  %v3377 = vld [vmem:[%s3 + $0x590] sm:$0xff]
  %v3378 = vld [vmem:[%s3 + $0x598] sm:$0xff]
  %v3379 = vld [vmem:[%s3 + $0x5a0] sm:$0xff]
  %v3380 = vld [vmem:[%s3 + $0x5a8] sm:$0xff]
  %v3381 = vld [vmem:[%s3 + $0x5b0] sm:$0xff]
  %v3382 = vld [vmem:[%s3 + $0x5b8] sm:$0xff]
  %v3383 = vld [vmem:[%s3 + $0x5c0] sm:$0xff]
  %v3384 = vld [vmem:[%s3 + $0x5c8] sm:$0xff]
  %v3385 = vld [vmem:[%s3 + $0x5d0] sm:$0xff]
  %v3386 = vld [vmem:[%s3 + $0x5d8] sm:$0xff]
  %v3387 = vld [vmem:[%s3 + $0x5e0] sm:$0xff]
  %v3388 = vld [vmem:[%s3 + $0x5e8] sm:$0xff]
  %v3389 = vld [vmem:[%s3 + $0x5f0] sm:$0xff]
  %v3390 = vld [vmem:[%s3 + $0x5f8] sm:$0xff]
  %v3391 = vld [vmem:[%s3 + $0x600] sm:$0xff]
  %v3392 = vld [vmem:[%s3 + $0x608] sm:$0xff]
  %v3393 = vld [vmem:[%s3 + $0x610] sm:$0xff]
  %v3394 = vld [vmem:[%s3 + $0x618] sm:$0xff]
  %v3395 = vld [vmem:[%s3 + $0x620] sm:$0xff]
  %v3396 = vld [vmem:[%s3 + $0x628] sm:$0xff]
  %v3397 = vld [vmem:[%s3 + $0x630] sm:$0xff]
  %v3398 = vld [vmem:[%s3 + $0x638] sm:$0xff]
  %v3399 = vld [vmem:[%s3 + $0x640] sm:$0xff]
  %v3400 = vld [vmem:[%s3 + $0x648] sm:$0xff]
  %v3401 = vld [vmem:[%s3 + $0x650] sm:$0xff]
  %v3402 = vld [vmem:[%s3 + $0x658] sm:$0xff]
  %v3403 = vld [vmem:[%s3 + $0x660] sm:$0xff]
  %v3404 = vld [vmem:[%s3 + $0x668] sm:$0xff]
  %v3405 = vld [vmem:[%s3 + $0x670] sm:$0xff]
  %v3406 = vld [vmem:[%s3 + $0x678] sm:$0xff]
  %v3407 = vld [vmem:[%s3 + $0x680] sm:$0xff]
  %v3408 = vld [vmem:[%s3 + $0x688] sm:$0xff]
  %v3409 = vld [vmem:[%s3 + $0x690] sm:$0xff]
  %v3410 = vld [vmem:[%s3 + $0x698] sm:$0xff]
  %v3411 = vld [vmem:[%s3 + $0x6a0] sm:$0xff]
  %v3412 = vld [vmem:[%s3 + $0x6a8] sm:$0xff]
  %v3413 = vld [vmem:[%s3 + $0x6b0] sm:$0xff]
  %v3414 = vld [vmem:[%s3 + $0x6b8] sm:$0xff]
  %v3415 = vld [vmem:[%s3 + $0x6c0] sm:$0xff]
  %v3416 = vld [vmem:[%s3 + $0x6c8] sm:$0xff]
  %v3417 = vld [vmem:[%s3 + $0x6d0] sm:$0xff]
  %v3418 = vld [vmem:[%s3 + $0x6d8] sm:$0xff]
  %v3419 = vld [vmem:[%s3 + $0x6e0] sm:$0xff]
  %v3420 = vld [vmem:[%s3 + $0x6e8] sm:$0xff]
  %v3421 = vld [vmem:[%s3 + $0x6f0] sm:$0xff]
  %v3422 = vld [vmem:[%s3 + $0x6f8] sm:$0xff]
  %v3423 = vld [vmem:[%s3 + $0x700] sm:$0xff]
  %v3424 = vld [vmem:[%s3 + $0x708] sm:$0xff]
  %v3425 = vld [vmem:[%s3 + $0x710] sm:$0xff]
  %v3426 = vld [vmem:[%s3 + $0x718] sm:$0xff]
  %v3427 = vld [vmem:[%s3 + $0x720] sm:$0xff]
  %v3428 = vld [vmem:[%s3 + $0x728] sm:$0xff]
  %v3429 = vld [vmem:[%s3 + $0x730] sm:$0xff]
  %v3430 = vld [vmem:[%s3 + $0x738] sm:$0xff]
  %v3431 = vld [vmem:[%s3 + $0x740] sm:$0xff]
  %v3432 = vld [vmem:[%s3 + $0x748] sm:$0xff]
  %v3433 = vld [vmem:[%s3 + $0x750] sm:$0xff]
  %v3434 = vld [vmem:[%s3 + $0x758] sm:$0xff]
  %v3435 = vld [vmem:[%s3 + $0x760] sm:$0xff]
  %v3436 = vld [vmem:[%s3 + $0x768] sm:$0xff]
  %v3437 = vld [vmem:[%s3 + $0x770] sm:$0xff]
  %v3438 = vld [vmem:[%s3 + $0x778] sm:$0xff]
  %v3439 = vld [vmem:[%s3 + $0x780] sm:$0xff]
  %v3440 = vld [vmem:[%s3 + $0x788] sm:$0xff]
  %v3441 = vld [vmem:[%s3 + $0x790] sm:$0xff]
  %v3442 = vld [vmem:[%s3 + $0x798] sm:$0xff]
  %v3443 = vld [vmem:[%s3 + $0x7a0] sm:$0xff]
  %v3444 = vld [vmem:[%s3 + $0x7a8] sm:$0xff]
  %v3445 = vld [vmem:[%s3 + $0x7b0] sm:$0xff]
  %v3446 = vld [vmem:[%s3 + $0x7b8] sm:$0xff]
  %v3447 = vld [vmem:[%s3 + $0x7c0] sm:$0xff]
  %v3448 = vld [vmem:[%s3 + $0x7c8] sm:$0xff]
  %v3449 = vld [vmem:[%s3 + $0x7d0] sm:$0xff]
  %v3450 = vld [vmem:[%s3 + $0x7d8] sm:$0xff]
  %v3451 = vld [vmem:[%s3 + $0x7e0] sm:$0xff]
  %v3452 = vld [vmem:[%s3 + $0x7e8] sm:$0xff]
  %v3453 = vld [vmem:[%s3 + $0x7f0] sm:$0xff]
  %v3454 = vld [vmem:[%s3 + $0x7f8] sm:$0xff]
  %v3455 = vld [vmem:[%s3 + $0x800] sm:$0xff]
  %v3456 = vld [vmem:[%s3 + $0x808] sm:$0xff]
  %v3457 = vld [vmem:[%s3 + $0x810] sm:$0xff]
  %v3458 = vld [vmem:[%s3 + $0x818] sm:$0xff]
  %v3459 = vld [vmem:[%s3 + $0x820] sm:$0xff]
  %v3460 = vld [vmem:[%s3 + $0x828] sm:$0xff]
  %v3461 = vld [vmem:[%s3 + $0x830] sm:$0xff]
  %v3462 = vld [vmem:[%s3 + $0x838] sm:$0xff]
  %v3463 = vld [vmem:[%s3 + $0x840] sm:$0xff]
  %v3464 = vld [vmem:[%s3 + $0x848] sm:$0xff]
  %v3465 = vld [vmem:[%s3 + $0x850] sm:$0xff]
  %v3466 = vld [vmem:[%s3 + $0x858] sm:$0xff]
  %v3467 = vld [vmem:[%s3 + $0x860] sm:$0xff]
  %v3468 = vld [vmem:[%s3 + $0x868] sm:$0xff]
  %v3469 = vld [vmem:[%s3 + $0x870] sm:$0xff]
  %v3470 = vld [vmem:[%s3 + $0x878] sm:$0xff]
  %v3471 = vld [vmem:[%s3 + $0x880] sm:$0xff]
  %v3472 = vld [vmem:[%s3 + $0x888] sm:$0xff]
  %v3473 = vld [vmem:[%s3 + $0x890] sm:$0xff]
  %v3474 = vld [vmem:[%s3 + $0x898] sm:$0xff]
  %v3475 = vld [vmem:[%s3 + $0x8a0] sm:$0xff]
  %v3476 = vld [vmem:[%s3 + $0x8a8] sm:$0xff]
  %v3477 = vld [vmem:[%s3 + $0x8b0] sm:$0xff]
  %v3478 = vld [vmem:[%s3 + $0x8b8] sm:$0xff]
  %v3479 = vld [vmem:[%s3 + $0x8c0] sm:$0xff]
  %v3480 = vld [vmem:[%s3 + $0x8c8] sm:$0xff]
  %v3481 = vld [vmem:[%s3 + $0x8d0] sm:$0xff]
  %v3482 = vld [vmem:[%s3 + $0x8d8] sm:$0xff]
  %v3483 = vld [vmem:[%s3 + $0x8e0] sm:$0xff]
  %v3484 = vld [vmem:[%s3 + $0x8e8] sm:$0xff]
  %v3485 = vld [vmem:[%s3 + $0x8f0] sm:$0xff]
  %v3486 = vld [vmem:[%s3 + $0x8f8] sm:$0xff]
  %v3487 = vld [vmem:[%s3 + $0x900] sm:$0xff]
  %v3488 = vld [vmem:[%s3 + $0x908] sm:$0xff]
  %v3489 = vld [vmem:[%s3 + $0x910] sm:$0xff]
  %v3490 = vld [vmem:[%s3 + $0x918] sm:$0xff]
  %v3491 = vld [vmem:[%s3 + $0x920] sm:$0xff]
  %v3492 = vld [vmem:[%s3 + $0x928] sm:$0xff]
  %v3493 = vld [vmem:[%s3 + $0x930] sm:$0xff]
  %v3494 = vld [vmem:[%s3 + $0x938] sm:$0xff]
  %v3495 = vld [vmem:[%s3 + $0x940] sm:$0xff]
  %v3496 = vld [vmem:[%s3 + $0x948] sm:$0xff]
  %v3497 = vld [vmem:[%s3 + $0x950] sm:$0xff]
  %v3498 = vld [vmem:[%s3 + $0x958] sm:$0xff]
  %v3499 = vld [vmem:[%s3 + $0x960] sm:$0xff]
  %v3500 = vld [vmem:[%s3 + $0x968] sm:$0xff]
  %v3501 = vld [vmem:[%s3 + $0x970] sm:$0xff]
  %v3502 = vld [vmem:[%s3 + $0x978] sm:$0xff]
  %v3503 = vld [vmem:[%s3 + $0x980] sm:$0xff]
  %v3504 = vld [vmem:[%s3 + $0x988] sm:$0xff]
  %v3505 = vld [vmem:[%s3 + $0x990] sm:$0xff]
  %v3506 = vld [vmem:[%s3 + $0x998] sm:$0xff]
  %v3507 = vld [vmem:[%s3 + $0x9a0] sm:$0xff]
  %v3508 = vld [vmem:[%s3 + $0x9a8] sm:$0xff]
  %v3509 = vld [vmem:[%s3 + $0x9b0] sm:$0xff]
  %v3510 = vld [vmem:[%s3 + $0x9b8] sm:$0xff]
  %v3511 = vld [vmem:[%s3 + $0x9c0] sm:$0xff]
  %v3512 = vld [vmem:[%s3 + $0x9c8] sm:$0xff]
  %v3513 = vld [vmem:[%s3 + $0x9d0] sm:$0xff]
  %v3514 = vld [vmem:[%s3 + $0x9d8] sm:$0xff]
  %v3515 = vld [vmem:[%s3 + $0x9e0] sm:$0xff]
  %v3516 = vld [vmem:[%s3 + $0x9e8] sm:$0xff]
  %v3517 = vld [vmem:[%s3 + $0x9f0] sm:$0xff]
  %v3518 = vld [vmem:[%s3 + $0x9f8] sm:$0xff]
  %v3519 = vld [vmem:[%s3 + $0xa00] sm:$0xff]
  %v3520 = vld [vmem:[%s3 + $0xa08] sm:$0xff]
  %v3521 = vld [vmem:[%s3 + $0xa10] sm:$0xff]
  %v3522 = vld [vmem:[%s3 + $0xa18] sm:$0xff]
  %v3523 = vld [vmem:[%s3 + $0xa20] sm:$0xff]
  %v3524 = vld [vmem:[%s3 + $0xa28] sm:$0xff]
  %v3525 = vld [vmem:[%s3 + $0xa30] sm:$0xff]
  %v3526 = vld [vmem:[%s3 + $0xa38] sm:$0xff]
  %v3527 = vld [vmem:[%s3 + $0xa40] sm:$0xff]
  %v3528 = vld [vmem:[%s3 + $0xa48] sm:$0xff]
  %v3529 = vld [vmem:[%s3 + $0xa50] sm:$0xff]
  %v3530 = vld [vmem:[%s3 + $0xa58] sm:$0xff]
  %v3531 = vld [vmem:[%s3 + $0xa60] sm:$0xff]
  %v3532 = vld [vmem:[%s3 + $0xa68] sm:$0xff]
  %v3533 = vld [vmem:[%s3 + $0xa70] sm:$0xff]
  %v3534 = vld [vmem:[%s3 + $0xa78] sm:$0xff]
  %v3535 = vld [vmem:[%s3 + $0xa80] sm:$0xff]
  %v3536 = vld [vmem:[%s3 + $0xa88] sm:$0xff]
  %v3537 = vld [vmem:[%s3 + $0xa90] sm:$0xff]
  %v3538 = vld [vmem:[%s3 + $0xa98] sm:$0xff]
  %v3539 = vld [vmem:[%s3 + $0xaa0] sm:$0xff]
  %v3540 = vld [vmem:[%s3 + $0xaa8] sm:$0xff]
  %v3541 = vld [vmem:[%s3 + $0xab0] sm:$0xff]
  %v3542 = vld [vmem:[%s3 + $0xab8] sm:$0xff]
  %v3543 = vld [vmem:[%s3 + $0xac0] sm:$0xff]
  %v3544 = vld [vmem:[%s3 + $0xac8] sm:$0xff]
  %v3545 = vld [vmem:[%s3 + $0xad0] sm:$0xff]
  %v3546 = vld [vmem:[%s3 + $0xad8] sm:$0xff]
  %v3547 = vld [vmem:[%s3 + $0xae0] sm:$0xff]
  %v3548 = vld [vmem:[%s3 + $0xae8] sm:$0xff]
  %v3549 = vld [vmem:[%s3 + $0xaf0] sm:$0xff]
  %v3550 = vld [vmem:[%s3 + $0xaf8] sm:$0xff]
  %v3551 = vld [vmem:[%s3 + $0xb00] sm:$0xff]
  %v3552 = vld [vmem:[%s3 + $0xb08] sm:$0xff]
  %v3553 = vld [vmem:[%s3 + $0xb10] sm:$0xff]
  %v3554 = vld [vmem:[%s3 + $0xb18] sm:$0xff]
  %v3555 = vld [vmem:[%s3 + $0xb20] sm:$0xff]
  %v3556 = vld [vmem:[%s3 + $0xb28] sm:$0xff]
  %v3557 = vld [vmem:[%s3 + $0xb30] sm:$0xff]
  %v3558 = vld [vmem:[%s3 + $0xb38] sm:$0xff]
  %v3559 = vld [vmem:[%s3 + $0xb40] sm:$0xff]
  %v3560 = vld [vmem:[%s3 + $0xb48] sm:$0xff]
  %v3561 = vld [vmem:[%s3 + $0xb50] sm:$0xff]
  %v3562 = vld [vmem:[%s3 + $0xb58] sm:$0xff]
  %v3563 = vld [vmem:[%s3 + $0xb60] sm:$0xff]
  %v3564 = vld [vmem:[%s3 + $0xb68] sm:$0xff]
  %v3565 = vld [vmem:[%s3 + $0xb70] sm:$0xff]
  %v3566 = vld [vmem:[%s3 + $0xb78] sm:$0xff]
  %v3567 = vld [vmem:[%s3 + $0xb80] sm:$0xff]
  %v3568 = vld [vmem:[%s3 + $0xb88] sm:$0xff]
  %v3569 = vld [vmem:[%s3 + $0xb90] sm:$0xff]
  %v3570 = vld [vmem:[%s3 + $0xb98] sm:$0xff]
  %v3571 = vld [vmem:[%s3 + $0xba0] sm:$0xff]
  %v3572 = vld [vmem:[%s3 + $0xba8] sm:$0xff]
  %v3573 = vld [vmem:[%s3 + $0xbb0] sm:$0xff]
  %v3574 = vld [vmem:[%s3 + $0xbb8] sm:$0xff]
  %v3575 = vld [vmem:[%s3 + $0xbc0] sm:$0xff]
  %v3576 = vld [vmem:[%s3 + $0xbc8] sm:$0xff]
  %v3577 = vld [vmem:[%s3 + $0xbd0] sm:$0xff]
  %v3578 = vld [vmem:[%s3 + $0xbd8] sm:$0xff]
  %v3579 = vld [vmem:[%s3 + $0xbe0] sm:$0xff]
  %v3580 = vld [vmem:[%s3 + $0xbe8] sm:$0xff]
  %v3581 = vld [vmem:[%s3 + $0xbf0] sm:$0xff]
  %v3582 = vld [vmem:[%s3 + $0xbf8] sm:$0xff]
  %v3583 = vld [vmem:[%s4] sm:$0xf]
  %v3585 = vlaneseq
  %v3586 = vshrl.u32 %v3585, 7
  %v3587 = vsub.s32 0, %v3586
  %v3588 = vrot.slane %v3583, %v3587
  %v3589 = vlaneseq
  %v3590 = vshrl.u32 %v3589, 7
  %v3591 = vsub.s32 1, %v3590
  %v3592 = vrot.slane %v3583, %v3591
  %v3593 = vlaneseq
  %v3594 = vshrl.u32 %v3593, 7
  %v3595 = vsub.s32 2, %v3594
  %v3596 = vrot.slane %v3583, %v3595
  %v3597 = vlaneseq
  %v3598 = vshrl.u32 %v3597, 7
  %v3599 = vsub.s32 3, %v3598
  %v3600 = vrot.slane %v3583, %v3599
  %v3605 = vpack.c.b16 %v3075, %v290
  %v3606 = vpack.c.b16 %v3076, %v290
  %v3607 = vpack.c.b16 %v3077, %v290
  %v3608 = vpack.c.b16 %v3078, %v290
  %v3609 = vpack.c.b16 %v3079, %v3071
  %v3610 = vpack.c.b16 %v3080, %v3072
  %v3611 = vpack.c.b16 %v3081, %v3073
  %v3612 = vpack.c.b16 %v3082, %v3074
  %v3613 = vpack.c.b16 %v3083, %v3075
  %v3614 = vpack.c.b16 %v3084, %v3076
  %v3615 = vpack.c.b16 %v3085, %v3077
  %v3616 = vpack.c.b16 %v3086, %v3078
  %v3617 = vpack.c.b16 %v3091, %v3083
  %v3618 = vpack.c.b16 %v3092, %v3084
  %v3619 = vpack.c.b16 %v3093, %v3085
  %v3620 = vpack.c.b16 %v3094, %v3086
  %v3621 = vpack.c.b16 %v3095, %v3087
  %v3622 = vpack.c.b16 %v3096, %v3088
  %v3623 = vpack.c.b16 %v3097, %v3089
  %v3624 = vpack.c.b16 %v3098, %v3090
  %v3625 = vpack.c.b16 %v3099, %v3091
  %v3626 = vpack.c.b16 %v3100, %v3092
  %v3627 = vpack.c.b16 %v3101, %v3093
  %v3628 = vpack.c.b16 %v3102, %v3094
  %v3629 = vpack.c.b16 %v3107, %v3099
  %v3630 = vpack.c.b16 %v3108, %v3100
  %v3631 = vpack.c.b16 %v3109, %v3101
  %v3632 = vpack.c.b16 %v3110, %v3102
  %v3633 = vpack.c.b16 %v3111, %v3103
  %v3634 = vpack.c.b16 %v3112, %v3104
  %v3635 = vpack.c.b16 %v3113, %v3105
  %v3636 = vpack.c.b16 %v3114, %v3106
  %v3637 = vpack.c.b16 %v3115, %v3107
  %v3638 = vpack.c.b16 %v3116, %v3108
  %v3639 = vpack.c.b16 %v3117, %v3109
  %v3640 = vpack.c.b16 %v3118, %v3110
  %v3641 = vpack.c.b16 %v3123, %v3115
  %v3642 = vpack.c.b16 %v3124, %v3116
  %v3643 = vpack.c.b16 %v3125, %v3117
  %v3644 = vpack.c.b16 %v3126, %v3118
  %v3645 = vpack.c.b16 %v3127, %v3119
  %v3646 = vpack.c.b16 %v3128, %v3120
  %v3647 = vpack.c.b16 %v3129, %v3121
  %v3648 = vpack.c.b16 %v3130, %v3122
  %v3649 = vpack.c.b16 %v3131, %v3123
  %v3650 = vpack.c.b16 %v3132, %v3124
  %v3651 = vpack.c.b16 %v3133, %v3125
  %v3652 = vpack.c.b16 %v3134, %v3126
  %v3653 = vpack.c.b16 %v3139, %v3131
  %v3654 = vpack.c.b16 %v3140, %v3132
  %v3655 = vpack.c.b16 %v3141, %v3133
  %v3656 = vpack.c.b16 %v3142, %v3134
  %v3657 = vpack.c.b16 %v3143, %v3135
  %v3658 = vpack.c.b16 %v3144, %v3136
  %v3659 = vpack.c.b16 %v3145, %v3137
  %v3660 = vpack.c.b16 %v3146, %v3138
  %v3661 = vpack.c.b16 %v3147, %v3139
  %v3662 = vpack.c.b16 %v3148, %v3140
  %v3663 = vpack.c.b16 %v3149, %v3141
  %v3664 = vpack.c.b16 %v3150, %v3142
  %v3665 = vpack.c.b16 %v3155, %v3147
  %v3666 = vpack.c.b16 %v3156, %v3148
  %v3667 = vpack.c.b16 %v3157, %v3149
  %v3668 = vpack.c.b16 %v3158, %v3150
  %v3669 = vpack.c.b16 %v3159, %v3151
  %v3670 = vpack.c.b16 %v3160, %v3152
  %v3671 = vpack.c.b16 %v3161, %v3153
  %v3672 = vpack.c.b16 %v3162, %v3154
  %v3673 = vpack.c.b16 %v3163, %v3155
  %v3674 = vpack.c.b16 %v3164, %v3156
  %v3675 = vpack.c.b16 %v3165, %v3157
  %v3676 = vpack.c.b16 %v3166, %v3158
  %v3677 = vpack.c.b16 %v3171, %v3163
  %v3678 = vpack.c.b16 %v3172, %v3164
  %v3679 = vpack.c.b16 %v3173, %v3165
  %v3680 = vpack.c.b16 %v3174, %v3166
  %v3681 = vpack.c.b16 %v3175, %v3167
  %v3682 = vpack.c.b16 %v3176, %v3168
  %v3683 = vpack.c.b16 %v3177, %v3169
  %v3684 = vpack.c.b16 %v3178, %v3170
  %v3685 = vpack.c.b16 %v3179, %v3171
  %v3686 = vpack.c.b16 %v3180, %v3172
  %v3687 = vpack.c.b16 %v3181, %v3173
  %v3688 = vpack.c.b16 %v3182, %v3174
  %v3689 = vpack.c.b16 %v3187, %v3179
  %v3690 = vpack.c.b16 %v3188, %v3180
  %v3691 = vpack.c.b16 %v3189, %v3181
  %v3692 = vpack.c.b16 %v3190, %v3182
  %v3693 = vpack.c.b16 %v3191, %v3183
  %v3694 = vpack.c.b16 %v3192, %v3184
  %v3695 = vpack.c.b16 %v3193, %v3185
  %v3696 = vpack.c.b16 %v3194, %v3186
  %v3697 = vpack.c.b16 %v3195, %v3187
  %v3698 = vpack.c.b16 %v3196, %v3188
  %v3699 = vpack.c.b16 %v3197, %v3189
  %v3700 = vpack.c.b16 %v3198, %v3190
  %v4181 = vunpack.c.l.b16 %v3199
  %v4182 = vunpack.c.h.b16 %v3199
  %v4183 = vunpack.c.l.b16 %v3200
  %v4184 = vunpack.c.h.b16 %v3200
  %v4185 = vunpack.c.l.b16 %v3201
  %v4186 = vunpack.c.h.b16 %v3201
  %v4187 = vunpack.c.l.b16 %v3202
  %v4188 = vunpack.c.h.b16 %v3202
  %v4189 = vunpack.c.l.b16 %v3203
  %v4190 = vunpack.c.h.b16 %v3203
  %v4191 = vunpack.c.l.b16 %v3204
  %v4192 = vunpack.c.h.b16 %v3204
  %v4193 = vunpack.c.l.b16 %v3205
  %v4194 = vunpack.c.h.b16 %v3205
  %v4195 = vunpack.c.l.b16 %v3206
  %v4196 = vunpack.c.h.b16 %v3206
  %v4197 = vunpack.c.l.b16 %v3207
  %v4198 = vunpack.c.h.b16 %v3207
  %v4199 = vunpack.c.l.b16 %v3208
  %v4200 = vunpack.c.h.b16 %v3208
  %v4201 = vunpack.c.l.b16 %v3209
  %v4202 = vunpack.c.h.b16 %v3209
  %v4203 = vunpack.c.l.b16 %v3210
  %v4204 = vunpack.c.h.b16 %v3210
  %v4205 = vunpack.c.l.b16 %v3211
  %v4206 = vunpack.c.h.b16 %v3211
  %v4207 = vunpack.c.l.b16 %v3212
  %v4208 = vunpack.c.h.b16 %v3212
  %v4209 = vunpack.c.l.b16 %v3213
  %v4210 = vunpack.c.h.b16 %v3213
  %v4211 = vunpack.c.l.b16 %v3214
  %v4212 = vunpack.c.h.b16 %v3214
  %v4213 = vunpack.c.l.b16 %v3215
  %v4214 = vunpack.c.h.b16 %v3215
  %v4215 = vunpack.c.l.b16 %v3216
  %v4216 = vunpack.c.h.b16 %v3216
  %v4217 = vunpack.c.l.b16 %v3217
  %v4218 = vunpack.c.h.b16 %v3217
  %v4219 = vunpack.c.l.b16 %v3218
  %v4220 = vunpack.c.h.b16 %v3218
  %v4221 = vunpack.c.l.b16 %v3219
  %v4222 = vunpack.c.h.b16 %v3219
  %v4223 = vunpack.c.l.b16 %v3220
  %v4224 = vunpack.c.h.b16 %v3220
  %v4225 = vunpack.c.l.b16 %v3221
  %v4226 = vunpack.c.h.b16 %v3221
  %v4227 = vunpack.c.l.b16 %v3222
  %v4228 = vunpack.c.h.b16 %v3222
  %v4229 = vunpack.c.l.b16 %v3223
  %v4230 = vunpack.c.h.b16 %v3223
  %v4231 = vunpack.c.l.b16 %v3224
  %v4232 = vunpack.c.h.b16 %v3224
  %v4233 = vunpack.c.l.b16 %v3225
  %v4234 = vunpack.c.h.b16 %v3225
  %v4235 = vunpack.c.l.b16 %v3226
  %v4236 = vunpack.c.h.b16 %v3226
  %v4237 = vunpack.c.l.b16 %v3227
  %v4238 = vunpack.c.h.b16 %v3227
  %v4239 = vunpack.c.l.b16 %v3228
  %v4240 = vunpack.c.h.b16 %v3228
  %v4241 = vunpack.c.l.b16 %v3229
  %v4242 = vunpack.c.h.b16 %v3229
  %v4243 = vunpack.c.l.b16 %v3230
  %v4244 = vunpack.c.h.b16 %v3230
  %v4245 = vunpack.c.l.b16 %v3231
  %v4246 = vunpack.c.h.b16 %v3231
  %v4247 = vunpack.c.l.b16 %v3232
  %v4248 = vunpack.c.h.b16 %v3232
  %v4249 = vunpack.c.l.b16 %v3233
  %v4250 = vunpack.c.h.b16 %v3233
  %v4251 = vunpack.c.l.b16 %v3234
  %v4252 = vunpack.c.h.b16 %v3234
  %v4253 = vunpack.c.l.b16 %v3235
  %v4254 = vunpack.c.h.b16 %v3235
  %v4255 = vunpack.c.l.b16 %v3236
  %v4256 = vunpack.c.h.b16 %v3236
  %v4257 = vunpack.c.l.b16 %v3237
  %v4258 = vunpack.c.h.b16 %v3237
  %v4259 = vunpack.c.l.b16 %v3238
  %v4260 = vunpack.c.h.b16 %v3238
  %v4261 = vunpack.c.l.b16 %v3239
  %v4262 = vunpack.c.h.b16 %v3239
  %v4263 = vunpack.c.l.b16 %v3240
  %v4264 = vunpack.c.h.b16 %v3240
  %v4265 = vunpack.c.l.b16 %v3241
  %v4266 = vunpack.c.h.b16 %v3241
  %v4267 = vunpack.c.l.b16 %v3242
  %v4268 = vunpack.c.h.b16 %v3242
  %v4269 = vunpack.c.l.b16 %v3243
  %v4270 = vunpack.c.h.b16 %v3243
  %v4271 = vunpack.c.l.b16 %v3244
  %v4272 = vunpack.c.h.b16 %v3244
  %v4273 = vunpack.c.l.b16 %v3245
  %v4274 = vunpack.c.h.b16 %v3245
  %v4275 = vunpack.c.l.b16 %v3246
  %v4276 = vunpack.c.h.b16 %v3246
  %v4277 = vunpack.c.l.b16 %v3247
  %v4278 = vunpack.c.h.b16 %v3247
  %v4279 = vunpack.c.l.b16 %v3248
  %v4280 = vunpack.c.h.b16 %v3248
  %v4281 = vunpack.c.l.b16 %v3249
  %v4282 = vunpack.c.h.b16 %v3249
  %v4283 = vunpack.c.l.b16 %v3250
  %v4284 = vunpack.c.h.b16 %v3250
  %v4285 = vunpack.c.l.b16 %v3251
  %v4286 = vunpack.c.h.b16 %v3251
  %v4287 = vunpack.c.l.b16 %v3252
  %v4288 = vunpack.c.h.b16 %v3252
  %v4289 = vunpack.c.l.b16 %v3253
  %v4290 = vunpack.c.h.b16 %v3253
  %v4291 = vunpack.c.l.b16 %v3254
  %v4292 = vunpack.c.h.b16 %v3254
  %v4293 = vunpack.c.l.b16 %v3255
  %v4294 = vunpack.c.h.b16 %v3255
  %v4295 = vunpack.c.l.b16 %v3256
  %v4296 = vunpack.c.h.b16 %v3256
  %v4297 = vunpack.c.l.b16 %v3257
  %v4298 = vunpack.c.h.b16 %v3257
  %v4299 = vunpack.c.l.b16 %v3258
  %v4300 = vunpack.c.h.b16 %v3258
  %v4301 = vunpack.c.l.b16 %v3259
  %v4302 = vunpack.c.h.b16 %v3259
  %v4303 = vunpack.c.l.b16 %v3260
  %v4304 = vunpack.c.h.b16 %v3260
  %v4305 = vunpack.c.l.b16 %v3261
  %v4306 = vunpack.c.h.b16 %v3261
  %v4307 = vunpack.c.l.b16 %v3262
  %v4308 = vunpack.c.h.b16 %v3262
  %v4309 = vunpack.c.l.b16 %v3263
  %v4310 = vunpack.c.h.b16 %v3263
  %v4311 = vunpack.c.l.b16 %v3264
  %v4312 = vunpack.c.h.b16 %v3264
  %v4313 = vunpack.c.l.b16 %v3265
  %v4314 = vunpack.c.h.b16 %v3265
  %v4315 = vunpack.c.l.b16 %v3266
  %v4316 = vunpack.c.h.b16 %v3266
  %v4317 = vunpack.c.l.b16 %v3267
  %v4318 = vunpack.c.h.b16 %v3267
  %v4319 = vunpack.c.l.b16 %v3268
  %v4320 = vunpack.c.h.b16 %v3268
  %v4321 = vunpack.c.l.b16 %v3269
  %v4322 = vunpack.c.h.b16 %v3269
  %v4323 = vunpack.c.l.b16 %v3270
  %v4324 = vunpack.c.h.b16 %v3270
  %v4325 = vunpack.c.l.b16 %v3271
  %v4326 = vunpack.c.h.b16 %v3271
  %v4327 = vunpack.c.l.b16 %v3272
  %v4328 = vunpack.c.h.b16 %v3272
  %v4329 = vunpack.c.l.b16 %v3273
  %v4330 = vunpack.c.h.b16 %v3273
  %v4331 = vunpack.c.l.b16 %v3274
  %v4332 = vunpack.c.h.b16 %v3274
  %v4333 = vunpack.c.l.b16 %v3275
  %v4334 = vunpack.c.h.b16 %v3275
  %v4335 = vunpack.c.l.b16 %v3276
  %v4336 = vunpack.c.h.b16 %v3276
  %v4337 = vunpack.c.l.b16 %v3277
  %v4338 = vunpack.c.h.b16 %v3277
  %v4339 = vunpack.c.l.b16 %v3278
  %v4340 = vunpack.c.h.b16 %v3278
  %v4341 = vunpack.c.l.b16 %v3279
  %v4342 = vunpack.c.h.b16 %v3279
  %v4343 = vunpack.c.l.b16 %v3280
  %v4344 = vunpack.c.h.b16 %v3280
  %v4345 = vunpack.c.l.b16 %v3281
  %v4346 = vunpack.c.h.b16 %v3281
  %v4347 = vunpack.c.l.b16 %v3282
  %v4348 = vunpack.c.h.b16 %v3282
  %v4349 = vunpack.c.l.b16 %v3283
  %v4350 = vunpack.c.h.b16 %v3283
  %v4351 = vunpack.c.l.b16 %v3284
  %v4352 = vunpack.c.h.b16 %v3284
  %v4353 = vunpack.c.l.b16 %v3285
  %v4354 = vunpack.c.h.b16 %v3285
  %v4355 = vunpack.c.l.b16 %v3286
  %v4356 = vunpack.c.h.b16 %v3286
  %v4357 = vunpack.c.l.b16 %v3287
  %v4358 = vunpack.c.h.b16 %v3287
  %v4359 = vunpack.c.l.b16 %v3288
  %v4360 = vunpack.c.h.b16 %v3288
  %v4361 = vunpack.c.l.b16 %v3289
  %v4362 = vunpack.c.h.b16 %v3289
  %v4363 = vunpack.c.l.b16 %v3290
  %v4364 = vunpack.c.h.b16 %v3290
  %v4365 = vunpack.c.l.b16 %v3291
  %v4366 = vunpack.c.h.b16 %v3291
  %v4367 = vunpack.c.l.b16 %v3292
  %v4368 = vunpack.c.h.b16 %v3292
  %v4369 = vunpack.c.l.b16 %v3293
  %v4370 = vunpack.c.h.b16 %v3293
  %v4371 = vunpack.c.l.b16 %v3294
  %v4372 = vunpack.c.h.b16 %v3294
  %v4373 = vunpack.c.l.b16 %v3295
  %v4374 = vunpack.c.h.b16 %v3295
  %v4375 = vunpack.c.l.b16 %v3296
  %v4376 = vunpack.c.h.b16 %v3296
  %v4377 = vunpack.c.l.b16 %v3297
  %v4378 = vunpack.c.h.b16 %v3297
  %v4379 = vunpack.c.l.b16 %v3298
  %v4380 = vunpack.c.h.b16 %v3298
  %v4381 = vunpack.c.l.b16 %v3299
  %v4382 = vunpack.c.h.b16 %v3299
  %v4383 = vunpack.c.l.b16 %v3300
  %v4384 = vunpack.c.h.b16 %v3300
  %v4385 = vunpack.c.l.b16 %v3301
  %v4386 = vunpack.c.h.b16 %v3301
  %v4387 = vunpack.c.l.b16 %v3302
  %v4388 = vunpack.c.h.b16 %v3302
  %v4389 = vunpack.c.l.b16 %v3303
  %v4390 = vunpack.c.h.b16 %v3303
  %v4391 = vunpack.c.l.b16 %v3304
  %v4392 = vunpack.c.h.b16 %v3304
  %v4393 = vunpack.c.l.b16 %v3305
  %v4394 = vunpack.c.h.b16 %v3305
  %v4395 = vunpack.c.l.b16 %v3306
  %v4396 = vunpack.c.h.b16 %v3306
  %v4397 = vunpack.c.l.b16 %v3307
  %v4398 = vunpack.c.h.b16 %v3307
  %v4399 = vunpack.c.l.b16 %v3308
  %v4400 = vunpack.c.h.b16 %v3308
  %v4401 = vunpack.c.l.b16 %v3309
  %v4402 = vunpack.c.h.b16 %v3309
  %v4403 = vunpack.c.l.b16 %v3310
  %v4404 = vunpack.c.h.b16 %v3310
  %v4405 = vunpack.c.l.b16 %v3311
  %v4406 = vunpack.c.h.b16 %v3311
  %v4407 = vunpack.c.l.b16 %v3312
  %v4408 = vunpack.c.h.b16 %v3312
  %v4409 = vunpack.c.l.b16 %v3313
  %v4410 = vunpack.c.h.b16 %v3313
  %v4411 = vunpack.c.l.b16 %v3314
  %v4412 = vunpack.c.h.b16 %v3314
  %v4413 = vunpack.c.l.b16 %v3315
  %v4414 = vunpack.c.h.b16 %v3315
  %v4415 = vunpack.c.l.b16 %v3316
  %v4416 = vunpack.c.h.b16 %v3316
  %v4417 = vunpack.c.l.b16 %v3317
  %v4418 = vunpack.c.h.b16 %v3317
  %v4419 = vunpack.c.l.b16 %v3318
  %v4420 = vunpack.c.h.b16 %v3318
  %v4421 = vunpack.c.l.b16 %v3319
  %v4422 = vunpack.c.h.b16 %v3319
  %v4423 = vunpack.c.l.b16 %v3320
  %v4424 = vunpack.c.h.b16 %v3320
  %v4425 = vunpack.c.l.b16 %v3321
  %v4426 = vunpack.c.h.b16 %v3321
  %v4427 = vunpack.c.l.b16 %v3322
  %v4428 = vunpack.c.h.b16 %v3322
  %v4429 = vunpack.c.l.b16 %v3323
  %v4430 = vunpack.c.h.b16 %v3323
  %v4431 = vunpack.c.l.b16 %v3324
  %v4432 = vunpack.c.h.b16 %v3324
  %v4433 = vunpack.c.l.b16 %v3325
  %v4434 = vunpack.c.h.b16 %v3325
  %v4435 = vunpack.c.l.b16 %v3326
  %v4436 = vunpack.c.h.b16 %v3326
  %v4437 = vunpack.c.l.b16 %v3327
  %v4438 = vunpack.c.h.b16 %v3327
  %v4439 = vunpack.c.l.b16 %v3328
  %v4440 = vunpack.c.h.b16 %v3328
  %v4441 = vunpack.c.l.b16 %v3329
  %v4442 = vunpack.c.h.b16 %v3329
  %v4443 = vunpack.c.l.b16 %v3330
  %v4444 = vunpack.c.h.b16 %v3330
  %v4445 = vunpack.c.l.b16 %v3331
  %v4446 = vunpack.c.h.b16 %v3331
  %v4447 = vunpack.c.l.b16 %v3332
  %v4448 = vunpack.c.h.b16 %v3332
  %v4449 = vunpack.c.l.b16 %v3333
  %v4450 = vunpack.c.h.b16 %v3333
  %v4451 = vunpack.c.l.b16 %v3334
  %v4452 = vunpack.c.h.b16 %v3334
  %v4453 = vunpack.c.l.b16 %v3335
  %v4454 = vunpack.c.h.b16 %v3335
  %v4455 = vunpack.c.l.b16 %v3336
  %v4456 = vunpack.c.h.b16 %v3336
  %v4457 = vunpack.c.l.b16 %v3337
  %v4458 = vunpack.c.h.b16 %v3337
  %v4459 = vunpack.c.l.b16 %v3338
  %v4460 = vunpack.c.h.b16 %v3338
  %v4461 = vunpack.c.l.b16 %v3339
  %v4462 = vunpack.c.h.b16 %v3339
  %v4463 = vunpack.c.l.b16 %v3340
  %v4464 = vunpack.c.h.b16 %v3340
  %v4465 = vunpack.c.l.b16 %v3341
  %v4466 = vunpack.c.h.b16 %v3341
  %v4467 = vunpack.c.l.b16 %v3342
  %v4468 = vunpack.c.h.b16 %v3342
  %v4469 = vunpack.c.l.b16 %v3343
  %v4470 = vunpack.c.h.b16 %v3343
  %v4471 = vunpack.c.l.b16 %v3344
  %v4472 = vunpack.c.h.b16 %v3344
  %v4473 = vunpack.c.l.b16 %v3345
  %v4474 = vunpack.c.h.b16 %v3345
  %v4475 = vunpack.c.l.b16 %v3346
  %v4476 = vunpack.c.h.b16 %v3346
  %v4477 = vunpack.c.l.b16 %v3347
  %v4478 = vunpack.c.h.b16 %v3347
  %v4479 = vunpack.c.l.b16 %v3348
  %v4480 = vunpack.c.h.b16 %v3348
  %v4481 = vunpack.c.l.b16 %v3349
  %v4482 = vunpack.c.h.b16 %v3349
  %v4483 = vunpack.c.l.b16 %v3350
  %v4484 = vunpack.c.h.b16 %v3350
  %v4485 = vunpack.c.l.b16 %v3351
  %v4486 = vunpack.c.h.b16 %v3351
  %v4487 = vunpack.c.l.b16 %v3352
  %v4488 = vunpack.c.h.b16 %v3352
  %v4489 = vunpack.c.l.b16 %v3353
  %v4490 = vunpack.c.h.b16 %v3353
  %v4491 = vunpack.c.l.b16 %v3354
  %v4492 = vunpack.c.h.b16 %v3354
  %v4493 = vunpack.c.l.b16 %v3355
  %v4494 = vunpack.c.h.b16 %v3355
  %v4495 = vunpack.c.l.b16 %v3356
  %v4496 = vunpack.c.h.b16 %v3356
  %v4497 = vunpack.c.l.b16 %v3357
  %v4498 = vunpack.c.h.b16 %v3357
  %v4499 = vunpack.c.l.b16 %v3358
  %v4500 = vunpack.c.h.b16 %v3358
  %v4501 = vunpack.c.l.b16 %v3359
  %v4502 = vunpack.c.h.b16 %v3359
  %v4503 = vunpack.c.l.b16 %v3360
  %v4504 = vunpack.c.h.b16 %v3360
  %v4505 = vunpack.c.l.b16 %v3361
  %v4506 = vunpack.c.h.b16 %v3361
  %v4507 = vunpack.c.l.b16 %v3362
  %v4508 = vunpack.c.h.b16 %v3362
  %v4509 = vunpack.c.l.b16 %v3363
  %v4510 = vunpack.c.h.b16 %v3363
  %v4511 = vunpack.c.l.b16 %v3364
  %v4512 = vunpack.c.h.b16 %v3364
  %v4513 = vunpack.c.l.b16 %v3365
  %v4514 = vunpack.c.h.b16 %v3365
  %v4515 = vunpack.c.l.b16 %v3366
  %v4516 = vunpack.c.h.b16 %v3366
  %v4517 = vunpack.c.l.b16 %v3367
  %v4518 = vunpack.c.h.b16 %v3367
  %v4519 = vunpack.c.l.b16 %v3368
  %v4520 = vunpack.c.h.b16 %v3368
  %v4521 = vunpack.c.l.b16 %v3369
  %v4522 = vunpack.c.h.b16 %v3369
  %v4523 = vunpack.c.l.b16 %v3370
  %v4524 = vunpack.c.h.b16 %v3370
  %v4525 = vunpack.c.l.b16 %v3371
  %v4526 = vunpack.c.h.b16 %v3371
  %v4527 = vunpack.c.l.b16 %v3372
  %v4528 = vunpack.c.h.b16 %v3372
  %v4529 = vunpack.c.l.b16 %v3373
  %v4530 = vunpack.c.h.b16 %v3373
  %v4531 = vunpack.c.l.b16 %v3374
  %v4532 = vunpack.c.h.b16 %v3374
  %v4533 = vunpack.c.l.b16 %v3375
  %v4534 = vunpack.c.h.b16 %v3375
  %v4535 = vunpack.c.l.b16 %v3376
  %v4536 = vunpack.c.h.b16 %v3376
  %v4537 = vunpack.c.l.b16 %v3377
  %v4538 = vunpack.c.h.b16 %v3377
  %v4539 = vunpack.c.l.b16 %v3378
  %v4540 = vunpack.c.h.b16 %v3378
  %v4541 = vunpack.c.l.b16 %v3379
  %v4542 = vunpack.c.h.b16 %v3379
  %v4543 = vunpack.c.l.b16 %v3380
  %v4544 = vunpack.c.h.b16 %v3380
  %v4545 = vunpack.c.l.b16 %v3381
  %v4546 = vunpack.c.h.b16 %v3381
  %v4547 = vunpack.c.l.b16 %v3382
  %v4548 = vunpack.c.h.b16 %v3382
  %v4549 = vunpack.c.l.b16 %v3383
  %v4550 = vunpack.c.h.b16 %v3383
  %v4551 = vunpack.c.l.b16 %v3384
  %v4552 = vunpack.c.h.b16 %v3384
  %v4553 = vunpack.c.l.b16 %v3385
  %v4554 = vunpack.c.h.b16 %v3385
  %v4555 = vunpack.c.l.b16 %v3386
  %v4556 = vunpack.c.h.b16 %v3386
  %v4557 = vunpack.c.l.b16 %v3387
  %v4558 = vunpack.c.h.b16 %v3387
  %v4559 = vunpack.c.l.b16 %v3388
  %v4560 = vunpack.c.h.b16 %v3388
  %v4561 = vunpack.c.l.b16 %v3389
  %v4562 = vunpack.c.h.b16 %v3389
  %v4563 = vunpack.c.l.b16 %v3390
  %v4564 = vunpack.c.h.b16 %v3390
  %v4565 = vunpack.c.l.b16 %v3391
  %v4566 = vunpack.c.h.b16 %v3391
  %v4567 = vunpack.c.l.b16 %v3392
  %v4568 = vunpack.c.h.b16 %v3392
  %v4569 = vunpack.c.l.b16 %v3393
  %v4570 = vunpack.c.h.b16 %v3393
  %v4571 = vunpack.c.l.b16 %v3394
  %v4572 = vunpack.c.h.b16 %v3394
  %v4573 = vunpack.c.l.b16 %v3395
  %v4574 = vunpack.c.h.b16 %v3395
  %v4575 = vunpack.c.l.b16 %v3396
  %v4576 = vunpack.c.h.b16 %v3396
  %v4577 = vunpack.c.l.b16 %v3397
  %v4578 = vunpack.c.h.b16 %v3397
  %v4579 = vunpack.c.l.b16 %v3398
  %v4580 = vunpack.c.h.b16 %v3398
  %v4581 = vunpack.c.l.b16 %v3399
  %v4582 = vunpack.c.h.b16 %v3399
  %v4583 = vunpack.c.l.b16 %v3400
  %v4584 = vunpack.c.h.b16 %v3400
  %v4585 = vunpack.c.l.b16 %v3401
  %v4586 = vunpack.c.h.b16 %v3401
  %v4587 = vunpack.c.l.b16 %v3402
  %v4588 = vunpack.c.h.b16 %v3402
  %v4589 = vunpack.c.l.b16 %v3403
  %v4590 = vunpack.c.h.b16 %v3403
  %v4591 = vunpack.c.l.b16 %v3404
  %v4592 = vunpack.c.h.b16 %v3404
  %v4593 = vunpack.c.l.b16 %v3405
  %v4594 = vunpack.c.h.b16 %v3405
  %v4595 = vunpack.c.l.b16 %v3406
  %v4596 = vunpack.c.h.b16 %v3406
  %v4597 = vunpack.c.l.b16 %v3407
  %v4598 = vunpack.c.h.b16 %v3407
  %v4599 = vunpack.c.l.b16 %v3408
  %v4600 = vunpack.c.h.b16 %v3408
  %v4601 = vunpack.c.l.b16 %v3409
  %v4602 = vunpack.c.h.b16 %v3409
  %v4603 = vunpack.c.l.b16 %v3410
  %v4604 = vunpack.c.h.b16 %v3410
  %v4605 = vunpack.c.l.b16 %v3411
  %v4606 = vunpack.c.h.b16 %v3411
  %v4607 = vunpack.c.l.b16 %v3412
  %v4608 = vunpack.c.h.b16 %v3412
  %v4609 = vunpack.c.l.b16 %v3413
  %v4610 = vunpack.c.h.b16 %v3413
  %v4611 = vunpack.c.l.b16 %v3414
  %v4612 = vunpack.c.h.b16 %v3414
  %v4613 = vunpack.c.l.b16 %v3415
  %v4614 = vunpack.c.h.b16 %v3415
  %v4615 = vunpack.c.l.b16 %v3416
  %v4616 = vunpack.c.h.b16 %v3416
  %v4617 = vunpack.c.l.b16 %v3417
  %v4618 = vunpack.c.h.b16 %v3417
  %v4619 = vunpack.c.l.b16 %v3418
  %v4620 = vunpack.c.h.b16 %v3418
  %v4621 = vunpack.c.l.b16 %v3419
  %v4622 = vunpack.c.h.b16 %v3419
  %v4623 = vunpack.c.l.b16 %v3420
  %v4624 = vunpack.c.h.b16 %v3420
  %v4625 = vunpack.c.l.b16 %v3421
  %v4626 = vunpack.c.h.b16 %v3421
  %v4627 = vunpack.c.l.b16 %v3422
  %v4628 = vunpack.c.h.b16 %v3422
  %v4629 = vunpack.c.l.b16 %v3423
  %v4630 = vunpack.c.h.b16 %v3423
  %v4631 = vunpack.c.l.b16 %v3424
  %v4632 = vunpack.c.h.b16 %v3424
  %v4633 = vunpack.c.l.b16 %v3425
  %v4634 = vunpack.c.h.b16 %v3425
  %v4635 = vunpack.c.l.b16 %v3426
  %v4636 = vunpack.c.h.b16 %v3426
  %v4637 = vunpack.c.l.b16 %v3427
  %v4638 = vunpack.c.h.b16 %v3427
  %v4639 = vunpack.c.l.b16 %v3428
  %v4640 = vunpack.c.h.b16 %v3428
  %v4641 = vunpack.c.l.b16 %v3429
  %v4642 = vunpack.c.h.b16 %v3429
  %v4643 = vunpack.c.l.b16 %v3430
  %v4644 = vunpack.c.h.b16 %v3430
  %v4645 = vunpack.c.l.b16 %v3431
  %v4646 = vunpack.c.h.b16 %v3431
  %v4647 = vunpack.c.l.b16 %v3432
  %v4648 = vunpack.c.h.b16 %v3432
  %v4649 = vunpack.c.l.b16 %v3433
  %v4650 = vunpack.c.h.b16 %v3433
  %v4651 = vunpack.c.l.b16 %v3434
  %v4652 = vunpack.c.h.b16 %v3434
  %v4653 = vunpack.c.l.b16 %v3435
  %v4654 = vunpack.c.h.b16 %v3435
  %v4655 = vunpack.c.l.b16 %v3436
  %v4656 = vunpack.c.h.b16 %v3436
  %v4657 = vunpack.c.l.b16 %v3437
  %v4658 = vunpack.c.h.b16 %v3437
  %v4659 = vunpack.c.l.b16 %v3438
  %v4660 = vunpack.c.h.b16 %v3438
  %v4661 = vunpack.c.l.b16 %v3439
  %v4662 = vunpack.c.h.b16 %v3439
  %v4663 = vunpack.c.l.b16 %v3440
  %v4664 = vunpack.c.h.b16 %v3440
  %v4665 = vunpack.c.l.b16 %v3441
  %v4666 = vunpack.c.h.b16 %v3441
  %v4667 = vunpack.c.l.b16 %v3442
  %v4668 = vunpack.c.h.b16 %v3442
  %v4669 = vunpack.c.l.b16 %v3443
  %v4670 = vunpack.c.h.b16 %v3443
  %v4671 = vunpack.c.l.b16 %v3444
  %v4672 = vunpack.c.h.b16 %v3444
  %v4673 = vunpack.c.l.b16 %v3445
  %v4674 = vunpack.c.h.b16 %v3445
  %v4675 = vunpack.c.l.b16 %v3446
  %v4676 = vunpack.c.h.b16 %v3446
  %v4677 = vunpack.c.l.b16 %v3447
  %v4678 = vunpack.c.h.b16 %v3447
  %v4679 = vunpack.c.l.b16 %v3448
  %v4680 = vunpack.c.h.b16 %v3448
  %v4681 = vunpack.c.l.b16 %v3449
  %v4682 = vunpack.c.h.b16 %v3449
  %v4683 = vunpack.c.l.b16 %v3450
  %v4684 = vunpack.c.h.b16 %v3450
  %v4685 = vunpack.c.l.b16 %v3451
  %v4686 = vunpack.c.h.b16 %v3451
  %v4687 = vunpack.c.l.b16 %v3452
  %v4688 = vunpack.c.h.b16 %v3452
  %v4689 = vunpack.c.l.b16 %v3453
  %v4690 = vunpack.c.h.b16 %v3453
  %v4691 = vunpack.c.l.b16 %v3454
  %v4692 = vunpack.c.h.b16 %v3454
  %v4693 = vunpack.c.l.b16 %v3455
  %v4694 = vunpack.c.h.b16 %v3455
  %v4695 = vunpack.c.l.b16 %v3456
  %v4696 = vunpack.c.h.b16 %v3456
  %v4697 = vunpack.c.l.b16 %v3457
  %v4698 = vunpack.c.h.b16 %v3457
  %v4699 = vunpack.c.l.b16 %v3458
  %v4700 = vunpack.c.h.b16 %v3458
  %v4701 = vunpack.c.l.b16 %v3459
  %v4702 = vunpack.c.h.b16 %v3459
  %v4703 = vunpack.c.l.b16 %v3460
  %v4704 = vunpack.c.h.b16 %v3460
  %v4705 = vunpack.c.l.b16 %v3461
  %v4706 = vunpack.c.h.b16 %v3461
  %v4707 = vunpack.c.l.b16 %v3462
  %v4708 = vunpack.c.h.b16 %v3462
  %v4709 = vunpack.c.l.b16 %v3463
  %v4710 = vunpack.c.h.b16 %v3463
  %v4711 = vunpack.c.l.b16 %v3464
  %v4712 = vunpack.c.h.b16 %v3464
  %v4713 = vunpack.c.l.b16 %v3465
  %v4714 = vunpack.c.h.b16 %v3465
  %v4715 = vunpack.c.l.b16 %v3466
  %v4716 = vunpack.c.h.b16 %v3466
  %v4717 = vunpack.c.l.b16 %v3467
  %v4718 = vunpack.c.h.b16 %v3467
  %v4719 = vunpack.c.l.b16 %v3468
  %v4720 = vunpack.c.h.b16 %v3468
  %v4721 = vunpack.c.l.b16 %v3469
  %v4722 = vunpack.c.h.b16 %v3469
  %v4723 = vunpack.c.l.b16 %v3470
  %v4724 = vunpack.c.h.b16 %v3470
  %v4725 = vunpack.c.l.b16 %v3471
  %v4726 = vunpack.c.h.b16 %v3471
  %v4727 = vunpack.c.l.b16 %v3472
  %v4728 = vunpack.c.h.b16 %v3472
  %v4729 = vunpack.c.l.b16 %v3473
  %v4730 = vunpack.c.h.b16 %v3473
  %v4731 = vunpack.c.l.b16 %v3474
  %v4732 = vunpack.c.h.b16 %v3474
  %v4733 = vunpack.c.l.b16 %v3475
  %v4734 = vunpack.c.h.b16 %v3475
  %v4735 = vunpack.c.l.b16 %v3476
  %v4736 = vunpack.c.h.b16 %v3476
  %v4737 = vunpack.c.l.b16 %v3477
  %v4738 = vunpack.c.h.b16 %v3477
  %v4739 = vunpack.c.l.b16 %v3478
  %v4740 = vunpack.c.h.b16 %v3478
  %v4741 = vunpack.c.l.b16 %v3479
  %v4742 = vunpack.c.h.b16 %v3479
  %v4743 = vunpack.c.l.b16 %v3480
  %v4744 = vunpack.c.h.b16 %v3480
  %v4745 = vunpack.c.l.b16 %v3481
  %v4746 = vunpack.c.h.b16 %v3481
  %v4747 = vunpack.c.l.b16 %v3482
  %v4748 = vunpack.c.h.b16 %v3482
  %v4749 = vunpack.c.l.b16 %v3483
  %v4750 = vunpack.c.h.b16 %v3483
  %v4751 = vunpack.c.l.b16 %v3484
  %v4752 = vunpack.c.h.b16 %v3484
  %v4753 = vunpack.c.l.b16 %v3485
  %v4754 = vunpack.c.h.b16 %v3485
  %v4755 = vunpack.c.l.b16 %v3486
  %v4756 = vunpack.c.h.b16 %v3486
  %v4757 = vunpack.c.l.b16 %v3487
  %v4758 = vunpack.c.h.b16 %v3487
  %v4759 = vunpack.c.l.b16 %v3488
  %v4760 = vunpack.c.h.b16 %v3488
  %v4761 = vunpack.c.l.b16 %v3489
  %v4762 = vunpack.c.h.b16 %v3489
  %v4763 = vunpack.c.l.b16 %v3490
  %v4764 = vunpack.c.h.b16 %v3490
  %v4765 = vunpack.c.l.b16 %v3491
  %v4766 = vunpack.c.h.b16 %v3491
  %v4767 = vunpack.c.l.b16 %v3492
  %v4768 = vunpack.c.h.b16 %v3492
  %v4769 = vunpack.c.l.b16 %v3493
  %v4770 = vunpack.c.h.b16 %v3493
  %v4771 = vunpack.c.l.b16 %v3494
  %v4772 = vunpack.c.h.b16 %v3494
  %v4773 = vunpack.c.l.b16 %v3495
  %v4774 = vunpack.c.h.b16 %v3495
  %v4775 = vunpack.c.l.b16 %v3496
  %v4776 = vunpack.c.h.b16 %v3496
  %v4777 = vunpack.c.l.b16 %v3497
  %v4778 = vunpack.c.h.b16 %v3497
  %v4779 = vunpack.c.l.b16 %v3498
  %v4780 = vunpack.c.h.b16 %v3498
  %v4781 = vunpack.c.l.b16 %v3499
  %v4782 = vunpack.c.h.b16 %v3499
  %v4783 = vunpack.c.l.b16 %v3500
  %v4784 = vunpack.c.h.b16 %v3500
  %v4785 = vunpack.c.l.b16 %v3501
  %v4786 = vunpack.c.h.b16 %v3501
  %v4787 = vunpack.c.l.b16 %v3502
  %v4788 = vunpack.c.h.b16 %v3502
  %v4789 = vunpack.c.l.b16 %v3503
  %v4790 = vunpack.c.h.b16 %v3503
  %v4791 = vunpack.c.l.b16 %v3504
  %v4792 = vunpack.c.h.b16 %v3504
  %v4793 = vunpack.c.l.b16 %v3505
  %v4794 = vunpack.c.h.b16 %v3505
  %v4795 = vunpack.c.l.b16 %v3506
  %v4796 = vunpack.c.h.b16 %v3506
  %v4797 = vunpack.c.l.b16 %v3507
  %v4798 = vunpack.c.h.b16 %v3507
  %v4799 = vunpack.c.l.b16 %v3508
  %v4800 = vunpack.c.h.b16 %v3508
  %v4801 = vunpack.c.l.b16 %v3509
  %v4802 = vunpack.c.h.b16 %v3509
  %v4803 = vunpack.c.l.b16 %v3510
  %v4804 = vunpack.c.h.b16 %v3510
  %v4805 = vunpack.c.l.b16 %v3511
  %v4806 = vunpack.c.h.b16 %v3511
  %v4807 = vunpack.c.l.b16 %v3512
  %v4808 = vunpack.c.h.b16 %v3512
  %v4809 = vunpack.c.l.b16 %v3513
  %v4810 = vunpack.c.h.b16 %v3513
  %v4811 = vunpack.c.l.b16 %v3514
  %v4812 = vunpack.c.h.b16 %v3514
  %v4813 = vunpack.c.l.b16 %v3515
  %v4814 = vunpack.c.h.b16 %v3515
  %v4815 = vunpack.c.l.b16 %v3516
  %v4816 = vunpack.c.h.b16 %v3516
  %v4817 = vunpack.c.l.b16 %v3517
  %v4818 = vunpack.c.h.b16 %v3517
  %v4819 = vunpack.c.l.b16 %v3518
  %v4820 = vunpack.c.h.b16 %v3518
  %v4821 = vunpack.c.l.b16 %v3519
  %v4822 = vunpack.c.h.b16 %v3519
  %v4823 = vunpack.c.l.b16 %v3520
  %v4824 = vunpack.c.h.b16 %v3520
  %v4825 = vunpack.c.l.b16 %v3521
  %v4826 = vunpack.c.h.b16 %v3521
  %v4827 = vunpack.c.l.b16 %v3522
  %v4828 = vunpack.c.h.b16 %v3522
  %v4829 = vunpack.c.l.b16 %v3523
  %v4830 = vunpack.c.h.b16 %v3523
  %v4831 = vunpack.c.l.b16 %v3524
  %v4832 = vunpack.c.h.b16 %v3524
  %v4833 = vunpack.c.l.b16 %v3525
  %v4834 = vunpack.c.h.b16 %v3525
  %v4835 = vunpack.c.l.b16 %v3526
  %v4836 = vunpack.c.h.b16 %v3526
  %v4837 = vunpack.c.l.b16 %v3527
  %v4838 = vunpack.c.h.b16 %v3527
  %v4839 = vunpack.c.l.b16 %v3528
  %v4840 = vunpack.c.h.b16 %v3528
  %v4841 = vunpack.c.l.b16 %v3529
  %v4842 = vunpack.c.h.b16 %v3529
  %v4843 = vunpack.c.l.b16 %v3530
  %v4844 = vunpack.c.h.b16 %v3530
  %v4845 = vunpack.c.l.b16 %v3531
  %v4846 = vunpack.c.h.b16 %v3531
  %v4847 = vunpack.c.l.b16 %v3532
  %v4848 = vunpack.c.h.b16 %v3532
  %v4849 = vunpack.c.l.b16 %v3533
  %v4850 = vunpack.c.h.b16 %v3533
  %v4851 = vunpack.c.l.b16 %v3534
  %v4852 = vunpack.c.h.b16 %v3534
  %v4853 = vunpack.c.l.b16 %v3535
  %v4854 = vunpack.c.h.b16 %v3535
  %v4855 = vunpack.c.l.b16 %v3536
  %v4856 = vunpack.c.h.b16 %v3536
  %v4857 = vunpack.c.l.b16 %v3537
  %v4858 = vunpack.c.h.b16 %v3537
  %v4859 = vunpack.c.l.b16 %v3538
  %v4860 = vunpack.c.h.b16 %v3538
  %v4861 = vunpack.c.l.b16 %v3539
  %v4862 = vunpack.c.h.b16 %v3539
  %v4863 = vunpack.c.l.b16 %v3540
  %v4864 = vunpack.c.h.b16 %v3540
  %v4865 = vunpack.c.l.b16 %v3541
  %v4866 = vunpack.c.h.b16 %v3541
  %v4867 = vunpack.c.l.b16 %v3542
  %v4868 = vunpack.c.h.b16 %v3542
  %v4869 = vunpack.c.l.b16 %v3543
  %v4870 = vunpack.c.h.b16 %v3543
  %v4871 = vunpack.c.l.b16 %v3544
  %v4872 = vunpack.c.h.b16 %v3544
  %v4873 = vunpack.c.l.b16 %v3545
  %v4874 = vunpack.c.h.b16 %v3545
  %v4875 = vunpack.c.l.b16 %v3546
  %v4876 = vunpack.c.h.b16 %v3546
  %v4877 = vunpack.c.l.b16 %v3547
  %v4878 = vunpack.c.h.b16 %v3547
  %v4879 = vunpack.c.l.b16 %v3548
  %v4880 = vunpack.c.h.b16 %v3548
  %v4881 = vunpack.c.l.b16 %v3549
  %v4882 = vunpack.c.h.b16 %v3549
  %v4883 = vunpack.c.l.b16 %v3550
  %v4884 = vunpack.c.h.b16 %v3550
  %v4885 = vunpack.c.l.b16 %v3551
  %v4886 = vunpack.c.h.b16 %v3551
  %v4887 = vunpack.c.l.b16 %v3552
  %v4888 = vunpack.c.h.b16 %v3552
  %v4889 = vunpack.c.l.b16 %v3553
  %v4890 = vunpack.c.h.b16 %v3553
  %v4891 = vunpack.c.l.b16 %v3554
  %v4892 = vunpack.c.h.b16 %v3554
  %v4893 = vunpack.c.l.b16 %v3555
  %v4894 = vunpack.c.h.b16 %v3555
  %v4895 = vunpack.c.l.b16 %v3556
  %v4896 = vunpack.c.h.b16 %v3556
  %v4897 = vunpack.c.l.b16 %v3557
  %v4898 = vunpack.c.h.b16 %v3557
  %v4899 = vunpack.c.l.b16 %v3558
  %v4900 = vunpack.c.h.b16 %v3558
  %v4901 = vunpack.c.l.b16 %v3559
  %v4902 = vunpack.c.h.b16 %v3559
  %v4903 = vunpack.c.l.b16 %v3560
  %v4904 = vunpack.c.h.b16 %v3560
  %v4905 = vunpack.c.l.b16 %v3561
  %v4906 = vunpack.c.h.b16 %v3561
  %v4907 = vunpack.c.l.b16 %v3562
  %v4908 = vunpack.c.h.b16 %v3562
  %v4909 = vunpack.c.l.b16 %v3563
  %v4910 = vunpack.c.h.b16 %v3563
  %v4911 = vunpack.c.l.b16 %v3564
  %v4912 = vunpack.c.h.b16 %v3564
  %v4913 = vunpack.c.l.b16 %v3565
  %v4914 = vunpack.c.h.b16 %v3565
  %v4915 = vunpack.c.l.b16 %v3566
  %v4916 = vunpack.c.h.b16 %v3566
  %v4917 = vunpack.c.l.b16 %v3567
  %v4918 = vunpack.c.h.b16 %v3567
  %v4919 = vunpack.c.l.b16 %v3568
  %v4920 = vunpack.c.h.b16 %v3568
  %v4921 = vunpack.c.l.b16 %v3569
  %v4922 = vunpack.c.h.b16 %v3569
  %v4923 = vunpack.c.l.b16 %v3570
  %v4924 = vunpack.c.h.b16 %v3570
  %v4925 = vunpack.c.l.b16 %v3571
  %v4926 = vunpack.c.h.b16 %v3571
  %v4927 = vunpack.c.l.b16 %v3572
  %v4928 = vunpack.c.h.b16 %v3572
  %v4929 = vunpack.c.l.b16 %v3573
  %v4930 = vunpack.c.h.b16 %v3573
  %v4931 = vunpack.c.l.b16 %v3574
  %v4932 = vunpack.c.h.b16 %v3574
  %v4933 = vunpack.c.l.b16 %v3575
  %v4934 = vunpack.c.h.b16 %v3575
  %v4935 = vunpack.c.l.b16 %v3576
  %v4936 = vunpack.c.h.b16 %v3576
  %v4937 = vunpack.c.l.b16 %v3577
  %v4938 = vunpack.c.h.b16 %v3577
  %v4939 = vunpack.c.l.b16 %v3578
  %v4940 = vunpack.c.h.b16 %v3578
  %v4941 = vunpack.c.l.b16 %v3579
  %v4942 = vunpack.c.h.b16 %v3579
  %v4943 = vunpack.c.l.b16 %v3580
  %v4944 = vunpack.c.h.b16 %v3580
  %v4945 = vunpack.c.l.b16 %v3581
  %v4946 = vunpack.c.h.b16 %v3581
  %v4947 = vunpack.c.l.b16 %v3582
  %v4948 = vunpack.c.h.b16 %v3582
  %v4949 = vpack.c.b16 %v4185, %v4181
  %v4950 = vpack.c.b16 %v4186, %v4182
  %v4951 = vpack.c.b16 %v4187, %v4183
  %v4952 = vpack.c.b16 %v4188, %v4184
  %v4953 = vpack.c.b16 %v4193, %v4189
  %v4954 = vpack.c.b16 %v4194, %v4190
  %v4955 = vpack.c.b16 %v4195, %v4191
  %v4956 = vpack.c.b16 %v4196, %v4192
  %v4957 = vpack.c.b16 %v4201, %v4197
  %v4958 = vpack.c.b16 %v4202, %v4198
  %v4959 = vpack.c.b16 %v4203, %v4199
  %v4960 = vpack.c.b16 %v4204, %v4200
  %v4961 = vpack.c.b16 %v4209, %v4205
  %v4962 = vpack.c.b16 %v4210, %v4206
  %v4963 = vpack.c.b16 %v4211, %v4207
  %v4964 = vpack.c.b16 %v4212, %v4208
  %v4965 = vpack.c.b16 %v4217, %v4213
  %v4966 = vpack.c.b16 %v4218, %v4214
  %v4967 = vpack.c.b16 %v4219, %v4215
  %v4968 = vpack.c.b16 %v4220, %v4216
  %v4969 = vpack.c.b16 %v4225, %v4221
  %v4970 = vpack.c.b16 %v4226, %v4222
  %v4971 = vpack.c.b16 %v4227, %v4223
  %v4972 = vpack.c.b16 %v4228, %v4224
  %v4973 = vpack.c.b16 %v4233, %v4229
  %v4974 = vpack.c.b16 %v4234, %v4230
  %v4975 = vpack.c.b16 %v4235, %v4231
  %v4976 = vpack.c.b16 %v4236, %v4232
  %v4977 = vpack.c.b16 %v4241, %v4237
  %v4978 = vpack.c.b16 %v4242, %v4238
  %v4979 = vpack.c.b16 %v4243, %v4239
  %v4980 = vpack.c.b16 %v4244, %v4240
  %v4981 = vpack.c.b16 %v4249, %v4245
  %v4982 = vpack.c.b16 %v4250, %v4246
  %v4983 = vpack.c.b16 %v4251, %v4247
  %v4984 = vpack.c.b16 %v4252, %v4248
  %v4985 = vpack.c.b16 %v4257, %v4253
  %v4986 = vpack.c.b16 %v4258, %v4254
  %v4987 = vpack.c.b16 %v4259, %v4255
  %v4988 = vpack.c.b16 %v4260, %v4256
  %v4989 = vpack.c.b16 %v4265, %v4261
  %v4990 = vpack.c.b16 %v4266, %v4262
  %v4991 = vpack.c.b16 %v4267, %v4263
  %v4992 = vpack.c.b16 %v4268, %v4264
  %v4993 = vpack.c.b16 %v4273, %v4269
  %v4994 = vpack.c.b16 %v4274, %v4270
  %v4995 = vpack.c.b16 %v4275, %v4271
  %v4996 = vpack.c.b16 %v4276, %v4272
  %v4997 = vpack.c.b16 %v4281, %v4277
  %v4998 = vpack.c.b16 %v4282, %v4278
  %v4999 = vpack.c.b16 %v4283, %v4279
  %v5000 = vpack.c.b16 %v4284, %v4280
  %v5001 = vpack.c.b16 %v4289, %v4285
  %v5002 = vpack.c.b16 %v4290, %v4286
  %v5003 = vpack.c.b16 %v4291, %v4287
  %v5004 = vpack.c.b16 %v4292, %v4288
  %v5005 = vpack.c.b16 %v4297, %v4293
  %v5006 = vpack.c.b16 %v4298, %v4294
  %v5007 = vpack.c.b16 %v4299, %v4295
  %v5008 = vpack.c.b16 %v4300, %v4296
  %v5009 = vpack.c.b16 %v4305, %v4301
  %v5010 = vpack.c.b16 %v4306, %v4302
  %v5011 = vpack.c.b16 %v4307, %v4303
  %v5012 = vpack.c.b16 %v4308, %v4304
  %v5013 = vpack.c.b16 %v4313, %v4309
  %v5014 = vpack.c.b16 %v4314, %v4310
  %v5015 = vpack.c.b16 %v4315, %v4311
  %v5016 = vpack.c.b16 %v4316, %v4312
  %v5017 = vpack.c.b16 %v4321, %v4317
  %v5018 = vpack.c.b16 %v4322, %v4318
  %v5019 = vpack.c.b16 %v4323, %v4319
  %v5020 = vpack.c.b16 %v4324, %v4320
  %v5021 = vpack.c.b16 %v4329, %v4325
  %v5022 = vpack.c.b16 %v4330, %v4326
  %v5023 = vpack.c.b16 %v4331, %v4327
  %v5024 = vpack.c.b16 %v4332, %v4328
  %v5025 = vpack.c.b16 %v4337, %v4333
  %v5026 = vpack.c.b16 %v4338, %v4334
  %v5027 = vpack.c.b16 %v4339, %v4335
  %v5028 = vpack.c.b16 %v4340, %v4336
  %v5029 = vpack.c.b16 %v4345, %v4341
  %v5030 = vpack.c.b16 %v4346, %v4342
  %v5031 = vpack.c.b16 %v4347, %v4343
  %v5032 = vpack.c.b16 %v4348, %v4344
  %v5033 = vpack.c.b16 %v4353, %v4349
  %v5034 = vpack.c.b16 %v4354, %v4350
  %v5035 = vpack.c.b16 %v4355, %v4351
  %v5036 = vpack.c.b16 %v4356, %v4352
  %v5037 = vpack.c.b16 %v4361, %v4357
  %v5038 = vpack.c.b16 %v4362, %v4358
  %v5039 = vpack.c.b16 %v4363, %v4359
  %v5040 = vpack.c.b16 %v4364, %v4360
  %v5041 = vpack.c.b16 %v4369, %v4365
  %v5042 = vpack.c.b16 %v4370, %v4366
  %v5043 = vpack.c.b16 %v4371, %v4367
  %v5044 = vpack.c.b16 %v4372, %v4368
  %v5045 = vpack.c.b16 %v4377, %v4373
  %v5046 = vpack.c.b16 %v4378, %v4374
  %v5047 = vpack.c.b16 %v4379, %v4375
  %v5048 = vpack.c.b16 %v4380, %v4376
  %v5049 = vpack.c.b16 %v4385, %v4381
  %v5050 = vpack.c.b16 %v4386, %v4382
  %v5051 = vpack.c.b16 %v4387, %v4383
  %v5052 = vpack.c.b16 %v4388, %v4384
  %v5053 = vpack.c.b16 %v4393, %v4389
  %v5054 = vpack.c.b16 %v4394, %v4390
  %v5055 = vpack.c.b16 %v4395, %v4391
  %v5056 = vpack.c.b16 %v4396, %v4392
  %v5057 = vpack.c.b16 %v4401, %v4397
  %v5058 = vpack.c.b16 %v4402, %v4398
  %v5059 = vpack.c.b16 %v4403, %v4399
  %v5060 = vpack.c.b16 %v4404, %v4400
  %v5061 = vpack.c.b16 %v4409, %v4405
  %v5062 = vpack.c.b16 %v4410, %v4406
  %v5063 = vpack.c.b16 %v4411, %v4407
  %v5064 = vpack.c.b16 %v4412, %v4408
  %v5065 = vpack.c.b16 %v4417, %v4413
  %v5066 = vpack.c.b16 %v4418, %v4414
  %v5067 = vpack.c.b16 %v4419, %v4415
  %v5068 = vpack.c.b16 %v4420, %v4416
  %v5069 = vpack.c.b16 %v4425, %v4421
  %v5070 = vpack.c.b16 %v4426, %v4422
  %v5071 = vpack.c.b16 %v4427, %v4423
  %v5072 = vpack.c.b16 %v4428, %v4424
  %v5073 = vpack.c.b16 %v4433, %v4429
  %v5074 = vpack.c.b16 %v4434, %v4430
  %v5075 = vpack.c.b16 %v4435, %v4431
  %v5076 = vpack.c.b16 %v4436, %v4432
  %v5077 = vpack.c.b16 %v4441, %v4437
  %v5078 = vpack.c.b16 %v4442, %v4438
  %v5079 = vpack.c.b16 %v4443, %v4439
  %v5080 = vpack.c.b16 %v4444, %v4440
  %v5081 = vpack.c.b16 %v4449, %v4445
  %v5082 = vpack.c.b16 %v4450, %v4446
  %v5083 = vpack.c.b16 %v4451, %v4447
  %v5084 = vpack.c.b16 %v4452, %v4448
  %v5085 = vpack.c.b16 %v4457, %v4453
  %v5086 = vpack.c.b16 %v4458, %v4454
  %v5087 = vpack.c.b16 %v4459, %v4455
  %v5088 = vpack.c.b16 %v4460, %v4456
  %v5089 = vpack.c.b16 %v4465, %v4461
  %v5090 = vpack.c.b16 %v4466, %v4462
  %v5091 = vpack.c.b16 %v4467, %v4463
  %v5092 = vpack.c.b16 %v4468, %v4464
  %v5093 = vpack.c.b16 %v4473, %v4469
  %v5094 = vpack.c.b16 %v4474, %v4470
  %v5095 = vpack.c.b16 %v4475, %v4471
  %v5096 = vpack.c.b16 %v4476, %v4472
  %v5097 = vpack.c.b16 %v4481, %v4477
  %v5098 = vpack.c.b16 %v4482, %v4478
  %v5099 = vpack.c.b16 %v4483, %v4479
  %v5100 = vpack.c.b16 %v4484, %v4480
  %v5101 = vpack.c.b16 %v4489, %v4485
  %v5102 = vpack.c.b16 %v4490, %v4486
  %v5103 = vpack.c.b16 %v4491, %v4487
  %v5104 = vpack.c.b16 %v4492, %v4488
  %v5105 = vpack.c.b16 %v4497, %v4493
  %v5106 = vpack.c.b16 %v4498, %v4494
  %v5107 = vpack.c.b16 %v4499, %v4495
  %v5108 = vpack.c.b16 %v4500, %v4496
  %v5109 = vpack.c.b16 %v4505, %v4501
  %v5110 = vpack.c.b16 %v4506, %v4502
  %v5111 = vpack.c.b16 %v4507, %v4503
  %v5112 = vpack.c.b16 %v4508, %v4504
  %v5113 = vpack.c.b16 %v4513, %v4509
  %v5114 = vpack.c.b16 %v4514, %v4510
  %v5115 = vpack.c.b16 %v4515, %v4511
  %v5116 = vpack.c.b16 %v4516, %v4512
  %v5117 = vpack.c.b16 %v4521, %v4517
  %v5118 = vpack.c.b16 %v4522, %v4518
  %v5119 = vpack.c.b16 %v4523, %v4519
  %v5120 = vpack.c.b16 %v4524, %v4520
  %v5121 = vpack.c.b16 %v4529, %v4525
  %v5122 = vpack.c.b16 %v4530, %v4526
  %v5123 = vpack.c.b16 %v4531, %v4527
  %v5124 = vpack.c.b16 %v4532, %v4528
  %v5125 = vpack.c.b16 %v4537, %v4533
  %v5126 = vpack.c.b16 %v4538, %v4534
  %v5127 = vpack.c.b16 %v4539, %v4535
  %v5128 = vpack.c.b16 %v4540, %v4536
  %v5129 = vpack.c.b16 %v4545, %v4541
  %v5130 = vpack.c.b16 %v4546, %v4542
  %v5131 = vpack.c.b16 %v4547, %v4543
  %v5132 = vpack.c.b16 %v4548, %v4544
  %v5133 = vpack.c.b16 %v4553, %v4549
  %v5134 = vpack.c.b16 %v4554, %v4550
  %v5135 = vpack.c.b16 %v4555, %v4551
  %v5136 = vpack.c.b16 %v4556, %v4552
  %v5137 = vpack.c.b16 %v4561, %v4557
  %v5138 = vpack.c.b16 %v4562, %v4558
  %v5139 = vpack.c.b16 %v4563, %v4559
  %v5140 = vpack.c.b16 %v4564, %v4560
  %v5141 = vpack.c.b16 %v4569, %v4565
  %v5142 = vpack.c.b16 %v4570, %v4566
  %v5143 = vpack.c.b16 %v4571, %v4567
  %v5144 = vpack.c.b16 %v4572, %v4568
  %v5145 = vpack.c.b16 %v4577, %v4573
  %v5146 = vpack.c.b16 %v4578, %v4574
  %v5147 = vpack.c.b16 %v4579, %v4575
  %v5148 = vpack.c.b16 %v4580, %v4576
  %v5149 = vpack.c.b16 %v4585, %v4581
  %v5150 = vpack.c.b16 %v4586, %v4582
  %v5151 = vpack.c.b16 %v4587, %v4583
  %v5152 = vpack.c.b16 %v4588, %v4584
  %v5153 = vpack.c.b16 %v4593, %v4589
  %v5154 = vpack.c.b16 %v4594, %v4590
  %v5155 = vpack.c.b16 %v4595, %v4591
  %v5156 = vpack.c.b16 %v4596, %v4592
  %v5157 = vpack.c.b16 %v4601, %v4597
  %v5158 = vpack.c.b16 %v4602, %v4598
  %v5159 = vpack.c.b16 %v4603, %v4599
  %v5160 = vpack.c.b16 %v4604, %v4600
  %v5161 = vpack.c.b16 %v4609, %v4605
  %v5162 = vpack.c.b16 %v4610, %v4606
  %v5163 = vpack.c.b16 %v4611, %v4607
  %v5164 = vpack.c.b16 %v4612, %v4608
  %v5165 = vpack.c.b16 %v4617, %v4613
  %v5166 = vpack.c.b16 %v4618, %v4614
  %v5167 = vpack.c.b16 %v4619, %v4615
  %v5168 = vpack.c.b16 %v4620, %v4616
  %v5169 = vpack.c.b16 %v4625, %v4621
  %v5170 = vpack.c.b16 %v4626, %v4622
  %v5171 = vpack.c.b16 %v4627, %v4623
  %v5172 = vpack.c.b16 %v4628, %v4624
  %v5173 = vpack.c.b16 %v4633, %v4629
  %v5174 = vpack.c.b16 %v4634, %v4630
  %v5175 = vpack.c.b16 %v4635, %v4631
  %v5176 = vpack.c.b16 %v4636, %v4632
  %v5177 = vpack.c.b16 %v4641, %v4637
  %v5178 = vpack.c.b16 %v4642, %v4638
  %v5179 = vpack.c.b16 %v4643, %v4639
  %v5180 = vpack.c.b16 %v4644, %v4640
  %v5181 = vpack.c.b16 %v4649, %v4645
  %v5182 = vpack.c.b16 %v4650, %v4646
  %v5183 = vpack.c.b16 %v4651, %v4647
  %v5184 = vpack.c.b16 %v4652, %v4648
  %v5185 = vpack.c.b16 %v4657, %v4653
  %v5186 = vpack.c.b16 %v4658, %v4654
  %v5187 = vpack.c.b16 %v4659, %v4655
  %v5188 = vpack.c.b16 %v4660, %v4656
  %v5189 = vpack.c.b16 %v4665, %v4661
  %v5190 = vpack.c.b16 %v4666, %v4662
  %v5191 = vpack.c.b16 %v4667, %v4663
  %v5192 = vpack.c.b16 %v4668, %v4664
  %v5193 = vpack.c.b16 %v4673, %v4669
  %v5194 = vpack.c.b16 %v4674, %v4670
  %v5195 = vpack.c.b16 %v4675, %v4671
  %v5196 = vpack.c.b16 %v4676, %v4672
  %v5197 = vpack.c.b16 %v4681, %v4677
  %v5198 = vpack.c.b16 %v4682, %v4678
  %v5199 = vpack.c.b16 %v4683, %v4679
  %v5200 = vpack.c.b16 %v4684, %v4680
  %v5201 = vpack.c.b16 %v4689, %v4685
  %v5202 = vpack.c.b16 %v4690, %v4686
  %v5203 = vpack.c.b16 %v4691, %v4687
  %v5204 = vpack.c.b16 %v4692, %v4688
  %v5205 = vpack.c.b16 %v4697, %v4693
  %v5206 = vpack.c.b16 %v4698, %v4694
  %v5207 = vpack.c.b16 %v4699, %v4695
  %v5208 = vpack.c.b16 %v4700, %v4696
  %v5209 = vpack.c.b16 %v4705, %v4701
  %v5210 = vpack.c.b16 %v4706, %v4702
  %v5211 = vpack.c.b16 %v4707, %v4703
  %v5212 = vpack.c.b16 %v4708, %v4704
  %v5213 = vpack.c.b16 %v4713, %v4709
  %v5214 = vpack.c.b16 %v4714, %v4710
  %v5215 = vpack.c.b16 %v4715, %v4711
  %v5216 = vpack.c.b16 %v4716, %v4712
  %v5217 = vpack.c.b16 %v4721, %v4717
  %v5218 = vpack.c.b16 %v4722, %v4718
  %v5219 = vpack.c.b16 %v4723, %v4719
  %v5220 = vpack.c.b16 %v4724, %v4720
  %v5221 = vpack.c.b16 %v4729, %v4725
  %v5222 = vpack.c.b16 %v4730, %v4726
  %v5223 = vpack.c.b16 %v4731, %v4727
  %v5224 = vpack.c.b16 %v4732, %v4728
  %v5225 = vpack.c.b16 %v4737, %v4733
  %v5226 = vpack.c.b16 %v4738, %v4734
  %v5227 = vpack.c.b16 %v4739, %v4735
  %v5228 = vpack.c.b16 %v4740, %v4736
  %v5229 = vpack.c.b16 %v4745, %v4741
  %v5230 = vpack.c.b16 %v4746, %v4742
  %v5231 = vpack.c.b16 %v4747, %v4743
  %v5232 = vpack.c.b16 %v4748, %v4744
  %v5233 = vpack.c.b16 %v4753, %v4749
  %v5234 = vpack.c.b16 %v4754, %v4750
  %v5235 = vpack.c.b16 %v4755, %v4751
  %v5236 = vpack.c.b16 %v4756, %v4752
  %v5237 = vpack.c.b16 %v4761, %v4757
  %v5238 = vpack.c.b16 %v4762, %v4758
  %v5239 = vpack.c.b16 %v4763, %v4759
  %v5240 = vpack.c.b16 %v4764, %v4760
  %v5241 = vpack.c.b16 %v4769, %v4765
  %v5242 = vpack.c.b16 %v4770, %v4766
  %v5243 = vpack.c.b16 %v4771, %v4767
  %v5244 = vpack.c.b16 %v4772, %v4768
  %v5245 = vpack.c.b16 %v4777, %v4773
  %v5246 = vpack.c.b16 %v4778, %v4774
  %v5247 = vpack.c.b16 %v4779, %v4775
  %v5248 = vpack.c.b16 %v4780, %v4776
  %v5249 = vpack.c.b16 %v4785, %v4781
  %v5250 = vpack.c.b16 %v4786, %v4782
  %v5251 = vpack.c.b16 %v4787, %v4783
  %v5252 = vpack.c.b16 %v4788, %v4784
  %v5253 = vpack.c.b16 %v4793, %v4789
  %v5254 = vpack.c.b16 %v4794, %v4790
  %v5255 = vpack.c.b16 %v4795, %v4791
  %v5256 = vpack.c.b16 %v4796, %v4792
  %v5257 = vpack.c.b16 %v4801, %v4797
  %v5258 = vpack.c.b16 %v4802, %v4798
  %v5259 = vpack.c.b16 %v4803, %v4799
  %v5260 = vpack.c.b16 %v4804, %v4800
  %v5261 = vpack.c.b16 %v4809, %v4805
  %v5262 = vpack.c.b16 %v4810, %v4806
  %v5263 = vpack.c.b16 %v4811, %v4807
  %v5264 = vpack.c.b16 %v4812, %v4808
  %v5265 = vpack.c.b16 %v4817, %v4813
  %v5266 = vpack.c.b16 %v4818, %v4814
  %v5267 = vpack.c.b16 %v4819, %v4815
  %v5268 = vpack.c.b16 %v4820, %v4816
  %v5269 = vpack.c.b16 %v4825, %v4821
  %v5270 = vpack.c.b16 %v4826, %v4822
  %v5271 = vpack.c.b16 %v4827, %v4823
  %v5272 = vpack.c.b16 %v4828, %v4824
  %v5273 = vpack.c.b16 %v4833, %v4829
  %v5274 = vpack.c.b16 %v4834, %v4830
  %v5275 = vpack.c.b16 %v4835, %v4831
  %v5276 = vpack.c.b16 %v4836, %v4832
  %v5277 = vpack.c.b16 %v4841, %v4837
  %v5278 = vpack.c.b16 %v4842, %v4838
  %v5279 = vpack.c.b16 %v4843, %v4839
  %v5280 = vpack.c.b16 %v4844, %v4840
  %v5281 = vpack.c.b16 %v4849, %v4845
  %v5282 = vpack.c.b16 %v4850, %v4846
  %v5283 = vpack.c.b16 %v4851, %v4847
  %v5284 = vpack.c.b16 %v4852, %v4848
  %v5285 = vpack.c.b16 %v4857, %v4853
  %v5286 = vpack.c.b16 %v4858, %v4854
  %v5287 = vpack.c.b16 %v4859, %v4855
  %v5288 = vpack.c.b16 %v4860, %v4856
  %v5289 = vpack.c.b16 %v4865, %v4861
  %v5290 = vpack.c.b16 %v4866, %v4862
  %v5291 = vpack.c.b16 %v4867, %v4863
  %v5292 = vpack.c.b16 %v4868, %v4864
  %v5293 = vpack.c.b16 %v4873, %v4869
  %v5294 = vpack.c.b16 %v4874, %v4870
  %v5295 = vpack.c.b16 %v4875, %v4871
  %v5296 = vpack.c.b16 %v4876, %v4872
  %v5297 = vpack.c.b16 %v4881, %v4877
  %v5298 = vpack.c.b16 %v4882, %v4878
  %v5299 = vpack.c.b16 %v4883, %v4879
  %v5300 = vpack.c.b16 %v4884, %v4880
  %v5301 = vpack.c.b16 %v4889, %v4885
  %v5302 = vpack.c.b16 %v4890, %v4886
  %v5303 = vpack.c.b16 %v4891, %v4887
  %v5304 = vpack.c.b16 %v4892, %v4888
  %v5305 = vpack.c.b16 %v4897, %v4893
  %v5306 = vpack.c.b16 %v4898, %v4894
  %v5307 = vpack.c.b16 %v4899, %v4895
  %v5308 = vpack.c.b16 %v4900, %v4896
  %v5309 = vpack.c.b16 %v4905, %v4901
  %v5310 = vpack.c.b16 %v4906, %v4902
  %v5311 = vpack.c.b16 %v4907, %v4903
  %v5312 = vpack.c.b16 %v4908, %v4904
  %v5313 = vpack.c.b16 %v4913, %v4909
  %v5314 = vpack.c.b16 %v4914, %v4910
  %v5315 = vpack.c.b16 %v4915, %v4911
  %v5316 = vpack.c.b16 %v4916, %v4912
  %v5317 = vpack.c.b16 %v4921, %v4917
  %v5318 = vpack.c.b16 %v4922, %v4918
  %v5319 = vpack.c.b16 %v4923, %v4919
  %v5320 = vpack.c.b16 %v4924, %v4920
  %v5321 = vpack.c.b16 %v4929, %v4925
  %v5322 = vpack.c.b16 %v4930, %v4926
  %v5323 = vpack.c.b16 %v4931, %v4927
  %v5324 = vpack.c.b16 %v4932, %v4928
  %v5325 = vpack.c.b16 %v4937, %v4933
  %v5326 = vpack.c.b16 %v4938, %v4934
  %v5327 = vpack.c.b16 %v4939, %v4935
  %v5328 = vpack.c.b16 %v4940, %v4936
  %v5329 = vpack.c.b16 %v4945, %v4941
  %v5330 = vpack.c.b16 %v4946, %v4942
  %v5331 = vpack.c.b16 %v4947, %v4943
  %v5332 = vpack.c.b16 %v4948, %v4944
  %5717 = vmatprep.subr.bf16.mxu0 %v4950
  %5718 = vmatpush1.bf16.msra.mxu0 %v4949
  %5719 = vmatprep.subr.bf16.mxu0 %v4954
  %5720 = vmatpush1.bf16.msra.mxu0 %v4953
  %5721 = vmatprep.subr.bf16.mxu0 %v4958
  %5722 = vmatpush1.bf16.msra.mxu0 %v4957
  %5723 = vmatprep.subr.bf16.mxu0 %v4962
  %5724 = vmatpush1.bf16.msra.mxu0 %v4961
  %5725 = vmatprep.subr.bf16.mxu0 %v4966
  %5726 = vmatpush1.bf16.msra.mxu0 %v4965
  %5727 = vmatprep.subr.bf16.mxu0 %v4970
  %5728 = vmatpush1.bf16.msra.mxu0 %v4969
  %5729 = vmatprep.subr.bf16.mxu0 %v4974
  %5730 = vmatpush1.bf16.msra.mxu0 %v4973
  %5731 = vmatprep.subr.bf16.mxu0 %v4978
  %5732 = vmatpush1.bf16.msra.mxu0 %v4977
  %5733 = vmatprep.subr.bf16.mxu0 %v4982
  %5734 = vmatpush1.bf16.msra.mxu0 %v4981
  %5735 = vmatprep.subr.bf16.mxu0 %v4986
  %5736 = vmatpush1.bf16.msra.mxu0 %v4985
  %5737 = vmatprep.subr.bf16.mxu0 %v4990
  %5738 = vmatpush1.bf16.msra.mxu0 %v4989
  %5739 = vmatprep.subr.bf16.mxu0 %v4994
  %5740 = vmatpush1.bf16.msra.mxu0 %v4993
  %5741 = vmatprep.subr.bf16.mxu0 %v4998
  %5742 = vmatpush1.bf16.msra.mxu0 %v4997
  %5743 = vmatprep.subr.bf16.mxu0 %v5002
  %5744 = vmatpush1.bf16.msra.mxu0 %v5001
  %5745 = vmatprep.subr.bf16.mxu0 %v5006
  %5746 = vmatpush1.bf16.msra.mxu0 %v5005
  %5747 = vmatprep.subr.bf16.mxu0 %v5010
  %5748 = vmatpush1.bf16.msra.mxu0 %v5009
  %5749 = vmatprep.mubr.bf16.mxu0 %v3606
  %5750 = vmatmul.mubr.bf16.gmra.mrb[0].mxu0 %v3605
  %v5751 = vpop.f32.mrb[0].mxu0
  %v5752 = vadd.f32 %v3588, %v5751
  %v5753 = vpop.f32.mrb[0].mxu0
  %v5754 = vadd.f32 %v3592, %v5753
  %v5755 = vpop.f32.mrb[0].mxu0
  %v5756 = vadd.f32 %v3588, %v5755
  %v5757 = vpop.f32.mrb[0].mxu0
  %v5758 = vadd.f32 %v3592, %v5757
  %5759 = vmatprep.mubr.bf16.mxu0 %v3618
  %5760 = vmatmul.mubr.bf16.gmra.mrb[0].mxu0 %v3617
  %v5761 = vpop.f32.mrb[0].mxu0
  %v5762 = vadd.f32 %v3588, %v5761
  %v5763 = vpop.f32.mrb[0].mxu0
  %v5764 = vadd.f32 %v3592, %v5763
  %v5765 = vpop.f32.mrb[0].mxu0
  %v5766 = vadd.f32 %v3588, %v5765
  %v5767 = vpop.f32.mrb[0].mxu0
  %v5768 = vadd.f32 %v3592, %v5767
  %5769 = vmatprep.mubr.bf16.mxu0 %v3630
  %5770 = vmatmul.mubr.bf16.gmra.mrb[0].mxu0 %v3629
  %v5771 = vpop.f32.mrb[0].mxu0
  %v5772 = vadd.f32 %v3588, %v5771
  %v5773 = vpop.f32.mrb[0].mxu0
  %v5774 = vadd.f32 %v3592, %v5773
  %v5775 = vpop.f32.mrb[0].mxu0
  %v5776 = vadd.f32 %v3588, %v5775
  %v5777 = vpop.f32.mrb[0].mxu0
  %v5778 = vadd.f32 %v3592, %v5777
  %5779 = vmatprep.mubr.bf16.mxu0 %v3642
  %5780 = vmatmul.mubr.bf16.gmra.mrb[0].mxu0 %v3641
  %v5781 = vpop.f32.mrb[0].mxu0
  %v5782 = vadd.f32 %v3588, %v5781
  %v5783 = vpop.f32.mrb[0].mxu0
  %v5784 = vadd.f32 %v3592, %v5783
  %v5785 = vpop.f32.mrb[0].mxu0
  %v5786 = vadd.f32 %v3588, %v5785
  %v5787 = vpop.f32.mrb[0].mxu0
  %v5788 = vadd.f32 %v3592, %v5787
  %5789 = vmatprep.mubr.bf16.mxu0 %v3654
  %5790 = vmatmul.mubr.bf16.gmra.mrb[0].mxu0 %v3653
  %v5791 = vpop.f32.mrb[0].mxu0
  %v5792 = vadd.f32 %v3588, %v5791
  %v5793 = vpop.f32.mrb[0].mxu0
  %v5794 = vadd.f32 %v3592, %v5793
  %v5795 = vpop.f32.mrb[0].mxu0
  %v5796 = vadd.f32 %v3588, %v5795
  %v5797 = vpop.f32.mrb[0].mxu0
  %v5798 = vadd.f32 %v3592, %v5797
  %5799 = vmatprep.mubr.bf16.mxu0 %v3666
  %5800 = vmatmul.mubr.bf16.gmra.mrb[0].mxu0 %v3665
  %v5801 = vpop.f32.mrb[0].mxu0
  %v5802 = vadd.f32 %v3588, %v5801
  %v5803 = vpop.f32.mrb[0].mxu0
  %v5804 = vadd.f32 %v3592, %v5803
  %v5805 = vpop.f32.mrb[0].mxu0
  %v5806 = vadd.f32 %v3588, %v5805
  %v5807 = vpop.f32.mrb[0].mxu0
  %v5808 = vadd.f32 %v3592, %v5807
  %5809 = vmatprep.mubr.bf16.mxu0 %v3678
  %5810 = vmatmul.mubr.bf16.gmra.mrb[0].mxu0 %v3677
  %v5811 = vpop.f32.mrb[0].mxu0
  %v5812 = vadd.f32 %v3588, %v5811
  %v5813 = vpop.f32.mrb[0].mxu0
  %v5814 = vadd.f32 %v3592, %v5813
  %v5815 = vpop.f32.mrb[0].mxu0
  %v5816 = vadd.f32 %v3588, %v5815
  %v5817 = vpop.f32.mrb[0].mxu0
  %v5818 = vadd.f32 %v3592, %v5817
  %5819 = vmatprep.mubr.bf16.mxu0 %v3690
  %5820 = vmatmul.mubr.bf16.gmra.mrb[0].mxu0 %v3689
  %v5821 = vpop.f32.mrb[0].mxu0
  %v5822 = vadd.f32 %v3588, %v5821
  %v5823 = vpop.f32.mrb[0].mxu0
  %v5824 = vadd.f32 %v3592, %v5823
  %v5825 = vpop.f32.mrb[0].mxu0
  %v5826 = vadd.f32 %v3588, %v5825
  %v5827 = vpop.f32.mrb[0].mxu0
  %v5828 = vadd.f32 %v3592, %v5827
  %5829 = vdwg.mxu0
  %5830 = vmatprep.subr.bf16.mxu0 %v5014
  %5831 = vmatpush1.bf16.msra.mxu0 %v5013
  %5832 = vmatprep.subr.bf16.mxu0 %v5018
  %5833 = vmatpush1.bf16.msra.mxu0 %v5017
  %5834 = vmatprep.subr.bf16.mxu0 %v5022
  %5835 = vmatpush1.bf16.msra.mxu0 %v5021
  %5836 = vmatprep.subr.bf16.mxu0 %v5026
  %5837 = vmatpush1.bf16.msra.mxu0 %v5025
  %5838 = vmatprep.subr.bf16.mxu0 %v5030
  %5839 = vmatpush1.bf16.msra.mxu0 %v5029
  %5840 = vmatprep.subr.bf16.mxu0 %v5034
  %5841 = vmatpush1.bf16.msra.mxu0 %v5033
  %5842 = vmatprep.subr.bf16.mxu0 %v5038
  %5843 = vmatpush1.bf16.msra.mxu0 %v5037
  %5844 = vmatprep.subr.bf16.mxu0 %v5042
  %5845 = vmatpush1.bf16.msra.mxu0 %v5041
  %5846 = vmatprep.subr.bf16.mxu0 %v5046
  %5847 = vmatpush1.bf16.msra.mxu0 %v5045
  %5848 = vmatprep.subr.bf16.mxu0 %v5050
  %5849 = vmatpush1.bf16.msra.mxu0 %v5049
  %5850 = vmatprep.subr.bf16.mxu0 %v5054
  %5851 = vmatpush1.bf16.msra.mxu0 %v5053
  %5852 = vmatprep.subr.bf16.mxu0 %v5058
  %5853 = vmatpush1.bf16.msra.mxu0 %v5057
  %5854 = vmatprep.subr.bf16.mxu0 %v5062
  %5855 = vmatpush1.bf16.msra.mxu0 %v5061
  %5856 = vmatprep.subr.bf16.mxu0 %v5066
  %5857 = vmatpush1.bf16.msra.mxu0 %v5065
  %5858 = vmatprep.subr.bf16.mxu0 %v5070
  %5859 = vmatpush1.bf16.msra.mxu0 %v5069
  %5860 = vmatprep.subr.bf16.mxu0 %v5074
  %5861 = vmatpush1.bf16.msra.mxu0 %v5073
  %5862 = vmatprep.mubr.bf16.mxu0 %v3608
  %5863 = vmatmul.mubr.bf16.gmra.mrb[0].mxu0 %v3607
  %v5864 = vpop.f32.mrb[0].mxu0
  %v5865 = vadd.f32 %v5752, %v5864
  %v5866 = vpop.f32.mrb[0].mxu0
  %v5867 = vadd.f32 %v5754, %v5866
  %v5868 = vpop.f32.mrb[0].mxu0
  %v5869 = vadd.f32 %v5756, %v5868
  %v5870 = vpop.f32.mrb[0].mxu0
  %v5871 = vadd.f32 %v5758, %v5870
  %5872 = vmatprep.mubr.bf16.mxu0 %v3620
  %5873 = vmatmul.mubr.bf16.gmra.mrb[0].mxu0 %v3619
  %v5874 = vpop.f32.mrb[0].mxu0
  %v5875 = vadd.f32 %v5762, %v5874
  %v5876 = vpop.f32.mrb[0].mxu0
  %v5877 = vadd.f32 %v5764, %v5876
  %v5878 = vpop.f32.mrb[0].mxu0
  %v5879 = vadd.f32 %v5766, %v5878
  %v5880 = vpop.f32.mrb[0].mxu0
  %v5881 = vadd.f32 %v5768, %v5880
  %5882 = vmatprep.mubr.bf16.mxu0 %v3632
  %5883 = vmatmul.mubr.bf16.gmra.mrb[0].mxu0 %v3631
  %v5884 = vpop.f32.mrb[0].mxu0
  %v5885 = vadd.f32 %v5772, %v5884
  %v5886 = vpop.f32.mrb[0].mxu0
  %v5887 = vadd.f32 %v5774, %v5886
  %v5888 = vpop.f32.mrb[0].mxu0
  %v5889 = vadd.f32 %v5776, %v5888
  %v5890 = vpop.f32.mrb[0].mxu0
  %v5891 = vadd.f32 %v5778, %v5890
  %5892 = vmatprep.mubr.bf16.mxu0 %v3644
  %5893 = vmatmul.mubr.bf16.gmra.mrb[0].mxu0 %v3643
  %v5894 = vpop.f32.mrb[0].mxu0
  %v5895 = vadd.f32 %v5782, %v5894
  %v5896 = vpop.f32.mrb[0].mxu0
  %v5897 = vadd.f32 %v5784, %v5896
  %v5898 = vpop.f32.mrb[0].mxu0
  %v5899 = vadd.f32 %v5786, %v5898
  %v5900 = vpop.f32.mrb[0].mxu0
  %v5901 = vadd.f32 %v5788, %v5900
  %5902 = vmatprep.mubr.bf16.mxu0 %v3656
  %5903 = vmatmul.mubr.bf16.gmra.mrb[0].mxu0 %v3655
  %v5904 = vpop.f32.mrb[0].mxu0
  %v5905 = vadd.f32 %v5792, %v5904
  %v5906 = vpop.f32.mrb[0].mxu0
  %v5907 = vadd.f32 %v5794, %v5906
  %v5908 = vpop.f32.mrb[0].mxu0
  %v5909 = vadd.f32 %v5796, %v5908
  %v5910 = vpop.f32.mrb[0].mxu0
  %v5911 = vadd.f32 %v5798, %v5910
  %5912 = vmatprep.mubr.bf16.mxu0 %v3668
  %5913 = vmatmul.mubr.bf16.gmra.mrb[0].mxu0 %v3667
  %v5914 = vpop.f32.mrb[0].mxu0
  %v5915 = vadd.f32 %v5802, %v5914
  %v5916 = vpop.f32.mrb[0].mxu0
  %v5917 = vadd.f32 %v5804, %v5916
  %v5918 = vpop.f32.mrb[0].mxu0
  %v5919 = vadd.f32 %v5806, %v5918
  %v5920 = vpop.f32.mrb[0].mxu0
  %v5921 = vadd.f32 %v5808, %v5920
  %5922 = vmatprep.mubr.bf16.mxu0 %v3680
  %5923 = vmatmul.mubr.bf16.gmra.mrb[0].mxu0 %v3679
  %v5924 = vpop.f32.mrb[0].mxu0
  %v5925 = vadd.f32 %v5812, %v5924
  %v5926 = vpop.f32.mrb[0].mxu0
  %v5927 = vadd.f32 %v5814, %v5926
  %v5928 = vpop.f32.mrb[0].mxu0
  %v5929 = vadd.f32 %v5816, %v5928
  %v5930 = vpop.f32.mrb[0].mxu0
  %v5931 = vadd.f32 %v5818, %v5930
  %5932 = vmatprep.mubr.bf16.mxu0 %v3692
  %5933 = vmatmul.mubr.bf16.gmra.mrb[0].mxu0 %v3691
  %v5934 = vpop.f32.mrb[0].mxu0
  %v5935 = vadd.f32 %v5822, %v5934
  %v5936 = vpop.f32.mrb[0].mxu0
  %v5937 = vadd.f32 %v5824, %v5936
  %v5938 = vpop.f32.mrb[0].mxu0
  %v5939 = vadd.f32 %v5826, %v5938
  %v5940 = vpop.f32.mrb[0].mxu0
  %v5941 = vadd.f32 %v5828, %v5940
  %5942 = vdwg.mxu0
  %5943 = vmatprep.subr.bf16.mxu0 %v5078
  %5944 = vmatpush1.bf16.msra.mxu0 %v5077
  %5945 = vmatprep.subr.bf16.mxu0 %v5082
  %5946 = vmatpush1.bf16.msra.mxu0 %v5081
  %5947 = vmatprep.subr.bf16.mxu0 %v5086
  %5948 = vmatpush1.bf16.msra.mxu0 %v5085
  %5949 = vmatprep.subr.bf16.mxu0 %v5090
  %5950 = vmatpush1.bf16.msra.mxu0 %v5089
  %5951 = vmatprep.subr.bf16.mxu0 %v5094
  %5952 = vmatpush1.bf16.msra.mxu0 %v5093
  %5953 = vmatprep.subr.bf16.mxu0 %v5098
  %5954 = vmatpush1.bf16.msra.mxu0 %v5097
  %5955 = vmatprep.subr.bf16.mxu0 %v5102
  %5956 = vmatpush1.bf16.msra.mxu0 %v5101
  %5957 = vmatprep.subr.bf16.mxu0 %v5106
  %5958 = vmatpush1.bf16.msra.mxu0 %v5105
  %5959 = vmatprep.subr.bf16.mxu0 %v5110
  %5960 = vmatpush1.bf16.msra.mxu0 %v5109
  %5961 = vmatprep.subr.bf16.mxu0 %v5114
  %5962 = vmatpush1.bf16.msra.mxu0 %v5113
  %5963 = vmatprep.subr.bf16.mxu0 %v5118
  %5964 = vmatpush1.bf16.msra.mxu0 %v5117
  %5965 = vmatprep.subr.bf16.mxu0 %v5122
  %5966 = vmatpush1.bf16.msra.mxu0 %v5121
  %5967 = vmatprep.subr.bf16.mxu0 %v5126
  %5968 = vmatpush1.bf16.msra.mxu0 %v5125
  %5969 = vmatprep.subr.bf16.mxu0 %v5130
  %5970 = vmatpush1.bf16.msra.mxu0 %v5129
  %5971 = vmatprep.subr.bf16.mxu0 %v5134
  %5972 = vmatpush1.bf16.msra.mxu0 %v5133
  %5973 = vmatprep.subr.bf16.mxu0 %v5138
  %5974 = vmatpush1.bf16.msra.mxu0 %v5137
  %5975 = vmatprep.mubr.bf16.mxu0 %v3610
  %5976 = vmatmul.mubr.bf16.gmra.mrb[0].mxu0 %v3609
  %v5977 = vpop.f32.mrb[0].mxu0
  %v5978 = vadd.f32 %v5865, %v5977
  %v5979 = vpop.f32.mrb[0].mxu0
  %v5980 = vadd.f32 %v5867, %v5979
  %v5981 = vpop.f32.mrb[0].mxu0
  %v5982 = vadd.f32 %v5869, %v5981
  %v5983 = vpop.f32.mrb[0].mxu0
  %v5984 = vadd.f32 %v5871, %v5983
  %5985 = vmatprep.mubr.bf16.mxu0 %v3622
  %5986 = vmatmul.mubr.bf16.gmra.mrb[0].mxu0 %v3621
  %v5987 = vpop.f32.mrb[0].mxu0
  %v5988 = vadd.f32 %v5875, %v5987
  %v5989 = vpop.f32.mrb[0].mxu0
  %v5990 = vadd.f32 %v5877, %v5989
  %v5991 = vpop.f32.mrb[0].mxu0
  %v5992 = vadd.f32 %v5879, %v5991
  %v5993 = vpop.f32.mrb[0].mxu0
  %v5994 = vadd.f32 %v5881, %v5993
  %5995 = vmatprep.mubr.bf16.mxu0 %v3634
  %5996 = vmatmul.mubr.bf16.gmra.mrb[0].mxu0 %v3633
  %v5997 = vpop.f32.mrb[0].mxu0
  %v5998 = vadd.f32 %v5885, %v5997
  %v5999 = vpop.f32.mrb[0].mxu0
  %v6000 = vadd.f32 %v5887, %v5999
  %v6001 = vpop.f32.mrb[0].mxu0
  %v6002 = vadd.f32 %v5889, %v6001
  %v6003 = vpop.f32.mrb[0].mxu0
  %v6004 = vadd.f32 %v5891, %v6003
  %6005 = vmatprep.mubr.bf16.mxu0 %v3646
  %6006 = vmatmul.mubr.bf16.gmra.mrb[0].mxu0 %v3645
  %v6007 = vpop.f32.mrb[0].mxu0
  %v6008 = vadd.f32 %v5895, %v6007
  %v6009 = vpop.f32.mrb[0].mxu0
  %v6010 = vadd.f32 %v5897, %v6009
  %v6011 = vpop.f32.mrb[0].mxu0
  %v6012 = vadd.f32 %v5899, %v6011
  %v6013 = vpop.f32.mrb[0].mxu0
  %v6014 = vadd.f32 %v5901, %v6013
  %6015 = vmatprep.mubr.bf16.mxu0 %v3658
  %6016 = vmatmul.mubr.bf16.gmra.mrb[0].mxu0 %v3657
  %v6017 = vpop.f32.mrb[0].mxu0
  %v6018 = vadd.f32 %v5905, %v6017
  %v6019 = vpop.f32.mrb[0].mxu0
  %v6020 = vadd.f32 %v5907, %v6019
  %v6021 = vpop.f32.mrb[0].mxu0
  %v6022 = vadd.f32 %v5909, %v6021
  %v6023 = vpop.f32.mrb[0].mxu0
  %v6024 = vadd.f32 %v5911, %v6023
  %6025 = vmatprep.mubr.bf16.mxu0 %v3670
  %6026 = vmatmul.mubr.bf16.gmra.mrb[0].mxu0 %v3669
  %v6027 = vpop.f32.mrb[0].mxu0
  %v6028 = vadd.f32 %v5915, %v6027
  %v6029 = vpop.f32.mrb[0].mxu0
  %v6030 = vadd.f32 %v5917, %v6029
  %v6031 = vpop.f32.mrb[0].mxu0
  %v6032 = vadd.f32 %v5919, %v6031
  %v6033 = vpop.f32.mrb[0].mxu0
  %v6034 = vadd.f32 %v5921, %v6033
  %6035 = vmatprep.mubr.bf16.mxu0 %v3682
  %6036 = vmatmul.mubr.bf16.gmra.mrb[0].mxu0 %v3681
  %v6037 = vpop.f32.mrb[0].mxu0
  %v6038 = vadd.f32 %v5925, %v6037
  %v6039 = vpop.f32.mrb[0].mxu0
  %v6040 = vadd.f32 %v5927, %v6039
  %v6041 = vpop.f32.mrb[0].mxu0
  %v6042 = vadd.f32 %v5929, %v6041
  %v6043 = vpop.f32.mrb[0].mxu0
  %v6044 = vadd.f32 %v5931, %v6043
  %6045 = vmatprep.mubr.bf16.mxu0 %v3694
  %6046 = vmatmul.mubr.bf16.gmra.mrb[0].mxu0 %v3693
  %v6047 = vpop.f32.mrb[0].mxu0
  %v6048 = vadd.f32 %v5935, %v6047
  %v6049 = vpop.f32.mrb[0].mxu0
  %v6050 = vadd.f32 %v5937, %v6049
  %v6051 = vpop.f32.mrb[0].mxu0
  %v6052 = vadd.f32 %v5939, %v6051
  %v6053 = vpop.f32.mrb[0].mxu0
  %v6054 = vadd.f32 %v5941, %v6053
  %6055 = vdwg.mxu0
  %6056 = vmatprep.subr.bf16.mxu0 %v5142
  %6057 = vmatpush1.bf16.msra.mxu0 %v5141
  %6058 = vmatprep.subr.bf16.mxu0 %v5146
  %6059 = vmatpush1.bf16.msra.mxu0 %v5145
  %6060 = vmatprep.subr.bf16.mxu0 %v5150
  %6061 = vmatpush1.bf16.msra.mxu0 %v5149
  %6062 = vmatprep.subr.bf16.mxu0 %v5154
  %6063 = vmatpush1.bf16.msra.mxu0 %v5153
  %6064 = vmatprep.subr.bf16.mxu0 %v5158
  %6065 = vmatpush1.bf16.msra.mxu0 %v5157
  %6066 = vmatprep.subr.bf16.mxu0 %v5162
  %6067 = vmatpush1.bf16.msra.mxu0 %v5161
  %6068 = vmatprep.subr.bf16.mxu0 %v5166
  %6069 = vmatpush1.bf16.msra.mxu0 %v5165
  %6070 = vmatprep.subr.bf16.mxu0 %v5170
  %6071 = vmatpush1.bf16.msra.mxu0 %v5169
  %6072 = vmatprep.subr.bf16.mxu0 %v5174
  %6073 = vmatpush1.bf16.msra.mxu0 %v5173
  %6074 = vmatprep.subr.bf16.mxu0 %v5178
  %6075 = vmatpush1.bf16.msra.mxu0 %v5177
  %6076 = vmatprep.subr.bf16.mxu0 %v5182
  %6077 = vmatpush1.bf16.msra.mxu0 %v5181
  %6078 = vmatprep.subr.bf16.mxu0 %v5186
  %6079 = vmatpush1.bf16.msra.mxu0 %v5185
  %6080 = vmatprep.subr.bf16.mxu0 %v5190
  %6081 = vmatpush1.bf16.msra.mxu0 %v5189
  %6082 = vmatprep.subr.bf16.mxu0 %v5194
  %6083 = vmatpush1.bf16.msra.mxu0 %v5193
  %6084 = vmatprep.subr.bf16.mxu0 %v5198
  %6085 = vmatpush1.bf16.msra.mxu0 %v5197
  %6086 = vmatprep.subr.bf16.mxu0 %v5202
  %6087 = vmatpush1.bf16.msra.mxu0 %v5201
  %6088 = vmatprep.mubr.bf16.mxu0 %v3612
  %6089 = vmatmul.mubr.bf16.gmra.mrb[0].mxu0 %v3611
  %v6090 = vpop.f32.mrb[0].mxu0
  %v6091 = vadd.f32 %v5978, %v6090
  %v6092 = vpop.f32.mrb[0].mxu0
  %v6093 = vadd.f32 %v5980, %v6092
  %v6094 = vpop.f32.mrb[0].mxu0
  %v6095 = vadd.f32 %v5982, %v6094
  %v6096 = vpop.f32.mrb[0].mxu0
  %v6097 = vadd.f32 %v5984, %v6096
  %6098 = vmatprep.mubr.bf16.mxu0 %v3624
  %6099 = vmatmul.mubr.bf16.gmra.mrb[0].mxu0 %v3623
  %v6100 = vpop.f32.mrb[0].mxu0
  %v6101 = vadd.f32 %v5988, %v6100
  %v6102 = vpop.f32.mrb[0].mxu0
  %v6103 = vadd.f32 %v5990, %v6102
  %v6104 = vpop.f32.mrb[0].mxu0
  %v6105 = vadd.f32 %v5992, %v6104
  %v6106 = vpop.f32.mrb[0].mxu0
  %v6107 = vadd.f32 %v5994, %v6106
  %6108 = vmatprep.mubr.bf16.mxu0 %v3636
  %6109 = vmatmul.mubr.bf16.gmra.mrb[0].mxu0 %v3635
  %v6110 = vpop.f32.mrb[0].mxu0
  %v6111 = vadd.f32 %v5998, %v6110
  %v6112 = vpop.f32.mrb[0].mxu0
  %v6113 = vadd.f32 %v6000, %v6112
  %v6114 = vpop.f32.mrb[0].mxu0
  %v6115 = vadd.f32 %v6002, %v6114
  %v6116 = vpop.f32.mrb[0].mxu0
  %v6117 = vadd.f32 %v6004, %v6116
  %6118 = vmatprep.mubr.bf16.mxu0 %v3648
  %6119 = vmatmul.mubr.bf16.gmra.mrb[0].mxu0 %v3647
  %v6120 = vpop.f32.mrb[0].mxu0
  %v6121 = vadd.f32 %v6008, %v6120
  %v6122 = vpop.f32.mrb[0].mxu0
  %v6123 = vadd.f32 %v6010, %v6122
  %v6124 = vpop.f32.mrb[0].mxu0
  %v6125 = vadd.f32 %v6012, %v6124
  %v6126 = vpop.f32.mrb[0].mxu0
  %v6127 = vadd.f32 %v6014, %v6126
  %6128 = vmatprep.mubr.bf16.mxu0 %v3660
  %6129 = vmatmul.mubr.bf16.gmra.mrb[0].mxu0 %v3659
  %v6130 = vpop.f32.mrb[0].mxu0
  %v6131 = vadd.f32 %v6018, %v6130
  %v6132 = vpop.f32.mrb[0].mxu0
  %v6133 = vadd.f32 %v6020, %v6132
  %v6134 = vpop.f32.mrb[0].mxu0
  %v6135 = vadd.f32 %v6022, %v6134
  %v6136 = vpop.f32.mrb[0].mxu0
  %v6137 = vadd.f32 %v6024, %v6136
  %6138 = vmatprep.mubr.bf16.mxu0 %v3672
  %6139 = vmatmul.mubr.bf16.gmra.mrb[0].mxu0 %v3671
  %v6140 = vpop.f32.mrb[0].mxu0
  %v6141 = vadd.f32 %v6028, %v6140
  %v6142 = vpop.f32.mrb[0].mxu0
  %v6143 = vadd.f32 %v6030, %v6142
  %v6144 = vpop.f32.mrb[0].mxu0
  %v6145 = vadd.f32 %v6032, %v6144
  %v6146 = vpop.f32.mrb[0].mxu0
  %v6147 = vadd.f32 %v6034, %v6146
  %6148 = vmatprep.mubr.bf16.mxu0 %v3684
  %6149 = vmatmul.mubr.bf16.gmra.mrb[0].mxu0 %v3683
  %v6150 = vpop.f32.mrb[0].mxu0
  %v6151 = vadd.f32 %v6038, %v6150
  %v6152 = vpop.f32.mrb[0].mxu0
  %v6153 = vadd.f32 %v6040, %v6152
  %v6154 = vpop.f32.mrb[0].mxu0
  %v6155 = vadd.f32 %v6042, %v6154
  %v6156 = vpop.f32.mrb[0].mxu0
  %v6157 = vadd.f32 %v6044, %v6156
  %6158 = vmatprep.mubr.bf16.mxu0 %v3696
  %6159 = vmatmul.mubr.bf16.gmra.mrb[0].mxu0 %v3695
  %v6160 = vpop.f32.mrb[0].mxu0
  %v6161 = vadd.f32 %v6048, %v6160
  %v6162 = vpop.f32.mrb[0].mxu0
  %v6163 = vadd.f32 %v6050, %v6162
  %v6164 = vpop.f32.mrb[0].mxu0
  %v6165 = vadd.f32 %v6052, %v6164
  %v6166 = vpop.f32.mrb[0].mxu0
  %v6167 = vadd.f32 %v6054, %v6166
  %6168 = vdwg.mxu0
  %6169 = vmatprep.subr.bf16.mxu0 %v5206
  %6170 = vmatpush1.bf16.msra.mxu0 %v5205
  %6171 = vmatprep.subr.bf16.mxu0 %v5210
  %6172 = vmatpush1.bf16.msra.mxu0 %v5209
  %6173 = vmatprep.subr.bf16.mxu0 %v5214
  %6174 = vmatpush1.bf16.msra.mxu0 %v5213
  %6175 = vmatprep.subr.bf16.mxu0 %v5218
  %6176 = vmatpush1.bf16.msra.mxu0 %v5217
  %6177 = vmatprep.subr.bf16.mxu0 %v5222
  %6178 = vmatpush1.bf16.msra.mxu0 %v5221
  %6179 = vmatprep.subr.bf16.mxu0 %v5226
  %6180 = vmatpush1.bf16.msra.mxu0 %v5225
  %6181 = vmatprep.subr.bf16.mxu0 %v5230
  %6182 = vmatpush1.bf16.msra.mxu0 %v5229
  %6183 = vmatprep.subr.bf16.mxu0 %v5234
  %6184 = vmatpush1.bf16.msra.mxu0 %v5233
  %6185 = vmatprep.subr.bf16.mxu0 %v5238
  %6186 = vmatpush1.bf16.msra.mxu0 %v5237
  %6187 = vmatprep.subr.bf16.mxu0 %v5242
  %6188 = vmatpush1.bf16.msra.mxu0 %v5241
  %6189 = vmatprep.subr.bf16.mxu0 %v5246
  %6190 = vmatpush1.bf16.msra.mxu0 %v5245
  %6191 = vmatprep.subr.bf16.mxu0 %v5250
  %6192 = vmatpush1.bf16.msra.mxu0 %v5249
  %6193 = vmatprep.subr.bf16.mxu0 %v5254
  %6194 = vmatpush1.bf16.msra.mxu0 %v5253
  %6195 = vmatprep.subr.bf16.mxu0 %v5258
  %6196 = vmatpush1.bf16.msra.mxu0 %v5257
  %6197 = vmatprep.subr.bf16.mxu0 %v5262
  %6198 = vmatpush1.bf16.msra.mxu0 %v5261
  %6199 = vmatprep.subr.bf16.mxu0 %v5266
  %6200 = vmatpush1.bf16.msra.mxu0 %v5265
  %6201 = vmatprep.mubr.bf16.mxu0 %v3614
  %6202 = vmatmul.mubr.bf16.gmra.mrb[0].mxu0 %v3613
  %v6203 = vpop.f32.mrb[0].mxu0
  %v6204 = vadd.f32 %v6091, %v6203
  %v6205 = vpop.f32.mrb[0].mxu0
  %v6206 = vadd.f32 %v6093, %v6205
  %v6207 = vpop.f32.mrb[0].mxu0
  %v6208 = vadd.f32 %v6095, %v6207
  %v6209 = vpop.f32.mrb[0].mxu0
  %v6210 = vadd.f32 %v6097, %v6209
  %6211 = vmatprep.mubr.bf16.mxu0 %v3626
  %6212 = vmatmul.mubr.bf16.gmra.mrb[0].mxu0 %v3625
  %v6213 = vpop.f32.mrb[0].mxu0
  %v6214 = vadd.f32 %v6101, %v6213
  %v6215 = vpop.f32.mrb[0].mxu0
  %v6216 = vadd.f32 %v6103, %v6215
  %v6217 = vpop.f32.mrb[0].mxu0
  %v6218 = vadd.f32 %v6105, %v6217
  %v6219 = vpop.f32.mrb[0].mxu0
  %v6220 = vadd.f32 %v6107, %v6219
  %6221 = vmatprep.mubr.bf16.mxu0 %v3638
  %6222 = vmatmul.mubr.bf16.gmra.mrb[0].mxu0 %v3637
  %v6223 = vpop.f32.mrb[0].mxu0
  %v6224 = vadd.f32 %v6111, %v6223
  %v6225 = vpop.f32.mrb[0].mxu0
  %v6226 = vadd.f32 %v6113, %v6225
  %v6227 = vpop.f32.mrb[0].mxu0
  %v6228 = vadd.f32 %v6115, %v6227
  %v6229 = vpop.f32.mrb[0].mxu0
  %v6230 = vadd.f32 %v6117, %v6229
  %6231 = vmatprep.mubr.bf16.mxu0 %v3650
  %6232 = vmatmul.mubr.bf16.gmra.mrb[0].mxu0 %v3649
  %v6233 = vpop.f32.mrb[0].mxu0
  %v6234 = vadd.f32 %v6121, %v6233
  %v6235 = vpop.f32.mrb[0].mxu0
  %v6236 = vadd.f32 %v6123, %v6235
  %v6237 = vpop.f32.mrb[0].mxu0
  %v6238 = vadd.f32 %v6125, %v6237
  %v6239 = vpop.f32.mrb[0].mxu0
  %v6240 = vadd.f32 %v6127, %v6239
  %6241 = vmatprep.mubr.bf16.mxu0 %v3662
  %6242 = vmatmul.mubr.bf16.gmra.mrb[0].mxu0 %v3661
  %v6243 = vpop.f32.mrb[0].mxu0
  %v6244 = vadd.f32 %v6131, %v6243
  %v6245 = vpop.f32.mrb[0].mxu0
  %v6246 = vadd.f32 %v6133, %v6245
  %v6247 = vpop.f32.mrb[0].mxu0
  %v6248 = vadd.f32 %v6135, %v6247
  %v6249 = vpop.f32.mrb[0].mxu0
  %v6250 = vadd.f32 %v6137, %v6249
  %6251 = vmatprep.mubr.bf16.mxu0 %v3674
  %6252 = vmatmul.mubr.bf16.gmra.mrb[0].mxu0 %v3673
  %v6253 = vpop.f32.mrb[0].mxu0
  %v6254 = vadd.f32 %v6141, %v6253
  %v6255 = vpop.f32.mrb[0].mxu0
  %v6256 = vadd.f32 %v6143, %v6255
  %v6257 = vpop.f32.mrb[0].mxu0
  %v6258 = vadd.f32 %v6145, %v6257
  %v6259 = vpop.f32.mrb[0].mxu0
  %v6260 = vadd.f32 %v6147, %v6259
  %6261 = vmatprep.mubr.bf16.mxu0 %v3686
  %6262 = vmatmul.mubr.bf16.gmra.mrb[0].mxu0 %v3685
  %v6263 = vpop.f32.mrb[0].mxu0
  %v6264 = vadd.f32 %v6151, %v6263
  %v6265 = vpop.f32.mrb[0].mxu0
  %v6266 = vadd.f32 %v6153, %v6265
  %v6267 = vpop.f32.mrb[0].mxu0
  %v6268 = vadd.f32 %v6155, %v6267
  %v6269 = vpop.f32.mrb[0].mxu0
  %v6270 = vadd.f32 %v6157, %v6269
  %6271 = vmatprep.mubr.bf16.mxu0 %v3698
  %6272 = vmatmul.mubr.bf16.gmra.mrb[0].mxu0 %v3697
  %v6273 = vpop.f32.mrb[0].mxu0
  %v6274 = vadd.f32 %v6161, %v6273
  %v6275 = vpop.f32.mrb[0].mxu0
  %v6276 = vadd.f32 %v6163, %v6275
  %v6277 = vpop.f32.mrb[0].mxu0
  %v6278 = vadd.f32 %v6165, %v6277
  %v6279 = vpop.f32.mrb[0].mxu0
  %v6280 = vadd.f32 %v6167, %v6279
  %6281 = vdwg.mxu0
  %6282 = vmatprep.subr.bf16.mxu0 %v5270
  %6283 = vmatpush1.bf16.msra.mxu0 %v5269
  %6284 = vmatprep.subr.bf16.mxu0 %v5274
  %6285 = vmatpush1.bf16.msra.mxu0 %v5273
  %6286 = vmatprep.subr.bf16.mxu0 %v5278
  %6287 = vmatpush1.bf16.msra.mxu0 %v5277
  %6288 = vmatprep.subr.bf16.mxu0 %v5282
  %6289 = vmatpush1.bf16.msra.mxu0 %v5281
  %6290 = vmatprep.subr.bf16.mxu0 %v5286
  %6291 = vmatpush1.bf16.msra.mxu0 %v5285
  %6292 = vmatprep.subr.bf16.mxu0 %v5290
  %6293 = vmatpush1.bf16.msra.mxu0 %v5289
  %6294 = vmatprep.subr.bf16.mxu0 %v5294
  %6295 = vmatpush1.bf16.msra.mxu0 %v5293
  %6296 = vmatprep.subr.bf16.mxu0 %v5298
  %6297 = vmatpush1.bf16.msra.mxu0 %v5297
  %6298 = vmatprep.subr.bf16.mxu0 %v5302
  %6299 = vmatpush1.bf16.msra.mxu0 %v5301
  %6300 = vmatprep.subr.bf16.mxu0 %v5306
  %6301 = vmatpush1.bf16.msra.mxu0 %v5305
  %6302 = vmatprep.subr.bf16.mxu0 %v5310
  %6303 = vmatpush1.bf16.msra.mxu0 %v5309
  %6304 = vmatprep.subr.bf16.mxu0 %v5314
  %6305 = vmatpush1.bf16.msra.mxu0 %v5313
  %6306 = vmatprep.subr.bf16.mxu0 %v5318
  %6307 = vmatpush1.bf16.msra.mxu0 %v5317
  %6308 = vmatprep.subr.bf16.mxu0 %v5322
  %6309 = vmatpush1.bf16.msra.mxu0 %v5321
  %6310 = vmatprep.subr.bf16.mxu0 %v5326
  %6311 = vmatpush1.bf16.msra.mxu0 %v5325
  %6312 = vmatprep.subr.bf16.mxu0 %v5330
  %6313 = vmatpush1.bf16.msra.mxu0 %v5329
  %6314 = vmatprep.mubr.bf16.mxu0 %v3616
  %6315 = vmatmul.mubr.bf16.gmra.mrb[0].mxu0 %v3615
  %v6316 = vpop.f32.mrb[0].mxu0
  %v6317 = vadd.f32 %v6204, %v6316
  %v6318 = vpop.f32.mrb[0].mxu0
  %v6319 = vadd.f32 %v6206, %v6318
  %v6320 = vpop.f32.mrb[0].mxu0
  %v6321 = vadd.f32 %v6208, %v6320
  %v6322 = vpop.f32.mrb[0].mxu0
  %v6323 = vadd.f32 %v6210, %v6322
  %6324 = vmatprep.mubr.bf16.mxu0 %v3628
  %6325 = vmatmul.mubr.bf16.gmra.mrb[0].mxu0 %v3627
  %v6326 = vpop.f32.mrb[0].mxu0
  %v6327 = vadd.f32 %v6214, %v6326
  %v6328 = vpop.f32.mrb[0].mxu0
  %v6329 = vadd.f32 %v6216, %v6328
  %v6330 = vpop.f32.mrb[0].mxu0
  %v6331 = vadd.f32 %v6218, %v6330
  %v6332 = vpop.f32.mrb[0].mxu0
  %v6333 = vadd.f32 %v6220, %v6332
  %6334 = vmatprep.mubr.bf16.mxu0 %v3640
  %6335 = vmatmul.mubr.bf16.gmra.mrb[0].mxu0 %v3639
  %v6336 = vpop.f32.mrb[0].mxu0
  %v6337 = vadd.f32 %v6224, %v6336
  %v6338 = vpop.f32.mrb[0].mxu0
  %v6339 = vadd.f32 %v6226, %v6338
  %v6340 = vpop.f32.mrb[0].mxu0
  %v6341 = vadd.f32 %v6228, %v6340
  %v6342 = vpop.f32.mrb[0].mxu0
  %v6343 = vadd.f32 %v6230, %v6342
  %6344 = vmatprep.mubr.bf16.mxu0 %v3652
  %6345 = vmatmul.mubr.bf16.gmra.mrb[0].mxu0 %v3651
  %v6346 = vpop.f32.mrb[0].mxu0
  %v6347 = vadd.f32 %v6234, %v6346
  %v6348 = vpop.f32.mrb[0].mxu0
  %v6349 = vadd.f32 %v6236, %v6348
  %v6350 = vpop.f32.mrb[0].mxu0
  %v6351 = vadd.f32 %v6238, %v6350
  %v6352 = vpop.f32.mrb[0].mxu0
  %v6353 = vadd.f32 %v6240, %v6352
  %6354 = vmatprep.mubr.bf16.mxu0 %v3664
  %6355 = vmatmul.mubr.bf16.gmra.mrb[0].mxu0 %v3663
  %v6356 = vpop.f32.mrb[0].mxu0
  %v6357 = vadd.f32 %v6244, %v6356
  %v6358 = vpop.f32.mrb[0].mxu0
  %v6359 = vadd.f32 %v6246, %v6358
  %v6360 = vpop.f32.mrb[0].mxu0
  %v6361 = vadd.f32 %v6248, %v6360
  %v6362 = vpop.f32.mrb[0].mxu0
  %v6363 = vadd.f32 %v6250, %v6362
  %6364 = vmatprep.mubr.bf16.mxu0 %v3676
  %6365 = vmatmul.mubr.bf16.gmra.mrb[0].mxu0 %v3675
  %v6366 = vpop.f32.mrb[0].mxu0
  %v6367 = vadd.f32 %v6254, %v6366
  %v6368 = vpop.f32.mrb[0].mxu0
  %v6369 = vadd.f32 %v6256, %v6368
  %v6370 = vpop.f32.mrb[0].mxu0
  %v6371 = vadd.f32 %v6258, %v6370
  %v6372 = vpop.f32.mrb[0].mxu0
  %v6373 = vadd.f32 %v6260, %v6372
  %6374 = vmatprep.mubr.bf16.mxu0 %v3688
  %6375 = vmatmul.mubr.bf16.gmra.mrb[0].mxu0 %v3687
  %v6376 = vpop.f32.mrb[0].mxu0
  %v6377 = vadd.f32 %v6264, %v6376
  %v6378 = vpop.f32.mrb[0].mxu0
  %v6379 = vadd.f32 %v6266, %v6378
  %v6380 = vpop.f32.mrb[0].mxu0
  %v6381 = vadd.f32 %v6268, %v6380
  %v6382 = vpop.f32.mrb[0].mxu0
  %v6383 = vadd.f32 %v6270, %v6382
  %6384 = vmatprep.mubr.bf16.mxu0 %v3700
  %6385 = vmatmul.mubr.bf16.gmra.mrb[0].mxu0 %v3699
  %v6386 = vpop.f32.mrb[0].mxu0
  %v6387 = vadd.f32 %v6274, %v6386
  %v6388 = vpop.f32.mrb[0].mxu0
  %v6389 = vadd.f32 %v6276, %v6388
  %v6390 = vpop.f32.mrb[0].mxu0
  %v6391 = vadd.f32 %v6278, %v6390
  %v6392 = vpop.f32.mrb[0].mxu0
  %v6393 = vadd.f32 %v6280, %v6392
  %6394 = vdwg.mxu0
  %6395 = vmatprep.subr.bf16.mxu0 %v4952
  %6396 = vmatpush1.bf16.msra.mxu0 %v4951
  %6397 = vmatprep.subr.bf16.mxu0 %v4956
  %6398 = vmatpush1.bf16.msra.mxu0 %v4955
  %6399 = vmatprep.subr.bf16.mxu0 %v4960
  %6400 = vmatpush1.bf16.msra.mxu0 %v4959
  %6401 = vmatprep.subr.bf16.mxu0 %v4964
  %6402 = vmatpush1.bf16.msra.mxu0 %v4963
  %6403 = vmatprep.subr.bf16.mxu0 %v4968
  %6404 = vmatpush1.bf16.msra.mxu0 %v4967
  %6405 = vmatprep.subr.bf16.mxu0 %v4972
  %6406 = vmatpush1.bf16.msra.mxu0 %v4971
  %6407 = vmatprep.subr.bf16.mxu0 %v4976
  %6408 = vmatpush1.bf16.msra.mxu0 %v4975
  %6409 = vmatprep.subr.bf16.mxu0 %v4980
  %6410 = vmatpush1.bf16.msra.mxu0 %v4979
  %6411 = vmatprep.subr.bf16.mxu0 %v4984
  %6412 = vmatpush1.bf16.msra.mxu0 %v4983
  %6413 = vmatprep.subr.bf16.mxu0 %v4988
  %6414 = vmatpush1.bf16.msra.mxu0 %v4987
  %6415 = vmatprep.subr.bf16.mxu0 %v4992
  %6416 = vmatpush1.bf16.msra.mxu0 %v4991
  %6417 = vmatprep.subr.bf16.mxu0 %v4996
  %6418 = vmatpush1.bf16.msra.mxu0 %v4995
  %6419 = vmatprep.subr.bf16.mxu0 %v5000
  %6420 = vmatpush1.bf16.msra.mxu0 %v4999
  %6421 = vmatprep.subr.bf16.mxu0 %v5004
  %6422 = vmatpush1.bf16.msra.mxu0 %v5003
  %6423 = vmatprep.subr.bf16.mxu0 %v5008
  %6424 = vmatpush1.bf16.msra.mxu0 %v5007
  %6425 = vmatprep.subr.bf16.mxu0 %v5012
  %6426 = vmatpush1.bf16.msra.mxu0 %v5011
  %6427 = vmatprep.mubr.bf16.mxu0 %v3606
  %6428 = vmatmul.mubr.bf16.gmra.mrb[0].mxu0 %v3605
  %v6429 = vpop.f32.mrb[0].mxu0
  %v6430 = vadd.f32 %v3596, %v6429
  %v6431 = vpop.f32.mrb[0].mxu0
  %v6432 = vadd.f32 %v3600, %v6431
  %v6433 = vpop.f32.mrb[0].mxu0
  %v6434 = vadd.f32 %v3596, %v6433
  %v6435 = vpop.f32.mrb[0].mxu0
  %v6436 = vadd.f32 %v3600, %v6435
  %6437 = vmatprep.mubr.bf16.mxu0 %v3618
  %6438 = vmatmul.mubr.bf16.gmra.mrb[0].mxu0 %v3617
  %v6439 = vpop.f32.mrb[0].mxu0
  %v6440 = vadd.f32 %v3596, %v6439
  %v6441 = vpop.f32.mrb[0].mxu0
  %v6442 = vadd.f32 %v3600, %v6441
  %v6443 = vpop.f32.mrb[0].mxu0
  %v6444 = vadd.f32 %v3596, %v6443
  %v6445 = vpop.f32.mrb[0].mxu0
  %v6446 = vadd.f32 %v3600, %v6445
  %6447 = vmatprep.mubr.bf16.mxu0 %v3630
  %6448 = vmatmul.mubr.bf16.gmra.mrb[0].mxu0 %v3629
  %v6449 = vpop.f32.mrb[0].mxu0
  %v6450 = vadd.f32 %v3596, %v6449
  %v6451 = vpop.f32.mrb[0].mxu0
  %v6452 = vadd.f32 %v3600, %v6451
  %v6453 = vpop.f32.mrb[0].mxu0
  %v6454 = vadd.f32 %v3596, %v6453
  %v6455 = vpop.f32.mrb[0].mxu0
  %v6456 = vadd.f32 %v3600, %v6455
  %6457 = vmatprep.mubr.bf16.mxu0 %v3642
  %6458 = vmatmul.mubr.bf16.gmra.mrb[0].mxu0 %v3641
  %v6459 = vpop.f32.mrb[0].mxu0
  %v6460 = vadd.f32 %v3596, %v6459
  %v6461 = vpop.f32.mrb[0].mxu0
  %v6462 = vadd.f32 %v3600, %v6461
  %v6463 = vpop.f32.mrb[0].mxu0
  %v6464 = vadd.f32 %v3596, %v6463
  %v6465 = vpop.f32.mrb[0].mxu0
  %v6466 = vadd.f32 %v3600, %v6465
  %6467 = vmatprep.mubr.bf16.mxu0 %v3654
  %6468 = vmatmul.mubr.bf16.gmra.mrb[0].mxu0 %v3653
  %v6469 = vpop.f32.mrb[0].mxu0
  %v6470 = vadd.f32 %v3596, %v6469
  %v6471 = vpop.f32.mrb[0].mxu0
  %v6472 = vadd.f32 %v3600, %v6471
  %v6473 = vpop.f32.mrb[0].mxu0
  %v6474 = vadd.f32 %v3596, %v6473
  %v6475 = vpop.f32.mrb[0].mxu0
  %v6476 = vadd.f32 %v3600, %v6475
  %6477 = vmatprep.mubr.bf16.mxu0 %v3666
  %6478 = vmatmul.mubr.bf16.gmra.mrb[0].mxu0 %v3665
  %v6479 = vpop.f32.mrb[0].mxu0
  %v6480 = vadd.f32 %v3596, %v6479
  %v6481 = vpop.f32.mrb[0].mxu0
  %v6482 = vadd.f32 %v3600, %v6481
  %v6483 = vpop.f32.mrb[0].mxu0
  %v6484 = vadd.f32 %v3596, %v6483
  %v6485 = vpop.f32.mrb[0].mxu0
  %v6486 = vadd.f32 %v3600, %v6485
  %6487 = vmatprep.mubr.bf16.mxu0 %v3678
  %6488 = vmatmul.mubr.bf16.gmra.mrb[0].mxu0 %v3677
  %v6489 = vpop.f32.mrb[0].mxu0
  %v6490 = vadd.f32 %v3596, %v6489
  %v6491 = vpop.f32.mrb[0].mxu0
  %v6492 = vadd.f32 %v3600, %v6491
  %v6493 = vpop.f32.mrb[0].mxu0
  %v6494 = vadd.f32 %v3596, %v6493
  %v6495 = vpop.f32.mrb[0].mxu0
  %v6496 = vadd.f32 %v3600, %v6495
  %6497 = vmatprep.mubr.bf16.mxu0 %v3690
  %6498 = vmatmul.mubr.bf16.gmra.mrb[0].mxu0 %v3689
  %v6499 = vpop.f32.mrb[0].mxu0
  %v6500 = vadd.f32 %v3596, %v6499
  %v6501 = vpop.f32.mrb[0].mxu0
  %v6502 = vadd.f32 %v3600, %v6501
  %v6503 = vpop.f32.mrb[0].mxu0
  %v6504 = vadd.f32 %v3596, %v6503
  %v6505 = vpop.f32.mrb[0].mxu0
  %v6506 = vadd.f32 %v3600, %v6505
  %6507 = vdwg.mxu0
  %6508 = vmatprep.subr.bf16.mxu0 %v5016
  %6509 = vmatpush1.bf16.msra.mxu0 %v5015
  %6510 = vmatprep.subr.bf16.mxu0 %v5020
  %6511 = vmatpush1.bf16.msra.mxu0 %v5019
  %6512 = vmatprep.subr.bf16.mxu0 %v5024
  %6513 = vmatpush1.bf16.msra.mxu0 %v5023
  %6514 = vmatprep.subr.bf16.mxu0 %v5028
  %6515 = vmatpush1.bf16.msra.mxu0 %v5027
  %6516 = vmatprep.subr.bf16.mxu0 %v5032
  %6517 = vmatpush1.bf16.msra.mxu0 %v5031
  %6518 = vmatprep.subr.bf16.mxu0 %v5036
  %6519 = vmatpush1.bf16.msra.mxu0 %v5035
  %6520 = vmatprep.subr.bf16.mxu0 %v5040
  %6521 = vmatpush1.bf16.msra.mxu0 %v5039
  %6522 = vmatprep.subr.bf16.mxu0 %v5044
  %6523 = vmatpush1.bf16.msra.mxu0 %v5043
  %6524 = vmatprep.subr.bf16.mxu0 %v5048
  %6525 = vmatpush1.bf16.msra.mxu0 %v5047
  %6526 = vmatprep.subr.bf16.mxu0 %v5052
  %6527 = vmatpush1.bf16.msra.mxu0 %v5051
  %6528 = vmatprep.subr.bf16.mxu0 %v5056
  %6529 = vmatpush1.bf16.msra.mxu0 %v5055
  %6530 = vmatprep.subr.bf16.mxu0 %v5060
  %6531 = vmatpush1.bf16.msra.mxu0 %v5059
  %6532 = vmatprep.subr.bf16.mxu0 %v5064
  %6533 = vmatpush1.bf16.msra.mxu0 %v5063
  %6534 = vmatprep.subr.bf16.mxu0 %v5068
  %6535 = vmatpush1.bf16.msra.mxu0 %v5067
  %6536 = vmatprep.subr.bf16.mxu0 %v5072
  %6537 = vmatpush1.bf16.msra.mxu0 %v5071
  %6538 = vmatprep.subr.bf16.mxu0 %v5076
  %6539 = vmatpush1.bf16.msra.mxu0 %v5075
  %6540 = vmatprep.mubr.bf16.mxu0 %v3608
  %6541 = vmatmul.mubr.bf16.gmra.mrb[0].mxu0 %v3607
  %v6542 = vpop.f32.mrb[0].mxu0
  %v6543 = vadd.f32 %v6430, %v6542
  %v6544 = vpop.f32.mrb[0].mxu0
  %v6545 = vadd.f32 %v6432, %v6544
  %v6546 = vpop.f32.mrb[0].mxu0
  %v6547 = vadd.f32 %v6434, %v6546
  %v6548 = vpop.f32.mrb[0].mxu0
  %v6549 = vadd.f32 %v6436, %v6548
  %6550 = vmatprep.mubr.bf16.mxu0 %v3620
  %6551 = vmatmul.mubr.bf16.gmra.mrb[0].mxu0 %v3619
  %v6552 = vpop.f32.mrb[0].mxu0
  %v6553 = vadd.f32 %v6440, %v6552
  %v6554 = vpop.f32.mrb[0].mxu0
  %v6555 = vadd.f32 %v6442, %v6554
  %v6556 = vpop.f32.mrb[0].mxu0
  %v6557 = vadd.f32 %v6444, %v6556
  %v6558 = vpop.f32.mrb[0].mxu0
  %v6559 = vadd.f32 %v6446, %v6558
  %6560 = vmatprep.mubr.bf16.mxu0 %v3632
  %6561 = vmatmul.mubr.bf16.gmra.mrb[0].mxu0 %v3631
  %v6562 = vpop.f32.mrb[0].mxu0
  %v6563 = vadd.f32 %v6450, %v6562
  %v6564 = vpop.f32.mrb[0].mxu0
  %v6565 = vadd.f32 %v6452, %v6564
  %v6566 = vpop.f32.mrb[0].mxu0
  %v6567 = vadd.f32 %v6454, %v6566
  %v6568 = vpop.f32.mrb[0].mxu0
  %v6569 = vadd.f32 %v6456, %v6568
  %6570 = vmatprep.mubr.bf16.mxu0 %v3644
  %6571 = vmatmul.mubr.bf16.gmra.mrb[0].mxu0 %v3643
  %v6572 = vpop.f32.mrb[0].mxu0
  %v6573 = vadd.f32 %v6460, %v6572
  %v6574 = vpop.f32.mrb[0].mxu0
  %v6575 = vadd.f32 %v6462, %v6574
  %v6576 = vpop.f32.mrb[0].mxu0
  %v6577 = vadd.f32 %v6464, %v6576
  %v6578 = vpop.f32.mrb[0].mxu0
  %v6579 = vadd.f32 %v6466, %v6578
  %6580 = vmatprep.mubr.bf16.mxu0 %v3656
  %6581 = vmatmul.mubr.bf16.gmra.mrb[0].mxu0 %v3655
  %v6582 = vpop.f32.mrb[0].mxu0
  %v6583 = vadd.f32 %v6470, %v6582
  %v6584 = vpop.f32.mrb[0].mxu0
  %v6585 = vadd.f32 %v6472, %v6584
  %v6586 = vpop.f32.mrb[0].mxu0
  %v6587 = vadd.f32 %v6474, %v6586
  %v6588 = vpop.f32.mrb[0].mxu0
  %v6589 = vadd.f32 %v6476, %v6588
  %6590 = vmatprep.mubr.bf16.mxu0 %v3668
  %6591 = vmatmul.mubr.bf16.gmra.mrb[0].mxu0 %v3667
  %v6592 = vpop.f32.mrb[0].mxu0
  %v6593 = vadd.f32 %v6480, %v6592
  %v6594 = vpop.f32.mrb[0].mxu0
  %v6595 = vadd.f32 %v6482, %v6594
  %v6596 = vpop.f32.mrb[0].mxu0
  %v6597 = vadd.f32 %v6484, %v6596
  %v6598 = vpop.f32.mrb[0].mxu0
  %v6599 = vadd.f32 %v6486, %v6598
  %6600 = vmatprep.mubr.bf16.mxu0 %v3680
  %6601 = vmatmul.mubr.bf16.gmra.mrb[0].mxu0 %v3679
  %v6602 = vpop.f32.mrb[0].mxu0
  %v6603 = vadd.f32 %v6490, %v6602
  %v6604 = vpop.f32.mrb[0].mxu0
  %v6605 = vadd.f32 %v6492, %v6604
  %v6606 = vpop.f32.mrb[0].mxu0
  %v6607 = vadd.f32 %v6494, %v6606
  %v6608 = vpop.f32.mrb[0].mxu0
  %v6609 = vadd.f32 %v6496, %v6608
  %6610 = vmatprep.mubr.bf16.mxu0 %v3692
  %6611 = vmatmul.mubr.bf16.gmra.mrb[0].mxu0 %v3691
  %v6612 = vpop.f32.mrb[0].mxu0
  %v6613 = vadd.f32 %v6500, %v6612
  %v6614 = vpop.f32.mrb[0].mxu0
  %v6615 = vadd.f32 %v6502, %v6614
  %v6616 = vpop.f32.mrb[0].mxu0
  %v6617 = vadd.f32 %v6504, %v6616
  %v6618 = vpop.f32.mrb[0].mxu0
  %v6619 = vadd.f32 %v6506, %v6618
  %6620 = vdwg.mxu0
  %6621 = vmatprep.subr.bf16.mxu0 %v5080
  %6622 = vmatpush1.bf16.msra.mxu0 %v5079
  %6623 = vmatprep.subr.bf16.mxu0 %v5084
  %6624 = vmatpush1.bf16.msra.mxu0 %v5083
  %6625 = vmatprep.subr.bf16.mxu0 %v5088
  %6626 = vmatpush1.bf16.msra.mxu0 %v5087
  %6627 = vmatprep.subr.bf16.mxu0 %v5092
  %6628 = vmatpush1.bf16.msra.mxu0 %v5091
  %6629 = vmatprep.subr.bf16.mxu0 %v5096
  %6630 = vmatpush1.bf16.msra.mxu0 %v5095
  %6631 = vmatprep.subr.bf16.mxu0 %v5100
  %6632 = vmatpush1.bf16.msra.mxu0 %v5099
  %6633 = vmatprep.subr.bf16.mxu0 %v5104
  %6634 = vmatpush1.bf16.msra.mxu0 %v5103
  %6635 = vmatprep.subr.bf16.mxu0 %v5108
  %6636 = vmatpush1.bf16.msra.mxu0 %v5107
  %6637 = vmatprep.subr.bf16.mxu0 %v5112
  %6638 = vmatpush1.bf16.msra.mxu0 %v5111
  %6639 = vmatprep.subr.bf16.mxu0 %v5116
  %6640 = vmatpush1.bf16.msra.mxu0 %v5115
  %6641 = vmatprep.subr.bf16.mxu0 %v5120
  %6642 = vmatpush1.bf16.msra.mxu0 %v5119
  %6643 = vmatprep.subr.bf16.mxu0 %v5124
  %6644 = vmatpush1.bf16.msra.mxu0 %v5123
  %6645 = vmatprep.subr.bf16.mxu0 %v5128
  %6646 = vmatpush1.bf16.msra.mxu0 %v5127
  %6647 = vmatprep.subr.bf16.mxu0 %v5132
  %6648 = vmatpush1.bf16.msra.mxu0 %v5131
  %6649 = vmatprep.subr.bf16.mxu0 %v5136
  %6650 = vmatpush1.bf16.msra.mxu0 %v5135
  %6651 = vmatprep.subr.bf16.mxu0 %v5140
  %6652 = vmatpush1.bf16.msra.mxu0 %v5139
  %6653 = vmatprep.mubr.bf16.mxu0 %v3610
  %6654 = vmatmul.mubr.bf16.gmra.mrb[0].mxu0 %v3609
  %v6655 = vpop.f32.mrb[0].mxu0
  %v6656 = vadd.f32 %v6543, %v6655
  %v6657 = vpop.f32.mrb[0].mxu0
  %v6658 = vadd.f32 %v6545, %v6657
  %v6659 = vpop.f32.mrb[0].mxu0
  %v6660 = vadd.f32 %v6547, %v6659
  %v6661 = vpop.f32.mrb[0].mxu0
  %v6662 = vadd.f32 %v6549, %v6661
  %6663 = vmatprep.mubr.bf16.mxu0 %v3622
  %6664 = vmatmul.mubr.bf16.gmra.mrb[0].mxu0 %v3621
  %v6665 = vpop.f32.mrb[0].mxu0
  %v6666 = vadd.f32 %v6553, %v6665
  %v6667 = vpop.f32.mrb[0].mxu0
  %v6668 = vadd.f32 %v6555, %v6667
  %v6669 = vpop.f32.mrb[0].mxu0
  %v6670 = vadd.f32 %v6557, %v6669
  %v6671 = vpop.f32.mrb[0].mxu0
  %v6672 = vadd.f32 %v6559, %v6671
  %6673 = vmatprep.mubr.bf16.mxu0 %v3634
  %6674 = vmatmul.mubr.bf16.gmra.mrb[0].mxu0 %v3633
  %v6675 = vpop.f32.mrb[0].mxu0
  %v6676 = vadd.f32 %v6563, %v6675
  %v6677 = vpop.f32.mrb[0].mxu0
  %v6678 = vadd.f32 %v6565, %v6677
  %v6679 = vpop.f32.mrb[0].mxu0
  %v6680 = vadd.f32 %v6567, %v6679
  %v6681 = vpop.f32.mrb[0].mxu0
  %v6682 = vadd.f32 %v6569, %v6681
  %6683 = vmatprep.mubr.bf16.mxu0 %v3646
  %6684 = vmatmul.mubr.bf16.gmra.mrb[0].mxu0 %v3645
  %v6685 = vpop.f32.mrb[0].mxu0
  %v6686 = vadd.f32 %v6573, %v6685
  %v6687 = vpop.f32.mrb[0].mxu0
  %v6688 = vadd.f32 %v6575, %v6687
  %v6689 = vpop.f32.mrb[0].mxu0
  %v6690 = vadd.f32 %v6577, %v6689
  %v6691 = vpop.f32.mrb[0].mxu0
  %v6692 = vadd.f32 %v6579, %v6691
  %6693 = vmatprep.mubr.bf16.mxu0 %v3658
  %6694 = vmatmul.mubr.bf16.gmra.mrb[0].mxu0 %v3657
  %v6695 = vpop.f32.mrb[0].mxu0
  %v6696 = vadd.f32 %v6583, %v6695
  %v6697 = vpop.f32.mrb[0].mxu0
  %v6698 = vadd.f32 %v6585, %v6697
  %v6699 = vpop.f32.mrb[0].mxu0
  %v6700 = vadd.f32 %v6587, %v6699
  %v6701 = vpop.f32.mrb[0].mxu0
  %v6702 = vadd.f32 %v6589, %v6701
  %6703 = vmatprep.mubr.bf16.mxu0 %v3670
  %6704 = vmatmul.mubr.bf16.gmra.mrb[0].mxu0 %v3669
  %v6705 = vpop.f32.mrb[0].mxu0
  %v6706 = vadd.f32 %v6593, %v6705
  %v6707 = vpop.f32.mrb[0].mxu0
  %v6708 = vadd.f32 %v6595, %v6707
  %v6709 = vpop.f32.mrb[0].mxu0
  %v6710 = vadd.f32 %v6597, %v6709
  %v6711 = vpop.f32.mrb[0].mxu0
  %v6712 = vadd.f32 %v6599, %v6711
  %6713 = vmatprep.mubr.bf16.mxu0 %v3682
  %6714 = vmatmul.mubr.bf16.gmra.mrb[0].mxu0 %v3681
  %v6715 = vpop.f32.mrb[0].mxu0
  %v6716 = vadd.f32 %v6603, %v6715
  %v6717 = vpop.f32.mrb[0].mxu0
  %v6718 = vadd.f32 %v6605, %v6717
  %v6719 = vpop.f32.mrb[0].mxu0
  %v6720 = vadd.f32 %v6607, %v6719
  %v6721 = vpop.f32.mrb[0].mxu0
  %v6722 = vadd.f32 %v6609, %v6721
  %6723 = vmatprep.mubr.bf16.mxu0 %v3694
  %6724 = vmatmul.mubr.bf16.gmra.mrb[0].mxu0 %v3693
  %v6725 = vpop.f32.mrb[0].mxu0
  %v6726 = vadd.f32 %v6613, %v6725
  %v6727 = vpop.f32.mrb[0].mxu0
  %v6728 = vadd.f32 %v6615, %v6727
  %v6729 = vpop.f32.mrb[0].mxu0
  %v6730 = vadd.f32 %v6617, %v6729
  %v6731 = vpop.f32.mrb[0].mxu0
  %v6732 = vadd.f32 %v6619, %v6731
  %6733 = vdwg.mxu0
  %6734 = vmatprep.subr.bf16.mxu0 %v5144
  %6735 = vmatpush1.bf16.msra.mxu0 %v5143
  %6736 = vmatprep.subr.bf16.mxu0 %v5148
  %6737 = vmatpush1.bf16.msra.mxu0 %v5147
  %6738 = vmatprep.subr.bf16.mxu0 %v5152
  %6739 = vmatpush1.bf16.msra.mxu0 %v5151
  %6740 = vmatprep.subr.bf16.mxu0 %v5156
  %6741 = vmatpush1.bf16.msra.mxu0 %v5155
  %6742 = vmatprep.subr.bf16.mxu0 %v5160
  %6743 = vmatpush1.bf16.msra.mxu0 %v5159
  %6744 = vmatprep.subr.bf16.mxu0 %v5164
  %6745 = vmatpush1.bf16.msra.mxu0 %v5163
  %6746 = vmatprep.subr.bf16.mxu0 %v5168
  %6747 = vmatpush1.bf16.msra.mxu0 %v5167
  %6748 = vmatprep.subr.bf16.mxu0 %v5172
  %6749 = vmatpush1.bf16.msra.mxu0 %v5171
  %6750 = vmatprep.subr.bf16.mxu0 %v5176
  %6751 = vmatpush1.bf16.msra.mxu0 %v5175
  %6752 = vmatprep.subr.bf16.mxu0 %v5180
  %6753 = vmatpush1.bf16.msra.mxu0 %v5179
  %6754 = vmatprep.subr.bf16.mxu0 %v5184
  %6755 = vmatpush1.bf16.msra.mxu0 %v5183
  %6756 = vmatprep.subr.bf16.mxu0 %v5188
  %6757 = vmatpush1.bf16.msra.mxu0 %v5187
  %6758 = vmatprep.subr.bf16.mxu0 %v5192
  %6759 = vmatpush1.bf16.msra.mxu0 %v5191
  %6760 = vmatprep.subr.bf16.mxu0 %v5196
  %6761 = vmatpush1.bf16.msra.mxu0 %v5195
  %6762 = vmatprep.subr.bf16.mxu0 %v5200
  %6763 = vmatpush1.bf16.msra.mxu0 %v5199
  %6764 = vmatprep.subr.bf16.mxu0 %v5204
  %6765 = vmatpush1.bf16.msra.mxu0 %v5203
  %6766 = vmatprep.mubr.bf16.mxu0 %v3612
  %6767 = vmatmul.mubr.bf16.gmra.mrb[0].mxu0 %v3611
  %v6768 = vpop.f32.mrb[0].mxu0
  %v6769 = vadd.f32 %v6656, %v6768
  %v6770 = vpop.f32.mrb[0].mxu0
  %v6771 = vadd.f32 %v6658, %v6770
  %v6772 = vpop.f32.mrb[0].mxu0
  %v6773 = vadd.f32 %v6660, %v6772
  %v6774 = vpop.f32.mrb[0].mxu0
  %v6775 = vadd.f32 %v6662, %v6774
  %6776 = vmatprep.mubr.bf16.mxu0 %v3624
  %6777 = vmatmul.mubr.bf16.gmra.mrb[0].mxu0 %v3623
  %v6778 = vpop.f32.mrb[0].mxu0
  %v6779 = vadd.f32 %v6666, %v6778
  %v6780 = vpop.f32.mrb[0].mxu0
  %v6781 = vadd.f32 %v6668, %v6780
  %v6782 = vpop.f32.mrb[0].mxu0
  %v6783 = vadd.f32 %v6670, %v6782
  %v6784 = vpop.f32.mrb[0].mxu0
  %v6785 = vadd.f32 %v6672, %v6784
  %6786 = vmatprep.mubr.bf16.mxu0 %v3636
  %6787 = vmatmul.mubr.bf16.gmra.mrb[0].mxu0 %v3635
  %v6788 = vpop.f32.mrb[0].mxu0
  %v6789 = vadd.f32 %v6676, %v6788
  %v6790 = vpop.f32.mrb[0].mxu0
  %v6791 = vadd.f32 %v6678, %v6790
  %v6792 = vpop.f32.mrb[0].mxu0
  %v6793 = vadd.f32 %v6680, %v6792
  %v6794 = vpop.f32.mrb[0].mxu0
  %v6795 = vadd.f32 %v6682, %v6794
  %6796 = vmatprep.mubr.bf16.mxu0 %v3648
  %6797 = vmatmul.mubr.bf16.gmra.mrb[0].mxu0 %v3647
  %v6798 = vpop.f32.mrb[0].mxu0
  %v6799 = vadd.f32 %v6686, %v6798
  %v6800 = vpop.f32.mrb[0].mxu0
  %v6801 = vadd.f32 %v6688, %v6800
  %v6802 = vpop.f32.mrb[0].mxu0
  %v6803 = vadd.f32 %v6690, %v6802
  %v6804 = vpop.f32.mrb[0].mxu0
  %v6805 = vadd.f32 %v6692, %v6804
  %6806 = vmatprep.mubr.bf16.mxu0 %v3660
  %6807 = vmatmul.mubr.bf16.gmra.mrb[0].mxu0 %v3659
  %v6808 = vpop.f32.mrb[0].mxu0
  %v6809 = vadd.f32 %v6696, %v6808
  %v6810 = vpop.f32.mrb[0].mxu0
  %v6811 = vadd.f32 %v6698, %v6810
  %v6812 = vpop.f32.mrb[0].mxu0
  %v6813 = vadd.f32 %v6700, %v6812
  %v6814 = vpop.f32.mrb[0].mxu0
  %v6815 = vadd.f32 %v6702, %v6814
  %6816 = vmatprep.mubr.bf16.mxu0 %v3672
  %6817 = vmatmul.mubr.bf16.gmra.mrb[0].mxu0 %v3671
  %v6818 = vpop.f32.mrb[0].mxu0
  %v6819 = vadd.f32 %v6706, %v6818
  %v6820 = vpop.f32.mrb[0].mxu0
  %v6821 = vadd.f32 %v6708, %v6820
  %v6822 = vpop.f32.mrb[0].mxu0
  %v6823 = vadd.f32 %v6710, %v6822
  %v6824 = vpop.f32.mrb[0].mxu0
  %v6825 = vadd.f32 %v6712, %v6824
  %6826 = vmatprep.mubr.bf16.mxu0 %v3684
  %6827 = vmatmul.mubr.bf16.gmra.mrb[0].mxu0 %v3683
  %v6828 = vpop.f32.mrb[0].mxu0
  %v6829 = vadd.f32 %v6716, %v6828
  %v6830 = vpop.f32.mrb[0].mxu0
  %v6831 = vadd.f32 %v6718, %v6830
  %v6832 = vpop.f32.mrb[0].mxu0
  %v6833 = vadd.f32 %v6720, %v6832
  %v6834 = vpop.f32.mrb[0].mxu0
  %v6835 = vadd.f32 %v6722, %v6834
  %6836 = vmatprep.mubr.bf16.mxu0 %v3696
  %6837 = vmatmul.mubr.bf16.gmra.mrb[0].mxu0 %v3695
  %v6838 = vpop.f32.mrb[0].mxu0
  %v6839 = vadd.f32 %v6726, %v6838
  %v6840 = vpop.f32.mrb[0].mxu0
  %v6841 = vadd.f32 %v6728, %v6840
  %v6842 = vpop.f32.mrb[0].mxu0
  %v6843 = vadd.f32 %v6730, %v6842
  %v6844 = vpop.f32.mrb[0].mxu0
  %v6845 = vadd.f32 %v6732, %v6844
  %6846 = vdwg.mxu0
  %6847 = vmatprep.subr.bf16.mxu0 %v5208
  %6848 = vmatpush1.bf16.msra.mxu0 %v5207
  %6849 = vmatprep.subr.bf16.mxu0 %v5212
  %6850 = vmatpush1.bf16.msra.mxu0 %v5211
  %6851 = vmatprep.subr.bf16.mxu0 %v5216
  %6852 = vmatpush1.bf16.msra.mxu0 %v5215
  %6853 = vmatprep.subr.bf16.mxu0 %v5220
  %6854 = vmatpush1.bf16.msra.mxu0 %v5219
  %6855 = vmatprep.subr.bf16.mxu0 %v5224
  %6856 = vmatpush1.bf16.msra.mxu0 %v5223
  %6857 = vmatprep.subr.bf16.mxu0 %v5228
  %6858 = vmatpush1.bf16.msra.mxu0 %v5227
  %6859 = vmatprep.subr.bf16.mxu0 %v5232
  %6860 = vmatpush1.bf16.msra.mxu0 %v5231
  %6861 = vmatprep.subr.bf16.mxu0 %v5236
  %6862 = vmatpush1.bf16.msra.mxu0 %v5235
  %6863 = vmatprep.subr.bf16.mxu0 %v5240
  %6864 = vmatpush1.bf16.msra.mxu0 %v5239
  %6865 = vmatprep.subr.bf16.mxu0 %v5244
  %6866 = vmatpush1.bf16.msra.mxu0 %v5243
  %6867 = vmatprep.subr.bf16.mxu0 %v5248
  %6868 = vmatpush1.bf16.msra.mxu0 %v5247
  %6869 = vmatprep.subr.bf16.mxu0 %v5252
  %6870 = vmatpush1.bf16.msra.mxu0 %v5251
  %6871 = vmatprep.subr.bf16.mxu0 %v5256
  %6872 = vmatpush1.bf16.msra.mxu0 %v5255
  %6873 = vmatprep.subr.bf16.mxu0 %v5260
  %6874 = vmatpush1.bf16.msra.mxu0 %v5259
  %6875 = vmatprep.subr.bf16.mxu0 %v5264
  %6876 = vmatpush1.bf16.msra.mxu0 %v5263
  %6877 = vmatprep.subr.bf16.mxu0 %v5268
  %6878 = vmatpush1.bf16.msra.mxu0 %v5267
  %6879 = vmatprep.mubr.bf16.mxu0 %v3614
  %6880 = vmatmul.mubr.bf16.gmra.mrb[0].mxu0 %v3613
  %v6881 = vpop.f32.mrb[0].mxu0
  %v6882 = vadd.f32 %v6769, %v6881
  %v6883 = vpop.f32.mrb[0].mxu0
  %v6884 = vadd.f32 %v6771, %v6883
  %v6885 = vpop.f32.mrb[0].mxu0
  %v6886 = vadd.f32 %v6773, %v6885
  %v6887 = vpop.f32.mrb[0].mxu0
  %v6888 = vadd.f32 %v6775, %v6887
  %6889 = vmatprep.mubr.bf16.mxu0 %v3626
  %6890 = vmatmul.mubr.bf16.gmra.mrb[0].mxu0 %v3625
  %v6891 = vpop.f32.mrb[0].mxu0
  %v6892 = vadd.f32 %v6779, %v6891
  %v6893 = vpop.f32.mrb[0].mxu0
  %v6894 = vadd.f32 %v6781, %v6893
  %v6895 = vpop.f32.mrb[0].mxu0
  %v6896 = vadd.f32 %v6783, %v6895
  %v6897 = vpop.f32.mrb[0].mxu0
  %v6898 = vadd.f32 %v6785, %v6897
  %6899 = vmatprep.mubr.bf16.mxu0 %v3638
  %6900 = vmatmul.mubr.bf16.gmra.mrb[0].mxu0 %v3637
  %v6901 = vpop.f32.mrb[0].mxu0
  %v6902 = vadd.f32 %v6789, %v6901
  %v6903 = vpop.f32.mrb[0].mxu0
  %v6904 = vadd.f32 %v6791, %v6903
  %v6905 = vpop.f32.mrb[0].mxu0
  %v6906 = vadd.f32 %v6793, %v6905
  %v6907 = vpop.f32.mrb[0].mxu0
  %v6908 = vadd.f32 %v6795, %v6907
  %6909 = vmatprep.mubr.bf16.mxu0 %v3650
  %6910 = vmatmul.mubr.bf16.gmra.mrb[0].mxu0 %v3649
  %v6911 = vpop.f32.mrb[0].mxu0
  %v6912 = vadd.f32 %v6799, %v6911
  %v6913 = vpop.f32.mrb[0].mxu0
  %v6914 = vadd.f32 %v6801, %v6913
  %v6915 = vpop.f32.mrb[0].mxu0
  %v6916 = vadd.f32 %v6803, %v6915
  %v6917 = vpop.f32.mrb[0].mxu0
  %v6918 = vadd.f32 %v6805, %v6917
  %6919 = vmatprep.mubr.bf16.mxu0 %v3662
  %6920 = vmatmul.mubr.bf16.gmra.mrb[0].mxu0 %v3661
  %v6921 = vpop.f32.mrb[0].mxu0
  %v6922 = vadd.f32 %v6809, %v6921
  %v6923 = vpop.f32.mrb[0].mxu0
  %v6924 = vadd.f32 %v6811, %v6923
  %v6925 = vpop.f32.mrb[0].mxu0
  %v6926 = vadd.f32 %v6813, %v6925
  %v6927 = vpop.f32.mrb[0].mxu0
  %v6928 = vadd.f32 %v6815, %v6927
  %6929 = vmatprep.mubr.bf16.mxu0 %v3674
  %6930 = vmatmul.mubr.bf16.gmra.mrb[0].mxu0 %v3673
  %v6931 = vpop.f32.mrb[0].mxu0
  %v6932 = vadd.f32 %v6819, %v6931
  %v6933 = vpop.f32.mrb[0].mxu0
  %v6934 = vadd.f32 %v6821, %v6933
  %v6935 = vpop.f32.mrb[0].mxu0
  %v6936 = vadd.f32 %v6823, %v6935
  %v6937 = vpop.f32.mrb[0].mxu0
  %v6938 = vadd.f32 %v6825, %v6937
  %6939 = vmatprep.mubr.bf16.mxu0 %v3686
  %6940 = vmatmul.mubr.bf16.gmra.mrb[0].mxu0 %v3685
  %v6941 = vpop.f32.mrb[0].mxu0
  %v6942 = vadd.f32 %v6829, %v6941
  %v6943 = vpop.f32.mrb[0].mxu0
  %v6944 = vadd.f32 %v6831, %v6943
  %v6945 = vpop.f32.mrb[0].mxu0
  %v6946 = vadd.f32 %v6833, %v6945
  %v6947 = vpop.f32.mrb[0].mxu0
  %v6948 = vadd.f32 %v6835, %v6947
  %6949 = vmatprep.mubr.bf16.mxu0 %v3698
  %6950 = vmatmul.mubr.bf16.gmra.mrb[0].mxu0 %v3697
  %v6951 = vpop.f32.mrb[0].mxu0
  %v6952 = vadd.f32 %v6839, %v6951
  %v6953 = vpop.f32.mrb[0].mxu0
  %v6954 = vadd.f32 %v6841, %v6953
  %v6955 = vpop.f32.mrb[0].mxu0
  %v6956 = vadd.f32 %v6843, %v6955
  %v6957 = vpop.f32.mrb[0].mxu0
  %v6958 = vadd.f32 %v6845, %v6957
  %6959 = vdwg.mxu0
  %6960 = vmatprep.subr.bf16.mxu0 %v5272
  %6961 = vmatpush1.bf16.msra.mxu0 %v5271
  %6962 = vmatprep.subr.bf16.mxu0 %v5276
  %6963 = vmatpush1.bf16.msra.mxu0 %v5275
  %6964 = vmatprep.subr.bf16.mxu0 %v5280
  %6965 = vmatpush1.bf16.msra.mxu0 %v5279
  %6966 = vmatprep.subr.bf16.mxu0 %v5284
  %6967 = vmatpush1.bf16.msra.mxu0 %v5283
  %6968 = vmatprep.subr.bf16.mxu0 %v5288
  %6969 = vmatpush1.bf16.msra.mxu0 %v5287
  %6970 = vmatprep.subr.bf16.mxu0 %v5292
  %6971 = vmatpush1.bf16.msra.mxu0 %v5291
  %6972 = vmatprep.subr.bf16.mxu0 %v5296
  %6973 = vmatpush1.bf16.msra.mxu0 %v5295
  %6974 = vmatprep.subr.bf16.mxu0 %v5300
  %6975 = vmatpush1.bf16.msra.mxu0 %v5299
  %6976 = vmatprep.subr.bf16.mxu0 %v5304
  %6977 = vmatpush1.bf16.msra.mxu0 %v5303
  %6978 = vmatprep.subr.bf16.mxu0 %v5308
  %6979 = vmatpush1.bf16.msra.mxu0 %v5307
  %6980 = vmatprep.subr.bf16.mxu0 %v5312
  %6981 = vmatpush1.bf16.msra.mxu0 %v5311
  %6982 = vmatprep.subr.bf16.mxu0 %v5316
  %6983 = vmatpush1.bf16.msra.mxu0 %v5315
  %6984 = vmatprep.subr.bf16.mxu0 %v5320
  %6985 = vmatpush1.bf16.msra.mxu0 %v5319
  %6986 = vmatprep.subr.bf16.mxu0 %v5324
  %6987 = vmatpush1.bf16.msra.mxu0 %v5323
  %6988 = vmatprep.subr.bf16.mxu0 %v5328
  %6989 = vmatpush1.bf16.msra.mxu0 %v5327
  %6990 = vmatprep.subr.bf16.mxu0 %v5332
  %6991 = vmatpush1.bf16.msra.mxu0 %v5331
  %6992 = vmatprep.mubr.bf16.mxu0 %v3616
  %6993 = vmatmul.mubr.bf16.gmra.mrb[0].mxu0 %v3615
  %v6994 = vpop.f32.mrb[0].mxu0
  %v6995 = vadd.f32 %v6882, %v6994
  %v6996 = vpop.f32.mrb[0].mxu0
  %v6997 = vadd.f32 %v6884, %v6996
  %v6998 = vpop.f32.mrb[0].mxu0
  %v6999 = vadd.f32 %v6886, %v6998
  %v7000 = vpop.f32.mrb[0].mxu0
  %v7001 = vadd.f32 %v6888, %v7000
  %7002 = vmatprep.mubr.bf16.mxu0 %v3628
  %7003 = vmatmul.mubr.bf16.gmra.mrb[0].mxu0 %v3627
  %v7004 = vpop.f32.mrb[0].mxu0
  %v7005 = vadd.f32 %v6892, %v7004
  %v7006 = vpop.f32.mrb[0].mxu0
  %v7007 = vadd.f32 %v6894, %v7006
  %v7008 = vpop.f32.mrb[0].mxu0
  %v7009 = vadd.f32 %v6896, %v7008
  %v7010 = vpop.f32.mrb[0].mxu0
  %v7011 = vadd.f32 %v6898, %v7010
  %7012 = vmatprep.mubr.bf16.mxu0 %v3640
  %7013 = vmatmul.mubr.bf16.gmra.mrb[0].mxu0 %v3639
  %v7014 = vpop.f32.mrb[0].mxu0
  %v7015 = vadd.f32 %v6902, %v7014
  %v7016 = vpop.f32.mrb[0].mxu0
  %v7017 = vadd.f32 %v6904, %v7016
  %v7018 = vpop.f32.mrb[0].mxu0
  %v7019 = vadd.f32 %v6906, %v7018
  %v7020 = vpop.f32.mrb[0].mxu0
  %v7021 = vadd.f32 %v6908, %v7020
  %7022 = vmatprep.mubr.bf16.mxu0 %v3652
  %7023 = vmatmul.mubr.bf16.gmra.mrb[0].mxu0 %v3651
  %v7024 = vpop.f32.mrb[0].mxu0
  %v7025 = vadd.f32 %v6912, %v7024
  %v7026 = vpop.f32.mrb[0].mxu0
  %v7027 = vadd.f32 %v6914, %v7026
  %v7028 = vpop.f32.mrb[0].mxu0
  %v7029 = vadd.f32 %v6916, %v7028
  %v7030 = vpop.f32.mrb[0].mxu0
  %v7031 = vadd.f32 %v6918, %v7030
  %7032 = vmatprep.mubr.bf16.mxu0 %v3664
  %7033 = vmatmul.mubr.bf16.gmra.mrb[0].mxu0 %v3663
  %v7034 = vpop.f32.mrb[0].mxu0
  %v7035 = vadd.f32 %v6922, %v7034
  %v7036 = vpop.f32.mrb[0].mxu0
  %v7037 = vadd.f32 %v6924, %v7036
  %v7038 = vpop.f32.mrb[0].mxu0
  %v7039 = vadd.f32 %v6926, %v7038
  %v7040 = vpop.f32.mrb[0].mxu0
  %v7041 = vadd.f32 %v6928, %v7040
  %7042 = vmatprep.mubr.bf16.mxu0 %v3676
  %7043 = vmatmul.mubr.bf16.gmra.mrb[0].mxu0 %v3675
  %v7044 = vpop.f32.mrb[0].mxu0
  %v7045 = vadd.f32 %v6932, %v7044
  %v7046 = vpop.f32.mrb[0].mxu0
  %v7047 = vadd.f32 %v6934, %v7046
  %v7048 = vpop.f32.mrb[0].mxu0
  %v7049 = vadd.f32 %v6936, %v7048
  %v7050 = vpop.f32.mrb[0].mxu0
  %v7051 = vadd.f32 %v6938, %v7050
  %7052 = vmatprep.mubr.bf16.mxu0 %v3688
  %7053 = vmatmul.mubr.bf16.gmra.mrb[0].mxu0 %v3687
  %v7054 = vpop.f32.mrb[0].mxu0
  %v7055 = vadd.f32 %v6942, %v7054
  %v7056 = vpop.f32.mrb[0].mxu0
  %v7057 = vadd.f32 %v6944, %v7056
  %v7058 = vpop.f32.mrb[0].mxu0
  %v7059 = vadd.f32 %v6946, %v7058
  %v7060 = vpop.f32.mrb[0].mxu0
  %v7061 = vadd.f32 %v6948, %v7060
  %7062 = vmatprep.mubr.bf16.mxu0 %v3700
  %7063 = vmatmul.mubr.bf16.gmra.mrb[0].mxu0 %v3699
  %v7064 = vpop.f32.mrb[0].mxu0
  %v7065 = vadd.f32 %v6952, %v7064
  %v7066 = vpop.f32.mrb[0].mxu0
  %v7067 = vadd.f32 %v6954, %v7066
  %v7068 = vpop.f32.mrb[0].mxu0
  %v7069 = vadd.f32 %v6956, %v7068
  %v7070 = vpop.f32.mrb[0].mxu0
  %v7071 = vadd.f32 %v6958, %v7070
  %7072 = vdwg.mxu0
  %v7073 = vmax.f32 %v6317, 0.0
  %v7074 = vmax.f32 %v6319, 0.0
  %v7075 = vmax.f32 %v6995, 0.0
  %v7076 = vmax.f32 %v6997, 0.0
  %v7077 = vmax.f32 %v6321, 0.0
  %v7078 = vmax.f32 %v6323, 0.0
  %v7079 = vmax.f32 %v6999, 0.0
  %v7080 = vmax.f32 %v7001, 0.0
  %v7081 = vmax.f32 %v6327, 0.0
  %v7082 = vmax.f32 %v6329, 0.0
  %v7083 = vmax.f32 %v7005, 0.0
  %v7084 = vmax.f32 %v7007, 0.0
  %v7085 = vmax.f32 %v6331, 0.0
  %v7086 = vmax.f32 %v6333, 0.0
  %v7087 = vmax.f32 %v7009, 0.0
  %v7088 = vmax.f32 %v7011, 0.0
  %v7089 = vmax.f32 %v6337, 0.0
  %v7090 = vmax.f32 %v6339, 0.0
  %v7091 = vmax.f32 %v7015, 0.0
  %v7092 = vmax.f32 %v7017, 0.0
  %v7093 = vmax.f32 %v6341, 0.0
  %v7094 = vmax.f32 %v6343, 0.0
  %v7095 = vmax.f32 %v7019, 0.0
  %v7096 = vmax.f32 %v7021, 0.0
  %v7097 = vmax.f32 %v6347, 0.0
  %v7098 = vmax.f32 %v6349, 0.0
  %v7099 = vmax.f32 %v7025, 0.0
  %v7100 = vmax.f32 %v7027, 0.0
  %v7101 = vmax.f32 %v6351, 0.0
  %v7102 = vmax.f32 %v6353, 0.0
  %v7103 = vmax.f32 %v7029, 0.0
  %v7104 = vmax.f32 %v7031, 0.0
  %v7105 = vmax.f32 %v6357, 0.0
  %v7106 = vmax.f32 %v6359, 0.0
  %v7107 = vmax.f32 %v7035, 0.0
  %v7108 = vmax.f32 %v7037, 0.0
  %v7109 = vmax.f32 %v6361, 0.0
  %v7110 = vmax.f32 %v6363, 0.0
  %v7111 = vmax.f32 %v7039, 0.0
  %v7112 = vmax.f32 %v7041, 0.0
  %v7113 = vmax.f32 %v6367, 0.0
  %v7114 = vmax.f32 %v6369, 0.0
  %v7115 = vmax.f32 %v7045, 0.0
  %v7116 = vmax.f32 %v7047, 0.0
  %v7117 = vmax.f32 %v6371, 0.0
  %v7118 = vmax.f32 %v6373, 0.0
  %v7119 = vmax.f32 %v7049, 0.0
  %v7120 = vmax.f32 %v7051, 0.0
  %v7121 = vmax.f32 %v6377, 0.0
  %v7122 = vmax.f32 %v6379, 0.0
  %v7123 = vmax.f32 %v7055, 0.0
  %v7124 = vmax.f32 %v7057, 0.0
  %v7125 = vmax.f32 %v6381, 0.0
  %v7126 = vmax.f32 %v6383, 0.0
  %v7127 = vmax.f32 %v7059, 0.0
  %v7128 = vmax.f32 %v7061, 0.0
  %v7129 = vmax.f32 %v6387, 0.0
  %v7130 = vmax.f32 %v6389, 0.0
  %v7131 = vmax.f32 %v7065, 0.0
  %v7132 = vmax.f32 %v7067, 0.0
  %v7133 = vmax.f32 %v6391, 0.0
  %v7134 = vmax.f32 %v6393, 0.0
  %v7135 = vmax.f32 %v7069, 0.0
  %v7136 = vmax.f32 %v7071, 0.0
  %v7137 = vpack.c.bf16 %v7077, %v7073
  %v7138 = vpack.c.bf16 %v7078, %v7074
  %v7139 = vpack.c.bf16 %v7079, %v7075
  %v7140 = vpack.c.bf16 %v7080, %v7076
  %v7141 = vpack.c.bf16 %v7085, %v7081
  %v7142 = vpack.c.bf16 %v7086, %v7082
  %v7143 = vpack.c.bf16 %v7087, %v7083
  %v7144 = vpack.c.bf16 %v7088, %v7084
  %v7145 = vpack.c.bf16 %v7093, %v7089
  %v7146 = vpack.c.bf16 %v7094, %v7090
  %v7147 = vpack.c.bf16 %v7095, %v7091
  %v7148 = vpack.c.bf16 %v7096, %v7092
  %v7149 = vpack.c.bf16 %v7101, %v7097
  %v7150 = vpack.c.bf16 %v7102, %v7098
  %v7151 = vpack.c.bf16 %v7103, %v7099
  %v7152 = vpack.c.bf16 %v7104, %v7100
  %v7153 = vpack.c.bf16 %v7109, %v7105
  %v7154 = vpack.c.bf16 %v7110, %v7106
  %v7155 = vpack.c.bf16 %v7111, %v7107
  %v7156 = vpack.c.bf16 %v7112, %v7108
  %v7157 = vpack.c.bf16 %v7117, %v7113
  %v7158 = vpack.c.bf16 %v7118, %v7114
  %v7159 = vpack.c.bf16 %v7119, %v7115
  %v7160 = vpack.c.bf16 %v7120, %v7116
  %v7161 = vpack.c.bf16 %v7125, %v7121
  %v7162 = vpack.c.bf16 %v7126, %v7122
  %v7163 = vpack.c.bf16 %v7127, %v7123
  %v7164 = vpack.c.bf16 %v7128, %v7124
  %v7165 = vpack.c.bf16 %v7133, %v7129
  %v7166 = vpack.c.bf16 %v7134, %v7130
  %v7167 = vpack.c.bf16 %v7135, %v7131
  %v7168 = vpack.c.bf16 %v7136, %v7132
  %v7201 = vunpack.c.l.b16 %v7137
  %v7202 = vunpack.c.l.b16 %v7138
  %v7203 = vunpack.c.l.b16 %v7139
  %v7204 = vunpack.c.l.b16 %v7140
  %v7205 = vunpack.c.h.b16 %v7137
  %v7206 = vunpack.c.h.b16 %v7138
  %v7207 = vunpack.c.h.b16 %v7139
  %v7208 = vunpack.c.h.b16 %v7140
  %v7209 = vunpack.c.l.b16 %v7141
  %v7210 = vunpack.c.l.b16 %v7142
  %v7211 = vunpack.c.l.b16 %v7143
  %v7212 = vunpack.c.l.b16 %v7144
  %v7213 = vunpack.c.h.b16 %v7141
  %v7214 = vunpack.c.h.b16 %v7142
  %v7215 = vunpack.c.h.b16 %v7143
  %v7216 = vunpack.c.h.b16 %v7144
  %v7217 = vunpack.c.l.b16 %v7145
  %v7218 = vunpack.c.l.b16 %v7146
  %v7219 = vunpack.c.l.b16 %v7147
  %v7220 = vunpack.c.l.b16 %v7148
  %v7221 = vunpack.c.h.b16 %v7145
  %v7222 = vunpack.c.h.b16 %v7146
  %v7223 = vunpack.c.h.b16 %v7147
  %v7224 = vunpack.c.h.b16 %v7148
  %v7225 = vunpack.c.l.b16 %v7149
  %v7226 = vunpack.c.l.b16 %v7150
  %v7227 = vunpack.c.l.b16 %v7151
  %v7228 = vunpack.c.l.b16 %v7152
  %v7229 = vunpack.c.h.b16 %v7149
  %v7230 = vunpack.c.h.b16 %v7150
  %v7231 = vunpack.c.h.b16 %v7151
  %v7232 = vunpack.c.h.b16 %v7152
  %v7233 = vunpack.c.l.b16 %v7153
  %v7234 = vunpack.c.l.b16 %v7154
  %v7235 = vunpack.c.l.b16 %v7155
  %v7236 = vunpack.c.l.b16 %v7156
  %v7237 = vunpack.c.h.b16 %v7153
  %v7238 = vunpack.c.h.b16 %v7154
  %v7239 = vunpack.c.h.b16 %v7155
  %v7240 = vunpack.c.h.b16 %v7156
  %v7241 = vunpack.c.l.b16 %v7157
  %v7242 = vunpack.c.l.b16 %v7158
  %v7243 = vunpack.c.l.b16 %v7159
  %v7244 = vunpack.c.l.b16 %v7160
  %v7245 = vunpack.c.h.b16 %v7157
  %v7246 = vunpack.c.h.b16 %v7158
  %v7247 = vunpack.c.h.b16 %v7159
  %v7248 = vunpack.c.h.b16 %v7160
  %v7249 = vunpack.c.l.b16 %v7161
  %v7250 = vunpack.c.l.b16 %v7162
  %v7251 = vunpack.c.l.b16 %v7163
  %v7252 = vunpack.c.l.b16 %v7164
  %v7253 = vunpack.c.h.b16 %v7161
  %v7254 = vunpack.c.h.b16 %v7162
  %v7255 = vunpack.c.h.b16 %v7163
  %v7256 = vunpack.c.h.b16 %v7164
  %v7257 = vunpack.c.l.b16 %v7165
  %v7258 = vunpack.c.l.b16 %v7166
  %v7259 = vunpack.c.l.b16 %v7167
  %v7260 = vunpack.c.l.b16 %v7168
  %v7261 = vunpack.c.h.b16 %v7165
  %v7262 = vunpack.c.h.b16 %v7166
  %v7263 = vunpack.c.h.b16 %v7167
  %v7264 = vunpack.c.h.b16 %v7168
  %v7265 = vld [vmem:[%s5] sm:$0xff]
  %v7266 = vld [vmem:[%s5 + $0x8] sm:$0xff]
  %v7267 = vld [vmem:[%s5 + $0x10] sm:$0xff]
  %v7268 = vld [vmem:[%s5 + $0x18] sm:$0xff]
  %v7269 = vld [vmem:[%s5 + $0x20] sm:$0xff]
  %v7270 = vld [vmem:[%s5 + $0x28] sm:$0xff]
  %v7271 = vld [vmem:[%s5 + $0x30] sm:$0xff]
  %v7272 = vld [vmem:[%s5 + $0x38] sm:$0xff]
  %v7273 = vld [vmem:[%s5 + $0x40] sm:$0xff]
  %v7274 = vld [vmem:[%s5 + $0x48] sm:$0xff]
  %v7275 = vld [vmem:[%s5 + $0x50] sm:$0xff]
  %v7276 = vld [vmem:[%s5 + $0x58] sm:$0xff]
  %v7277 = vld [vmem:[%s5 + $0x60] sm:$0xff]
  %v7278 = vld [vmem:[%s5 + $0x68] sm:$0xff]
  %v7279 = vld [vmem:[%s5 + $0x70] sm:$0xff]
  %v7280 = vld [vmem:[%s5 + $0x78] sm:$0xff]
  %v7281 = vld [vmem:[%s5 + $0x80] sm:$0xff]
  %v7282 = vld [vmem:[%s5 + $0x88] sm:$0xff]
  %v7283 = vld [vmem:[%s5 + $0x90] sm:$0xff]
  %v7284 = vld [vmem:[%s5 + $0x98] sm:$0xff]
  %v7285 = vld [vmem:[%s5 + $0xa0] sm:$0xff]
  %v7286 = vld [vmem:[%s5 + $0xa8] sm:$0xff]
  %v7287 = vld [vmem:[%s5 + $0xb0] sm:$0xff]
  %v7288 = vld [vmem:[%s5 + $0xb8] sm:$0xff]
  %v7289 = vld [vmem:[%s5 + $0xc0] sm:$0xff]
  %v7290 = vld [vmem:[%s5 + $0xc8] sm:$0xff]
  %v7291 = vld [vmem:[%s5 + $0xd0] sm:$0xff]
  %v7292 = vld [vmem:[%s5 + $0xd8] sm:$0xff]
  %v7293 = vld [vmem:[%s5 + $0xe0] sm:$0xff]
  %v7294 = vld [vmem:[%s5 + $0xe8] sm:$0xff]
  %v7295 = vld [vmem:[%s5 + $0xf0] sm:$0xff]
  %v7296 = vld [vmem:[%s5 + $0xf8] sm:$0xff]
  %v7297 = vld [vmem:[%s5 + $0x100] sm:$0xff]
  %v7298 = vld [vmem:[%s5 + $0x108] sm:$0xff]
  %v7299 = vld [vmem:[%s5 + $0x110] sm:$0xff]
  %v7300 = vld [vmem:[%s5 + $0x118] sm:$0xff]
  %v7301 = vld [vmem:[%s5 + $0x120] sm:$0xff]
  %v7302 = vld [vmem:[%s5 + $0x128] sm:$0xff]
  %v7303 = vld [vmem:[%s5 + $0x130] sm:$0xff]
  %v7304 = vld [vmem:[%s5 + $0x138] sm:$0xff]
  %v7305 = vld [vmem:[%s5 + $0x140] sm:$0xff]
  %v7306 = vld [vmem:[%s5 + $0x148] sm:$0xff]
  %v7307 = vld [vmem:[%s5 + $0x150] sm:$0xff]
  %v7308 = vld [vmem:[%s5 + $0x158] sm:$0xff]
  %v7309 = vld [vmem:[%s5 + $0x160] sm:$0xff]
  %v7310 = vld [vmem:[%s5 + $0x168] sm:$0xff]
  %v7311 = vld [vmem:[%s5 + $0x170] sm:$0xff]
  %v7312 = vld [vmem:[%s5 + $0x178] sm:$0xff]
  %v7313 = vld [vmem:[%s5 + $0x180] sm:$0xff]
  %v7314 = vld [vmem:[%s5 + $0x188] sm:$0xff]
  %v7315 = vld [vmem:[%s5 + $0x190] sm:$0xff]
  %v7316 = vld [vmem:[%s5 + $0x198] sm:$0xff]
  %v7317 = vld [vmem:[%s5 + $0x1a0] sm:$0xff]
  %v7318 = vld [vmem:[%s5 + $0x1a8] sm:$0xff]
  %v7319 = vld [vmem:[%s5 + $0x1b0] sm:$0xff]
  %v7320 = vld [vmem:[%s5 + $0x1b8] sm:$0xff]
  %v7321 = vld [vmem:[%s5 + $0x1c0] sm:$0xff]
  %v7322 = vld [vmem:[%s5 + $0x1c8] sm:$0xff]
  %v7323 = vld [vmem:[%s5 + $0x1d0] sm:$0xff]
  %v7324 = vld [vmem:[%s5 + $0x1d8] sm:$0xff]
  %v7325 = vld [vmem:[%s5 + $0x1e0] sm:$0xff]
  %v7326 = vld [vmem:[%s5 + $0x1e8] sm:$0xff]
  %v7327 = vld [vmem:[%s5 + $0x1f0] sm:$0xff]
  %v7328 = vld [vmem:[%s5 + $0x1f8] sm:$0xff]
  %v7329 = vld [vmem:[%s5 + $0x200] sm:$0xff]
  %v7330 = vld [vmem:[%s5 + $0x208] sm:$0xff]
  %v7331 = vld [vmem:[%s5 + $0x210] sm:$0xff]
  %v7332 = vld [vmem:[%s5 + $0x218] sm:$0xff]
  %v7333 = vld [vmem:[%s5 + $0x220] sm:$0xff]
  %v7334 = vld [vmem:[%s5 + $0x228] sm:$0xff]
  %v7335 = vld [vmem:[%s5 + $0x230] sm:$0xff]
  %v7336 = vld [vmem:[%s5 + $0x238] sm:$0xff]
  %v7337 = vld [vmem:[%s5 + $0x240] sm:$0xff]
  %v7338 = vld [vmem:[%s5 + $0x248] sm:$0xff]
  %v7339 = vld [vmem:[%s5 + $0x250] sm:$0xff]
  %v7340 = vld [vmem:[%s5 + $0x258] sm:$0xff]
  %v7341 = vld [vmem:[%s5 + $0x260] sm:$0xff]
  %v7342 = vld [vmem:[%s5 + $0x268] sm:$0xff]
  %v7343 = vld [vmem:[%s5 + $0x270] sm:$0xff]
  %v7344 = vld [vmem:[%s5 + $0x278] sm:$0xff]
  %v7345 = vld [vmem:[%s5 + $0x280] sm:$0xff]
  %v7346 = vld [vmem:[%s5 + $0x288] sm:$0xff]
  %v7347 = vld [vmem:[%s5 + $0x290] sm:$0xff]
  %v7348 = vld [vmem:[%s5 + $0x298] sm:$0xff]
  %v7349 = vld [vmem:[%s5 + $0x2a0] sm:$0xff]
  %v7350 = vld [vmem:[%s5 + $0x2a8] sm:$0xff]
  %v7351 = vld [vmem:[%s5 + $0x2b0] sm:$0xff]
  %v7352 = vld [vmem:[%s5 + $0x2b8] sm:$0xff]
  %v7353 = vld [vmem:[%s5 + $0x2c0] sm:$0xff]
  %v7354 = vld [vmem:[%s5 + $0x2c8] sm:$0xff]
  %v7355 = vld [vmem:[%s5 + $0x2d0] sm:$0xff]
  %v7356 = vld [vmem:[%s5 + $0x2d8] sm:$0xff]
  %v7357 = vld [vmem:[%s5 + $0x2e0] sm:$0xff]
  %v7358 = vld [vmem:[%s5 + $0x2e8] sm:$0xff]
  %v7359 = vld [vmem:[%s5 + $0x2f0] sm:$0xff]
  %v7360 = vld [vmem:[%s5 + $0x2f8] sm:$0xff]
  %v7361 = vld [vmem:[%s5 + $0x300] sm:$0xff]
  %v7362 = vld [vmem:[%s5 + $0x308] sm:$0xff]
  %v7363 = vld [vmem:[%s5 + $0x310] sm:$0xff]
  %v7364 = vld [vmem:[%s5 + $0x318] sm:$0xff]
  %v7365 = vld [vmem:[%s5 + $0x320] sm:$0xff]
  %v7366 = vld [vmem:[%s5 + $0x328] sm:$0xff]
  %v7367 = vld [vmem:[%s5 + $0x330] sm:$0xff]
  %v7368 = vld [vmem:[%s5 + $0x338] sm:$0xff]
  %v7369 = vld [vmem:[%s5 + $0x340] sm:$0xff]
  %v7370 = vld [vmem:[%s5 + $0x348] sm:$0xff]
  %v7371 = vld [vmem:[%s5 + $0x350] sm:$0xff]
  %v7372 = vld [vmem:[%s5 + $0x358] sm:$0xff]
  %v7373 = vld [vmem:[%s5 + $0x360] sm:$0xff]
  %v7374 = vld [vmem:[%s5 + $0x368] sm:$0xff]
  %v7375 = vld [vmem:[%s5 + $0x370] sm:$0xff]
  %v7376 = vld [vmem:[%s5 + $0x378] sm:$0xff]
  %v7377 = vld [vmem:[%s5 + $0x380] sm:$0xff]
  %v7378 = vld [vmem:[%s5 + $0x388] sm:$0xff]
  %v7379 = vld [vmem:[%s5 + $0x390] sm:$0xff]
  %v7380 = vld [vmem:[%s5 + $0x398] sm:$0xff]
  %v7381 = vld [vmem:[%s5 + $0x3a0] sm:$0xff]
  %v7382 = vld [vmem:[%s5 + $0x3a8] sm:$0xff]
  %v7383 = vld [vmem:[%s5 + $0x3b0] sm:$0xff]
  %v7384 = vld [vmem:[%s5 + $0x3b8] sm:$0xff]
  %v7385 = vld [vmem:[%s5 + $0x3c0] sm:$0xff]
  %v7386 = vld [vmem:[%s5 + $0x3c8] sm:$0xff]
  %v7387 = vld [vmem:[%s5 + $0x3d0] sm:$0xff]
  %v7388 = vld [vmem:[%s5 + $0x3d8] sm:$0xff]
  %v7389 = vld [vmem:[%s5 + $0x3e0] sm:$0xff]
  %v7390 = vld [vmem:[%s5 + $0x3e8] sm:$0xff]
  %v7391 = vld [vmem:[%s5 + $0x3f0] sm:$0xff]
  %v7392 = vld [vmem:[%s5 + $0x3f8] sm:$0xff]
  %v7393 = vld [vmem:[%s5 + $0x400] sm:$0xff]
  %v7394 = vld [vmem:[%s5 + $0x408] sm:$0xff]
  %v7395 = vld [vmem:[%s5 + $0x410] sm:$0xff]
  %v7396 = vld [vmem:[%s5 + $0x418] sm:$0xff]
  %v7397 = vld [vmem:[%s5 + $0x420] sm:$0xff]
  %v7398 = vld [vmem:[%s5 + $0x428] sm:$0xff]
  %v7399 = vld [vmem:[%s5 + $0x430] sm:$0xff]
  %v7400 = vld [vmem:[%s5 + $0x438] sm:$0xff]
  %v7401 = vld [vmem:[%s5 + $0x440] sm:$0xff]
  %v7402 = vld [vmem:[%s5 + $0x448] sm:$0xff]
  %v7403 = vld [vmem:[%s5 + $0x450] sm:$0xff]
  %v7404 = vld [vmem:[%s5 + $0x458] sm:$0xff]
  %v7405 = vld [vmem:[%s5 + $0x460] sm:$0xff]
  %v7406 = vld [vmem:[%s5 + $0x468] sm:$0xff]
  %v7407 = vld [vmem:[%s5 + $0x470] sm:$0xff]
  %v7408 = vld [vmem:[%s5 + $0x478] sm:$0xff]
  %v7409 = vld [vmem:[%s5 + $0x480] sm:$0xff]
  %v7410 = vld [vmem:[%s5 + $0x488] sm:$0xff]
  %v7411 = vld [vmem:[%s5 + $0x490] sm:$0xff]
  %v7412 = vld [vmem:[%s5 + $0x498] sm:$0xff]
  %v7413 = vld [vmem:[%s5 + $0x4a0] sm:$0xff]
  %v7414 = vld [vmem:[%s5 + $0x4a8] sm:$0xff]
  %v7415 = vld [vmem:[%s5 + $0x4b0] sm:$0xff]
  %v7416 = vld [vmem:[%s5 + $0x4b8] sm:$0xff]
  %v7417 = vld [vmem:[%s5 + $0x4c0] sm:$0xff]
  %v7418 = vld [vmem:[%s5 + $0x4c8] sm:$0xff]
  %v7419 = vld [vmem:[%s5 + $0x4d0] sm:$0xff]
  %v7420 = vld [vmem:[%s5 + $0x4d8] sm:$0xff]
  %v7421 = vld [vmem:[%s5 + $0x4e0] sm:$0xff]
  %v7422 = vld [vmem:[%s5 + $0x4e8] sm:$0xff]
  %v7423 = vld [vmem:[%s5 + $0x4f0] sm:$0xff]
  %v7424 = vld [vmem:[%s5 + $0x4f8] sm:$0xff]
  %v7425 = vld [vmem:[%s5 + $0x500] sm:$0xff]
  %v7426 = vld [vmem:[%s5 + $0x508] sm:$0xff]
  %v7427 = vld [vmem:[%s5 + $0x510] sm:$0xff]
  %v7428 = vld [vmem:[%s5 + $0x518] sm:$0xff]
  %v7429 = vld [vmem:[%s5 + $0x520] sm:$0xff]
  %v7430 = vld [vmem:[%s5 + $0x528] sm:$0xff]
  %v7431 = vld [vmem:[%s5 + $0x530] sm:$0xff]
  %v7432 = vld [vmem:[%s5 + $0x538] sm:$0xff]
  %v7433 = vld [vmem:[%s5 + $0x540] sm:$0xff]
  %v7434 = vld [vmem:[%s5 + $0x548] sm:$0xff]
  %v7435 = vld [vmem:[%s5 + $0x550] sm:$0xff]
  %v7436 = vld [vmem:[%s5 + $0x558] sm:$0xff]
  %v7437 = vld [vmem:[%s5 + $0x560] sm:$0xff]
  %v7438 = vld [vmem:[%s5 + $0x568] sm:$0xff]
  %v7439 = vld [vmem:[%s5 + $0x570] sm:$0xff]
  %v7440 = vld [vmem:[%s5 + $0x578] sm:$0xff]
  %v7441 = vld [vmem:[%s5 + $0x580] sm:$0xff]
  %v7442 = vld [vmem:[%s5 + $0x588] sm:$0xff]
  %v7443 = vld [vmem:[%s5 + $0x590] sm:$0xff]
  %v7444 = vld [vmem:[%s5 + $0x598] sm:$0xff]
  %v7445 = vld [vmem:[%s5 + $0x5a0] sm:$0xff]
  %v7446 = vld [vmem:[%s5 + $0x5a8] sm:$0xff]
  %v7447 = vld [vmem:[%s5 + $0x5b0] sm:$0xff]
  %v7448 = vld [vmem:[%s5 + $0x5b8] sm:$0xff]
  %v7449 = vld [vmem:[%s5 + $0x5c0] sm:$0xff]
  %v7450 = vld [vmem:[%s5 + $0x5c8] sm:$0xff]
  %v7451 = vld [vmem:[%s5 + $0x5d0] sm:$0xff]
  %v7452 = vld [vmem:[%s5 + $0x5d8] sm:$0xff]
  %v7453 = vld [vmem:[%s5 + $0x5e0] sm:$0xff]
  %v7454 = vld [vmem:[%s5 + $0x5e8] sm:$0xff]
  %v7455 = vld [vmem:[%s5 + $0x5f0] sm:$0xff]
  %v7456 = vld [vmem:[%s5 + $0x5f8] sm:$0xff]
  %v7457 = vld [vmem:[%s5 + $0x600] sm:$0xff]
  %v7458 = vld [vmem:[%s5 + $0x608] sm:$0xff]
  %v7459 = vld [vmem:[%s5 + $0x610] sm:$0xff]
  %v7460 = vld [vmem:[%s5 + $0x618] sm:$0xff]
  %v7461 = vld [vmem:[%s5 + $0x620] sm:$0xff]
  %v7462 = vld [vmem:[%s5 + $0x628] sm:$0xff]
  %v7463 = vld [vmem:[%s5 + $0x630] sm:$0xff]
  %v7464 = vld [vmem:[%s5 + $0x638] sm:$0xff]
  %v7465 = vld [vmem:[%s5 + $0x640] sm:$0xff]
  %v7466 = vld [vmem:[%s5 + $0x648] sm:$0xff]
  %v7467 = vld [vmem:[%s5 + $0x650] sm:$0xff]
  %v7468 = vld [vmem:[%s5 + $0x658] sm:$0xff]
  %v7469 = vld [vmem:[%s5 + $0x660] sm:$0xff]
  %v7470 = vld [vmem:[%s5 + $0x668] sm:$0xff]
  %v7471 = vld [vmem:[%s5 + $0x670] sm:$0xff]
  %v7472 = vld [vmem:[%s5 + $0x678] sm:$0xff]
  %v7473 = vld [vmem:[%s5 + $0x680] sm:$0xff]
  %v7474 = vld [vmem:[%s5 + $0x688] sm:$0xff]
  %v7475 = vld [vmem:[%s5 + $0x690] sm:$0xff]
  %v7476 = vld [vmem:[%s5 + $0x698] sm:$0xff]
  %v7477 = vld [vmem:[%s5 + $0x6a0] sm:$0xff]
  %v7478 = vld [vmem:[%s5 + $0x6a8] sm:$0xff]
  %v7479 = vld [vmem:[%s5 + $0x6b0] sm:$0xff]
  %v7480 = vld [vmem:[%s5 + $0x6b8] sm:$0xff]
  %v7481 = vld [vmem:[%s5 + $0x6c0] sm:$0xff]
  %v7482 = vld [vmem:[%s5 + $0x6c8] sm:$0xff]
  %v7483 = vld [vmem:[%s5 + $0x6d0] sm:$0xff]
  %v7484 = vld [vmem:[%s5 + $0x6d8] sm:$0xff]
  %v7485 = vld [vmem:[%s5 + $0x6e0] sm:$0xff]
  %v7486 = vld [vmem:[%s5 + $0x6e8] sm:$0xff]
  %v7487 = vld [vmem:[%s5 + $0x6f0] sm:$0xff]
  %v7488 = vld [vmem:[%s5 + $0x6f8] sm:$0xff]
  %v7489 = vld [vmem:[%s5 + $0x700] sm:$0xff]
  %v7490 = vld [vmem:[%s5 + $0x708] sm:$0xff]
  %v7491 = vld [vmem:[%s5 + $0x710] sm:$0xff]
  %v7492 = vld [vmem:[%s5 + $0x718] sm:$0xff]
  %v7493 = vld [vmem:[%s5 + $0x720] sm:$0xff]
  %v7494 = vld [vmem:[%s5 + $0x728] sm:$0xff]
  %v7495 = vld [vmem:[%s5 + $0x730] sm:$0xff]
  %v7496 = vld [vmem:[%s5 + $0x738] sm:$0xff]
  %v7497 = vld [vmem:[%s5 + $0x740] sm:$0xff]
  %v7498 = vld [vmem:[%s5 + $0x748] sm:$0xff]
  %v7499 = vld [vmem:[%s5 + $0x750] sm:$0xff]
  %v7500 = vld [vmem:[%s5 + $0x758] sm:$0xff]
  %v7501 = vld [vmem:[%s5 + $0x760] sm:$0xff]
  %v7502 = vld [vmem:[%s5 + $0x768] sm:$0xff]
  %v7503 = vld [vmem:[%s5 + $0x770] sm:$0xff]
  %v7504 = vld [vmem:[%s5 + $0x778] sm:$0xff]
  %v7505 = vld [vmem:[%s5 + $0x780] sm:$0xff]
  %v7506 = vld [vmem:[%s5 + $0x788] sm:$0xff]
  %v7507 = vld [vmem:[%s5 + $0x790] sm:$0xff]
  %v7508 = vld [vmem:[%s5 + $0x798] sm:$0xff]
  %v7509 = vld [vmem:[%s5 + $0x7a0] sm:$0xff]
  %v7510 = vld [vmem:[%s5 + $0x7a8] sm:$0xff]
  %v7511 = vld [vmem:[%s5 + $0x7b0] sm:$0xff]
  %v7512 = vld [vmem:[%s5 + $0x7b8] sm:$0xff]
  %v7513 = vld [vmem:[%s5 + $0x7c0] sm:$0xff]
  %v7514 = vld [vmem:[%s5 + $0x7c8] sm:$0xff]
  %v7515 = vld [vmem:[%s5 + $0x7d0] sm:$0xff]
  %v7516 = vld [vmem:[%s5 + $0x7d8] sm:$0xff]
  %v7517 = vld [vmem:[%s5 + $0x7e0] sm:$0xff]
  %v7518 = vld [vmem:[%s5 + $0x7e8] sm:$0xff]
  %v7519 = vld [vmem:[%s5 + $0x7f0] sm:$0xff]
  %v7520 = vld [vmem:[%s5 + $0x7f8] sm:$0xff]
  %v7521 = vld [vmem:[%s5 + $0x800] sm:$0xff]
  %v7522 = vld [vmem:[%s5 + $0x808] sm:$0xff]
  %v7523 = vld [vmem:[%s5 + $0x810] sm:$0xff]
  %v7524 = vld [vmem:[%s5 + $0x818] sm:$0xff]
  %v7525 = vld [vmem:[%s5 + $0x820] sm:$0xff]
  %v7526 = vld [vmem:[%s5 + $0x828] sm:$0xff]
  %v7527 = vld [vmem:[%s5 + $0x830] sm:$0xff]
  %v7528 = vld [vmem:[%s5 + $0x838] sm:$0xff]
  %v7529 = vld [vmem:[%s5 + $0x840] sm:$0xff]
  %v7530 = vld [vmem:[%s5 + $0x848] sm:$0xff]
  %v7531 = vld [vmem:[%s5 + $0x850] sm:$0xff]
  %v7532 = vld [vmem:[%s5 + $0x858] sm:$0xff]
  %v7533 = vld [vmem:[%s5 + $0x860] sm:$0xff]
  %v7534 = vld [vmem:[%s5 + $0x868] sm:$0xff]
  %v7535 = vld [vmem:[%s5 + $0x870] sm:$0xff]
  %v7536 = vld [vmem:[%s5 + $0x878] sm:$0xff]
  %v7537 = vld [vmem:[%s5 + $0x880] sm:$0xff]
  %v7538 = vld [vmem:[%s5 + $0x888] sm:$0xff]
  %v7539 = vld [vmem:[%s5 + $0x890] sm:$0xff]
  %v7540 = vld [vmem:[%s5 + $0x898] sm:$0xff]
  %v7541 = vld [vmem:[%s5 + $0x8a0] sm:$0xff]
  %v7542 = vld [vmem:[%s5 + $0x8a8] sm:$0xff]
  %v7543 = vld [vmem:[%s5 + $0x8b0] sm:$0xff]
  %v7544 = vld [vmem:[%s5 + $0x8b8] sm:$0xff]
  %v7545 = vld [vmem:[%s5 + $0x8c0] sm:$0xff]
  %v7546 = vld [vmem:[%s5 + $0x8c8] sm:$0xff]
  %v7547 = vld [vmem:[%s5 + $0x8d0] sm:$0xff]
  %v7548 = vld [vmem:[%s5 + $0x8d8] sm:$0xff]
  %v7549 = vld [vmem:[%s5 + $0x8e0] sm:$0xff]
  %v7550 = vld [vmem:[%s5 + $0x8e8] sm:$0xff]
  %v7551 = vld [vmem:[%s5 + $0x8f0] sm:$0xff]
  %v7552 = vld [vmem:[%s5 + $0x8f8] sm:$0xff]
  %v7553 = vld [vmem:[%s5 + $0x900] sm:$0xff]
  %v7554 = vld [vmem:[%s5 + $0x908] sm:$0xff]
  %v7555 = vld [vmem:[%s5 + $0x910] sm:$0xff]
  %v7556 = vld [vmem:[%s5 + $0x918] sm:$0xff]
  %v7557 = vld [vmem:[%s5 + $0x920] sm:$0xff]
  %v7558 = vld [vmem:[%s5 + $0x928] sm:$0xff]
  %v7559 = vld [vmem:[%s5 + $0x930] sm:$0xff]
  %v7560 = vld [vmem:[%s5 + $0x938] sm:$0xff]
  %v7561 = vld [vmem:[%s5 + $0x940] sm:$0xff]
  %v7562 = vld [vmem:[%s5 + $0x948] sm:$0xff]
  %v7563 = vld [vmem:[%s5 + $0x950] sm:$0xff]
  %v7564 = vld [vmem:[%s5 + $0x958] sm:$0xff]
  %v7565 = vld [vmem:[%s5 + $0x960] sm:$0xff]
  %v7566 = vld [vmem:[%s5 + $0x968] sm:$0xff]
  %v7567 = vld [vmem:[%s5 + $0x970] sm:$0xff]
  %v7568 = vld [vmem:[%s5 + $0x978] sm:$0xff]
  %v7569 = vld [vmem:[%s5 + $0x980] sm:$0xff]
  %v7570 = vld [vmem:[%s5 + $0x988] sm:$0xff]
  %v7571 = vld [vmem:[%s5 + $0x990] sm:$0xff]
  %v7572 = vld [vmem:[%s5 + $0x998] sm:$0xff]
  %v7573 = vld [vmem:[%s5 + $0x9a0] sm:$0xff]
  %v7574 = vld [vmem:[%s5 + $0x9a8] sm:$0xff]
  %v7575 = vld [vmem:[%s5 + $0x9b0] sm:$0xff]
  %v7576 = vld [vmem:[%s5 + $0x9b8] sm:$0xff]
  %v7577 = vld [vmem:[%s5 + $0x9c0] sm:$0xff]
  %v7578 = vld [vmem:[%s5 + $0x9c8] sm:$0xff]
  %v7579 = vld [vmem:[%s5 + $0x9d0] sm:$0xff]
  %v7580 = vld [vmem:[%s5 + $0x9d8] sm:$0xff]
  %v7581 = vld [vmem:[%s5 + $0x9e0] sm:$0xff]
  %v7582 = vld [vmem:[%s5 + $0x9e8] sm:$0xff]
  %v7583 = vld [vmem:[%s5 + $0x9f0] sm:$0xff]
  %v7584 = vld [vmem:[%s5 + $0x9f8] sm:$0xff]
  %v7585 = vld [vmem:[%s5 + $0xa00] sm:$0xff]
  %v7586 = vld [vmem:[%s5 + $0xa08] sm:$0xff]
  %v7587 = vld [vmem:[%s5 + $0xa10] sm:$0xff]
  %v7588 = vld [vmem:[%s5 + $0xa18] sm:$0xff]
  %v7589 = vld [vmem:[%s5 + $0xa20] sm:$0xff]
  %v7590 = vld [vmem:[%s5 + $0xa28] sm:$0xff]
  %v7591 = vld [vmem:[%s5 + $0xa30] sm:$0xff]
  %v7592 = vld [vmem:[%s5 + $0xa38] sm:$0xff]
  %v7593 = vld [vmem:[%s5 + $0xa40] sm:$0xff]
  %v7594 = vld [vmem:[%s5 + $0xa48] sm:$0xff]
  %v7595 = vld [vmem:[%s5 + $0xa50] sm:$0xff]
  %v7596 = vld [vmem:[%s5 + $0xa58] sm:$0xff]
  %v7597 = vld [vmem:[%s5 + $0xa60] sm:$0xff]
  %v7598 = vld [vmem:[%s5 + $0xa68] sm:$0xff]
  %v7599 = vld [vmem:[%s5 + $0xa70] sm:$0xff]
  %v7600 = vld [vmem:[%s5 + $0xa78] sm:$0xff]
  %v7601 = vld [vmem:[%s5 + $0xa80] sm:$0xff]
  %v7602 = vld [vmem:[%s5 + $0xa88] sm:$0xff]
  %v7603 = vld [vmem:[%s5 + $0xa90] sm:$0xff]
  %v7604 = vld [vmem:[%s5 + $0xa98] sm:$0xff]
  %v7605 = vld [vmem:[%s5 + $0xaa0] sm:$0xff]
  %v7606 = vld [vmem:[%s5 + $0xaa8] sm:$0xff]
  %v7607 = vld [vmem:[%s5 + $0xab0] sm:$0xff]
  %v7608 = vld [vmem:[%s5 + $0xab8] sm:$0xff]
  %v7609 = vld [vmem:[%s5 + $0xac0] sm:$0xff]
  %v7610 = vld [vmem:[%s5 + $0xac8] sm:$0xff]
  %v7611 = vld [vmem:[%s5 + $0xad0] sm:$0xff]
  %v7612 = vld [vmem:[%s5 + $0xad8] sm:$0xff]
  %v7613 = vld [vmem:[%s5 + $0xae0] sm:$0xff]
  %v7614 = vld [vmem:[%s5 + $0xae8] sm:$0xff]
  %v7615 = vld [vmem:[%s5 + $0xaf0] sm:$0xff]
  %v7616 = vld [vmem:[%s5 + $0xaf8] sm:$0xff]
  %v7617 = vld [vmem:[%s5 + $0xb00] sm:$0xff]
  %v7618 = vld [vmem:[%s5 + $0xb08] sm:$0xff]
  %v7619 = vld [vmem:[%s5 + $0xb10] sm:$0xff]
  %v7620 = vld [vmem:[%s5 + $0xb18] sm:$0xff]
  %v7621 = vld [vmem:[%s5 + $0xb20] sm:$0xff]
  %v7622 = vld [vmem:[%s5 + $0xb28] sm:$0xff]
  %v7623 = vld [vmem:[%s5 + $0xb30] sm:$0xff]
  %v7624 = vld [vmem:[%s5 + $0xb38] sm:$0xff]
  %v7625 = vld [vmem:[%s5 + $0xb40] sm:$0xff]
  %v7626 = vld [vmem:[%s5 + $0xb48] sm:$0xff]
  %v7627 = vld [vmem:[%s5 + $0xb50] sm:$0xff]
  %v7628 = vld [vmem:[%s5 + $0xb58] sm:$0xff]
  %v7629 = vld [vmem:[%s5 + $0xb60] sm:$0xff]
  %v7630 = vld [vmem:[%s5 + $0xb68] sm:$0xff]
  %v7631 = vld [vmem:[%s5 + $0xb70] sm:$0xff]
  %v7632 = vld [vmem:[%s5 + $0xb78] sm:$0xff]
  %v7633 = vld [vmem:[%s5 + $0xb80] sm:$0xff]
  %v7634 = vld [vmem:[%s5 + $0xb88] sm:$0xff]
  %v7635 = vld [vmem:[%s5 + $0xb90] sm:$0xff]
  %v7636 = vld [vmem:[%s5 + $0xb98] sm:$0xff]
  %v7637 = vld [vmem:[%s5 + $0xba0] sm:$0xff]
  %v7638 = vld [vmem:[%s5 + $0xba8] sm:$0xff]
  %v7639 = vld [vmem:[%s5 + $0xbb0] sm:$0xff]
  %v7640 = vld [vmem:[%s5 + $0xbb8] sm:$0xff]
  %v7641 = vld [vmem:[%s5 + $0xbc0] sm:$0xff]
  %v7642 = vld [vmem:[%s5 + $0xbc8] sm:$0xff]
  %v7643 = vld [vmem:[%s5 + $0xbd0] sm:$0xff]
  %v7644 = vld [vmem:[%s5 + $0xbd8] sm:$0xff]
  %v7645 = vld [vmem:[%s5 + $0xbe0] sm:$0xff]
  %v7646 = vld [vmem:[%s5 + $0xbe8] sm:$0xff]
  %v7647 = vld [vmem:[%s5 + $0xbf0] sm:$0xff]
  %v7648 = vld [vmem:[%s5 + $0xbf8] sm:$0xff]
  %v7649 = vld [vmem:[%s6] sm:$0xf]
  %v7651 = vlaneseq
  %v7652 = vshrl.u32 %v7651, 7
  %v7653 = vsub.s32 0, %v7652
  %v7654 = vrot.slane %v7649, %v7653
  %v7655 = vlaneseq
  %v7656 = vshrl.u32 %v7655, 7
  %v7657 = vsub.s32 1, %v7656
  %v7658 = vrot.slane %v7649, %v7657
  %v7659 = vlaneseq
  %v7660 = vshrl.u32 %v7659, 7
  %v7661 = vsub.s32 2, %v7660
  %v7662 = vrot.slane %v7649, %v7661
  %v7663 = vlaneseq
  %v7664 = vshrl.u32 %v7663, 7
  %v7665 = vsub.s32 3, %v7664
  %v7666 = vrot.slane %v7649, %v7665
  %v7671 = vpack.c.b16 %v7205, %v290
  %v7672 = vpack.c.b16 %v7206, %v290
  %v7673 = vpack.c.b16 %v7207, %v290
  %v7674 = vpack.c.b16 %v7208, %v290
  %v7675 = vpack.c.b16 %v7209, %v7201
  %v7676 = vpack.c.b16 %v7210, %v7202
  %v7677 = vpack.c.b16 %v7211, %v7203
  %v7678 = vpack.c.b16 %v7212, %v7204
  %v7679 = vpack.c.b16 %v7213, %v7205
  %v7680 = vpack.c.b16 %v7214, %v7206
  %v7681 = vpack.c.b16 %v7215, %v7207
  %v7682 = vpack.c.b16 %v7216, %v7208
  %v7683 = vpack.c.b16 %v7221, %v7213
  %v7684 = vpack.c.b16 %v7222, %v7214
  %v7685 = vpack.c.b16 %v7223, %v7215
  %v7686 = vpack.c.b16 %v7224, %v7216
  %v7687 = vpack.c.b16 %v7225, %v7217
  %v7688 = vpack.c.b16 %v7226, %v7218
  %v7689 = vpack.c.b16 %v7227, %v7219
  %v7690 = vpack.c.b16 %v7228, %v7220
  %v7691 = vpack.c.b16 %v7229, %v7221
  %v7692 = vpack.c.b16 %v7230, %v7222
  %v7693 = vpack.c.b16 %v7231, %v7223
  %v7694 = vpack.c.b16 %v7232, %v7224
  %v7695 = vpack.c.b16 %v7237, %v7229
  %v7696 = vpack.c.b16 %v7238, %v7230
  %v7697 = vpack.c.b16 %v7239, %v7231
  %v7698 = vpack.c.b16 %v7240, %v7232
  %v7699 = vpack.c.b16 %v7241, %v7233
  %v7700 = vpack.c.b16 %v7242, %v7234
  %v7701 = vpack.c.b16 %v7243, %v7235
  %v7702 = vpack.c.b16 %v7244, %v7236
  %v7703 = vpack.c.b16 %v7245, %v7237
  %v7704 = vpack.c.b16 %v7246, %v7238
  %v7705 = vpack.c.b16 %v7247, %v7239
  %v7706 = vpack.c.b16 %v7248, %v7240
  %v7707 = vpack.c.b16 %v7253, %v7245
  %v7708 = vpack.c.b16 %v7254, %v7246
  %v7709 = vpack.c.b16 %v7255, %v7247
  %v7710 = vpack.c.b16 %v7256, %v7248
  %v7711 = vpack.c.b16 %v7257, %v7249
  %v7712 = vpack.c.b16 %v7258, %v7250
  %v7713 = vpack.c.b16 %v7259, %v7251
  %v7714 = vpack.c.b16 %v7260, %v7252
  %v7715 = vpack.c.b16 %v7261, %v7253
  %v7716 = vpack.c.b16 %v7262, %v7254
  %v7717 = vpack.c.b16 %v7263, %v7255
  %v7718 = vpack.c.b16 %v7264, %v7256
  %v8151 = vunpack.c.l.b16 %v7265
  %v8152 = vunpack.c.h.b16 %v7265
  %v8153 = vunpack.c.l.b16 %v7266
  %v8154 = vunpack.c.h.b16 %v7266
  %v8155 = vunpack.c.l.b16 %v7267
  %v8156 = vunpack.c.h.b16 %v7267
  %v8157 = vunpack.c.l.b16 %v7268
  %v8158 = vunpack.c.h.b16 %v7268
  %v8159 = vunpack.c.l.b16 %v7269
  %v8160 = vunpack.c.h.b16 %v7269
  %v8161 = vunpack.c.l.b16 %v7270
  %v8162 = vunpack.c.h.b16 %v7270
  %v8163 = vunpack.c.l.b16 %v7271
  %v8164 = vunpack.c.h.b16 %v7271
  %v8165 = vunpack.c.l.b16 %v7272
  %v8166 = vunpack.c.h.b16 %v7272
  %v8167 = vunpack.c.l.b16 %v7273
  %v8168 = vunpack.c.h.b16 %v7273
  %v8169 = vunpack.c.l.b16 %v7274
  %v8170 = vunpack.c.h.b16 %v7274
  %v8171 = vunpack.c.l.b16 %v7275
  %v8172 = vunpack.c.h.b16 %v7275
  %v8173 = vunpack.c.l.b16 %v7276
  %v8174 = vunpack.c.h.b16 %v7276
  %v8175 = vunpack.c.l.b16 %v7277
  %v8176 = vunpack.c.h.b16 %v7277
  %v8177 = vunpack.c.l.b16 %v7278
  %v8178 = vunpack.c.h.b16 %v7278
  %v8179 = vunpack.c.l.b16 %v7279
  %v8180 = vunpack.c.h.b16 %v7279
  %v8181 = vunpack.c.l.b16 %v7280
  %v8182 = vunpack.c.h.b16 %v7280
  %v8183 = vunpack.c.l.b16 %v7281
  %v8184 = vunpack.c.h.b16 %v7281
  %v8185 = vunpack.c.l.b16 %v7282
  %v8186 = vunpack.c.h.b16 %v7282
  %v8187 = vunpack.c.l.b16 %v7283
  %v8188 = vunpack.c.h.b16 %v7283
  %v8189 = vunpack.c.l.b16 %v7284
  %v8190 = vunpack.c.h.b16 %v7284
  %v8191 = vunpack.c.l.b16 %v7285
  %v8192 = vunpack.c.h.b16 %v7285
  %v8193 = vunpack.c.l.b16 %v7286
  %v8194 = vunpack.c.h.b16 %v7286
  %v8195 = vunpack.c.l.b16 %v7287
  %v8196 = vunpack.c.h.b16 %v7287
  %v8197 = vunpack.c.l.b16 %v7288
  %v8198 = vunpack.c.h.b16 %v7288
  %v8199 = vunpack.c.l.b16 %v7289
  %v8200 = vunpack.c.h.b16 %v7289
  %v8201 = vunpack.c.l.b16 %v7290
  %v8202 = vunpack.c.h.b16 %v7290
  %v8203 = vunpack.c.l.b16 %v7291
  %v8204 = vunpack.c.h.b16 %v7291
  %v8205 = vunpack.c.l.b16 %v7292
  %v8206 = vunpack.c.h.b16 %v7292
  %v8207 = vunpack.c.l.b16 %v7293
  %v8208 = vunpack.c.h.b16 %v7293
  %v8209 = vunpack.c.l.b16 %v7294
  %v8210 = vunpack.c.h.b16 %v7294
  %v8211 = vunpack.c.l.b16 %v7295
  %v8212 = vunpack.c.h.b16 %v7295
  %v8213 = vunpack.c.l.b16 %v7296
  %v8214 = vunpack.c.h.b16 %v7296
  %v8215 = vunpack.c.l.b16 %v7297
  %v8216 = vunpack.c.h.b16 %v7297
  %v8217 = vunpack.c.l.b16 %v7298
  %v8218 = vunpack.c.h.b16 %v7298
  %v8219 = vunpack.c.l.b16 %v7299
  %v8220 = vunpack.c.h.b16 %v7299
  %v8221 = vunpack.c.l.b16 %v7300
  %v8222 = vunpack.c.h.b16 %v7300
  %v8223 = vunpack.c.l.b16 %v7301
  %v8224 = vunpack.c.h.b16 %v7301
  %v8225 = vunpack.c.l.b16 %v7302
  %v8226 = vunpack.c.h.b16 %v7302
  %v8227 = vunpack.c.l.b16 %v7303
  %v8228 = vunpack.c.h.b16 %v7303
  %v8229 = vunpack.c.l.b16 %v7304
  %v8230 = vunpack.c.h.b16 %v7304
  %v8231 = vunpack.c.l.b16 %v7305
  %v8232 = vunpack.c.h.b16 %v7305
  %v8233 = vunpack.c.l.b16 %v7306
  %v8234 = vunpack.c.h.b16 %v7306
  %v8235 = vunpack.c.l.b16 %v7307
  %v8236 = vunpack.c.h.b16 %v7307
  %v8237 = vunpack.c.l.b16 %v7308
  %v8238 = vunpack.c.h.b16 %v7308
  %v8239 = vunpack.c.l.b16 %v7309
  %v8240 = vunpack.c.h.b16 %v7309
  %v8241 = vunpack.c.l.b16 %v7310
  %v8242 = vunpack.c.h.b16 %v7310
  %v8243 = vunpack.c.l.b16 %v7311
  %v8244 = vunpack.c.h.b16 %v7311
  %v8245 = vunpack.c.l.b16 %v7312
  %v8246 = vunpack.c.h.b16 %v7312
  %v8247 = vunpack.c.l.b16 %v7313
  %v8248 = vunpack.c.h.b16 %v7313
  %v8249 = vunpack.c.l.b16 %v7314
  %v8250 = vunpack.c.h.b16 %v7314
  %v8251 = vunpack.c.l.b16 %v7315
  %v8252 = vunpack.c.h.b16 %v7315
  %v8253 = vunpack.c.l.b16 %v7316
  %v8254 = vunpack.c.h.b16 %v7316
  %v8255 = vunpack.c.l.b16 %v7317
  %v8256 = vunpack.c.h.b16 %v7317
  %v8257 = vunpack.c.l.b16 %v7318
  %v8258 = vunpack.c.h.b16 %v7318
  %v8259 = vunpack.c.l.b16 %v7319
  %v8260 = vunpack.c.h.b16 %v7319
  %v8261 = vunpack.c.l.b16 %v7320
  %v8262 = vunpack.c.h.b16 %v7320
  %v8263 = vunpack.c.l.b16 %v7321
  %v8264 = vunpack.c.h.b16 %v7321
  %v8265 = vunpack.c.l.b16 %v7322
  %v8266 = vunpack.c.h.b16 %v7322
  %v8267 = vunpack.c.l.b16 %v7323
  %v8268 = vunpack.c.h.b16 %v7323
  %v8269 = vunpack.c.l.b16 %v7324
  %v8270 = vunpack.c.h.b16 %v7324
  %v8271 = vunpack.c.l.b16 %v7325
  %v8272 = vunpack.c.h.b16 %v7325
  %v8273 = vunpack.c.l.b16 %v7326
  %v8274 = vunpack.c.h.b16 %v7326
  %v8275 = vunpack.c.l.b16 %v7327
  %v8276 = vunpack.c.h.b16 %v7327
  %v8277 = vunpack.c.l.b16 %v7328
  %v8278 = vunpack.c.h.b16 %v7328
  %v8279 = vunpack.c.l.b16 %v7329
  %v8280 = vunpack.c.h.b16 %v7329
  %v8281 = vunpack.c.l.b16 %v7330
  %v8282 = vunpack.c.h.b16 %v7330
  %v8283 = vunpack.c.l.b16 %v7331
  %v8284 = vunpack.c.h.b16 %v7331
  %v8285 = vunpack.c.l.b16 %v7332
  %v8286 = vunpack.c.h.b16 %v7332
  %v8287 = vunpack.c.l.b16 %v7333
  %v8288 = vunpack.c.h.b16 %v7333
  %v8289 = vunpack.c.l.b16 %v7334
  %v8290 = vunpack.c.h.b16 %v7334
  %v8291 = vunpack.c.l.b16 %v7335
  %v8292 = vunpack.c.h.b16 %v7335
  %v8293 = vunpack.c.l.b16 %v7336
  %v8294 = vunpack.c.h.b16 %v7336
  %v8295 = vunpack.c.l.b16 %v7337
  %v8296 = vunpack.c.h.b16 %v7337
  %v8297 = vunpack.c.l.b16 %v7338
  %v8298 = vunpack.c.h.b16 %v7338
  %v8299 = vunpack.c.l.b16 %v7339
  %v8300 = vunpack.c.h.b16 %v7339
  %v8301 = vunpack.c.l.b16 %v7340
  %v8302 = vunpack.c.h.b16 %v7340
  %v8303 = vunpack.c.l.b16 %v7341
  %v8304 = vunpack.c.h.b16 %v7341
  %v8305 = vunpack.c.l.b16 %v7342
  %v8306 = vunpack.c.h.b16 %v7342
  %v8307 = vunpack.c.l.b16 %v7343
  %v8308 = vunpack.c.h.b16 %v7343
  %v8309 = vunpack.c.l.b16 %v7344
  %v8310 = vunpack.c.h.b16 %v7344
  %v8311 = vunpack.c.l.b16 %v7345
  %v8312 = vunpack.c.h.b16 %v7345
  %v8313 = vunpack.c.l.b16 %v7346
  %v8314 = vunpack.c.h.b16 %v7346
  %v8315 = vunpack.c.l.b16 %v7347
  %v8316 = vunpack.c.h.b16 %v7347
  %v8317 = vunpack.c.l.b16 %v7348
  %v8318 = vunpack.c.h.b16 %v7348
  %v8319 = vunpack.c.l.b16 %v7349
  %v8320 = vunpack.c.h.b16 %v7349
  %v8321 = vunpack.c.l.b16 %v7350
  %v8322 = vunpack.c.h.b16 %v7350
  %v8323 = vunpack.c.l.b16 %v7351
  %v8324 = vunpack.c.h.b16 %v7351
  %v8325 = vunpack.c.l.b16 %v7352
  %v8326 = vunpack.c.h.b16 %v7352
  %v8327 = vunpack.c.l.b16 %v7353
  %v8328 = vunpack.c.h.b16 %v7353
  %v8329 = vunpack.c.l.b16 %v7354
  %v8330 = vunpack.c.h.b16 %v7354
  %v8331 = vunpack.c.l.b16 %v7355
  %v8332 = vunpack.c.h.b16 %v7355
  %v8333 = vunpack.c.l.b16 %v7356
  %v8334 = vunpack.c.h.b16 %v7356
  %v8335 = vunpack.c.l.b16 %v7357
  %v8336 = vunpack.c.h.b16 %v7357
  %v8337 = vunpack.c.l.b16 %v7358
  %v8338 = vunpack.c.h.b16 %v7358
  %v8339 = vunpack.c.l.b16 %v7359
  %v8340 = vunpack.c.h.b16 %v7359
  %v8341 = vunpack.c.l.b16 %v7360
  %v8342 = vunpack.c.h.b16 %v7360
  %v8343 = vunpack.c.l.b16 %v7361
  %v8344 = vunpack.c.h.b16 %v7361
  %v8345 = vunpack.c.l.b16 %v7362
  %v8346 = vunpack.c.h.b16 %v7362
  %v8347 = vunpack.c.l.b16 %v7363
  %v8348 = vunpack.c.h.b16 %v7363
  %v8349 = vunpack.c.l.b16 %v7364
  %v8350 = vunpack.c.h.b16 %v7364
  %v8351 = vunpack.c.l.b16 %v7365
  %v8352 = vunpack.c.h.b16 %v7365
  %v8353 = vunpack.c.l.b16 %v7366
  %v8354 = vunpack.c.h.b16 %v7366
  %v8355 = vunpack.c.l.b16 %v7367
  %v8356 = vunpack.c.h.b16 %v7367
  %v8357 = vunpack.c.l.b16 %v7368
  %v8358 = vunpack.c.h.b16 %v7368
  %v8359 = vunpack.c.l.b16 %v7369
  %v8360 = vunpack.c.h.b16 %v7369
  %v8361 = vunpack.c.l.b16 %v7370
  %v8362 = vunpack.c.h.b16 %v7370
  %v8363 = vunpack.c.l.b16 %v7371
  %v8364 = vunpack.c.h.b16 %v7371
  %v8365 = vunpack.c.l.b16 %v7372
  %v8366 = vunpack.c.h.b16 %v7372
  %v8367 = vunpack.c.l.b16 %v7373
  %v8368 = vunpack.c.h.b16 %v7373
  %v8369 = vunpack.c.l.b16 %v7374
  %v8370 = vunpack.c.h.b16 %v7374
  %v8371 = vunpack.c.l.b16 %v7375
  %v8372 = vunpack.c.h.b16 %v7375
  %v8373 = vunpack.c.l.b16 %v7376
  %v8374 = vunpack.c.h.b16 %v7376
  %v8375 = vunpack.c.l.b16 %v7377
  %v8376 = vunpack.c.h.b16 %v7377
  %v8377 = vunpack.c.l.b16 %v7378
  %v8378 = vunpack.c.h.b16 %v7378
  %v8379 = vunpack.c.l.b16 %v7379
  %v8380 = vunpack.c.h.b16 %v7379
  %v8381 = vunpack.c.l.b16 %v7380
  %v8382 = vunpack.c.h.b16 %v7380
  %v8383 = vunpack.c.l.b16 %v7381
  %v8384 = vunpack.c.h.b16 %v7381
  %v8385 = vunpack.c.l.b16 %v7382
  %v8386 = vunpack.c.h.b16 %v7382
  %v8387 = vunpack.c.l.b16 %v7383
  %v8388 = vunpack.c.h.b16 %v7383
  %v8389 = vunpack.c.l.b16 %v7384
  %v8390 = vunpack.c.h.b16 %v7384
  %v8391 = vunpack.c.l.b16 %v7385
  %v8392 = vunpack.c.h.b16 %v7385
  %v8393 = vunpack.c.l.b16 %v7386
  %v8394 = vunpack.c.h.b16 %v7386
  %v8395 = vunpack.c.l.b16 %v7387
  %v8396 = vunpack.c.h.b16 %v7387
  %v8397 = vunpack.c.l.b16 %v7388
  %v8398 = vunpack.c.h.b16 %v7388
  %v8399 = vunpack.c.l.b16 %v7389
  %v8400 = vunpack.c.h.b16 %v7389
  %v8401 = vunpack.c.l.b16 %v7390
  %v8402 = vunpack.c.h.b16 %v7390
  %v8403 = vunpack.c.l.b16 %v7391
  %v8404 = vunpack.c.h.b16 %v7391
  %v8405 = vunpack.c.l.b16 %v7392
  %v8406 = vunpack.c.h.b16 %v7392
  %v8407 = vunpack.c.l.b16 %v7393
  %v8408 = vunpack.c.h.b16 %v7393
  %v8409 = vunpack.c.l.b16 %v7394
  %v8410 = vunpack.c.h.b16 %v7394
  %v8411 = vunpack.c.l.b16 %v7395
  %v8412 = vunpack.c.h.b16 %v7395
  %v8413 = vunpack.c.l.b16 %v7396
  %v8414 = vunpack.c.h.b16 %v7396
  %v8415 = vunpack.c.l.b16 %v7397
  %v8416 = vunpack.c.h.b16 %v7397
  %v8417 = vunpack.c.l.b16 %v7398
  %v8418 = vunpack.c.h.b16 %v7398
  %v8419 = vunpack.c.l.b16 %v7399
  %v8420 = vunpack.c.h.b16 %v7399
  %v8421 = vunpack.c.l.b16 %v7400
  %v8422 = vunpack.c.h.b16 %v7400
  %v8423 = vunpack.c.l.b16 %v7401
  %v8424 = vunpack.c.h.b16 %v7401
  %v8425 = vunpack.c.l.b16 %v7402
  %v8426 = vunpack.c.h.b16 %v7402
  %v8427 = vunpack.c.l.b16 %v7403
  %v8428 = vunpack.c.h.b16 %v7403
  %v8429 = vunpack.c.l.b16 %v7404
  %v8430 = vunpack.c.h.b16 %v7404
  %v8431 = vunpack.c.l.b16 %v7405
  %v8432 = vunpack.c.h.b16 %v7405
  %v8433 = vunpack.c.l.b16 %v7406
  %v8434 = vunpack.c.h.b16 %v7406
  %v8435 = vunpack.c.l.b16 %v7407
  %v8436 = vunpack.c.h.b16 %v7407
  %v8437 = vunpack.c.l.b16 %v7408
  %v8438 = vunpack.c.h.b16 %v7408
  %v8439 = vunpack.c.l.b16 %v7409
  %v8440 = vunpack.c.h.b16 %v7409
  %v8441 = vunpack.c.l.b16 %v7410
  %v8442 = vunpack.c.h.b16 %v7410
  %v8443 = vunpack.c.l.b16 %v7411
  %v8444 = vunpack.c.h.b16 %v7411
  %v8445 = vunpack.c.l.b16 %v7412
  %v8446 = vunpack.c.h.b16 %v7412
  %v8447 = vunpack.c.l.b16 %v7413
  %v8448 = vunpack.c.h.b16 %v7413
  %v8449 = vunpack.c.l.b16 %v7414
  %v8450 = vunpack.c.h.b16 %v7414
  %v8451 = vunpack.c.l.b16 %v7415
  %v8452 = vunpack.c.h.b16 %v7415
  %v8453 = vunpack.c.l.b16 %v7416
  %v8454 = vunpack.c.h.b16 %v7416
  %v8455 = vunpack.c.l.b16 %v7417
  %v8456 = vunpack.c.h.b16 %v7417
  %v8457 = vunpack.c.l.b16 %v7418
  %v8458 = vunpack.c.h.b16 %v7418
  %v8459 = vunpack.c.l.b16 %v7419
  %v8460 = vunpack.c.h.b16 %v7419
  %v8461 = vunpack.c.l.b16 %v7420
  %v8462 = vunpack.c.h.b16 %v7420
  %v8463 = vunpack.c.l.b16 %v7421
  %v8464 = vunpack.c.h.b16 %v7421
  %v8465 = vunpack.c.l.b16 %v7422
  %v8466 = vunpack.c.h.b16 %v7422
  %v8467 = vunpack.c.l.b16 %v7423
  %v8468 = vunpack.c.h.b16 %v7423
  %v8469 = vunpack.c.l.b16 %v7424
  %v8470 = vunpack.c.h.b16 %v7424
  %v8471 = vunpack.c.l.b16 %v7425
  %v8472 = vunpack.c.h.b16 %v7425
  %v8473 = vunpack.c.l.b16 %v7426
  %v8474 = vunpack.c.h.b16 %v7426
  %v8475 = vunpack.c.l.b16 %v7427
  %v8476 = vunpack.c.h.b16 %v7427
  %v8477 = vunpack.c.l.b16 %v7428
  %v8478 = vunpack.c.h.b16 %v7428
  %v8479 = vunpack.c.l.b16 %v7429
  %v8480 = vunpack.c.h.b16 %v7429
  %v8481 = vunpack.c.l.b16 %v7430
  %v8482 = vunpack.c.h.b16 %v7430
  %v8483 = vunpack.c.l.b16 %v7431
  %v8484 = vunpack.c.h.b16 %v7431
  %v8485 = vunpack.c.l.b16 %v7432
  %v8486 = vunpack.c.h.b16 %v7432
  %v8487 = vunpack.c.l.b16 %v7433
  %v8488 = vunpack.c.h.b16 %v7433
  %v8489 = vunpack.c.l.b16 %v7434
  %v8490 = vunpack.c.h.b16 %v7434
  %v8491 = vunpack.c.l.b16 %v7435
  %v8492 = vunpack.c.h.b16 %v7435
  %v8493 = vunpack.c.l.b16 %v7436
  %v8494 = vunpack.c.h.b16 %v7436
  %v8495 = vunpack.c.l.b16 %v7437
  %v8496 = vunpack.c.h.b16 %v7437
  %v8497 = vunpack.c.l.b16 %v7438
  %v8498 = vunpack.c.h.b16 %v7438
  %v8499 = vunpack.c.l.b16 %v7439
  %v8500 = vunpack.c.h.b16 %v7439
  %v8501 = vunpack.c.l.b16 %v7440
  %v8502 = vunpack.c.h.b16 %v7440
  %v8503 = vunpack.c.l.b16 %v7441
  %v8504 = vunpack.c.h.b16 %v7441
  %v8505 = vunpack.c.l.b16 %v7442
  %v8506 = vunpack.c.h.b16 %v7442
  %v8507 = vunpack.c.l.b16 %v7443
  %v8508 = vunpack.c.h.b16 %v7443
  %v8509 = vunpack.c.l.b16 %v7444
  %v8510 = vunpack.c.h.b16 %v7444
  %v8511 = vunpack.c.l.b16 %v7445
  %v8512 = vunpack.c.h.b16 %v7445
  %v8513 = vunpack.c.l.b16 %v7446
  %v8514 = vunpack.c.h.b16 %v7446
  %v8515 = vunpack.c.l.b16 %v7447
  %v8516 = vunpack.c.h.b16 %v7447
  %v8517 = vunpack.c.l.b16 %v7448
  %v8518 = vunpack.c.h.b16 %v7448
  %v8519 = vunpack.c.l.b16 %v7449
  %v8520 = vunpack.c.h.b16 %v7449
  %v8521 = vunpack.c.l.b16 %v7450
  %v8522 = vunpack.c.h.b16 %v7450
  %v8523 = vunpack.c.l.b16 %v7451
  %v8524 = vunpack.c.h.b16 %v7451
  %v8525 = vunpack.c.l.b16 %v7452
  %v8526 = vunpack.c.h.b16 %v7452
  %v8527 = vunpack.c.l.b16 %v7453
  %v8528 = vunpack.c.h.b16 %v7453
  %v8529 = vunpack.c.l.b16 %v7454
  %v8530 = vunpack.c.h.b16 %v7454
  %v8531 = vunpack.c.l.b16 %v7455
  %v8532 = vunpack.c.h.b16 %v7455
  %v8533 = vunpack.c.l.b16 %v7456
  %v8534 = vunpack.c.h.b16 %v7456
  %v8535 = vunpack.c.l.b16 %v7457
  %v8536 = vunpack.c.h.b16 %v7457
  %v8537 = vunpack.c.l.b16 %v7458
  %v8538 = vunpack.c.h.b16 %v7458
  %v8539 = vunpack.c.l.b16 %v7459
  %v8540 = vunpack.c.h.b16 %v7459
  %v8541 = vunpack.c.l.b16 %v7460
  %v8542 = vunpack.c.h.b16 %v7460
  %v8543 = vunpack.c.l.b16 %v7461
  %v8544 = vunpack.c.h.b16 %v7461
  %v8545 = vunpack.c.l.b16 %v7462
  %v8546 = vunpack.c.h.b16 %v7462
  %v8547 = vunpack.c.l.b16 %v7463
  %v8548 = vunpack.c.h.b16 %v7463
  %v8549 = vunpack.c.l.b16 %v7464
  %v8550 = vunpack.c.h.b16 %v7464
  %v8551 = vunpack.c.l.b16 %v7465
  %v8552 = vunpack.c.h.b16 %v7465
  %v8553 = vunpack.c.l.b16 %v7466
  %v8554 = vunpack.c.h.b16 %v7466
  %v8555 = vunpack.c.l.b16 %v7467
  %v8556 = vunpack.c.h.b16 %v7467
  %v8557 = vunpack.c.l.b16 %v7468
  %v8558 = vunpack.c.h.b16 %v7468
  %v8559 = vunpack.c.l.b16 %v7469
  %v8560 = vunpack.c.h.b16 %v7469
  %v8561 = vunpack.c.l.b16 %v7470
  %v8562 = vunpack.c.h.b16 %v7470
  %v8563 = vunpack.c.l.b16 %v7471
  %v8564 = vunpack.c.h.b16 %v7471
  %v8565 = vunpack.c.l.b16 %v7472
  %v8566 = vunpack.c.h.b16 %v7472
  %v8567 = vunpack.c.l.b16 %v7473
  %v8568 = vunpack.c.h.b16 %v7473
  %v8569 = vunpack.c.l.b16 %v7474
  %v8570 = vunpack.c.h.b16 %v7474
  %v8571 = vunpack.c.l.b16 %v7475
  %v8572 = vunpack.c.h.b16 %v7475
  %v8573 = vunpack.c.l.b16 %v7476
  %v8574 = vunpack.c.h.b16 %v7476
  %v8575 = vunpack.c.l.b16 %v7477
  %v8576 = vunpack.c.h.b16 %v7477
  %v8577 = vunpack.c.l.b16 %v7478
  %v8578 = vunpack.c.h.b16 %v7478
  %v8579 = vunpack.c.l.b16 %v7479
  %v8580 = vunpack.c.h.b16 %v7479
  %v8581 = vunpack.c.l.b16 %v7480
  %v8582 = vunpack.c.h.b16 %v7480
  %v8583 = vunpack.c.l.b16 %v7481
  %v8584 = vunpack.c.h.b16 %v7481
  %v8585 = vunpack.c.l.b16 %v7482
  %v8586 = vunpack.c.h.b16 %v7482
  %v8587 = vunpack.c.l.b16 %v7483
  %v8588 = vunpack.c.h.b16 %v7483
  %v8589 = vunpack.c.l.b16 %v7484
  %v8590 = vunpack.c.h.b16 %v7484
  %v8591 = vunpack.c.l.b16 %v7485
  %v8592 = vunpack.c.h.b16 %v7485
  %v8593 = vunpack.c.l.b16 %v7486
  %v8594 = vunpack.c.h.b16 %v7486
  %v8595 = vunpack.c.l.b16 %v7487
  %v8596 = vunpack.c.h.b16 %v7487
  %v8597 = vunpack.c.l.b16 %v7488
  %v8598 = vunpack.c.h.b16 %v7488
  %v8599 = vunpack.c.l.b16 %v7489
  %v8600 = vunpack.c.h.b16 %v7489
  %v8601 = vunpack.c.l.b16 %v7490
  %v8602 = vunpack.c.h.b16 %v7490
  %v8603 = vunpack.c.l.b16 %v7491
  %v8604 = vunpack.c.h.b16 %v7491
  %v8605 = vunpack.c.l.b16 %v7492
  %v8606 = vunpack.c.h.b16 %v7492
  %v8607 = vunpack.c.l.b16 %v7493
  %v8608 = vunpack.c.h.b16 %v7493
  %v8609 = vunpack.c.l.b16 %v7494
  %v8610 = vunpack.c.h.b16 %v7494
  %v8611 = vunpack.c.l.b16 %v7495
  %v8612 = vunpack.c.h.b16 %v7495
  %v8613 = vunpack.c.l.b16 %v7496
  %v8614 = vunpack.c.h.b16 %v7496
  %v8615 = vunpack.c.l.b16 %v7497
  %v8616 = vunpack.c.h.b16 %v7497
  %v8617 = vunpack.c.l.b16 %v7498
  %v8618 = vunpack.c.h.b16 %v7498
  %v8619 = vunpack.c.l.b16 %v7499
  %v8620 = vunpack.c.h.b16 %v7499
  %v8621 = vunpack.c.l.b16 %v7500
  %v8622 = vunpack.c.h.b16 %v7500
  %v8623 = vunpack.c.l.b16 %v7501
  %v8624 = vunpack.c.h.b16 %v7501
  %v8625 = vunpack.c.l.b16 %v7502
  %v8626 = vunpack.c.h.b16 %v7502
  %v8627 = vunpack.c.l.b16 %v7503
  %v8628 = vunpack.c.h.b16 %v7503
  %v8629 = vunpack.c.l.b16 %v7504
  %v8630 = vunpack.c.h.b16 %v7504
  %v8631 = vunpack.c.l.b16 %v7505
  %v8632 = vunpack.c.h.b16 %v7505
  %v8633 = vunpack.c.l.b16 %v7506
  %v8634 = vunpack.c.h.b16 %v7506
  %v8635 = vunpack.c.l.b16 %v7507
  %v8636 = vunpack.c.h.b16 %v7507
  %v8637 = vunpack.c.l.b16 %v7508
  %v8638 = vunpack.c.h.b16 %v7508
  %v8639 = vunpack.c.l.b16 %v7509
  %v8640 = vunpack.c.h.b16 %v7509
  %v8641 = vunpack.c.l.b16 %v7510
  %v8642 = vunpack.c.h.b16 %v7510
  %v8643 = vunpack.c.l.b16 %v7511
  %v8644 = vunpack.c.h.b16 %v7511
  %v8645 = vunpack.c.l.b16 %v7512
  %v8646 = vunpack.c.h.b16 %v7512
  %v8647 = vunpack.c.l.b16 %v7513
  %v8648 = vunpack.c.h.b16 %v7513
  %v8649 = vunpack.c.l.b16 %v7514
  %v8650 = vunpack.c.h.b16 %v7514
  %v8651 = vunpack.c.l.b16 %v7515
  %v8652 = vunpack.c.h.b16 %v7515
  %v8653 = vunpack.c.l.b16 %v7516
  %v8654 = vunpack.c.h.b16 %v7516
  %v8655 = vunpack.c.l.b16 %v7517
  %v8656 = vunpack.c.h.b16 %v7517
  %v8657 = vunpack.c.l.b16 %v7518
  %v8658 = vunpack.c.h.b16 %v7518
  %v8659 = vunpack.c.l.b16 %v7519
  %v8660 = vunpack.c.h.b16 %v7519
  %v8661 = vunpack.c.l.b16 %v7520
  %v8662 = vunpack.c.h.b16 %v7520
  %v8663 = vunpack.c.l.b16 %v7521
  %v8664 = vunpack.c.h.b16 %v7521
  %v8665 = vunpack.c.l.b16 %v7522
  %v8666 = vunpack.c.h.b16 %v7522
  %v8667 = vunpack.c.l.b16 %v7523
  %v8668 = vunpack.c.h.b16 %v7523
  %v8669 = vunpack.c.l.b16 %v7524
  %v8670 = vunpack.c.h.b16 %v7524
  %v8671 = vunpack.c.l.b16 %v7525
  %v8672 = vunpack.c.h.b16 %v7525
  %v8673 = vunpack.c.l.b16 %v7526
  %v8674 = vunpack.c.h.b16 %v7526
  %v8675 = vunpack.c.l.b16 %v7527
  %v8676 = vunpack.c.h.b16 %v7527
  %v8677 = vunpack.c.l.b16 %v7528
  %v8678 = vunpack.c.h.b16 %v7528
  %v8679 = vunpack.c.l.b16 %v7529
  %v8680 = vunpack.c.h.b16 %v7529
  %v8681 = vunpack.c.l.b16 %v7530
  %v8682 = vunpack.c.h.b16 %v7530
  %v8683 = vunpack.c.l.b16 %v7531
  %v8684 = vunpack.c.h.b16 %v7531
  %v8685 = vunpack.c.l.b16 %v7532
  %v8686 = vunpack.c.h.b16 %v7532
  %v8687 = vunpack.c.l.b16 %v7533
  %v8688 = vunpack.c.h.b16 %v7533
  %v8689 = vunpack.c.l.b16 %v7534
  %v8690 = vunpack.c.h.b16 %v7534
  %v8691 = vunpack.c.l.b16 %v7535
  %v8692 = vunpack.c.h.b16 %v7535
  %v8693 = vunpack.c.l.b16 %v7536
  %v8694 = vunpack.c.h.b16 %v7536
  %v8695 = vunpack.c.l.b16 %v7537
  %v8696 = vunpack.c.h.b16 %v7537
  %v8697 = vunpack.c.l.b16 %v7538
  %v8698 = vunpack.c.h.b16 %v7538
  %v8699 = vunpack.c.l.b16 %v7539
  %v8700 = vunpack.c.h.b16 %v7539
  %v8701 = vunpack.c.l.b16 %v7540
  %v8702 = vunpack.c.h.b16 %v7540
  %v8703 = vunpack.c.l.b16 %v7541
  %v8704 = vunpack.c.h.b16 %v7541
  %v8705 = vunpack.c.l.b16 %v7542
  %v8706 = vunpack.c.h.b16 %v7542
  %v8707 = vunpack.c.l.b16 %v7543
  %v8708 = vunpack.c.h.b16 %v7543
  %v8709 = vunpack.c.l.b16 %v7544
  %v8710 = vunpack.c.h.b16 %v7544
  %v8711 = vunpack.c.l.b16 %v7545
  %v8712 = vunpack.c.h.b16 %v7545
  %v8713 = vunpack.c.l.b16 %v7546
  %v8714 = vunpack.c.h.b16 %v7546
  %v8715 = vunpack.c.l.b16 %v7547
  %v8716 = vunpack.c.h.b16 %v7547
  %v8717 = vunpack.c.l.b16 %v7548
  %v8718 = vunpack.c.h.b16 %v7548
  %v8719 = vunpack.c.l.b16 %v7549
  %v8720 = vunpack.c.h.b16 %v7549
  %v8721 = vunpack.c.l.b16 %v7550
  %v8722 = vunpack.c.h.b16 %v7550
  %v8723 = vunpack.c.l.b16 %v7551
  %v8724 = vunpack.c.h.b16 %v7551
  %v8725 = vunpack.c.l.b16 %v7552
  %v8726 = vunpack.c.h.b16 %v7552
  %v8727 = vunpack.c.l.b16 %v7553
  %v8728 = vunpack.c.h.b16 %v7553
  %v8729 = vunpack.c.l.b16 %v7554
  %v8730 = vunpack.c.h.b16 %v7554
  %v8731 = vunpack.c.l.b16 %v7555
  %v8732 = vunpack.c.h.b16 %v7555
  %v8733 = vunpack.c.l.b16 %v7556
  %v8734 = vunpack.c.h.b16 %v7556
  %v8735 = vunpack.c.l.b16 %v7557
  %v8736 = vunpack.c.h.b16 %v7557
  %v8737 = vunpack.c.l.b16 %v7558
  %v8738 = vunpack.c.h.b16 %v7558
  %v8739 = vunpack.c.l.b16 %v7559
  %v8740 = vunpack.c.h.b16 %v7559
  %v8741 = vunpack.c.l.b16 %v7560
  %v8742 = vunpack.c.h.b16 %v7560
  %v8743 = vunpack.c.l.b16 %v7561
  %v8744 = vunpack.c.h.b16 %v7561
  %v8745 = vunpack.c.l.b16 %v7562
  %v8746 = vunpack.c.h.b16 %v7562
  %v8747 = vunpack.c.l.b16 %v7563
  %v8748 = vunpack.c.h.b16 %v7563
  %v8749 = vunpack.c.l.b16 %v7564
  %v8750 = vunpack.c.h.b16 %v7564
  %v8751 = vunpack.c.l.b16 %v7565
  %v8752 = vunpack.c.h.b16 %v7565
  %v8753 = vunpack.c.l.b16 %v7566
  %v8754 = vunpack.c.h.b16 %v7566
  %v8755 = vunpack.c.l.b16 %v7567
  %v8756 = vunpack.c.h.b16 %v7567
  %v8757 = vunpack.c.l.b16 %v7568
  %v8758 = vunpack.c.h.b16 %v7568
  %v8759 = vunpack.c.l.b16 %v7569
  %v8760 = vunpack.c.h.b16 %v7569
  %v8761 = vunpack.c.l.b16 %v7570
  %v8762 = vunpack.c.h.b16 %v7570
  %v8763 = vunpack.c.l.b16 %v7571
  %v8764 = vunpack.c.h.b16 %v7571
  %v8765 = vunpack.c.l.b16 %v7572
  %v8766 = vunpack.c.h.b16 %v7572
  %v8767 = vunpack.c.l.b16 %v7573
  %v8768 = vunpack.c.h.b16 %v7573
  %v8769 = vunpack.c.l.b16 %v7574
  %v8770 = vunpack.c.h.b16 %v7574
  %v8771 = vunpack.c.l.b16 %v7575
  %v8772 = vunpack.c.h.b16 %v7575
  %v8773 = vunpack.c.l.b16 %v7576
  %v8774 = vunpack.c.h.b16 %v7576
  %v8775 = vunpack.c.l.b16 %v7577
  %v8776 = vunpack.c.h.b16 %v7577
  %v8777 = vunpack.c.l.b16 %v7578
  %v8778 = vunpack.c.h.b16 %v7578
  %v8779 = vunpack.c.l.b16 %v7579
  %v8780 = vunpack.c.h.b16 %v7579
  %v8781 = vunpack.c.l.b16 %v7580
  %v8782 = vunpack.c.h.b16 %v7580
  %v8783 = vunpack.c.l.b16 %v7581
  %v8784 = vunpack.c.h.b16 %v7581
  %v8785 = vunpack.c.l.b16 %v7582
  %v8786 = vunpack.c.h.b16 %v7582
  %v8787 = vunpack.c.l.b16 %v7583
  %v8788 = vunpack.c.h.b16 %v7583
  %v8789 = vunpack.c.l.b16 %v7584
  %v8790 = vunpack.c.h.b16 %v7584
  %v8791 = vunpack.c.l.b16 %v7585
  %v8792 = vunpack.c.h.b16 %v7585
  %v8793 = vunpack.c.l.b16 %v7586
  %v8794 = vunpack.c.h.b16 %v7586
  %v8795 = vunpack.c.l.b16 %v7587
  %v8796 = vunpack.c.h.b16 %v7587
  %v8797 = vunpack.c.l.b16 %v7588
  %v8798 = vunpack.c.h.b16 %v7588
  %v8799 = vunpack.c.l.b16 %v7589
  %v8800 = vunpack.c.h.b16 %v7589
  %v8801 = vunpack.c.l.b16 %v7590
  %v8802 = vunpack.c.h.b16 %v7590
  %v8803 = vunpack.c.l.b16 %v7591
  %v8804 = vunpack.c.h.b16 %v7591
  %v8805 = vunpack.c.l.b16 %v7592
  %v8806 = vunpack.c.h.b16 %v7592
  %v8807 = vunpack.c.l.b16 %v7593
  %v8808 = vunpack.c.h.b16 %v7593
  %v8809 = vunpack.c.l.b16 %v7594
  %v8810 = vunpack.c.h.b16 %v7594
  %v8811 = vunpack.c.l.b16 %v7595
  %v8812 = vunpack.c.h.b16 %v7595
  %v8813 = vunpack.c.l.b16 %v7596
  %v8814 = vunpack.c.h.b16 %v7596
  %v8815 = vunpack.c.l.b16 %v7597
  %v8816 = vunpack.c.h.b16 %v7597
  %v8817 = vunpack.c.l.b16 %v7598
  %v8818 = vunpack.c.h.b16 %v7598
  %v8819 = vunpack.c.l.b16 %v7599
  %v8820 = vunpack.c.h.b16 %v7599
  %v8821 = vunpack.c.l.b16 %v7600
  %v8822 = vunpack.c.h.b16 %v7600
  %v8823 = vunpack.c.l.b16 %v7601
  %v8824 = vunpack.c.h.b16 %v7601
  %v8825 = vunpack.c.l.b16 %v7602
  %v8826 = vunpack.c.h.b16 %v7602
  %v8827 = vunpack.c.l.b16 %v7603
  %v8828 = vunpack.c.h.b16 %v7603
  %v8829 = vunpack.c.l.b16 %v7604
  %v8830 = vunpack.c.h.b16 %v7604
  %v8831 = vunpack.c.l.b16 %v7605
  %v8832 = vunpack.c.h.b16 %v7605
  %v8833 = vunpack.c.l.b16 %v7606
  %v8834 = vunpack.c.h.b16 %v7606
  %v8835 = vunpack.c.l.b16 %v7607
  %v8836 = vunpack.c.h.b16 %v7607
  %v8837 = vunpack.c.l.b16 %v7608
  %v8838 = vunpack.c.h.b16 %v7608
  %v8839 = vunpack.c.l.b16 %v7609
  %v8840 = vunpack.c.h.b16 %v7609
  %v8841 = vunpack.c.l.b16 %v7610
  %v8842 = vunpack.c.h.b16 %v7610
  %v8843 = vunpack.c.l.b16 %v7611
  %v8844 = vunpack.c.h.b16 %v7611
  %v8845 = vunpack.c.l.b16 %v7612
  %v8846 = vunpack.c.h.b16 %v7612
  %v8847 = vunpack.c.l.b16 %v7613
  %v8848 = vunpack.c.h.b16 %v7613
  %v8849 = vunpack.c.l.b16 %v7614
  %v8850 = vunpack.c.h.b16 %v7614
  %v8851 = vunpack.c.l.b16 %v7615
  %v8852 = vunpack.c.h.b16 %v7615
  %v8853 = vunpack.c.l.b16 %v7616
  %v8854 = vunpack.c.h.b16 %v7616
  %v8855 = vunpack.c.l.b16 %v7617
  %v8856 = vunpack.c.h.b16 %v7617
  %v8857 = vunpack.c.l.b16 %v7618
  %v8858 = vunpack.c.h.b16 %v7618
  %v8859 = vunpack.c.l.b16 %v7619
  %v8860 = vunpack.c.h.b16 %v7619
  %v8861 = vunpack.c.l.b16 %v7620
  %v8862 = vunpack.c.h.b16 %v7620
  %v8863 = vunpack.c.l.b16 %v7621
  %v8864 = vunpack.c.h.b16 %v7621
  %v8865 = vunpack.c.l.b16 %v7622
  %v8866 = vunpack.c.h.b16 %v7622
  %v8867 = vunpack.c.l.b16 %v7623
  %v8868 = vunpack.c.h.b16 %v7623
  %v8869 = vunpack.c.l.b16 %v7624
  %v8870 = vunpack.c.h.b16 %v7624
  %v8871 = vunpack.c.l.b16 %v7625
  %v8872 = vunpack.c.h.b16 %v7625
  %v8873 = vunpack.c.l.b16 %v7626
  %v8874 = vunpack.c.h.b16 %v7626
  %v8875 = vunpack.c.l.b16 %v7627
  %v8876 = vunpack.c.h.b16 %v7627
  %v8877 = vunpack.c.l.b16 %v7628
  %v8878 = vunpack.c.h.b16 %v7628
  %v8879 = vunpack.c.l.b16 %v7629
  %v8880 = vunpack.c.h.b16 %v7629
  %v8881 = vunpack.c.l.b16 %v7630
  %v8882 = vunpack.c.h.b16 %v7630
  %v8883 = vunpack.c.l.b16 %v7631
  %v8884 = vunpack.c.h.b16 %v7631
  %v8885 = vunpack.c.l.b16 %v7632
  %v8886 = vunpack.c.h.b16 %v7632
  %v8887 = vunpack.c.l.b16 %v7633
  %v8888 = vunpack.c.h.b16 %v7633
  %v8889 = vunpack.c.l.b16 %v7634
  %v8890 = vunpack.c.h.b16 %v7634
  %v8891 = vunpack.c.l.b16 %v7635
  %v8892 = vunpack.c.h.b16 %v7635
  %v8893 = vunpack.c.l.b16 %v7636
  %v8894 = vunpack.c.h.b16 %v7636
  %v8895 = vunpack.c.l.b16 %v7637
  %v8896 = vunpack.c.h.b16 %v7637
  %v8897 = vunpack.c.l.b16 %v7638
  %v8898 = vunpack.c.h.b16 %v7638
  %v8899 = vunpack.c.l.b16 %v7639
  %v8900 = vunpack.c.h.b16 %v7639
  %v8901 = vunpack.c.l.b16 %v7640
  %v8902 = vunpack.c.h.b16 %v7640
  %v8903 = vunpack.c.l.b16 %v7641
  %v8904 = vunpack.c.h.b16 %v7641
  %v8905 = vunpack.c.l.b16 %v7642
  %v8906 = vunpack.c.h.b16 %v7642
  %v8907 = vunpack.c.l.b16 %v7643
  %v8908 = vunpack.c.h.b16 %v7643
  %v8909 = vunpack.c.l.b16 %v7644
  %v8910 = vunpack.c.h.b16 %v7644
  %v8911 = vunpack.c.l.b16 %v7645
  %v8912 = vunpack.c.h.b16 %v7645
  %v8913 = vunpack.c.l.b16 %v7646
  %v8914 = vunpack.c.h.b16 %v7646
  %v8915 = vunpack.c.l.b16 %v7647
  %v8916 = vunpack.c.h.b16 %v7647
  %v8917 = vunpack.c.l.b16 %v7648
  %v8918 = vunpack.c.h.b16 %v7648
  %v8919 = vpack.c.b16 %v8155, %v8151
  %v8920 = vpack.c.b16 %v8156, %v8152
  %v8921 = vpack.c.b16 %v8157, %v8153
  %v8922 = vpack.c.b16 %v8158, %v8154
  %v8923 = vpack.c.b16 %v8163, %v8159
  %v8924 = vpack.c.b16 %v8164, %v8160
  %v8925 = vpack.c.b16 %v8165, %v8161
  %v8926 = vpack.c.b16 %v8166, %v8162
  %v8927 = vpack.c.b16 %v8171, %v8167
  %v8928 = vpack.c.b16 %v8172, %v8168
  %v8929 = vpack.c.b16 %v8173, %v8169
  %v8930 = vpack.c.b16 %v8174, %v8170
  %v8931 = vpack.c.b16 %v8179, %v8175
  %v8932 = vpack.c.b16 %v8180, %v8176
  %v8933 = vpack.c.b16 %v8181, %v8177
  %v8934 = vpack.c.b16 %v8182, %v8178
  %v8935 = vpack.c.b16 %v8187, %v8183
  %v8936 = vpack.c.b16 %v8188, %v8184
  %v8937 = vpack.c.b16 %v8189, %v8185
  %v8938 = vpack.c.b16 %v8190, %v8186
  %v8939 = vpack.c.b16 %v8195, %v8191
  %v8940 = vpack.c.b16 %v8196, %v8192
  %v8941 = vpack.c.b16 %v8197, %v8193
  %v8942 = vpack.c.b16 %v8198, %v8194
  %v8943 = vpack.c.b16 %v8203, %v8199
  %v8944 = vpack.c.b16 %v8204, %v8200
  %v8945 = vpack.c.b16 %v8205, %v8201
  %v8946 = vpack.c.b16 %v8206, %v8202
  %v8947 = vpack.c.b16 %v8211, %v8207
  %v8948 = vpack.c.b16 %v8212, %v8208
  %v8949 = vpack.c.b16 %v8213, %v8209
  %v8950 = vpack.c.b16 %v8214, %v8210
  %v8951 = vpack.c.b16 %v8219, %v8215
  %v8952 = vpack.c.b16 %v8220, %v8216
  %v8953 = vpack.c.b16 %v8221, %v8217
  %v8954 = vpack.c.b16 %v8222, %v8218
  %v8955 = vpack.c.b16 %v8227, %v8223
  %v8956 = vpack.c.b16 %v8228, %v8224
  %v8957 = vpack.c.b16 %v8229, %v8225
  %v8958 = vpack.c.b16 %v8230, %v8226
  %v8959 = vpack.c.b16 %v8235, %v8231
  %v8960 = vpack.c.b16 %v8236, %v8232
  %v8961 = vpack.c.b16 %v8237, %v8233
  %v8962 = vpack.c.b16 %v8238, %v8234
  %v8963 = vpack.c.b16 %v8243, %v8239
  %v8964 = vpack.c.b16 %v8244, %v8240
  %v8965 = vpack.c.b16 %v8245, %v8241
  %v8966 = vpack.c.b16 %v8246, %v8242
  %v8967 = vpack.c.b16 %v8251, %v8247
  %v8968 = vpack.c.b16 %v8252, %v8248
  %v8969 = vpack.c.b16 %v8253, %v8249
  %v8970 = vpack.c.b16 %v8254, %v8250
  %v8971 = vpack.c.b16 %v8259, %v8255
  %v8972 = vpack.c.b16 %v8260, %v8256
  %v8973 = vpack.c.b16 %v8261, %v8257
  %v8974 = vpack.c.b16 %v8262, %v8258
  %v8975 = vpack.c.b16 %v8267, %v8263
  %v8976 = vpack.c.b16 %v8268, %v8264
  %v8977 = vpack.c.b16 %v8269, %v8265
  %v8978 = vpack.c.b16 %v8270, %v8266
  %v8979 = vpack.c.b16 %v8275, %v8271
  %v8980 = vpack.c.b16 %v8276, %v8272
  %v8981 = vpack.c.b16 %v8277, %v8273
  %v8982 = vpack.c.b16 %v8278, %v8274
  %v8983 = vpack.c.b16 %v8283, %v8279
  %v8984 = vpack.c.b16 %v8284, %v8280
  %v8985 = vpack.c.b16 %v8285, %v8281
  %v8986 = vpack.c.b16 %v8286, %v8282
  %v8987 = vpack.c.b16 %v8291, %v8287
  %v8988 = vpack.c.b16 %v8292, %v8288
  %v8989 = vpack.c.b16 %v8293, %v8289
  %v8990 = vpack.c.b16 %v8294, %v8290
  %v8991 = vpack.c.b16 %v8299, %v8295
  %v8992 = vpack.c.b16 %v8300, %v8296
  %v8993 = vpack.c.b16 %v8301, %v8297
  %v8994 = vpack.c.b16 %v8302, %v8298
  %v8995 = vpack.c.b16 %v8307, %v8303
  %v8996 = vpack.c.b16 %v8308, %v8304
  %v8997 = vpack.c.b16 %v8309, %v8305
  %v8998 = vpack.c.b16 %v8310, %v8306
  %v8999 = vpack.c.b16 %v8315, %v8311
  %v9000 = vpack.c.b16 %v8316, %v8312
  %v9001 = vpack.c.b16 %v8317, %v8313
  %v9002 = vpack.c.b16 %v8318, %v8314
  %v9003 = vpack.c.b16 %v8323, %v8319
  %v9004 = vpack.c.b16 %v8324, %v8320
  %v9005 = vpack.c.b16 %v8325, %v8321
  %v9006 = vpack.c.b16 %v8326, %v8322
  %v9007 = vpack.c.b16 %v8331, %v8327
  %v9008 = vpack.c.b16 %v8332, %v8328
  %v9009 = vpack.c.b16 %v8333, %v8329
  %v9010 = vpack.c.b16 %v8334, %v8330
  %v9011 = vpack.c.b16 %v8339, %v8335
  %v9012 = vpack.c.b16 %v8340, %v8336
  %v9013 = vpack.c.b16 %v8341, %v8337
  %v9014 = vpack.c.b16 %v8342, %v8338
  %v9015 = vpack.c.b16 %v8347, %v8343
  %v9016 = vpack.c.b16 %v8348, %v8344
  %v9017 = vpack.c.b16 %v8349, %v8345
  %v9018 = vpack.c.b16 %v8350, %v8346
  %v9019 = vpack.c.b16 %v8355, %v8351
  %v9020 = vpack.c.b16 %v8356, %v8352
  %v9021 = vpack.c.b16 %v8357, %v8353
  %v9022 = vpack.c.b16 %v8358, %v8354
  %v9023 = vpack.c.b16 %v8363, %v8359
  %v9024 = vpack.c.b16 %v8364, %v8360
  %v9025 = vpack.c.b16 %v8365, %v8361
  %v9026 = vpack.c.b16 %v8366, %v8362
  %v9027 = vpack.c.b16 %v8371, %v8367
  %v9028 = vpack.c.b16 %v8372, %v8368
  %v9029 = vpack.c.b16 %v8373, %v8369
  %v9030 = vpack.c.b16 %v8374, %v8370
  %v9031 = vpack.c.b16 %v8379, %v8375
  %v9032 = vpack.c.b16 %v8380, %v8376
  %v9033 = vpack.c.b16 %v8381, %v8377
  %v9034 = vpack.c.b16 %v8382, %v8378
  %v9035 = vpack.c.b16 %v8387, %v8383
  %v9036 = vpack.c.b16 %v8388, %v8384
  %v9037 = vpack.c.b16 %v8389, %v8385
  %v9038 = vpack.c.b16 %v8390, %v8386
  %v9039 = vpack.c.b16 %v8395, %v8391
  %v9040 = vpack.c.b16 %v8396, %v8392
  %v9041 = vpack.c.b16 %v8397, %v8393
  %v9042 = vpack.c.b16 %v8398, %v8394
  %v9043 = vpack.c.b16 %v8403, %v8399
  %v9044 = vpack.c.b16 %v8404, %v8400
  %v9045 = vpack.c.b16 %v8405, %v8401
  %v9046 = vpack.c.b16 %v8406, %v8402
  %v9047 = vpack.c.b16 %v8411, %v8407
  %v9048 = vpack.c.b16 %v8412, %v8408
  %v9049 = vpack.c.b16 %v8413, %v8409
  %v9050 = vpack.c.b16 %v8414, %v8410
  %v9051 = vpack.c.b16 %v8419, %v8415
  %v9052 = vpack.c.b16 %v8420, %v8416
  %v9053 = vpack.c.b16 %v8421, %v8417
  %v9054 = vpack.c.b16 %v8422, %v8418
  %v9055 = vpack.c.b16 %v8427, %v8423
  %v9056 = vpack.c.b16 %v8428, %v8424
  %v9057 = vpack.c.b16 %v8429, %v8425
  %v9058 = vpack.c.b16 %v8430, %v8426
  %v9059 = vpack.c.b16 %v8435, %v8431
  %v9060 = vpack.c.b16 %v8436, %v8432
  %v9061 = vpack.c.b16 %v8437, %v8433
  %v9062 = vpack.c.b16 %v8438, %v8434
  %v9063 = vpack.c.b16 %v8443, %v8439
  %v9064 = vpack.c.b16 %v8444, %v8440
  %v9065 = vpack.c.b16 %v8445, %v8441
  %v9066 = vpack.c.b16 %v8446, %v8442
  %v9067 = vpack.c.b16 %v8451, %v8447
  %v9068 = vpack.c.b16 %v8452, %v8448
  %v9069 = vpack.c.b16 %v8453, %v8449
  %v9070 = vpack.c.b16 %v8454, %v8450
  %v9071 = vpack.c.b16 %v8459, %v8455
  %v9072 = vpack.c.b16 %v8460, %v8456
  %v9073 = vpack.c.b16 %v8461, %v8457
  %v9074 = vpack.c.b16 %v8462, %v8458
  %v9075 = vpack.c.b16 %v8467, %v8463
  %v9076 = vpack.c.b16 %v8468, %v8464
  %v9077 = vpack.c.b16 %v8469, %v8465
  %v9078 = vpack.c.b16 %v8470, %v8466
  %v9079 = vpack.c.b16 %v8475, %v8471
  %v9080 = vpack.c.b16 %v8476, %v8472
  %v9081 = vpack.c.b16 %v8477, %v8473
  %v9082 = vpack.c.b16 %v8478, %v8474
  %v9083 = vpack.c.b16 %v8483, %v8479
  %v9084 = vpack.c.b16 %v8484, %v8480
  %v9085 = vpack.c.b16 %v8485, %v8481
  %v9086 = vpack.c.b16 %v8486, %v8482
  %v9087 = vpack.c.b16 %v8491, %v8487
  %v9088 = vpack.c.b16 %v8492, %v8488
  %v9089 = vpack.c.b16 %v8493, %v8489
  %v9090 = vpack.c.b16 %v8494, %v8490
  %v9091 = vpack.c.b16 %v8499, %v8495
  %v9092 = vpack.c.b16 %v8500, %v8496
  %v9093 = vpack.c.b16 %v8501, %v8497
  %v9094 = vpack.c.b16 %v8502, %v8498
  %v9095 = vpack.c.b16 %v8507, %v8503
  %v9096 = vpack.c.b16 %v8508, %v8504
  %v9097 = vpack.c.b16 %v8509, %v8505
  %v9098 = vpack.c.b16 %v8510, %v8506
  %v9099 = vpack.c.b16 %v8515, %v8511
  %v9100 = vpack.c.b16 %v8516, %v8512
  %v9101 = vpack.c.b16 %v8517, %v8513
  %v9102 = vpack.c.b16 %v8518, %v8514
  %v9103 = vpack.c.b16 %v8523, %v8519
  %v9104 = vpack.c.b16 %v8524, %v8520
  %v9105 = vpack.c.b16 %v8525, %v8521
  %v9106 = vpack.c.b16 %v8526, %v8522
  %v9107 = vpack.c.b16 %v8531, %v8527
  %v9108 = vpack.c.b16 %v8532, %v8528
  %v9109 = vpack.c.b16 %v8533, %v8529
  %v9110 = vpack.c.b16 %v8534, %v8530
  %v9111 = vpack.c.b16 %v8539, %v8535
  %v9112 = vpack.c.b16 %v8540, %v8536
  %v9113 = vpack.c.b16 %v8541, %v8537
  %v9114 = vpack.c.b16 %v8542, %v8538
  %v9115 = vpack.c.b16 %v8547, %v8543
  %v9116 = vpack.c.b16 %v8548, %v8544
  %v9117 = vpack.c.b16 %v8549, %v8545
  %v9118 = vpack.c.b16 %v8550, %v8546
  %v9119 = vpack.c.b16 %v8555, %v8551
  %v9120 = vpack.c.b16 %v8556, %v8552
  %v9121 = vpack.c.b16 %v8557, %v8553
  %v9122 = vpack.c.b16 %v8558, %v8554
  %v9123 = vpack.c.b16 %v8563, %v8559
  %v9124 = vpack.c.b16 %v8564, %v8560
  %v9125 = vpack.c.b16 %v8565, %v8561
  %v9126 = vpack.c.b16 %v8566, %v8562
  %v9127 = vpack.c.b16 %v8571, %v8567
  %v9128 = vpack.c.b16 %v8572, %v8568
  %v9129 = vpack.c.b16 %v8573, %v8569
  %v9130 = vpack.c.b16 %v8574, %v8570
  %v9131 = vpack.c.b16 %v8579, %v8575
  %v9132 = vpack.c.b16 %v8580, %v8576
  %v9133 = vpack.c.b16 %v8581, %v8577
  %v9134 = vpack.c.b16 %v8582, %v8578
  %v9135 = vpack.c.b16 %v8587, %v8583
  %v9136 = vpack.c.b16 %v8588, %v8584
  %v9137 = vpack.c.b16 %v8589, %v8585
  %v9138 = vpack.c.b16 %v8590, %v8586
  %v9139 = vpack.c.b16 %v8595, %v8591
  %v9140 = vpack.c.b16 %v8596, %v8592
  %v9141 = vpack.c.b16 %v8597, %v8593
  %v9142 = vpack.c.b16 %v8598, %v8594
  %v9143 = vpack.c.b16 %v8603, %v8599
  %v9144 = vpack.c.b16 %v8604, %v8600
  %v9145 = vpack.c.b16 %v8605, %v8601
  %v9146 = vpack.c.b16 %v8606, %v8602
  %v9147 = vpack.c.b16 %v8611, %v8607
  %v9148 = vpack.c.b16 %v8612, %v8608
  %v9149 = vpack.c.b16 %v8613, %v8609
  %v9150 = vpack.c.b16 %v8614, %v8610
  %v9151 = vpack.c.b16 %v8619, %v8615
  %v9152 = vpack.c.b16 %v8620, %v8616
  %v9153 = vpack.c.b16 %v8621, %v8617
  %v9154 = vpack.c.b16 %v8622, %v8618
  %v9155 = vpack.c.b16 %v8627, %v8623
  %v9156 = vpack.c.b16 %v8628, %v8624
  %v9157 = vpack.c.b16 %v8629, %v8625
  %v9158 = vpack.c.b16 %v8630, %v8626
  %v9159 = vpack.c.b16 %v8635, %v8631
  %v9160 = vpack.c.b16 %v8636, %v8632
  %v9161 = vpack.c.b16 %v8637, %v8633
  %v9162 = vpack.c.b16 %v8638, %v8634
  %v9163 = vpack.c.b16 %v8643, %v8639
  %v9164 = vpack.c.b16 %v8644, %v8640
  %v9165 = vpack.c.b16 %v8645, %v8641
  %v9166 = vpack.c.b16 %v8646, %v8642
  %v9167 = vpack.c.b16 %v8651, %v8647
  %v9168 = vpack.c.b16 %v8652, %v8648
  %v9169 = vpack.c.b16 %v8653, %v8649
  %v9170 = vpack.c.b16 %v8654, %v8650
  %v9171 = vpack.c.b16 %v8659, %v8655
  %v9172 = vpack.c.b16 %v8660, %v8656
  %v9173 = vpack.c.b16 %v8661, %v8657
  %v9174 = vpack.c.b16 %v8662, %v8658
  %v9175 = vpack.c.b16 %v8667, %v8663
  %v9176 = vpack.c.b16 %v8668, %v8664
  %v9177 = vpack.c.b16 %v8669, %v8665
  %v9178 = vpack.c.b16 %v8670, %v8666
  %v9179 = vpack.c.b16 %v8675, %v8671
  %v9180 = vpack.c.b16 %v8676, %v8672
  %v9181 = vpack.c.b16 %v8677, %v8673
  %v9182 = vpack.c.b16 %v8678, %v8674
  %v9183 = vpack.c.b16 %v8683, %v8679
  %v9184 = vpack.c.b16 %v8684, %v8680
  %v9185 = vpack.c.b16 %v8685, %v8681
  %v9186 = vpack.c.b16 %v8686, %v8682
  %v9187 = vpack.c.b16 %v8691, %v8687
  %v9188 = vpack.c.b16 %v8692, %v8688
  %v9189 = vpack.c.b16 %v8693, %v8689
  %v9190 = vpack.c.b16 %v8694, %v8690
  %v9191 = vpack.c.b16 %v8699, %v8695
  %v9192 = vpack.c.b16 %v8700, %v8696
  %v9193 = vpack.c.b16 %v8701, %v8697
  %v9194 = vpack.c.b16 %v8702, %v8698
  %v9195 = vpack.c.b16 %v8707, %v8703
  %v9196 = vpack.c.b16 %v8708, %v8704
  %v9197 = vpack.c.b16 %v8709, %v8705
  %v9198 = vpack.c.b16 %v8710, %v8706
  %v9199 = vpack.c.b16 %v8715, %v8711
  %v9200 = vpack.c.b16 %v8716, %v8712
  %v9201 = vpack.c.b16 %v8717, %v8713
  %v9202 = vpack.c.b16 %v8718, %v8714
  %v9203 = vpack.c.b16 %v8723, %v8719
  %v9204 = vpack.c.b16 %v8724, %v8720
  %v9205 = vpack.c.b16 %v8725, %v8721
  %v9206 = vpack.c.b16 %v8726, %v8722
  %v9207 = vpack.c.b16 %v8731, %v8727
  %v9208 = vpack.c.b16 %v8732, %v8728
  %v9209 = vpack.c.b16 %v8733, %v8729
  %v9210 = vpack.c.b16 %v8734, %v8730
  %v9211 = vpack.c.b16 %v8739, %v8735
  %v9212 = vpack.c.b16 %v8740, %v8736
  %v9213 = vpack.c.b16 %v8741, %v8737
  %v9214 = vpack.c.b16 %v8742, %v8738
  %v9215 = vpack.c.b16 %v8747, %v8743
  %v9216 = vpack.c.b16 %v8748, %v8744
  %v9217 = vpack.c.b16 %v8749, %v8745
  %v9218 = vpack.c.b16 %v8750, %v8746
  %v9219 = vpack.c.b16 %v8755, %v8751
  %v9220 = vpack.c.b16 %v8756, %v8752
  %v9221 = vpack.c.b16 %v8757, %v8753
  %v9222 = vpack.c.b16 %v8758, %v8754
  %v9223 = vpack.c.b16 %v8763, %v8759
  %v9224 = vpack.c.b16 %v8764, %v8760
  %v9225 = vpack.c.b16 %v8765, %v8761
  %v9226 = vpack.c.b16 %v8766, %v8762
  %v9227 = vpack.c.b16 %v8771, %v8767
  %v9228 = vpack.c.b16 %v8772, %v8768
  %v9229 = vpack.c.b16 %v8773, %v8769
  %v9230 = vpack.c.b16 %v8774, %v8770
  %v9231 = vpack.c.b16 %v8779, %v8775
  %v9232 = vpack.c.b16 %v8780, %v8776
  %v9233 = vpack.c.b16 %v8781, %v8777
  %v9234 = vpack.c.b16 %v8782, %v8778
  %v9235 = vpack.c.b16 %v8787, %v8783
  %v9236 = vpack.c.b16 %v8788, %v8784
  %v9237 = vpack.c.b16 %v8789, %v8785
  %v9238 = vpack.c.b16 %v8790, %v8786
  %v9239 = vpack.c.b16 %v8795, %v8791
  %v9240 = vpack.c.b16 %v8796, %v8792
  %v9241 = vpack.c.b16 %v8797, %v8793
  %v9242 = vpack.c.b16 %v8798, %v8794
  %v9243 = vpack.c.b16 %v8803, %v8799
  %v9244 = vpack.c.b16 %v8804, %v8800
  %v9245 = vpack.c.b16 %v8805, %v8801
  %v9246 = vpack.c.b16 %v8806, %v8802
  %v9247 = vpack.c.b16 %v8811, %v8807
  %v9248 = vpack.c.b16 %v8812, %v8808
  %v9249 = vpack.c.b16 %v8813, %v8809
  %v9250 = vpack.c.b16 %v8814, %v8810
  %v9251 = vpack.c.b16 %v8819, %v8815
  %v9252 = vpack.c.b16 %v8820, %v8816
  %v9253 = vpack.c.b16 %v8821, %v8817
  %v9254 = vpack.c.b16 %v8822, %v8818
  %v9255 = vpack.c.b16 %v8827, %v8823
  %v9256 = vpack.c.b16 %v8828, %v8824
  %v9257 = vpack.c.b16 %v8829, %v8825
  %v9258 = vpack.c.b16 %v8830, %v8826
  %v9259 = vpack.c.b16 %v8835, %v8831
  %v9260 = vpack.c.b16 %v8836, %v8832
  %v9261 = vpack.c.b16 %v8837, %v8833
  %v9262 = vpack.c.b16 %v8838, %v8834
  %v9263 = vpack.c.b16 %v8843, %v8839
  %v9264 = vpack.c.b16 %v8844, %v8840
  %v9265 = vpack.c.b16 %v8845, %v8841
  %v9266 = vpack.c.b16 %v8846, %v8842
  %v9267 = vpack.c.b16 %v8851, %v8847
  %v9268 = vpack.c.b16 %v8852, %v8848
  %v9269 = vpack.c.b16 %v8853, %v8849
  %v9270 = vpack.c.b16 %v8854, %v8850
  %v9271 = vpack.c.b16 %v8859, %v8855
  %v9272 = vpack.c.b16 %v8860, %v8856
  %v9273 = vpack.c.b16 %v8861, %v8857
  %v9274 = vpack.c.b16 %v8862, %v8858
  %v9275 = vpack.c.b16 %v8867, %v8863
  %v9276 = vpack.c.b16 %v8868, %v8864
  %v9277 = vpack.c.b16 %v8869, %v8865
  %v9278 = vpack.c.b16 %v8870, %v8866
  %v9279 = vpack.c.b16 %v8875, %v8871
  %v9280 = vpack.c.b16 %v8876, %v8872
  %v9281 = vpack.c.b16 %v8877, %v8873
  %v9282 = vpack.c.b16 %v8878, %v8874
  %v9283 = vpack.c.b16 %v8883, %v8879
  %v9284 = vpack.c.b16 %v8884, %v8880
  %v9285 = vpack.c.b16 %v8885, %v8881
  %v9286 = vpack.c.b16 %v8886, %v8882
  %v9287 = vpack.c.b16 %v8891, %v8887
  %v9288 = vpack.c.b16 %v8892, %v8888
  %v9289 = vpack.c.b16 %v8893, %v8889
  %v9290 = vpack.c.b16 %v8894, %v8890
  %v9291 = vpack.c.b16 %v8899, %v8895
  %v9292 = vpack.c.b16 %v8900, %v8896
  %v9293 = vpack.c.b16 %v8901, %v8897
  %v9294 = vpack.c.b16 %v8902, %v8898
  %v9295 = vpack.c.b16 %v8907, %v8903
  %v9296 = vpack.c.b16 %v8908, %v8904
  %v9297 = vpack.c.b16 %v8909, %v8905
  %v9298 = vpack.c.b16 %v8910, %v8906
  %v9299 = vpack.c.b16 %v8915, %v8911
  %v9300 = vpack.c.b16 %v8916, %v8912
  %v9301 = vpack.c.b16 %v8917, %v8913
  %v9302 = vpack.c.b16 %v8918, %v8914
  %9687 = vmatprep.subr.bf16.mxu0 %v8920
  %9688 = vmatpush1.bf16.msra.mxu0 %v8919
  %9689 = vmatprep.subr.bf16.mxu0 %v8924
  %9690 = vmatpush1.bf16.msra.mxu0 %v8923
  %9691 = vmatprep.subr.bf16.mxu0 %v8928
  %9692 = vmatpush1.bf16.msra.mxu0 %v8927
  %9693 = vmatprep.subr.bf16.mxu0 %v8932
  %9694 = vmatpush1.bf16.msra.mxu0 %v8931
  %9695 = vmatprep.subr.bf16.mxu0 %v8936
  %9696 = vmatpush1.bf16.msra.mxu0 %v8935
  %9697 = vmatprep.subr.bf16.mxu0 %v8940
  %9698 = vmatpush1.bf16.msra.mxu0 %v8939
  %9699 = vmatprep.subr.bf16.mxu0 %v8944
  %9700 = vmatpush1.bf16.msra.mxu0 %v8943
  %9701 = vmatprep.subr.bf16.mxu0 %v8948
  %9702 = vmatpush1.bf16.msra.mxu0 %v8947
  %9703 = vmatprep.subr.bf16.mxu0 %v8952
  %9704 = vmatpush1.bf16.msra.mxu0 %v8951
  %9705 = vmatprep.subr.bf16.mxu0 %v8956
  %9706 = vmatpush1.bf16.msra.mxu0 %v8955
  %9707 = vmatprep.subr.bf16.mxu0 %v8960
  %9708 = vmatpush1.bf16.msra.mxu0 %v8959
  %9709 = vmatprep.subr.bf16.mxu0 %v8964
  %9710 = vmatpush1.bf16.msra.mxu0 %v8963
  %9711 = vmatprep.subr.bf16.mxu0 %v8968
  %9712 = vmatpush1.bf16.msra.mxu0 %v8967
  %9713 = vmatprep.subr.bf16.mxu0 %v8972
  %9714 = vmatpush1.bf16.msra.mxu0 %v8971
  %9715 = vmatprep.subr.bf16.mxu0 %v8976
  %9716 = vmatpush1.bf16.msra.mxu0 %v8975
  %9717 = vmatprep.subr.bf16.mxu0 %v8980
  %9718 = vmatpush1.bf16.msra.mxu0 %v8979
  %9719 = vmatprep.mubr.bf16.mxu0 %v7672
  %9720 = vmatmul.mubr.bf16.gmra.mrb[0].mxu0 %v7671
  %v9721 = vpop.f32.mrb[0].mxu0
  %v9722 = vadd.f32 %v7654, %v9721
  %v9723 = vpop.f32.mrb[0].mxu0
  %v9724 = vadd.f32 %v7658, %v9723
  %v9725 = vpop.f32.mrb[0].mxu0
  %v9726 = vadd.f32 %v7654, %v9725
  %v9727 = vpop.f32.mrb[0].mxu0
  %v9728 = vadd.f32 %v7658, %v9727
  %9729 = vmatprep.mubr.bf16.mxu0 %v7684
  %9730 = vmatmul.mubr.bf16.gmra.mrb[0].mxu0 %v7683
  %v9731 = vpop.f32.mrb[0].mxu0
  %v9732 = vadd.f32 %v7654, %v9731
  %v9733 = vpop.f32.mrb[0].mxu0
  %v9734 = vadd.f32 %v7658, %v9733
  %v9735 = vpop.f32.mrb[0].mxu0
  %v9736 = vadd.f32 %v7654, %v9735
  %v9737 = vpop.f32.mrb[0].mxu0
  %v9738 = vadd.f32 %v7658, %v9737
  %9739 = vmatprep.mubr.bf16.mxu0 %v7696
  %9740 = vmatmul.mubr.bf16.gmra.mrb[0].mxu0 %v7695
  %v9741 = vpop.f32.mrb[0].mxu0
  %v9742 = vadd.f32 %v7654, %v9741
  %v9743 = vpop.f32.mrb[0].mxu0
  %v9744 = vadd.f32 %v7658, %v9743
  %v9745 = vpop.f32.mrb[0].mxu0
  %v9746 = vadd.f32 %v7654, %v9745
  %v9747 = vpop.f32.mrb[0].mxu0
  %v9748 = vadd.f32 %v7658, %v9747
  %9749 = vmatprep.mubr.bf16.mxu0 %v7708
  %9750 = vmatmul.mubr.bf16.gmra.mrb[0].mxu0 %v7707
  %v9751 = vpop.f32.mrb[0].mxu0
  %v9752 = vadd.f32 %v7654, %v9751
  %v9753 = vpop.f32.mrb[0].mxu0
  %v9754 = vadd.f32 %v7658, %v9753
  %v9755 = vpop.f32.mrb[0].mxu0
  %v9756 = vadd.f32 %v7654, %v9755
  %v9757 = vpop.f32.mrb[0].mxu0
  %v9758 = vadd.f32 %v7658, %v9757
  %9759 = vdwg.mxu0
  %9760 = vmatprep.subr.bf16.mxu0 %v8984
  %9761 = vmatpush1.bf16.msra.mxu0 %v8983
  %9762 = vmatprep.subr.bf16.mxu0 %v8988
  %9763 = vmatpush1.bf16.msra.mxu0 %v8987
  %9764 = vmatprep.subr.bf16.mxu0 %v8992
  %9765 = vmatpush1.bf16.msra.mxu0 %v8991
  %9766 = vmatprep.subr.bf16.mxu0 %v8996
  %9767 = vmatpush1.bf16.msra.mxu0 %v8995
  %9768 = vmatprep.subr.bf16.mxu0 %v9000
  %9769 = vmatpush1.bf16.msra.mxu0 %v8999
  %9770 = vmatprep.subr.bf16.mxu0 %v9004
  %9771 = vmatpush1.bf16.msra.mxu0 %v9003
  %9772 = vmatprep.subr.bf16.mxu0 %v9008
  %9773 = vmatpush1.bf16.msra.mxu0 %v9007
  %9774 = vmatprep.subr.bf16.mxu0 %v9012
  %9775 = vmatpush1.bf16.msra.mxu0 %v9011
  %9776 = vmatprep.subr.bf16.mxu0 %v9016
  %9777 = vmatpush1.bf16.msra.mxu0 %v9015
  %9778 = vmatprep.subr.bf16.mxu0 %v9020
  %9779 = vmatpush1.bf16.msra.mxu0 %v9019
  %9780 = vmatprep.subr.bf16.mxu0 %v9024
  %9781 = vmatpush1.bf16.msra.mxu0 %v9023
  %9782 = vmatprep.subr.bf16.mxu0 %v9028
  %9783 = vmatpush1.bf16.msra.mxu0 %v9027
  %9784 = vmatprep.subr.bf16.mxu0 %v9032
  %9785 = vmatpush1.bf16.msra.mxu0 %v9031
  %9786 = vmatprep.subr.bf16.mxu0 %v9036
  %9787 = vmatpush1.bf16.msra.mxu0 %v9035
  %9788 = vmatprep.subr.bf16.mxu0 %v9040
  %9789 = vmatpush1.bf16.msra.mxu0 %v9039
  %9790 = vmatprep.subr.bf16.mxu0 %v9044
  %9791 = vmatpush1.bf16.msra.mxu0 %v9043
  %9792 = vmatprep.mubr.bf16.mxu0 %v7674
  %9793 = vmatmul.mubr.bf16.gmra.mrb[0].mxu0 %v7673
  %v9794 = vpop.f32.mrb[0].mxu0
  %v9795 = vadd.f32 %v9722, %v9794
  %v9796 = vpop.f32.mrb[0].mxu0
  %v9797 = vadd.f32 %v9724, %v9796
  %v9798 = vpop.f32.mrb[0].mxu0
  %v9799 = vadd.f32 %v9726, %v9798
  %v9800 = vpop.f32.mrb[0].mxu0
  %v9801 = vadd.f32 %v9728, %v9800
  %9802 = vmatprep.mubr.bf16.mxu0 %v7686
  %9803 = vmatmul.mubr.bf16.gmra.mrb[0].mxu0 %v7685
  %v9804 = vpop.f32.mrb[0].mxu0
  %v9805 = vadd.f32 %v9732, %v9804
  %v9806 = vpop.f32.mrb[0].mxu0
  %v9807 = vadd.f32 %v9734, %v9806
  %v9808 = vpop.f32.mrb[0].mxu0
  %v9809 = vadd.f32 %v9736, %v9808
  %v9810 = vpop.f32.mrb[0].mxu0
  %v9811 = vadd.f32 %v9738, %v9810
  %9812 = vmatprep.mubr.bf16.mxu0 %v7698
  %9813 = vmatmul.mubr.bf16.gmra.mrb[0].mxu0 %v7697
  %v9814 = vpop.f32.mrb[0].mxu0
  %v9815 = vadd.f32 %v9742, %v9814
  %v9816 = vpop.f32.mrb[0].mxu0
  %v9817 = vadd.f32 %v9744, %v9816
  %v9818 = vpop.f32.mrb[0].mxu0
  %v9819 = vadd.f32 %v9746, %v9818
  %v9820 = vpop.f32.mrb[0].mxu0
  %v9821 = vadd.f32 %v9748, %v9820
  %9822 = vmatprep.mubr.bf16.mxu0 %v7710
  %9823 = vmatmul.mubr.bf16.gmra.mrb[0].mxu0 %v7709
  %v9824 = vpop.f32.mrb[0].mxu0
  %v9825 = vadd.f32 %v9752, %v9824
  %v9826 = vpop.f32.mrb[0].mxu0
  %v9827 = vadd.f32 %v9754, %v9826
  %v9828 = vpop.f32.mrb[0].mxu0
  %v9829 = vadd.f32 %v9756, %v9828
  %v9830 = vpop.f32.mrb[0].mxu0
  %v9831 = vadd.f32 %v9758, %v9830
  %9832 = vdwg.mxu0
  %9833 = vmatprep.subr.bf16.mxu0 %v9048
  %9834 = vmatpush1.bf16.msra.mxu0 %v9047
  %9835 = vmatprep.subr.bf16.mxu0 %v9052
  %9836 = vmatpush1.bf16.msra.mxu0 %v9051
  %9837 = vmatprep.subr.bf16.mxu0 %v9056
  %9838 = vmatpush1.bf16.msra.mxu0 %v9055
  %9839 = vmatprep.subr.bf16.mxu0 %v9060
  %9840 = vmatpush1.bf16.msra.mxu0 %v9059
  %9841 = vmatprep.subr.bf16.mxu0 %v9064
  %9842 = vmatpush1.bf16.msra.mxu0 %v9063
  %9843 = vmatprep.subr.bf16.mxu0 %v9068
  %9844 = vmatpush1.bf16.msra.mxu0 %v9067
  %9845 = vmatprep.subr.bf16.mxu0 %v9072
  %9846 = vmatpush1.bf16.msra.mxu0 %v9071
  %9847 = vmatprep.subr.bf16.mxu0 %v9076
  %9848 = vmatpush1.bf16.msra.mxu0 %v9075
  %9849 = vmatprep.subr.bf16.mxu0 %v9080
  %9850 = vmatpush1.bf16.msra.mxu0 %v9079
  %9851 = vmatprep.subr.bf16.mxu0 %v9084
  %9852 = vmatpush1.bf16.msra.mxu0 %v9083
  %9853 = vmatprep.subr.bf16.mxu0 %v9088
  %9854 = vmatpush1.bf16.msra.mxu0 %v9087
  %9855 = vmatprep.subr.bf16.mxu0 %v9092
  %9856 = vmatpush1.bf16.msra.mxu0 %v9091
  %9857 = vmatprep.subr.bf16.mxu0 %v9096
  %9858 = vmatpush1.bf16.msra.mxu0 %v9095
  %9859 = vmatprep.subr.bf16.mxu0 %v9100
  %9860 = vmatpush1.bf16.msra.mxu0 %v9099
  %9861 = vmatprep.subr.bf16.mxu0 %v9104
  %9862 = vmatpush1.bf16.msra.mxu0 %v9103
  %9863 = vmatprep.subr.bf16.mxu0 %v9108
  %9864 = vmatpush1.bf16.msra.mxu0 %v9107
  %9865 = vmatprep.mubr.bf16.mxu0 %v7676
  %9866 = vmatmul.mubr.bf16.gmra.mrb[0].mxu0 %v7675
  %v9867 = vpop.f32.mrb[0].mxu0
  %v9868 = vadd.f32 %v9795, %v9867
  %v9869 = vpop.f32.mrb[0].mxu0
  %v9870 = vadd.f32 %v9797, %v9869
  %v9871 = vpop.f32.mrb[0].mxu0
  %v9872 = vadd.f32 %v9799, %v9871
  %v9873 = vpop.f32.mrb[0].mxu0
  %v9874 = vadd.f32 %v9801, %v9873
  %9875 = vmatprep.mubr.bf16.mxu0 %v7688
  %9876 = vmatmul.mubr.bf16.gmra.mrb[0].mxu0 %v7687
  %v9877 = vpop.f32.mrb[0].mxu0
  %v9878 = vadd.f32 %v9805, %v9877
  %v9879 = vpop.f32.mrb[0].mxu0
  %v9880 = vadd.f32 %v9807, %v9879
  %v9881 = vpop.f32.mrb[0].mxu0
  %v9882 = vadd.f32 %v9809, %v9881
  %v9883 = vpop.f32.mrb[0].mxu0
  %v9884 = vadd.f32 %v9811, %v9883
  %9885 = vmatprep.mubr.bf16.mxu0 %v7700
  %9886 = vmatmul.mubr.bf16.gmra.mrb[0].mxu0 %v7699
  %v9887 = vpop.f32.mrb[0].mxu0
  %v9888 = vadd.f32 %v9815, %v9887
  %v9889 = vpop.f32.mrb[0].mxu0
  %v9890 = vadd.f32 %v9817, %v9889
  %v9891 = vpop.f32.mrb[0].mxu0
  %v9892 = vadd.f32 %v9819, %v9891
  %v9893 = vpop.f32.mrb[0].mxu0
  %v9894 = vadd.f32 %v9821, %v9893
  %9895 = vmatprep.mubr.bf16.mxu0 %v7712
  %9896 = vmatmul.mubr.bf16.gmra.mrb[0].mxu0 %v7711
  %v9897 = vpop.f32.mrb[0].mxu0
  %v9898 = vadd.f32 %v9825, %v9897
  %v9899 = vpop.f32.mrb[0].mxu0
  %v9900 = vadd.f32 %v9827, %v9899
  %v9901 = vpop.f32.mrb[0].mxu0
  %v9902 = vadd.f32 %v9829, %v9901
  %v9903 = vpop.f32.mrb[0].mxu0
  %v9904 = vadd.f32 %v9831, %v9903
  %9905 = vdwg.mxu0
  %9906 = vmatprep.subr.bf16.mxu0 %v9112
  %9907 = vmatpush1.bf16.msra.mxu0 %v9111
  %9908 = vmatprep.subr.bf16.mxu0 %v9116
  %9909 = vmatpush1.bf16.msra.mxu0 %v9115
  %9910 = vmatprep.subr.bf16.mxu0 %v9120
  %9911 = vmatpush1.bf16.msra.mxu0 %v9119
  %9912 = vmatprep.subr.bf16.mxu0 %v9124
  %9913 = vmatpush1.bf16.msra.mxu0 %v9123
  %9914 = vmatprep.subr.bf16.mxu0 %v9128
  %9915 = vmatpush1.bf16.msra.mxu0 %v9127
  %9916 = vmatprep.subr.bf16.mxu0 %v9132
  %9917 = vmatpush1.bf16.msra.mxu0 %v9131
  %9918 = vmatprep.subr.bf16.mxu0 %v9136
  %9919 = vmatpush1.bf16.msra.mxu0 %v9135
  %9920 = vmatprep.subr.bf16.mxu0 %v9140
  %9921 = vmatpush1.bf16.msra.mxu0 %v9139
  %9922 = vmatprep.subr.bf16.mxu0 %v9144
  %9923 = vmatpush1.bf16.msra.mxu0 %v9143
  %9924 = vmatprep.subr.bf16.mxu0 %v9148
  %9925 = vmatpush1.bf16.msra.mxu0 %v9147
  %9926 = vmatprep.subr.bf16.mxu0 %v9152
  %9927 = vmatpush1.bf16.msra.mxu0 %v9151
  %9928 = vmatprep.subr.bf16.mxu0 %v9156
  %9929 = vmatpush1.bf16.msra.mxu0 %v9155
  %9930 = vmatprep.subr.bf16.mxu0 %v9160
  %9931 = vmatpush1.bf16.msra.mxu0 %v9159
  %9932 = vmatprep.subr.bf16.mxu0 %v9164
  %9933 = vmatpush1.bf16.msra.mxu0 %v9163
  %9934 = vmatprep.subr.bf16.mxu0 %v9168
  %9935 = vmatpush1.bf16.msra.mxu0 %v9167
  %9936 = vmatprep.subr.bf16.mxu0 %v9172
  %9937 = vmatpush1.bf16.msra.mxu0 %v9171
  %9938 = vmatprep.mubr.bf16.mxu0 %v7678
  %9939 = vmatmul.mubr.bf16.gmra.mrb[0].mxu0 %v7677
  %v9940 = vpop.f32.mrb[0].mxu0
  %v9941 = vadd.f32 %v9868, %v9940
  %v9942 = vpop.f32.mrb[0].mxu0
  %v9943 = vadd.f32 %v9870, %v9942
  %v9944 = vpop.f32.mrb[0].mxu0
  %v9945 = vadd.f32 %v9872, %v9944
  %v9946 = vpop.f32.mrb[0].mxu0
  %v9947 = vadd.f32 %v9874, %v9946
  %9948 = vmatprep.mubr.bf16.mxu0 %v7690
  %9949 = vmatmul.mubr.bf16.gmra.mrb[0].mxu0 %v7689
  %v9950 = vpop.f32.mrb[0].mxu0
  %v9951 = vadd.f32 %v9878, %v9950
  %v9952 = vpop.f32.mrb[0].mxu0
  %v9953 = vadd.f32 %v9880, %v9952
  %v9954 = vpop.f32.mrb[0].mxu0
  %v9955 = vadd.f32 %v9882, %v9954
  %v9956 = vpop.f32.mrb[0].mxu0
  %v9957 = vadd.f32 %v9884, %v9956
  %9958 = vmatprep.mubr.bf16.mxu0 %v7702
  %9959 = vmatmul.mubr.bf16.gmra.mrb[0].mxu0 %v7701
  %v9960 = vpop.f32.mrb[0].mxu0
  %v9961 = vadd.f32 %v9888, %v9960
  %v9962 = vpop.f32.mrb[0].mxu0
  %v9963 = vadd.f32 %v9890, %v9962
  %v9964 = vpop.f32.mrb[0].mxu0
  %v9965 = vadd.f32 %v9892, %v9964
  %v9966 = vpop.f32.mrb[0].mxu0
  %v9967 = vadd.f32 %v9894, %v9966
  %9968 = vmatprep.mubr.bf16.mxu0 %v7714
  %9969 = vmatmul.mubr.bf16.gmra.mrb[0].mxu0 %v7713
  %v9970 = vpop.f32.mrb[0].mxu0
  %v9971 = vadd.f32 %v9898, %v9970
  %v9972 = vpop.f32.mrb[0].mxu0
  %v9973 = vadd.f32 %v9900, %v9972
  %v9974 = vpop.f32.mrb[0].mxu0
  %v9975 = vadd.f32 %v9902, %v9974
  %v9976 = vpop.f32.mrb[0].mxu0
  %v9977 = vadd.f32 %v9904, %v9976
  %9978 = vdwg.mxu0
  %9979 = vmatprep.subr.bf16.mxu0 %v9176
  %9980 = vmatpush1.bf16.msra.mxu0 %v9175
  %9981 = vmatprep.subr.bf16.mxu0 %v9180
  %9982 = vmatpush1.bf16.msra.mxu0 %v9179
  %9983 = vmatprep.subr.bf16.mxu0 %v9184
  %9984 = vmatpush1.bf16.msra.mxu0 %v9183
  %9985 = vmatprep.subr.bf16.mxu0 %v9188
  %9986 = vmatpush1.bf16.msra.mxu0 %v9187
  %9987 = vmatprep.subr.bf16.mxu0 %v9192
  %9988 = vmatpush1.bf16.msra.mxu0 %v9191
  %9989 = vmatprep.subr.bf16.mxu0 %v9196
  %9990 = vmatpush1.bf16.msra.mxu0 %v9195
  %9991 = vmatprep.subr.bf16.mxu0 %v9200
  %9992 = vmatpush1.bf16.msra.mxu0 %v9199
  %9993 = vmatprep.subr.bf16.mxu0 %v9204
  %9994 = vmatpush1.bf16.msra.mxu0 %v9203
  %9995 = vmatprep.subr.bf16.mxu0 %v9208
  %9996 = vmatpush1.bf16.msra.mxu0 %v9207
  %9997 = vmatprep.subr.bf16.mxu0 %v9212
  %9998 = vmatpush1.bf16.msra.mxu0 %v9211
  %9999 = vmatprep.subr.bf16.mxu0 %v9216
  %10000 = vmatpush1.bf16.msra.mxu0 %v9215
  %10001 = vmatprep.subr.bf16.mxu0 %v9220
  %10002 = vmatpush1.bf16.msra.mxu0 %v9219
  %10003 = vmatprep.subr.bf16.mxu0 %v9224
  %10004 = vmatpush1.bf16.msra.mxu0 %v9223
  %10005 = vmatprep.subr.bf16.mxu0 %v9228
  %10006 = vmatpush1.bf16.msra.mxu0 %v9227
  %10007 = vmatprep.subr.bf16.mxu0 %v9232
  %10008 = vmatpush1.bf16.msra.mxu0 %v9231
  %10009 = vmatprep.subr.bf16.mxu0 %v9236
  %10010 = vmatpush1.bf16.msra.mxu0 %v9235
  %10011 = vmatprep.mubr.bf16.mxu0 %v7680
  %10012 = vmatmul.mubr.bf16.gmra.mrb[0].mxu0 %v7679
  %v10013 = vpop.f32.mrb[0].mxu0
  %v10014 = vadd.f32 %v9941, %v10013
  %v10015 = vpop.f32.mrb[0].mxu0
  %v10016 = vadd.f32 %v9943, %v10015
  %v10017 = vpop.f32.mrb[0].mxu0
  %v10018 = vadd.f32 %v9945, %v10017
  %v10019 = vpop.f32.mrb[0].mxu0
  %v10020 = vadd.f32 %v9947, %v10019
  %10021 = vmatprep.mubr.bf16.mxu0 %v7692
  %10022 = vmatmul.mubr.bf16.gmra.mrb[0].mxu0 %v7691
  %v10023 = vpop.f32.mrb[0].mxu0
  %v10024 = vadd.f32 %v9951, %v10023
  %v10025 = vpop.f32.mrb[0].mxu0
  %v10026 = vadd.f32 %v9953, %v10025
  %v10027 = vpop.f32.mrb[0].mxu0
  %v10028 = vadd.f32 %v9955, %v10027
  %v10029 = vpop.f32.mrb[0].mxu0
  %v10030 = vadd.f32 %v9957, %v10029
  %10031 = vmatprep.mubr.bf16.mxu0 %v7704
  %10032 = vmatmul.mubr.bf16.gmra.mrb[0].mxu0 %v7703
  %v10033 = vpop.f32.mrb[0].mxu0
  %v10034 = vadd.f32 %v9961, %v10033
  %v10035 = vpop.f32.mrb[0].mxu0
  %v10036 = vadd.f32 %v9963, %v10035
  %v10037 = vpop.f32.mrb[0].mxu0
  %v10038 = vadd.f32 %v9965, %v10037
  %v10039 = vpop.f32.mrb[0].mxu0
  %v10040 = vadd.f32 %v9967, %v10039
  %10041 = vmatprep.mubr.bf16.mxu0 %v7716
  %10042 = vmatmul.mubr.bf16.gmra.mrb[0].mxu0 %v7715
  %v10043 = vpop.f32.mrb[0].mxu0
  %v10044 = vadd.f32 %v9971, %v10043
  %v10045 = vpop.f32.mrb[0].mxu0
  %v10046 = vadd.f32 %v9973, %v10045
  %v10047 = vpop.f32.mrb[0].mxu0
  %v10048 = vadd.f32 %v9975, %v10047
  %v10049 = vpop.f32.mrb[0].mxu0
  %v10050 = vadd.f32 %v9977, %v10049
  %10051 = vdwg.mxu0
  %10052 = vmatprep.subr.bf16.mxu0 %v9240
  %10053 = vmatpush1.bf16.msra.mxu0 %v9239
  %10054 = vmatprep.subr.bf16.mxu0 %v9244
  %10055 = vmatpush1.bf16.msra.mxu0 %v9243
  %10056 = vmatprep.subr.bf16.mxu0 %v9248
  %10057 = vmatpush1.bf16.msra.mxu0 %v9247
  %10058 = vmatprep.subr.bf16.mxu0 %v9252
  %10059 = vmatpush1.bf16.msra.mxu0 %v9251
  %10060 = vmatprep.subr.bf16.mxu0 %v9256
  %10061 = vmatpush1.bf16.msra.mxu0 %v9255
  %10062 = vmatprep.subr.bf16.mxu0 %v9260
  %10063 = vmatpush1.bf16.msra.mxu0 %v9259
  %10064 = vmatprep.subr.bf16.mxu0 %v9264
  %10065 = vmatpush1.bf16.msra.mxu0 %v9263
  %10066 = vmatprep.subr.bf16.mxu0 %v9268
  %10067 = vmatpush1.bf16.msra.mxu0 %v9267
  %10068 = vmatprep.subr.bf16.mxu0 %v9272
  %10069 = vmatpush1.bf16.msra.mxu0 %v9271
  %10070 = vmatprep.subr.bf16.mxu0 %v9276
  %10071 = vmatpush1.bf16.msra.mxu0 %v9275
  %10072 = vmatprep.subr.bf16.mxu0 %v9280
  %10073 = vmatpush1.bf16.msra.mxu0 %v9279
  %10074 = vmatprep.subr.bf16.mxu0 %v9284
  %10075 = vmatpush1.bf16.msra.mxu0 %v9283
  %10076 = vmatprep.subr.bf16.mxu0 %v9288
  %10077 = vmatpush1.bf16.msra.mxu0 %v9287
  %10078 = vmatprep.subr.bf16.mxu0 %v9292
  %10079 = vmatpush1.bf16.msra.mxu0 %v9291
  %10080 = vmatprep.subr.bf16.mxu0 %v9296
  %10081 = vmatpush1.bf16.msra.mxu0 %v9295
  %10082 = vmatprep.subr.bf16.mxu0 %v9300
  %10083 = vmatpush1.bf16.msra.mxu0 %v9299
  %10084 = vmatprep.mubr.bf16.mxu0 %v7682
  %10085 = vmatmul.mubr.bf16.gmra.mrb[0].mxu0 %v7681
  %v10086 = vpop.f32.mrb[0].mxu0
  %v10087 = vadd.f32 %v10014, %v10086
  %v10088 = vpop.f32.mrb[0].mxu0
  %v10089 = vadd.f32 %v10016, %v10088
  %v10090 = vpop.f32.mrb[0].mxu0
  %v10091 = vadd.f32 %v10018, %v10090
  %v10092 = vpop.f32.mrb[0].mxu0
  %v10093 = vadd.f32 %v10020, %v10092
  %10094 = vmatprep.mubr.bf16.mxu0 %v7694
  %10095 = vmatmul.mubr.bf16.gmra.mrb[0].mxu0 %v7693
  %v10096 = vpop.f32.mrb[0].mxu0
  %v10097 = vadd.f32 %v10024, %v10096
  %v10098 = vpop.f32.mrb[0].mxu0
  %v10099 = vadd.f32 %v10026, %v10098
  %v10100 = vpop.f32.mrb[0].mxu0
  %v10101 = vadd.f32 %v10028, %v10100
  %v10102 = vpop.f32.mrb[0].mxu0
  %v10103 = vadd.f32 %v10030, %v10102
  %10104 = vmatprep.mubr.bf16.mxu0 %v7706
  %10105 = vmatmul.mubr.bf16.gmra.mrb[0].mxu0 %v7705
  %v10106 = vpop.f32.mrb[0].mxu0
  %v10107 = vadd.f32 %v10034, %v10106
  %v10108 = vpop.f32.mrb[0].mxu0
  %v10109 = vadd.f32 %v10036, %v10108
  %v10110 = vpop.f32.mrb[0].mxu0
  %v10111 = vadd.f32 %v10038, %v10110
  %v10112 = vpop.f32.mrb[0].mxu0
  %v10113 = vadd.f32 %v10040, %v10112
  %10114 = vmatprep.mubr.bf16.mxu0 %v7718
  %10115 = vmatmul.mubr.bf16.gmra.mrb[0].mxu0 %v7717
  %v10116 = vpop.f32.mrb[0].mxu0
  %v10117 = vadd.f32 %v10044, %v10116
  %v10118 = vpop.f32.mrb[0].mxu0
  %v10119 = vadd.f32 %v10046, %v10118
  %v10120 = vpop.f32.mrb[0].mxu0
  %v10121 = vadd.f32 %v10048, %v10120
  %v10122 = vpop.f32.mrb[0].mxu0
  %v10123 = vadd.f32 %v10050, %v10122
  %10124 = vdwg.mxu0
  %10125 = vmatprep.subr.bf16.mxu0 %v8922
  %10126 = vmatpush1.bf16.msra.mxu0 %v8921
  %10127 = vmatprep.subr.bf16.mxu0 %v8926
  %10128 = vmatpush1.bf16.msra.mxu0 %v8925
  %10129 = vmatprep.subr.bf16.mxu0 %v8930
  %10130 = vmatpush1.bf16.msra.mxu0 %v8929
  %10131 = vmatprep.subr.bf16.mxu0 %v8934
  %10132 = vmatpush1.bf16.msra.mxu0 %v8933
  %10133 = vmatprep.subr.bf16.mxu0 %v8938
  %10134 = vmatpush1.bf16.msra.mxu0 %v8937
  %10135 = vmatprep.subr.bf16.mxu0 %v8942
  %10136 = vmatpush1.bf16.msra.mxu0 %v8941
  %10137 = vmatprep.subr.bf16.mxu0 %v8946
  %10138 = vmatpush1.bf16.msra.mxu0 %v8945
  %10139 = vmatprep.subr.bf16.mxu0 %v8950
  %10140 = vmatpush1.bf16.msra.mxu0 %v8949
  %10141 = vmatprep.subr.bf16.mxu0 %v8954
  %10142 = vmatpush1.bf16.msra.mxu0 %v8953
  %10143 = vmatprep.subr.bf16.mxu0 %v8958
  %10144 = vmatpush1.bf16.msra.mxu0 %v8957
  %10145 = vmatprep.subr.bf16.mxu0 %v8962
  %10146 = vmatpush1.bf16.msra.mxu0 %v8961
  %10147 = vmatprep.subr.bf16.mxu0 %v8966
  %10148 = vmatpush1.bf16.msra.mxu0 %v8965
  %10149 = vmatprep.subr.bf16.mxu0 %v8970
  %10150 = vmatpush1.bf16.msra.mxu0 %v8969
  %10151 = vmatprep.subr.bf16.mxu0 %v8974
  %10152 = vmatpush1.bf16.msra.mxu0 %v8973
  %10153 = vmatprep.subr.bf16.mxu0 %v8978
  %10154 = vmatpush1.bf16.msra.mxu0 %v8977
  %10155 = vmatprep.subr.bf16.mxu0 %v8982
  %10156 = vmatpush1.bf16.msra.mxu0 %v8981
  %10157 = vmatprep.mubr.bf16.mxu0 %v7672
  %10158 = vmatmul.mubr.bf16.gmra.mrb[0].mxu0 %v7671
  %v10159 = vpop.f32.mrb[0].mxu0
  %v10160 = vadd.f32 %v7662, %v10159
  %v10161 = vpop.f32.mrb[0].mxu0
  %v10162 = vadd.f32 %v7666, %v10161
  %v10163 = vpop.f32.mrb[0].mxu0
  %v10164 = vadd.f32 %v7662, %v10163
  %v10165 = vpop.f32.mrb[0].mxu0
  %v10166 = vadd.f32 %v7666, %v10165
  %10167 = vmatprep.mubr.bf16.mxu0 %v7684
  %10168 = vmatmul.mubr.bf16.gmra.mrb[0].mxu0 %v7683
  %v10169 = vpop.f32.mrb[0].mxu0
  %v10170 = vadd.f32 %v7662, %v10169
  %v10171 = vpop.f32.mrb[0].mxu0
  %v10172 = vadd.f32 %v7666, %v10171
  %v10173 = vpop.f32.mrb[0].mxu0
  %v10174 = vadd.f32 %v7662, %v10173
  %v10175 = vpop.f32.mrb[0].mxu0
  %v10176 = vadd.f32 %v7666, %v10175
  %10177 = vmatprep.mubr.bf16.mxu0 %v7696
  %10178 = vmatmul.mubr.bf16.gmra.mrb[0].mxu0 %v7695
  %v10179 = vpop.f32.mrb[0].mxu0
  %v10180 = vadd.f32 %v7662, %v10179
  %v10181 = vpop.f32.mrb[0].mxu0
  %v10182 = vadd.f32 %v7666, %v10181
  %v10183 = vpop.f32.mrb[0].mxu0
  %v10184 = vadd.f32 %v7662, %v10183
  %v10185 = vpop.f32.mrb[0].mxu0
  %v10186 = vadd.f32 %v7666, %v10185
  %10187 = vmatprep.mubr.bf16.mxu0 %v7708
  %10188 = vmatmul.mubr.bf16.gmra.mrb[0].mxu0 %v7707
  %v10189 = vpop.f32.mrb[0].mxu0
  %v10190 = vadd.f32 %v7662, %v10189
  %v10191 = vpop.f32.mrb[0].mxu0
  %v10192 = vadd.f32 %v7666, %v10191
  %v10193 = vpop.f32.mrb[0].mxu0
  %v10194 = vadd.f32 %v7662, %v10193
  %v10195 = vpop.f32.mrb[0].mxu0
  %v10196 = vadd.f32 %v7666, %v10195
  %10197 = vdwg.mxu0
  %10198 = vmatprep.subr.bf16.mxu0 %v8986
  %10199 = vmatpush1.bf16.msra.mxu0 %v8985
  %10200 = vmatprep.subr.bf16.mxu0 %v8990
  %10201 = vmatpush1.bf16.msra.mxu0 %v8989
  %10202 = vmatprep.subr.bf16.mxu0 %v8994
  %10203 = vmatpush1.bf16.msra.mxu0 %v8993
  %10204 = vmatprep.subr.bf16.mxu0 %v8998
  %10205 = vmatpush1.bf16.msra.mxu0 %v8997
  %10206 = vmatprep.subr.bf16.mxu0 %v9002
  %10207 = vmatpush1.bf16.msra.mxu0 %v9001
  %10208 = vmatprep.subr.bf16.mxu0 %v9006
  %10209 = vmatpush1.bf16.msra.mxu0 %v9005
  %10210 = vmatprep.subr.bf16.mxu0 %v9010
  %10211 = vmatpush1.bf16.msra.mxu0 %v9009
  %10212 = vmatprep.subr.bf16.mxu0 %v9014
  %10213 = vmatpush1.bf16.msra.mxu0 %v9013
  %10214 = vmatprep.subr.bf16.mxu0 %v9018
  %10215 = vmatpush1.bf16.msra.mxu0 %v9017
  %10216 = vmatprep.subr.bf16.mxu0 %v9022
  %10217 = vmatpush1.bf16.msra.mxu0 %v9021
  %10218 = vmatprep.subr.bf16.mxu0 %v9026
  %10219 = vmatpush1.bf16.msra.mxu0 %v9025
  %10220 = vmatprep.subr.bf16.mxu0 %v9030
  %10221 = vmatpush1.bf16.msra.mxu0 %v9029
  %10222 = vmatprep.subr.bf16.mxu0 %v9034
  %10223 = vmatpush1.bf16.msra.mxu0 %v9033
  %10224 = vmatprep.subr.bf16.mxu0 %v9038
  %10225 = vmatpush1.bf16.msra.mxu0 %v9037
  %10226 = vmatprep.subr.bf16.mxu0 %v9042
  %10227 = vmatpush1.bf16.msra.mxu0 %v9041
  %10228 = vmatprep.subr.bf16.mxu0 %v9046
  %10229 = vmatpush1.bf16.msra.mxu0 %v9045
  %10230 = vmatprep.mubr.bf16.mxu0 %v7674
  %10231 = vmatmul.mubr.bf16.gmra.mrb[0].mxu0 %v7673
  %v10232 = vpop.f32.mrb[0].mxu0
  %v10233 = vadd.f32 %v10160, %v10232
  %v10234 = vpop.f32.mrb[0].mxu0
  %v10235 = vadd.f32 %v10162, %v10234
  %v10236 = vpop.f32.mrb[0].mxu0
  %v10237 = vadd.f32 %v10164, %v10236
  %v10238 = vpop.f32.mrb[0].mxu0
  %v10239 = vadd.f32 %v10166, %v10238
  %10240 = vmatprep.mubr.bf16.mxu0 %v7686
  %10241 = vmatmul.mubr.bf16.gmra.mrb[0].mxu0 %v7685
  %v10242 = vpop.f32.mrb[0].mxu0
  %v10243 = vadd.f32 %v10170, %v10242
  %v10244 = vpop.f32.mrb[0].mxu0
  %v10245 = vadd.f32 %v10172, %v10244
  %v10246 = vpop.f32.mrb[0].mxu0
  %v10247 = vadd.f32 %v10174, %v10246
  %v10248 = vpop.f32.mrb[0].mxu0
  %v10249 = vadd.f32 %v10176, %v10248
  %10250 = vmatprep.mubr.bf16.mxu0 %v7698
  %10251 = vmatmul.mubr.bf16.gmra.mrb[0].mxu0 %v7697
  %v10252 = vpop.f32.mrb[0].mxu0
  %v10253 = vadd.f32 %v10180, %v10252
  %v10254 = vpop.f32.mrb[0].mxu0
  %v10255 = vadd.f32 %v10182, %v10254
  %v10256 = vpop.f32.mrb[0].mxu0
  %v10257 = vadd.f32 %v10184, %v10256
  %v10258 = vpop.f32.mrb[0].mxu0
  %v10259 = vadd.f32 %v10186, %v10258
  %10260 = vmatprep.mubr.bf16.mxu0 %v7710
  %10261 = vmatmul.mubr.bf16.gmra.mrb[0].mxu0 %v7709
  %v10262 = vpop.f32.mrb[0].mxu0
  %v10263 = vadd.f32 %v10190, %v10262
  %v10264 = vpop.f32.mrb[0].mxu0
  %v10265 = vadd.f32 %v10192, %v10264
  %v10266 = vpop.f32.mrb[0].mxu0
  %v10267 = vadd.f32 %v10194, %v10266
  %v10268 = vpop.f32.mrb[0].mxu0
  %v10269 = vadd.f32 %v10196, %v10268
  %10270 = vdwg.mxu0
  %10271 = vmatprep.subr.bf16.mxu0 %v9050
  %10272 = vmatpush1.bf16.msra.mxu0 %v9049
  %10273 = vmatprep.subr.bf16.mxu0 %v9054
  %10274 = vmatpush1.bf16.msra.mxu0 %v9053
  %10275 = vmatprep.subr.bf16.mxu0 %v9058
  %10276 = vmatpush1.bf16.msra.mxu0 %v9057
  %10277 = vmatprep.subr.bf16.mxu0 %v9062
  %10278 = vmatpush1.bf16.msra.mxu0 %v9061
  %10279 = vmatprep.subr.bf16.mxu0 %v9066
  %10280 = vmatpush1.bf16.msra.mxu0 %v9065
  %10281 = vmatprep.subr.bf16.mxu0 %v9070
  %10282 = vmatpush1.bf16.msra.mxu0 %v9069
  %10283 = vmatprep.subr.bf16.mxu0 %v9074
  %10284 = vmatpush1.bf16.msra.mxu0 %v9073
  %10285 = vmatprep.subr.bf16.mxu0 %v9078
  %10286 = vmatpush1.bf16.msra.mxu0 %v9077
  %10287 = vmatprep.subr.bf16.mxu0 %v9082
  %10288 = vmatpush1.bf16.msra.mxu0 %v9081
  %10289 = vmatprep.subr.bf16.mxu0 %v9086
  %10290 = vmatpush1.bf16.msra.mxu0 %v9085
  %10291 = vmatprep.subr.bf16.mxu0 %v9090
  %10292 = vmatpush1.bf16.msra.mxu0 %v9089
  %10293 = vmatprep.subr.bf16.mxu0 %v9094
  %10294 = vmatpush1.bf16.msra.mxu0 %v9093
  %10295 = vmatprep.subr.bf16.mxu0 %v9098
  %10296 = vmatpush1.bf16.msra.mxu0 %v9097
  %10297 = vmatprep.subr.bf16.mxu0 %v9102
  %10298 = vmatpush1.bf16.msra.mxu0 %v9101
  %10299 = vmatprep.subr.bf16.mxu0 %v9106
  %10300 = vmatpush1.bf16.msra.mxu0 %v9105
  %10301 = vmatprep.subr.bf16.mxu0 %v9110
  %10302 = vmatpush1.bf16.msra.mxu0 %v9109
  %10303 = vmatprep.mubr.bf16.mxu0 %v7676
  %10304 = vmatmul.mubr.bf16.gmra.mrb[0].mxu0 %v7675
  %v10305 = vpop.f32.mrb[0].mxu0
  %v10306 = vadd.f32 %v10233, %v10305
  %v10307 = vpop.f32.mrb[0].mxu0
  %v10308 = vadd.f32 %v10235, %v10307
  %v10309 = vpop.f32.mrb[0].mxu0
  %v10310 = vadd.f32 %v10237, %v10309
  %v10311 = vpop.f32.mrb[0].mxu0
  %v10312 = vadd.f32 %v10239, %v10311
  %10313 = vmatprep.mubr.bf16.mxu0 %v7688
  %10314 = vmatmul.mubr.bf16.gmra.mrb[0].mxu0 %v7687
  %v10315 = vpop.f32.mrb[0].mxu0
  %v10316 = vadd.f32 %v10243, %v10315
  %v10317 = vpop.f32.mrb[0].mxu0
  %v10318 = vadd.f32 %v10245, %v10317
  %v10319 = vpop.f32.mrb[0].mxu0
  %v10320 = vadd.f32 %v10247, %v10319
  %v10321 = vpop.f32.mrb[0].mxu0
  %v10322 = vadd.f32 %v10249, %v10321
  %10323 = vmatprep.mubr.bf16.mxu0 %v7700
  %10324 = vmatmul.mubr.bf16.gmra.mrb[0].mxu0 %v7699
  %v10325 = vpop.f32.mrb[0].mxu0
  %v10326 = vadd.f32 %v10253, %v10325
  %v10327 = vpop.f32.mrb[0].mxu0
  %v10328 = vadd.f32 %v10255, %v10327
  %v10329 = vpop.f32.mrb[0].mxu0
  %v10330 = vadd.f32 %v10257, %v10329
  %v10331 = vpop.f32.mrb[0].mxu0
  %v10332 = vadd.f32 %v10259, %v10331
  %10333 = vmatprep.mubr.bf16.mxu0 %v7712
  %10334 = vmatmul.mubr.bf16.gmra.mrb[0].mxu0 %v7711
  %v10335 = vpop.f32.mrb[0].mxu0
  %v10336 = vadd.f32 %v10263, %v10335
  %v10337 = vpop.f32.mrb[0].mxu0
  %v10338 = vadd.f32 %v10265, %v10337
  %v10339 = vpop.f32.mrb[0].mxu0
  %v10340 = vadd.f32 %v10267, %v10339
  %v10341 = vpop.f32.mrb[0].mxu0
  %v10342 = vadd.f32 %v10269, %v10341
  %10343 = vdwg.mxu0
  %10344 = vmatprep.subr.bf16.mxu0 %v9114
  %10345 = vmatpush1.bf16.msra.mxu0 %v9113
  %10346 = vmatprep.subr.bf16.mxu0 %v9118
  %10347 = vmatpush1.bf16.msra.mxu0 %v9117
  %10348 = vmatprep.subr.bf16.mxu0 %v9122
  %10349 = vmatpush1.bf16.msra.mxu0 %v9121
  %10350 = vmatprep.subr.bf16.mxu0 %v9126
  %10351 = vmatpush1.bf16.msra.mxu0 %v9125
  %10352 = vmatprep.subr.bf16.mxu0 %v9130
  %10353 = vmatpush1.bf16.msra.mxu0 %v9129
  %10354 = vmatprep.subr.bf16.mxu0 %v9134
  %10355 = vmatpush1.bf16.msra.mxu0 %v9133
  %10356 = vmatprep.subr.bf16.mxu0 %v9138
  %10357 = vmatpush1.bf16.msra.mxu0 %v9137
  %10358 = vmatprep.subr.bf16.mxu0 %v9142
  %10359 = vmatpush1.bf16.msra.mxu0 %v9141
  %10360 = vmatprep.subr.bf16.mxu0 %v9146
  %10361 = vmatpush1.bf16.msra.mxu0 %v9145
  %10362 = vmatprep.subr.bf16.mxu0 %v9150
  %10363 = vmatpush1.bf16.msra.mxu0 %v9149
  %10364 = vmatprep.subr.bf16.mxu0 %v9154
  %10365 = vmatpush1.bf16.msra.mxu0 %v9153
  %10366 = vmatprep.subr.bf16.mxu0 %v9158
  %10367 = vmatpush1.bf16.msra.mxu0 %v9157
  %10368 = vmatprep.subr.bf16.mxu0 %v9162
  %10369 = vmatpush1.bf16.msra.mxu0 %v9161
  %10370 = vmatprep.subr.bf16.mxu0 %v9166
  %10371 = vmatpush1.bf16.msra.mxu0 %v9165
  %10372 = vmatprep.subr.bf16.mxu0 %v9170
  %10373 = vmatpush1.bf16.msra.mxu0 %v9169
  %10374 = vmatprep.subr.bf16.mxu0 %v9174
  %10375 = vmatpush1.bf16.msra.mxu0 %v9173
  %10376 = vmatprep.mubr.bf16.mxu0 %v7678
  %10377 = vmatmul.mubr.bf16.gmra.mrb[0].mxu0 %v7677
  %v10378 = vpop.f32.mrb[0].mxu0
  %v10379 = vadd.f32 %v10306, %v10378
  %v10380 = vpop.f32.mrb[0].mxu0
  %v10381 = vadd.f32 %v10308, %v10380
  %v10382 = vpop.f32.mrb[0].mxu0
  %v10383 = vadd.f32 %v10310, %v10382
  %v10384 = vpop.f32.mrb[0].mxu0
  %v10385 = vadd.f32 %v10312, %v10384
  %10386 = vmatprep.mubr.bf16.mxu0 %v7690
  %10387 = vmatmul.mubr.bf16.gmra.mrb[0].mxu0 %v7689
  %v10388 = vpop.f32.mrb[0].mxu0
  %v10389 = vadd.f32 %v10316, %v10388
  %v10390 = vpop.f32.mrb[0].mxu0
  %v10391 = vadd.f32 %v10318, %v10390
  %v10392 = vpop.f32.mrb[0].mxu0
  %v10393 = vadd.f32 %v10320, %v10392
  %v10394 = vpop.f32.mrb[0].mxu0
  %v10395 = vadd.f32 %v10322, %v10394
  %10396 = vmatprep.mubr.bf16.mxu0 %v7702
  %10397 = vmatmul.mubr.bf16.gmra.mrb[0].mxu0 %v7701
  %v10398 = vpop.f32.mrb[0].mxu0
  %v10399 = vadd.f32 %v10326, %v10398
  %v10400 = vpop.f32.mrb[0].mxu0
  %v10401 = vadd.f32 %v10328, %v10400
  %v10402 = vpop.f32.mrb[0].mxu0
  %v10403 = vadd.f32 %v10330, %v10402
  %v10404 = vpop.f32.mrb[0].mxu0
  %v10405 = vadd.f32 %v10332, %v10404
  %10406 = vmatprep.mubr.bf16.mxu0 %v7714
  %10407 = vmatmul.mubr.bf16.gmra.mrb[0].mxu0 %v7713
  %v10408 = vpop.f32.mrb[0].mxu0
  %v10409 = vadd.f32 %v10336, %v10408
  %v10410 = vpop.f32.mrb[0].mxu0
  %v10411 = vadd.f32 %v10338, %v10410
  %v10412 = vpop.f32.mrb[0].mxu0
  %v10413 = vadd.f32 %v10340, %v10412
  %v10414 = vpop.f32.mrb[0].mxu0
  %v10415 = vadd.f32 %v10342, %v10414
  %10416 = vdwg.mxu0
  %10417 = vmatprep.subr.bf16.mxu0 %v9178
  %10418 = vmatpush1.bf16.msra.mxu0 %v9177
  %10419 = vmatprep.subr.bf16.mxu0 %v9182
  %10420 = vmatpush1.bf16.msra.mxu0 %v9181
  %10421 = vmatprep.subr.bf16.mxu0 %v9186
  %10422 = vmatpush1.bf16.msra.mxu0 %v9185
  %10423 = vmatprep.subr.bf16.mxu0 %v9190
  %10424 = vmatpush1.bf16.msra.mxu0 %v9189
  %10425 = vmatprep.subr.bf16.mxu0 %v9194
  %10426 = vmatpush1.bf16.msra.mxu0 %v9193
  %10427 = vmatprep.subr.bf16.mxu0 %v9198
  %10428 = vmatpush1.bf16.msra.mxu0 %v9197
  %10429 = vmatprep.subr.bf16.mxu0 %v9202
  %10430 = vmatpush1.bf16.msra.mxu0 %v9201
  %10431 = vmatprep.subr.bf16.mxu0 %v9206
  %10432 = vmatpush1.bf16.msra.mxu0 %v9205
  %10433 = vmatprep.subr.bf16.mxu0 %v9210
  %10434 = vmatpush1.bf16.msra.mxu0 %v9209
  %10435 = vmatprep.subr.bf16.mxu0 %v9214
  %10436 = vmatpush1.bf16.msra.mxu0 %v9213
  %10437 = vmatprep.subr.bf16.mxu0 %v9218
  %10438 = vmatpush1.bf16.msra.mxu0 %v9217
  %10439 = vmatprep.subr.bf16.mxu0 %v9222
  %10440 = vmatpush1.bf16.msra.mxu0 %v9221
  %10441 = vmatprep.subr.bf16.mxu0 %v9226
  %10442 = vmatpush1.bf16.msra.mxu0 %v9225
  %10443 = vmatprep.subr.bf16.mxu0 %v9230
  %10444 = vmatpush1.bf16.msra.mxu0 %v9229
  %10445 = vmatprep.subr.bf16.mxu0 %v9234
  %10446 = vmatpush1.bf16.msra.mxu0 %v9233
  %10447 = vmatprep.subr.bf16.mxu0 %v9238
  %10448 = vmatpush1.bf16.msra.mxu0 %v9237
  %10449 = vmatprep.mubr.bf16.mxu0 %v7680
  %10450 = vmatmul.mubr.bf16.gmra.mrb[0].mxu0 %v7679
  %v10451 = vpop.f32.mrb[0].mxu0
  %v10452 = vadd.f32 %v10379, %v10451
  %v10453 = vpop.f32.mrb[0].mxu0
  %v10454 = vadd.f32 %v10381, %v10453
  %v10455 = vpop.f32.mrb[0].mxu0
  %v10456 = vadd.f32 %v10383, %v10455
  %v10457 = vpop.f32.mrb[0].mxu0
  %v10458 = vadd.f32 %v10385, %v10457
  %10459 = vmatprep.mubr.bf16.mxu0 %v7692
  %10460 = vmatmul.mubr.bf16.gmra.mrb[0].mxu0 %v7691
  %v10461 = vpop.f32.mrb[0].mxu0
  %v10462 = vadd.f32 %v10389, %v10461
  %v10463 = vpop.f32.mrb[0].mxu0
  %v10464 = vadd.f32 %v10391, %v10463
  %v10465 = vpop.f32.mrb[0].mxu0
  %v10466 = vadd.f32 %v10393, %v10465
  %v10467 = vpop.f32.mrb[0].mxu0
  %v10468 = vadd.f32 %v10395, %v10467
  %10469 = vmatprep.mubr.bf16.mxu0 %v7704
  %10470 = vmatmul.mubr.bf16.gmra.mrb[0].mxu0 %v7703
  %v10471 = vpop.f32.mrb[0].mxu0
  %v10472 = vadd.f32 %v10399, %v10471
  %v10473 = vpop.f32.mrb[0].mxu0
  %v10474 = vadd.f32 %v10401, %v10473
  %v10475 = vpop.f32.mrb[0].mxu0
  %v10476 = vadd.f32 %v10403, %v10475
  %v10477 = vpop.f32.mrb[0].mxu0
  %v10478 = vadd.f32 %v10405, %v10477
  %10479 = vmatprep.mubr.bf16.mxu0 %v7716
  %10480 = vmatmul.mubr.bf16.gmra.mrb[0].mxu0 %v7715
  %v10481 = vpop.f32.mrb[0].mxu0
  %v10482 = vadd.f32 %v10409, %v10481
  %v10483 = vpop.f32.mrb[0].mxu0
  %v10484 = vadd.f32 %v10411, %v10483
  %v10485 = vpop.f32.mrb[0].mxu0
  %v10486 = vadd.f32 %v10413, %v10485
  %v10487 = vpop.f32.mrb[0].mxu0
  %v10488 = vadd.f32 %v10415, %v10487
  %10489 = vdwg.mxu0
  %10490 = vmatprep.subr.bf16.mxu0 %v9242
  %10491 = vmatpush1.bf16.msra.mxu0 %v9241
  %10492 = vmatprep.subr.bf16.mxu0 %v9246
  %10493 = vmatpush1.bf16.msra.mxu0 %v9245
  %10494 = vmatprep.subr.bf16.mxu0 %v9250
  %10495 = vmatpush1.bf16.msra.mxu0 %v9249
  %10496 = vmatprep.subr.bf16.mxu0 %v9254
  %10497 = vmatpush1.bf16.msra.mxu0 %v9253
  %10498 = vmatprep.subr.bf16.mxu0 %v9258
  %10499 = vmatpush1.bf16.msra.mxu0 %v9257
  %10500 = vmatprep.subr.bf16.mxu0 %v9262
  %10501 = vmatpush1.bf16.msra.mxu0 %v9261
  %10502 = vmatprep.subr.bf16.mxu0 %v9266
  %10503 = vmatpush1.bf16.msra.mxu0 %v9265
  %10504 = vmatprep.subr.bf16.mxu0 %v9270
  %10505 = vmatpush1.bf16.msra.mxu0 %v9269
  %10506 = vmatprep.subr.bf16.mxu0 %v9274
  %10507 = vmatpush1.bf16.msra.mxu0 %v9273
  %10508 = vmatprep.subr.bf16.mxu0 %v9278
  %10509 = vmatpush1.bf16.msra.mxu0 %v9277
  %10510 = vmatprep.subr.bf16.mxu0 %v9282
  %10511 = vmatpush1.bf16.msra.mxu0 %v9281
  %10512 = vmatprep.subr.bf16.mxu0 %v9286
  %10513 = vmatpush1.bf16.msra.mxu0 %v9285
  %10514 = vmatprep.subr.bf16.mxu0 %v9290
  %10515 = vmatpush1.bf16.msra.mxu0 %v9289
  %10516 = vmatprep.subr.bf16.mxu0 %v9294
  %10517 = vmatpush1.bf16.msra.mxu0 %v9293
  %10518 = vmatprep.subr.bf16.mxu0 %v9298
  %10519 = vmatpush1.bf16.msra.mxu0 %v9297
  %10520 = vmatprep.subr.bf16.mxu0 %v9302
  %10521 = vmatpush1.bf16.msra.mxu0 %v9301
  %10522 = vmatprep.mubr.bf16.mxu0 %v7682
  %10523 = vmatmul.mubr.bf16.gmra.mrb[0].mxu0 %v7681
  %v10524 = vpop.f32.mrb[0].mxu0
  %v10525 = vadd.f32 %v10452, %v10524
  %v10526 = vpop.f32.mrb[0].mxu0
  %v10527 = vadd.f32 %v10454, %v10526
  %v10528 = vpop.f32.mrb[0].mxu0
  %v10529 = vadd.f32 %v10456, %v10528
  %v10530 = vpop.f32.mrb[0].mxu0
  %v10531 = vadd.f32 %v10458, %v10530
  %10532 = vmatprep.mubr.bf16.mxu0 %v7694
  %10533 = vmatmul.mubr.bf16.gmra.mrb[0].mxu0 %v7693
  %v10534 = vpop.f32.mrb[0].mxu0
  %v10535 = vadd.f32 %v10462, %v10534
  %v10536 = vpop.f32.mrb[0].mxu0
  %v10537 = vadd.f32 %v10464, %v10536
  %v10538 = vpop.f32.mrb[0].mxu0
  %v10539 = vadd.f32 %v10466, %v10538
  %v10540 = vpop.f32.mrb[0].mxu0
  %v10541 = vadd.f32 %v10468, %v10540
  %10542 = vmatprep.mubr.bf16.mxu0 %v7706
  %10543 = vmatmul.mubr.bf16.gmra.mrb[0].mxu0 %v7705
  %v10544 = vpop.f32.mrb[0].mxu0
  %v10545 = vadd.f32 %v10472, %v10544
  %v10546 = vpop.f32.mrb[0].mxu0
  %v10547 = vadd.f32 %v10474, %v10546
  %v10548 = vpop.f32.mrb[0].mxu0
  %v10549 = vadd.f32 %v10476, %v10548
  %v10550 = vpop.f32.mrb[0].mxu0
  %v10551 = vadd.f32 %v10478, %v10550
  %10552 = vmatprep.mubr.bf16.mxu0 %v7718
  %10553 = vmatmul.mubr.bf16.gmra.mrb[0].mxu0 %v7717
  %v10554 = vpop.f32.mrb[0].mxu0
  %v10555 = vadd.f32 %v10482, %v10554
  %v10556 = vpop.f32.mrb[0].mxu0
  %v10557 = vadd.f32 %v10484, %v10556
  %v10558 = vpop.f32.mrb[0].mxu0
  %v10559 = vadd.f32 %v10486, %v10558
  %v10560 = vpop.f32.mrb[0].mxu0
  %v10561 = vadd.f32 %v10488, %v10560
  %10562 = vdwg.mxu0
  %v10563 = vmax.f32 %v10087, 0.0
  %v10564 = vmax.f32 %v10089, 0.0
  %v10565 = vmax.f32 %v10525, 0.0
  %v10566 = vmax.f32 %v10527, 0.0
  %v10567 = vmax.f32 %v10091, 0.0
  %v10568 = vmax.f32 %v10093, 0.0
  %v10569 = vmax.f32 %v10529, 0.0
  %v10570 = vmax.f32 %v10531, 0.0
  %v10571 = vmax.f32 %v10097, 0.0
  %v10572 = vmax.f32 %v10099, 0.0
  %v10573 = vmax.f32 %v10535, 0.0
  %v10574 = vmax.f32 %v10537, 0.0
  %v10575 = vmax.f32 %v10101, 0.0
  %v10576 = vmax.f32 %v10103, 0.0
  %v10577 = vmax.f32 %v10539, 0.0
  %v10578 = vmax.f32 %v10541, 0.0
  %v10579 = vmax.f32 %v10107, 0.0
  %v10580 = vmax.f32 %v10109, 0.0
  %v10581 = vmax.f32 %v10545, 0.0
  %v10582 = vmax.f32 %v10547, 0.0
  %v10583 = vmax.f32 %v10111, 0.0
  %v10584 = vmax.f32 %v10113, 0.0
  %v10585 = vmax.f32 %v10549, 0.0
  %v10586 = vmax.f32 %v10551, 0.0
  %v10587 = vmax.f32 %v10117, 0.0
  %v10588 = vmax.f32 %v10119, 0.0
  %v10589 = vmax.f32 %v10555, 0.0
  %v10590 = vmax.f32 %v10557, 0.0
  %v10591 = vmax.f32 %v10121, 0.0
  %v10592 = vmax.f32 %v10123, 0.0
  %v10593 = vmax.f32 %v10559, 0.0
  %v10594 = vmax.f32 %v10561, 0.0
  %v10595 = vpack.c.bf16 %v10567, %v10563
  %v10596 = vpack.c.bf16 %v10568, %v10564
  %v10597 = vpack.c.bf16 %v10569, %v10565
  %v10598 = vpack.c.bf16 %v10570, %v10566
  %v10599 = vpack.c.bf16 %v10575, %v10571
  %v10600 = vpack.c.bf16 %v10576, %v10572
  %v10601 = vpack.c.bf16 %v10577, %v10573
  %v10602 = vpack.c.bf16 %v10578, %v10574
  %v10603 = vpack.c.bf16 %v10583, %v10579
  %v10604 = vpack.c.bf16 %v10584, %v10580
  %v10605 = vpack.c.bf16 %v10585, %v10581
  %v10606 = vpack.c.bf16 %v10586, %v10582
  %v10607 = vpack.c.bf16 %v10591, %v10587
  %v10608 = vpack.c.bf16 %v10592, %v10588
  %v10609 = vpack.c.bf16 %v10593, %v10589
  %v10610 = vpack.c.bf16 %v10594, %v10590
  %v10627 = vunpack.c.l.b16 %v10595
  %v10628 = vunpack.c.l.b16 %v10596
  %v10629 = vunpack.c.l.b16 %v10597
  %v10630 = vunpack.c.l.b16 %v10598
  %v10631 = vunpack.c.h.b16 %v10595
  %v10632 = vunpack.c.h.b16 %v10596
  %v10633 = vunpack.c.h.b16 %v10597
  %v10634 = vunpack.c.h.b16 %v10598
  %v10635 = vunpack.c.l.b16 %v10599
  %v10636 = vunpack.c.l.b16 %v10600
  %v10637 = vunpack.c.l.b16 %v10601
  %v10638 = vunpack.c.l.b16 %v10602
  %v10639 = vunpack.c.h.b16 %v10599
  %v10640 = vunpack.c.h.b16 %v10600
  %v10641 = vunpack.c.h.b16 %v10601
  %v10642 = vunpack.c.h.b16 %v10602
  %v10643 = vunpack.c.l.b16 %v10603
  %v10644 = vunpack.c.l.b16 %v10604
  %v10645 = vunpack.c.l.b16 %v10605
  %v10646 = vunpack.c.l.b16 %v10606
  %v10647 = vunpack.c.h.b16 %v10603
  %v10648 = vunpack.c.h.b16 %v10604
  %v10649 = vunpack.c.h.b16 %v10605
  %v10650 = vunpack.c.h.b16 %v10606
  %v10651 = vunpack.c.l.b16 %v10607
  %v10652 = vunpack.c.l.b16 %v10608
  %v10653 = vunpack.c.l.b16 %v10609
  %v10654 = vunpack.c.l.b16 %v10610
  %v10655 = vunpack.c.h.b16 %v10607
  %v10656 = vunpack.c.h.b16 %v10608
  %v10657 = vunpack.c.h.b16 %v10609
  %v10658 = vunpack.c.h.b16 %v10610
  %v10659 = vpack.c.b16 %v10627, %v10627
  %v10660 = vpack.c.b16 %v10628, %v10628
  %v10661 = vpack.c.b16 %v10629, %v10629
  %v10662 = vpack.c.b16 %v10630, %v10630
  %v10667 = vpack.c.b16 %v10631, %v10631
  %v10668 = vpack.c.b16 %v10632, %v10632
  %v10669 = vpack.c.b16 %v10633, %v10633
  %v10670 = vpack.c.b16 %v10634, %v10634
  %v10675 = vpack.c.b16 %v10635, %v10635
  %v10676 = vpack.c.b16 %v10636, %v10636
  %v10677 = vpack.c.b16 %v10637, %v10637
  %v10678 = vpack.c.b16 %v10638, %v10638
  %v10683 = vpack.c.b16 %v10639, %v10639
  %v10684 = vpack.c.b16 %v10640, %v10640
  %v10685 = vpack.c.b16 %v10641, %v10641
  %v10686 = vpack.c.b16 %v10642, %v10642
  %v10691 = vpack.c.b16 %v10643, %v10643
  %v10692 = vpack.c.b16 %v10644, %v10644
  %v10693 = vpack.c.b16 %v10645, %v10645
  %v10694 = vpack.c.b16 %v10646, %v10646
  %v10699 = vpack.c.b16 %v10647, %v10647
  %v10700 = vpack.c.b16 %v10648, %v10648
  %v10701 = vpack.c.b16 %v10649, %v10649
  %v10702 = vpack.c.b16 %v10650, %v10650
  %v10707 = vpack.c.b16 %v10651, %v10651
  %v10708 = vpack.c.b16 %v10652, %v10652
  %v10709 = vpack.c.b16 %v10653, %v10653
  %v10710 = vpack.c.b16 %v10654, %v10654
  %v10715 = vpack.c.b16 %v10655, %v10655
  %v10716 = vpack.c.b16 %v10656, %v10656
  %v10717 = vpack.c.b16 %v10657, %v10657
  %v10718 = vpack.c.b16 %v10658, %v10658
  %v10723 = vld [vmem:[%s7] sm:$0xf]
  %v10724 = vld [vmem:[%s7 + $0x4] sm:$0xf]
  %v10725 = vld [vmem:[%s7 + $0x8] sm:$0xf]
  %v10726 = vld [vmem:[%s7 + $0xc] sm:$0xf]
  %v10727 = vld [vmem:[%s7 + $0x10] sm:$0xf]
  %v10728 = vld [vmem:[%s7 + $0x14] sm:$0xf]
  %v10729 = vld [vmem:[%s7 + $0x18] sm:$0xf]
  %v10730 = vld [vmem:[%s7 + $0x1c] sm:$0xf]
  %v10731 = vld [vmem:[%s7 + $0x20] sm:$0xf]
  %v10732 = vld [vmem:[%s7 + $0x24] sm:$0xf]
  %v10733 = vld [vmem:[%s7 + $0x28] sm:$0xf]
  %v10734 = vld [vmem:[%s7 + $0x2c] sm:$0xf]
  %v10735 = vld [vmem:[%s7 + $0x30] sm:$0xf]
  %v10736 = vld [vmem:[%s7 + $0x34] sm:$0xf]
  %v10737 = vld [vmem:[%s7 + $0x38] sm:$0xf]
  %v10738 = vld [vmem:[%s7 + $0x3c] sm:$0xf]
  %v10739 = vld [vmem:[%s7 + $0x40] sm:$0xf]
  %v10740 = vld [vmem:[%s7 + $0x44] sm:$0xf]
  %v10741 = vld [vmem:[%s7 + $0x48] sm:$0xf]
  %v10742 = vld [vmem:[%s7 + $0x4c] sm:$0xf]
  %v10743 = vld [vmem:[%s7 + $0x50] sm:$0xf]
  %v10744 = vld [vmem:[%s7 + $0x54] sm:$0xf]
  %v10745 = vld [vmem:[%s7 + $0x58] sm:$0xf]
  %v10746 = vld [vmem:[%s7 + $0x5c] sm:$0xf]
  %v10747 = vld [vmem:[%s7 + $0x60] sm:$0xf]
  %v10748 = vld [vmem:[%s7 + $0x64] sm:$0xf]
  %v10749 = vld [vmem:[%s7 + $0x68] sm:$0xf]
  %v10750 = vld [vmem:[%s7 + $0x6c] sm:$0xf]
  %v10751 = vld [vmem:[%s7 + $0x70] sm:$0xf]
  %v10752 = vld [vmem:[%s7 + $0x74] sm:$0xf]
  %v10753 = vld [vmem:[%s7 + $0x78] sm:$0xf]
  %v10754 = vld [vmem:[%s7 + $0x7c] sm:$0xf]
  %v10755 = vld [vmem:[%s7 + $0x80] sm:$0xf]
  %v10756 = vld [vmem:[%s7 + $0x84] sm:$0xf]
  %v10757 = vld [vmem:[%s7 + $0x88] sm:$0xf]
  %v10758 = vld [vmem:[%s7 + $0x8c] sm:$0xf]
  %v10759 = vld [vmem:[%s7 + $0x90] sm:$0xf]
  %v10760 = vld [vmem:[%s7 + $0x94] sm:$0xf]
  %v10761 = vld [vmem:[%s7 + $0x98] sm:$0xf]
  %v10762 = vld [vmem:[%s7 + $0x9c] sm:$0xf]
  %v10763 = vld [vmem:[%s7 + $0xa0] sm:$0xf]
  %v10764 = vld [vmem:[%s7 + $0xa4] sm:$0xf]
  %v10765 = vld [vmem:[%s7 + $0xa8] sm:$0xf]
  %v10766 = vld [vmem:[%s7 + $0xac] sm:$0xf]
  %v10767 = vld [vmem:[%s7 + $0xb0] sm:$0xf]
  %v10768 = vld [vmem:[%s7 + $0xb4] sm:$0xf]
  %v10769 = vld [vmem:[%s7 + $0xb8] sm:$0xf]
  %v10770 = vld [vmem:[%s7 + $0xbc] sm:$0xf]
  %v10771 = vld [vmem:[%s7 + $0xc0] sm:$0xf]
  %v10772 = vld [vmem:[%s7 + $0xc4] sm:$0xf]
  %v10773 = vld [vmem:[%s7 + $0xc8] sm:$0xf]
  %v10774 = vld [vmem:[%s7 + $0xcc] sm:$0xf]
  %v10775 = vld [vmem:[%s7 + $0xd0] sm:$0xf]
  %v10776 = vld [vmem:[%s7 + $0xd4] sm:$0xf]
  %v10777 = vld [vmem:[%s7 + $0xd8] sm:$0xf]
  %v10778 = vld [vmem:[%s7 + $0xdc] sm:$0xf]
  %v10779 = vld [vmem:[%s7 + $0xe0] sm:$0xf]
  %v10780 = vld [vmem:[%s7 + $0xe4] sm:$0xf]
  %v10781 = vld [vmem:[%s7 + $0xe8] sm:$0xf]
  %v10782 = vld [vmem:[%s7 + $0xec] sm:$0xf]
  %v10783 = vld [vmem:[%s7 + $0xf0] sm:$0xf]
  %v10784 = vld [vmem:[%s7 + $0xf4] sm:$0xf]
  %v10785 = vld [vmem:[%s7 + $0xf8] sm:$0xf]
  %v10786 = vld [vmem:[%s7 + $0xfc] sm:$0xf]
  %v10787 = vld [vmem:[%s7 + $0x100] sm:$0xf]
  %v10788 = vld [vmem:[%s7 + $0x104] sm:$0xf]
  %v10789 = vld [vmem:[%s7 + $0x108] sm:$0xf]
  %v10790 = vld [vmem:[%s7 + $0x10c] sm:$0xf]
  %v10791 = vld [vmem:[%s7 + $0x110] sm:$0xf]
  %v10792 = vld [vmem:[%s7 + $0x114] sm:$0xf]
  %v10793 = vld [vmem:[%s7 + $0x118] sm:$0xf]
  %v10794 = vld [vmem:[%s7 + $0x11c] sm:$0xf]
  %v10795 = vld [vmem:[%s7 + $0x120] sm:$0xf]
  %v10796 = vld [vmem:[%s7 + $0x124] sm:$0xf]
  %v10797 = vld [vmem:[%s7 + $0x128] sm:$0xf]
  %v10798 = vld [vmem:[%s7 + $0x12c] sm:$0xf]
  %v10799 = vld [vmem:[%s7 + $0x130] sm:$0xf]
  %v10800 = vld [vmem:[%s7 + $0x134] sm:$0xf]
  %v10801 = vld [vmem:[%s7 + $0x138] sm:$0xf]
  %v10802 = vld [vmem:[%s7 + $0x13c] sm:$0xf]
  %v10803 = vld [vmem:[%s7 + $0x140] sm:$0xf]
  %v10804 = vld [vmem:[%s7 + $0x144] sm:$0xf]
  %v10805 = vld [vmem:[%s7 + $0x148] sm:$0xf]
  %v10806 = vld [vmem:[%s7 + $0x14c] sm:$0xf]
  %v10807 = vld [vmem:[%s7 + $0x150] sm:$0xf]
  %v10808 = vld [vmem:[%s7 + $0x154] sm:$0xf]
  %v10809 = vld [vmem:[%s7 + $0x158] sm:$0xf]
  %v10810 = vld [vmem:[%s7 + $0x15c] sm:$0xf]
  %v10811 = vld [vmem:[%s7 + $0x160] sm:$0xf]
  %v10812 = vld [vmem:[%s7 + $0x164] sm:$0xf]
  %v10813 = vld [vmem:[%s7 + $0x168] sm:$0xf]
  %v10814 = vld [vmem:[%s7 + $0x16c] sm:$0xf]
  %v10815 = vld [vmem:[%s7 + $0x170] sm:$0xf]
  %v10816 = vld [vmem:[%s7 + $0x174] sm:$0xf]
  %v10817 = vld [vmem:[%s7 + $0x178] sm:$0xf]
  %v10818 = vld [vmem:[%s7 + $0x17c] sm:$0xf]
  %v10819 = vld [vmem:[%s7 + $0x180] sm:$0xf]
  %v10820 = vld [vmem:[%s7 + $0x184] sm:$0xf]
  %v10821 = vld [vmem:[%s7 + $0x188] sm:$0xf]
  %v10822 = vld [vmem:[%s7 + $0x18c] sm:$0xf]
  %v10823 = vld [vmem:[%s7 + $0x190] sm:$0xf]
  %v10824 = vld [vmem:[%s7 + $0x194] sm:$0xf]
  %v10825 = vld [vmem:[%s7 + $0x198] sm:$0xf]
  %v10826 = vld [vmem:[%s7 + $0x19c] sm:$0xf]
  %v10827 = vld [vmem:[%s7 + $0x1a0] sm:$0xf]
  %v10828 = vld [vmem:[%s7 + $0x1a4] sm:$0xf]
  %v10829 = vld [vmem:[%s7 + $0x1a8] sm:$0xf]
  %v10830 = vld [vmem:[%s7 + $0x1ac] sm:$0xf]
  %v10831 = vld [vmem:[%s7 + $0x1b0] sm:$0xf]
  %v10832 = vld [vmem:[%s7 + $0x1b4] sm:$0xf]
  %v10833 = vld [vmem:[%s7 + $0x1b8] sm:$0xf]
  %v10834 = vld [vmem:[%s7 + $0x1bc] sm:$0xf]
  %v10835 = vld [vmem:[%s7 + $0x1c0] sm:$0xf]
  %v10836 = vld [vmem:[%s7 + $0x1c4] sm:$0xf]
  %v10837 = vld [vmem:[%s7 + $0x1c8] sm:$0xf]
  %v10838 = vld [vmem:[%s7 + $0x1cc] sm:$0xf]
  %v10839 = vld [vmem:[%s7 + $0x1d0] sm:$0xf]
  %v10840 = vld [vmem:[%s7 + $0x1d4] sm:$0xf]
  %v10841 = vld [vmem:[%s7 + $0x1d8] sm:$0xf]
  %v10842 = vld [vmem:[%s7 + $0x1dc] sm:$0xf]
  %v10843 = vld [vmem:[%s7 + $0x1e0] sm:$0xf]
  %v10844 = vld [vmem:[%s7 + $0x1e4] sm:$0xf]
  %v10845 = vld [vmem:[%s7 + $0x1e8] sm:$0xf]
  %v10846 = vld [vmem:[%s7 + $0x1ec] sm:$0xf]
  %v10847 = vld [vmem:[%s7 + $0x1f0] sm:$0xf]
  %v10848 = vld [vmem:[%s7 + $0x1f4] sm:$0xf]
  %v10849 = vld [vmem:[%s7 + $0x1f8] sm:$0xf]
  %v10850 = vld [vmem:[%s7 + $0x1fc] sm:$0xf]
  %v10851 = vld [vmem:[%s7 + $0x200] sm:$0xf]
  %v10852 = vld [vmem:[%s7 + $0x204] sm:$0xf]
  %v10853 = vld [vmem:[%s7 + $0x208] sm:$0xf]
  %v10854 = vld [vmem:[%s7 + $0x20c] sm:$0xf]
  %v10855 = vld [vmem:[%s7 + $0x210] sm:$0xf]
  %v10856 = vld [vmem:[%s7 + $0x214] sm:$0xf]
  %v10857 = vld [vmem:[%s7 + $0x218] sm:$0xf]
  %v10858 = vld [vmem:[%s7 + $0x21c] sm:$0xf]
  %v10859 = vld [vmem:[%s7 + $0x220] sm:$0xf]
  %v10860 = vld [vmem:[%s7 + $0x224] sm:$0xf]
  %v10861 = vld [vmem:[%s7 + $0x228] sm:$0xf]
  %v10862 = vld [vmem:[%s7 + $0x22c] sm:$0xf]
  %v10863 = vld [vmem:[%s7 + $0x230] sm:$0xf]
  %v10864 = vld [vmem:[%s7 + $0x234] sm:$0xf]
  %v10865 = vld [vmem:[%s7 + $0x238] sm:$0xf]
  %v10866 = vld [vmem:[%s7 + $0x23c] sm:$0xf]
  %v10867 = vld [vmem:[%s7 + $0x240] sm:$0xf]
  %v10868 = vld [vmem:[%s7 + $0x244] sm:$0xf]
  %v10869 = vld [vmem:[%s7 + $0x248] sm:$0xf]
  %v10870 = vld [vmem:[%s7 + $0x24c] sm:$0xf]
  %v10871 = vld [vmem:[%s7 + $0x250] sm:$0xf]
  %v10872 = vld [vmem:[%s7 + $0x254] sm:$0xf]
  %v10873 = vld [vmem:[%s7 + $0x258] sm:$0xf]
  %v10874 = vld [vmem:[%s7 + $0x25c] sm:$0xf]
  %v10875 = vld [vmem:[%s7 + $0x260] sm:$0xf]
  %v10876 = vld [vmem:[%s7 + $0x264] sm:$0xf]
  %v10877 = vld [vmem:[%s7 + $0x268] sm:$0xf]
  %v10878 = vld [vmem:[%s7 + $0x26c] sm:$0xf]
  %v10879 = vld [vmem:[%s7 + $0x270] sm:$0xf]
  %v10880 = vld [vmem:[%s7 + $0x274] sm:$0xf]
  %v10881 = vld [vmem:[%s7 + $0x278] sm:$0xf]
  %v10882 = vld [vmem:[%s7 + $0x27c] sm:$0xf]
  %v10883 = vld [vmem:[%s7 + $0x280] sm:$0xf]
  %v10884 = vld [vmem:[%s7 + $0x284] sm:$0xf]
  %v10885 = vld [vmem:[%s7 + $0x288] sm:$0xf]
  %v10886 = vld [vmem:[%s7 + $0x28c] sm:$0xf]
  %v10887 = vld [vmem:[%s7 + $0x290] sm:$0xf]
  %v10888 = vld [vmem:[%s7 + $0x294] sm:$0xf]
  %v10889 = vld [vmem:[%s7 + $0x298] sm:$0xf]
  %v10890 = vld [vmem:[%s7 + $0x29c] sm:$0xf]
  %v10891 = vld [vmem:[%s7 + $0x2a0] sm:$0xf]
  %v10892 = vld [vmem:[%s7 + $0x2a4] sm:$0xf]
  %v10893 = vld [vmem:[%s7 + $0x2a8] sm:$0xf]
  %v10894 = vld [vmem:[%s7 + $0x2ac] sm:$0xf]
  %v10895 = vld [vmem:[%s7 + $0x2b0] sm:$0xf]
  %v10896 = vld [vmem:[%s7 + $0x2b4] sm:$0xf]
  %v10897 = vld [vmem:[%s7 + $0x2b8] sm:$0xf]
  %v10898 = vld [vmem:[%s7 + $0x2bc] sm:$0xf]
  %v10899 = vld [vmem:[%s7 + $0x2c0] sm:$0xf]
  %v10900 = vld [vmem:[%s7 + $0x2c4] sm:$0xf]
  %v10901 = vld [vmem:[%s7 + $0x2c8] sm:$0xf]
  %v10902 = vld [vmem:[%s7 + $0x2cc] sm:$0xf]
  %v10903 = vld [vmem:[%s7 + $0x2d0] sm:$0xf]
  %v10904 = vld [vmem:[%s7 + $0x2d4] sm:$0xf]
  %v10905 = vld [vmem:[%s7 + $0x2d8] sm:$0xf]
  %v10906 = vld [vmem:[%s7 + $0x2dc] sm:$0xf]
  %v10907 = vld [vmem:[%s7 + $0x2e0] sm:$0xf]
  %v10908 = vld [vmem:[%s7 + $0x2e4] sm:$0xf]
  %v10909 = vld [vmem:[%s7 + $0x2e8] sm:$0xf]
  %v10910 = vld [vmem:[%s7 + $0x2ec] sm:$0xf]
  %v10911 = vld [vmem:[%s7 + $0x2f0] sm:$0xf]
  %v10912 = vld [vmem:[%s7 + $0x2f4] sm:$0xf]
  %v10913 = vld [vmem:[%s7 + $0x2f8] sm:$0xf]
  %v10914 = vld [vmem:[%s7 + $0x2fc] sm:$0xf]
  %v10915 = vld [vmem:[%s7 + $0x300] sm:$0xf]
  %v10916 = vld [vmem:[%s7 + $0x304] sm:$0xf]
  %v10917 = vld [vmem:[%s7 + $0x308] sm:$0xf]
  %v10918 = vld [vmem:[%s7 + $0x30c] sm:$0xf]
  %v10919 = vld [vmem:[%s7 + $0x310] sm:$0xf]
  %v10920 = vld [vmem:[%s7 + $0x314] sm:$0xf]
  %v10921 = vld [vmem:[%s7 + $0x318] sm:$0xf]
  %v10922 = vld [vmem:[%s7 + $0x31c] sm:$0xf]
  %v10923 = vld [vmem:[%s7 + $0x320] sm:$0xf]
  %v10924 = vld [vmem:[%s7 + $0x324] sm:$0xf]
  %v10925 = vld [vmem:[%s7 + $0x328] sm:$0xf]
  %v10926 = vld [vmem:[%s7 + $0x32c] sm:$0xf]
  %v10927 = vld [vmem:[%s7 + $0x330] sm:$0xf]
  %v10928 = vld [vmem:[%s7 + $0x334] sm:$0xf]
  %v10929 = vld [vmem:[%s7 + $0x338] sm:$0xf]
  %v10930 = vld [vmem:[%s7 + $0x33c] sm:$0xf]
  %v10931 = vld [vmem:[%s7 + $0x340] sm:$0xf]
  %v10932 = vld [vmem:[%s7 + $0x344] sm:$0xf]
  %v10933 = vld [vmem:[%s7 + $0x348] sm:$0xf]
  %v10934 = vld [vmem:[%s7 + $0x34c] sm:$0xf]
  %v10935 = vld [vmem:[%s7 + $0x350] sm:$0xf]
  %v10936 = vld [vmem:[%s7 + $0x354] sm:$0xf]
  %v10937 = vld [vmem:[%s7 + $0x358] sm:$0xf]
  %v10938 = vld [vmem:[%s7 + $0x35c] sm:$0xf]
  %v10939 = vld [vmem:[%s7 + $0x360] sm:$0xf]
  %v10940 = vld [vmem:[%s7 + $0x364] sm:$0xf]
  %v10941 = vld [vmem:[%s7 + $0x368] sm:$0xf]
  %v10942 = vld [vmem:[%s7 + $0x36c] sm:$0xf]
  %v10943 = vld [vmem:[%s7 + $0x370] sm:$0xf]
  %v10944 = vld [vmem:[%s7 + $0x374] sm:$0xf]
  %v10945 = vld [vmem:[%s7 + $0x378] sm:$0xf]
  %v10946 = vld [vmem:[%s7 + $0x37c] sm:$0xf]
  %v10947 = vld [vmem:[%s7 + $0x380] sm:$0xf]
  %v10948 = vld [vmem:[%s7 + $0x384] sm:$0xf]
  %v10949 = vld [vmem:[%s7 + $0x388] sm:$0xf]
  %v10950 = vld [vmem:[%s7 + $0x38c] sm:$0xf]
  %v10951 = vld [vmem:[%s7 + $0x390] sm:$0xf]
  %v10952 = vld [vmem:[%s7 + $0x394] sm:$0xf]
  %v10953 = vld [vmem:[%s7 + $0x398] sm:$0xf]
  %v10954 = vld [vmem:[%s7 + $0x39c] sm:$0xf]
  %v10955 = vld [vmem:[%s7 + $0x3a0] sm:$0xf]
  %v10956 = vld [vmem:[%s7 + $0x3a4] sm:$0xf]
  %v10957 = vld [vmem:[%s7 + $0x3a8] sm:$0xf]
  %v10958 = vld [vmem:[%s7 + $0x3ac] sm:$0xf]
  %v10959 = vld [vmem:[%s7 + $0x3b0] sm:$0xf]
  %v10960 = vld [vmem:[%s7 + $0x3b4] sm:$0xf]
  %v10961 = vld [vmem:[%s7 + $0x3b8] sm:$0xf]
  %v10962 = vld [vmem:[%s7 + $0x3bc] sm:$0xf]
  %v10963 = vld [vmem:[%s7 + $0x3c0] sm:$0xf]
  %v10964 = vld [vmem:[%s7 + $0x3c4] sm:$0xf]
  %v10965 = vld [vmem:[%s7 + $0x3c8] sm:$0xf]
  %v10966 = vld [vmem:[%s7 + $0x3cc] sm:$0xf]
  %v10967 = vld [vmem:[%s7 + $0x3d0] sm:$0xf]
  %v10968 = vld [vmem:[%s7 + $0x3d4] sm:$0xf]
  %v10969 = vld [vmem:[%s7 + $0x3d8] sm:$0xf]
  %v10970 = vld [vmem:[%s7 + $0x3dc] sm:$0xf]
  %v10971 = vld [vmem:[%s7 + $0x3e0] sm:$0xf]
  %v10972 = vld [vmem:[%s7 + $0x3e4] sm:$0xf]
  %v10973 = vld [vmem:[%s7 + $0x3e8] sm:$0xf]
  %v10974 = vld [vmem:[%s7 + $0x3ec] sm:$0xf]
  %v10975 = vld [vmem:[%s7 + $0x3f0] sm:$0xf]
  %v10976 = vld [vmem:[%s7 + $0x3f4] sm:$0xf]
  %v10977 = vld [vmem:[%s7 + $0x3f8] sm:$0xf]
  %v10978 = vld [vmem:[%s7 + $0x3fc] sm:$0xf]
  %v10979 = vld [vmem:[%s7 + $0x400] sm:$0xf]
  %v10980 = vld [vmem:[%s7 + $0x404] sm:$0xf]
  %v10981 = vld [vmem:[%s7 + $0x408] sm:$0xf]
  %v10982 = vld [vmem:[%s7 + $0x40c] sm:$0xf]
  %v10983 = vld [vmem:[%s7 + $0x410] sm:$0xf]
  %v10984 = vld [vmem:[%s7 + $0x414] sm:$0xf]
  %v10985 = vld [vmem:[%s7 + $0x418] sm:$0xf]
  %v10986 = vld [vmem:[%s7 + $0x41c] sm:$0xf]
  %v10987 = vld [vmem:[%s7 + $0x420] sm:$0xf]
  %v10988 = vld [vmem:[%s7 + $0x424] sm:$0xf]
  %v10989 = vld [vmem:[%s7 + $0x428] sm:$0xf]
  %v10990 = vld [vmem:[%s7 + $0x42c] sm:$0xf]
  %v10991 = vld [vmem:[%s7 + $0x430] sm:$0xf]
  %v10992 = vld [vmem:[%s7 + $0x434] sm:$0xf]
  %v10993 = vld [vmem:[%s7 + $0x438] sm:$0xf]
  %v10994 = vld [vmem:[%s7 + $0x43c] sm:$0xf]
  %v10995 = vld [vmem:[%s7 + $0x440] sm:$0xf]
  %v10996 = vld [vmem:[%s7 + $0x444] sm:$0xf]
  %v10997 = vld [vmem:[%s7 + $0x448] sm:$0xf]
  %v10998 = vld [vmem:[%s7 + $0x44c] sm:$0xf]
  %v10999 = vld [vmem:[%s7 + $0x450] sm:$0xf]
  %v11000 = vld [vmem:[%s7 + $0x454] sm:$0xf]
  %v11001 = vld [vmem:[%s7 + $0x458] sm:$0xf]
  %v11002 = vld [vmem:[%s7 + $0x45c] sm:$0xf]
  %v11003 = vld [vmem:[%s7 + $0x460] sm:$0xf]
  %v11004 = vld [vmem:[%s7 + $0x464] sm:$0xf]
  %v11005 = vld [vmem:[%s7 + $0x468] sm:$0xf]
  %v11006 = vld [vmem:[%s7 + $0x46c] sm:$0xf]
  %v11007 = vld [vmem:[%s7 + $0x470] sm:$0xf]
  %v11008 = vld [vmem:[%s7 + $0x474] sm:$0xf]
  %v11009 = vld [vmem:[%s7 + $0x478] sm:$0xf]
  %v11010 = vld [vmem:[%s7 + $0x47c] sm:$0xf]
  %v11011 = vld [vmem:[%s7 + $0x480] sm:$0xf]
  %v11012 = vld [vmem:[%s7 + $0x484] sm:$0xf]
  %v11013 = vld [vmem:[%s7 + $0x488] sm:$0xf]
  %v11014 = vld [vmem:[%s7 + $0x48c] sm:$0xf]
  %v11015 = vld [vmem:[%s7 + $0x490] sm:$0xf]
  %v11016 = vld [vmem:[%s7 + $0x494] sm:$0xf]
  %v11017 = vld [vmem:[%s7 + $0x498] sm:$0xf]
  %v11018 = vld [vmem:[%s7 + $0x49c] sm:$0xf]
  %v11019 = vld [vmem:[%s7 + $0x4a0] sm:$0xf]
  %v11020 = vld [vmem:[%s7 + $0x4a4] sm:$0xf]
  %v11021 = vld [vmem:[%s7 + $0x4a8] sm:$0xf]
  %v11022 = vld [vmem:[%s7 + $0x4ac] sm:$0xf]
  %v11023 = vld [vmem:[%s7 + $0x4b0] sm:$0xf]
  %v11024 = vld [vmem:[%s7 + $0x4b4] sm:$0xf]
  %v11025 = vld [vmem:[%s7 + $0x4b8] sm:$0xf]
  %v11026 = vld [vmem:[%s7 + $0x4bc] sm:$0xf]
  %v11027 = vld [vmem:[%s7 + $0x4c0] sm:$0xf]
  %v11028 = vld [vmem:[%s7 + $0x4c4] sm:$0xf]
  %v11029 = vld [vmem:[%s7 + $0x4c8] sm:$0xf]
  %v11030 = vld [vmem:[%s7 + $0x4cc] sm:$0xf]
  %v11031 = vld [vmem:[%s7 + $0x4d0] sm:$0xf]
  %v11032 = vld [vmem:[%s7 + $0x4d4] sm:$0xf]
  %v11033 = vld [vmem:[%s7 + $0x4d8] sm:$0xf]
  %v11034 = vld [vmem:[%s7 + $0x4dc] sm:$0xf]
  %v11035 = vld [vmem:[%s7 + $0x4e0] sm:$0xf]
  %v11036 = vld [vmem:[%s7 + $0x4e4] sm:$0xf]
  %v11037 = vld [vmem:[%s7 + $0x4e8] sm:$0xf]
  %v11038 = vld [vmem:[%s7 + $0x4ec] sm:$0xf]
  %v11039 = vld [vmem:[%s7 + $0x4f0] sm:$0xf]
  %v11040 = vld [vmem:[%s7 + $0x4f4] sm:$0xf]
  %v11041 = vld [vmem:[%s7 + $0x4f8] sm:$0xf]
  %v11042 = vld [vmem:[%s7 + $0x4fc] sm:$0xf]
  %v11043 = vld [vmem:[%s7 + $0x500] sm:$0xf]
  %v11044 = vld [vmem:[%s7 + $0x504] sm:$0xf]
  %v11045 = vld [vmem:[%s7 + $0x508] sm:$0xf]
  %v11046 = vld [vmem:[%s7 + $0x50c] sm:$0xf]
  %v11047 = vld [vmem:[%s7 + $0x510] sm:$0xf]
  %v11048 = vld [vmem:[%s7 + $0x514] sm:$0xf]
  %v11049 = vld [vmem:[%s7 + $0x518] sm:$0xf]
  %v11050 = vld [vmem:[%s7 + $0x51c] sm:$0xf]
  %v11051 = vld [vmem:[%s7 + $0x520] sm:$0xf]
  %v11052 = vld [vmem:[%s7 + $0x524] sm:$0xf]
  %v11053 = vld [vmem:[%s7 + $0x528] sm:$0xf]
  %v11054 = vld [vmem:[%s7 + $0x52c] sm:$0xf]
  %v11055 = vld [vmem:[%s7 + $0x530] sm:$0xf]
  %v11056 = vld [vmem:[%s7 + $0x534] sm:$0xf]
  %v11057 = vld [vmem:[%s7 + $0x538] sm:$0xf]
  %v11058 = vld [vmem:[%s7 + $0x53c] sm:$0xf]
  %v11059 = vld [vmem:[%s7 + $0x540] sm:$0xf]
  %v11060 = vld [vmem:[%s7 + $0x544] sm:$0xf]
  %v11061 = vld [vmem:[%s7 + $0x548] sm:$0xf]
  %v11062 = vld [vmem:[%s7 + $0x54c] sm:$0xf]
  %v11063 = vld [vmem:[%s7 + $0x550] sm:$0xf]
  %v11064 = vld [vmem:[%s7 + $0x554] sm:$0xf]
  %v11065 = vld [vmem:[%s7 + $0x558] sm:$0xf]
  %v11066 = vld [vmem:[%s7 + $0x55c] sm:$0xf]
  %v11067 = vld [vmem:[%s7 + $0x560] sm:$0xf]
  %v11068 = vld [vmem:[%s7 + $0x564] sm:$0xf]
  %v11069 = vld [vmem:[%s7 + $0x568] sm:$0xf]
  %v11070 = vld [vmem:[%s7 + $0x56c] sm:$0xf]
  %v11071 = vld [vmem:[%s7 + $0x570] sm:$0xf]
  %v11072 = vld [vmem:[%s7 + $0x574] sm:$0xf]
  %v11073 = vld [vmem:[%s7 + $0x578] sm:$0xf]
  %v11074 = vld [vmem:[%s7 + $0x57c] sm:$0xf]
  %v11075 = vld [vmem:[%s7 + $0x580] sm:$0xf]
  %v11076 = vld [vmem:[%s7 + $0x584] sm:$0xf]
  %v11077 = vld [vmem:[%s7 + $0x588] sm:$0xf]
  %v11078 = vld [vmem:[%s7 + $0x58c] sm:$0xf]
  %v11079 = vld [vmem:[%s7 + $0x590] sm:$0xf]
  %v11080 = vld [vmem:[%s7 + $0x594] sm:$0xf]
  %v11081 = vld [vmem:[%s7 + $0x598] sm:$0xf]
  %v11082 = vld [vmem:[%s7 + $0x59c] sm:$0xf]
  %v11083 = vld [vmem:[%s7 + $0x5a0] sm:$0xf]
  %v11084 = vld [vmem:[%s7 + $0x5a4] sm:$0xf]
  %v11085 = vld [vmem:[%s7 + $0x5a8] sm:$0xf]
  %v11086 = vld [vmem:[%s7 + $0x5ac] sm:$0xf]
  %v11087 = vld [vmem:[%s7 + $0x5b0] sm:$0xf]
  %v11088 = vld [vmem:[%s7 + $0x5b4] sm:$0xf]
  %v11089 = vld [vmem:[%s7 + $0x5b8] sm:$0xf]
  %v11090 = vld [vmem:[%s7 + $0x5bc] sm:$0xf]
  %v11091 = vld [vmem:[%s7 + $0x5c0] sm:$0xf]
  %v11092 = vld [vmem:[%s7 + $0x5c4] sm:$0xf]
  %v11093 = vld [vmem:[%s7 + $0x5c8] sm:$0xf]
  %v11094 = vld [vmem:[%s7 + $0x5cc] sm:$0xf]
  %v11095 = vld [vmem:[%s7 + $0x5d0] sm:$0xf]
  %v11096 = vld [vmem:[%s7 + $0x5d4] sm:$0xf]
  %v11097 = vld [vmem:[%s7 + $0x5d8] sm:$0xf]
  %v11098 = vld [vmem:[%s7 + $0x5dc] sm:$0xf]
  %v11099 = vld [vmem:[%s7 + $0x5e0] sm:$0xf]
  %v11100 = vld [vmem:[%s7 + $0x5e4] sm:$0xf]
  %v11101 = vld [vmem:[%s7 + $0x5e8] sm:$0xf]
  %v11102 = vld [vmem:[%s7 + $0x5ec] sm:$0xf]
  %v11103 = vld [vmem:[%s7 + $0x5f0] sm:$0xf]
  %v11104 = vld [vmem:[%s7 + $0x5f4] sm:$0xf]
  %v11105 = vld [vmem:[%s7 + $0x5f8] sm:$0xf]
  %v11106 = vld [vmem:[%s7 + $0x5fc] sm:$0xf]
  %v11107 = vld [vmem:[%s7 + $0x600] sm:$0xf]
  %v11108 = vld [vmem:[%s7 + $0x604] sm:$0xf]
  %v11109 = vld [vmem:[%s7 + $0x608] sm:$0xf]
  %v11110 = vld [vmem:[%s7 + $0x60c] sm:$0xf]
  %v11111 = vld [vmem:[%s7 + $0x610] sm:$0xf]
  %v11112 = vld [vmem:[%s7 + $0x614] sm:$0xf]
  %v11113 = vld [vmem:[%s7 + $0x618] sm:$0xf]
  %v11114 = vld [vmem:[%s7 + $0x61c] sm:$0xf]
  %v11115 = vld [vmem:[%s7 + $0x620] sm:$0xf]
  %v11116 = vld [vmem:[%s7 + $0x624] sm:$0xf]
  %v11117 = vld [vmem:[%s7 + $0x628] sm:$0xf]
  %v11118 = vld [vmem:[%s7 + $0x62c] sm:$0xf]
  %v11119 = vld [vmem:[%s7 + $0x630] sm:$0xf]
  %v11120 = vld [vmem:[%s7 + $0x634] sm:$0xf]
  %v11121 = vld [vmem:[%s7 + $0x638] sm:$0xf]
  %v11122 = vld [vmem:[%s7 + $0x63c] sm:$0xf]
  %v11123 = vld [vmem:[%s7 + $0x640] sm:$0xf]
  %v11124 = vld [vmem:[%s7 + $0x644] sm:$0xf]
  %v11125 = vld [vmem:[%s7 + $0x648] sm:$0xf]
  %v11126 = vld [vmem:[%s7 + $0x64c] sm:$0xf]
  %v11127 = vld [vmem:[%s7 + $0x650] sm:$0xf]
  %v11128 = vld [vmem:[%s7 + $0x654] sm:$0xf]
  %v11129 = vld [vmem:[%s7 + $0x658] sm:$0xf]
  %v11130 = vld [vmem:[%s7 + $0x65c] sm:$0xf]
  %v11131 = vld [vmem:[%s7 + $0x660] sm:$0xf]
  %v11132 = vld [vmem:[%s7 + $0x664] sm:$0xf]
  %v11133 = vld [vmem:[%s7 + $0x668] sm:$0xf]
  %v11134 = vld [vmem:[%s7 + $0x66c] sm:$0xf]
  %v11135 = vld [vmem:[%s7 + $0x670] sm:$0xf]
  %v11136 = vld [vmem:[%s7 + $0x674] sm:$0xf]
  %v11137 = vld [vmem:[%s7 + $0x678] sm:$0xf]
  %v11138 = vld [vmem:[%s7 + $0x67c] sm:$0xf]
  %v11139 = vld [vmem:[%s7 + $0x680] sm:$0xf]
  %v11140 = vld [vmem:[%s7 + $0x684] sm:$0xf]
  %v11141 = vld [vmem:[%s7 + $0x688] sm:$0xf]
  %v11142 = vld [vmem:[%s7 + $0x68c] sm:$0xf]
  %v11143 = vld [vmem:[%s7 + $0x690] sm:$0xf]
  %v11144 = vld [vmem:[%s7 + $0x694] sm:$0xf]
  %v11145 = vld [vmem:[%s7 + $0x698] sm:$0xf]
  %v11146 = vld [vmem:[%s7 + $0x69c] sm:$0xf]
  %v11147 = vld [vmem:[%s7 + $0x6a0] sm:$0xf]
  %v11148 = vld [vmem:[%s7 + $0x6a4] sm:$0xf]
  %v11149 = vld [vmem:[%s7 + $0x6a8] sm:$0xf]
  %v11150 = vld [vmem:[%s7 + $0x6ac] sm:$0xf]
  %v11151 = vld [vmem:[%s7 + $0x6b0] sm:$0xf]
  %v11152 = vld [vmem:[%s7 + $0x6b4] sm:$0xf]
  %v11153 = vld [vmem:[%s7 + $0x6b8] sm:$0xf]
  %v11154 = vld [vmem:[%s7 + $0x6bc] sm:$0xf]
  %v11155 = vld [vmem:[%s7 + $0x6c0] sm:$0xf]
  %v11156 = vld [vmem:[%s7 + $0x6c4] sm:$0xf]
  %v11157 = vld [vmem:[%s7 + $0x6c8] sm:$0xf]
  %v11158 = vld [vmem:[%s7 + $0x6cc] sm:$0xf]
  %v11159 = vld [vmem:[%s7 + $0x6d0] sm:$0xf]
  %v11160 = vld [vmem:[%s7 + $0x6d4] sm:$0xf]
  %v11161 = vld [vmem:[%s7 + $0x6d8] sm:$0xf]
  %v11162 = vld [vmem:[%s7 + $0x6dc] sm:$0xf]
  %v11163 = vld [vmem:[%s7 + $0x6e0] sm:$0xf]
  %v11164 = vld [vmem:[%s7 + $0x6e4] sm:$0xf]
  %v11165 = vld [vmem:[%s7 + $0x6e8] sm:$0xf]
  %v11166 = vld [vmem:[%s7 + $0x6ec] sm:$0xf]
  %v11167 = vld [vmem:[%s7 + $0x6f0] sm:$0xf]
  %v11168 = vld [vmem:[%s7 + $0x6f4] sm:$0xf]
  %v11169 = vld [vmem:[%s7 + $0x6f8] sm:$0xf]
  %v11170 = vld [vmem:[%s7 + $0x6fc] sm:$0xf]
  %v11171 = vld [vmem:[%s7 + $0x700] sm:$0xf]
  %v11172 = vld [vmem:[%s7 + $0x704] sm:$0xf]
  %v11173 = vld [vmem:[%s7 + $0x708] sm:$0xf]
  %v11174 = vld [vmem:[%s7 + $0x70c] sm:$0xf]
  %v11175 = vld [vmem:[%s7 + $0x710] sm:$0xf]
  %v11176 = vld [vmem:[%s7 + $0x714] sm:$0xf]
  %v11177 = vld [vmem:[%s7 + $0x718] sm:$0xf]
  %v11178 = vld [vmem:[%s7 + $0x71c] sm:$0xf]
  %v11179 = vld [vmem:[%s7 + $0x720] sm:$0xf]
  %v11180 = vld [vmem:[%s7 + $0x724] sm:$0xf]
  %v11181 = vld [vmem:[%s7 + $0x728] sm:$0xf]
  %v11182 = vld [vmem:[%s7 + $0x72c] sm:$0xf]
  %v11183 = vld [vmem:[%s7 + $0x730] sm:$0xf]
  %v11184 = vld [vmem:[%s7 + $0x734] sm:$0xf]
  %v11185 = vld [vmem:[%s7 + $0x738] sm:$0xf]
  %v11186 = vld [vmem:[%s7 + $0x73c] sm:$0xf]
  %v11187 = vld [vmem:[%s7 + $0x740] sm:$0xf]
  %v11188 = vld [vmem:[%s7 + $0x744] sm:$0xf]
  %v11189 = vld [vmem:[%s7 + $0x748] sm:$0xf]
  %v11190 = vld [vmem:[%s7 + $0x74c] sm:$0xf]
  %v11191 = vld [vmem:[%s7 + $0x750] sm:$0xf]
  %v11192 = vld [vmem:[%s7 + $0x754] sm:$0xf]
  %v11193 = vld [vmem:[%s7 + $0x758] sm:$0xf]
  %v11194 = vld [vmem:[%s7 + $0x75c] sm:$0xf]
  %v11195 = vld [vmem:[%s7 + $0x760] sm:$0xf]
  %v11196 = vld [vmem:[%s7 + $0x764] sm:$0xf]
  %v11197 = vld [vmem:[%s7 + $0x768] sm:$0xf]
  %v11198 = vld [vmem:[%s7 + $0x76c] sm:$0xf]
  %v11199 = vld [vmem:[%s7 + $0x770] sm:$0xf]
  %v11200 = vld [vmem:[%s7 + $0x774] sm:$0xf]
  %v11201 = vld [vmem:[%s7 + $0x778] sm:$0xf]
  %v11202 = vld [vmem:[%s7 + $0x77c] sm:$0xf]
  %v11203 = vld [vmem:[%s7 + $0x780] sm:$0xf]
  %v11204 = vld [vmem:[%s7 + $0x784] sm:$0xf]
  %v11205 = vld [vmem:[%s7 + $0x788] sm:$0xf]
  %v11206 = vld [vmem:[%s7 + $0x78c] sm:$0xf]
  %v11207 = vld [vmem:[%s7 + $0x790] sm:$0xf]
  %v11208 = vld [vmem:[%s7 + $0x794] sm:$0xf]
  %v11209 = vld [vmem:[%s7 + $0x798] sm:$0xf]
  %v11210 = vld [vmem:[%s7 + $0x79c] sm:$0xf]
  %v11211 = vld [vmem:[%s7 + $0x7a0] sm:$0xf]
  %v11212 = vld [vmem:[%s7 + $0x7a4] sm:$0xf]
  %v11213 = vld [vmem:[%s7 + $0x7a8] sm:$0xf]
  %v11214 = vld [vmem:[%s7 + $0x7ac] sm:$0xf]
  %v11215 = vld [vmem:[%s7 + $0x7b0] sm:$0xf]
  %v11216 = vld [vmem:[%s7 + $0x7b4] sm:$0xf]
  %v11217 = vld [vmem:[%s7 + $0x7b8] sm:$0xf]
  %v11218 = vld [vmem:[%s7 + $0x7bc] sm:$0xf]
  %v11219 = vld [vmem:[%s7 + $0x7c0] sm:$0xf]
  %v11220 = vld [vmem:[%s7 + $0x7c4] sm:$0xf]
  %v11221 = vld [vmem:[%s7 + $0x7c8] sm:$0xf]
  %v11222 = vld [vmem:[%s7 + $0x7cc] sm:$0xf]
  %v11223 = vld [vmem:[%s7 + $0x7d0] sm:$0xf]
  %v11224 = vld [vmem:[%s7 + $0x7d4] sm:$0xf]
  %v11225 = vld [vmem:[%s7 + $0x7d8] sm:$0xf]
  %v11226 = vld [vmem:[%s7 + $0x7dc] sm:$0xf]
  %v11227 = vld [vmem:[%s7 + $0x7e0] sm:$0xf]
  %v11228 = vld [vmem:[%s7 + $0x7e4] sm:$0xf]
  %v11229 = vld [vmem:[%s7 + $0x7e8] sm:$0xf]
  %v11230 = vld [vmem:[%s7 + $0x7ec] sm:$0xf]
  %v11231 = vld [vmem:[%s7 + $0x7f0] sm:$0xf]
  %v11232 = vld [vmem:[%s7 + $0x7f4] sm:$0xf]
  %v11233 = vld [vmem:[%s7 + $0x7f8] sm:$0xf]
  %v11234 = vld [vmem:[%s7 + $0x7fc] sm:$0xf]
  %v11235 = vld [vmem:[%s8] sm:$0x1]
  %v11237 = vlaneseq
  %v11238 = vshrl.u32 %v11237, 7
  %v11239 = vsub.s32 0, %v11238
  %v11240 = vrot.slane %v11235, %v11239
  %v11754 = vunpack.c.l.b16 %v10723
  %v11755 = vunpack.c.l.b16 %v10724
  %v11756 = vunpack.c.l.b16 %v10725
  %v11757 = vunpack.c.l.b16 %v10726
  %v11758 = vunpack.c.l.b16 %v10727
  %v11759 = vunpack.c.l.b16 %v10728
  %v11760 = vunpack.c.l.b16 %v10729
  %v11761 = vunpack.c.l.b16 %v10730
  %v11762 = vunpack.c.l.b16 %v10731
  %v11763 = vunpack.c.l.b16 %v10732
  %v11764 = vunpack.c.l.b16 %v10733
  %v11765 = vunpack.c.l.b16 %v10734
  %v11766 = vunpack.c.l.b16 %v10735
  %v11767 = vunpack.c.l.b16 %v10736
  %v11768 = vunpack.c.l.b16 %v10737
  %v11769 = vunpack.c.l.b16 %v10738
  %v11770 = vunpack.c.l.b16 %v10739
  %v11771 = vunpack.c.l.b16 %v10740
  %v11772 = vunpack.c.l.b16 %v10741
  %v11773 = vunpack.c.l.b16 %v10742
  %v11774 = vunpack.c.l.b16 %v10743
  %v11775 = vunpack.c.l.b16 %v10744
  %v11776 = vunpack.c.l.b16 %v10745
  %v11777 = vunpack.c.l.b16 %v10746
  %v11778 = vunpack.c.l.b16 %v10747
  %v11779 = vunpack.c.l.b16 %v10748
  %v11780 = vunpack.c.l.b16 %v10749
  %v11781 = vunpack.c.l.b16 %v10750
  %v11782 = vunpack.c.l.b16 %v10751
  %v11783 = vunpack.c.l.b16 %v10752
  %v11784 = vunpack.c.l.b16 %v10753
  %v11785 = vunpack.c.l.b16 %v10754
  %v11786 = vunpack.c.l.b16 %v10755
  %v11787 = vunpack.c.l.b16 %v10756
  %v11788 = vunpack.c.l.b16 %v10757
  %v11789 = vunpack.c.l.b16 %v10758
  %v11790 = vunpack.c.l.b16 %v10759
  %v11791 = vunpack.c.l.b16 %v10760
  %v11792 = vunpack.c.l.b16 %v10761
  %v11793 = vunpack.c.l.b16 %v10762
  %v11794 = vunpack.c.l.b16 %v10763
  %v11795 = vunpack.c.l.b16 %v10764
  %v11796 = vunpack.c.l.b16 %v10765
  %v11797 = vunpack.c.l.b16 %v10766
  %v11798 = vunpack.c.l.b16 %v10767
  %v11799 = vunpack.c.l.b16 %v10768
  %v11800 = vunpack.c.l.b16 %v10769
  %v11801 = vunpack.c.l.b16 %v10770
  %v11802 = vunpack.c.l.b16 %v10771
  %v11803 = vunpack.c.l.b16 %v10772
  %v11804 = vunpack.c.l.b16 %v10773
  %v11805 = vunpack.c.l.b16 %v10774
  %v11806 = vunpack.c.l.b16 %v10775
  %v11807 = vunpack.c.l.b16 %v10776
  %v11808 = vunpack.c.l.b16 %v10777
  %v11809 = vunpack.c.l.b16 %v10778
  %v11810 = vunpack.c.l.b16 %v10779
  %v11811 = vunpack.c.l.b16 %v10780
  %v11812 = vunpack.c.l.b16 %v10781
  %v11813 = vunpack.c.l.b16 %v10782
  %v11814 = vunpack.c.l.b16 %v10783
  %v11815 = vunpack.c.l.b16 %v10784
  %v11816 = vunpack.c.l.b16 %v10785
  %v11817 = vunpack.c.l.b16 %v10786
  %v11818 = vunpack.c.l.b16 %v10787
  %v11819 = vunpack.c.l.b16 %v10788
  %v11820 = vunpack.c.l.b16 %v10789
  %v11821 = vunpack.c.l.b16 %v10790
  %v11822 = vunpack.c.l.b16 %v10791
  %v11823 = vunpack.c.l.b16 %v10792
  %v11824 = vunpack.c.l.b16 %v10793
  %v11825 = vunpack.c.l.b16 %v10794
  %v11826 = vunpack.c.l.b16 %v10795
  %v11827 = vunpack.c.l.b16 %v10796
  %v11828 = vunpack.c.l.b16 %v10797
  %v11829 = vunpack.c.l.b16 %v10798
  %v11830 = vunpack.c.l.b16 %v10799
  %v11831 = vunpack.c.l.b16 %v10800
  %v11832 = vunpack.c.l.b16 %v10801
  %v11833 = vunpack.c.l.b16 %v10802
  %v11834 = vunpack.c.l.b16 %v10803
  %v11835 = vunpack.c.l.b16 %v10804
  %v11836 = vunpack.c.l.b16 %v10805
  %v11837 = vunpack.c.l.b16 %v10806
  %v11838 = vunpack.c.l.b16 %v10807
  %v11839 = vunpack.c.l.b16 %v10808
  %v11840 = vunpack.c.l.b16 %v10809
  %v11841 = vunpack.c.l.b16 %v10810
  %v11842 = vunpack.c.l.b16 %v10811
  %v11843 = vunpack.c.l.b16 %v10812
  %v11844 = vunpack.c.l.b16 %v10813
  %v11845 = vunpack.c.l.b16 %v10814
  %v11846 = vunpack.c.l.b16 %v10815
  %v11847 = vunpack.c.l.b16 %v10816
  %v11848 = vunpack.c.l.b16 %v10817
  %v11849 = vunpack.c.l.b16 %v10818
  %v11850 = vunpack.c.l.b16 %v10819
  %v11851 = vunpack.c.l.b16 %v10820
  %v11852 = vunpack.c.l.b16 %v10821
  %v11853 = vunpack.c.l.b16 %v10822
  %v11854 = vunpack.c.l.b16 %v10823
  %v11855 = vunpack.c.l.b16 %v10824
  %v11856 = vunpack.c.l.b16 %v10825
  %v11857 = vunpack.c.l.b16 %v10826
  %v11858 = vunpack.c.l.b16 %v10827
  %v11859 = vunpack.c.l.b16 %v10828
  %v11860 = vunpack.c.l.b16 %v10829
  %v11861 = vunpack.c.l.b16 %v10830
  %v11862 = vunpack.c.l.b16 %v10831
  %v11863 = vunpack.c.l.b16 %v10832
  %v11864 = vunpack.c.l.b16 %v10833
  %v11865 = vunpack.c.l.b16 %v10834
  %v11866 = vunpack.c.l.b16 %v10835
  %v11867 = vunpack.c.l.b16 %v10836
  %v11868 = vunpack.c.l.b16 %v10837
  %v11869 = vunpack.c.l.b16 %v10838
  %v11870 = vunpack.c.l.b16 %v10839
  %v11871 = vunpack.c.l.b16 %v10840
  %v11872 = vunpack.c.l.b16 %v10841
  %v11873 = vunpack.c.l.b16 %v10842
  %v11874 = vunpack.c.l.b16 %v10843
  %v11875 = vunpack.c.l.b16 %v10844
  %v11876 = vunpack.c.l.b16 %v10845
  %v11877 = vunpack.c.l.b16 %v10846
  %v11878 = vunpack.c.l.b16 %v10847
  %v11879 = vunpack.c.l.b16 %v10848
  %v11880 = vunpack.c.l.b16 %v10849
  %v11881 = vunpack.c.l.b16 %v10850
  %v11882 = vunpack.c.l.b16 %v10851
  %v11883 = vunpack.c.l.b16 %v10852
  %v11884 = vunpack.c.l.b16 %v10853
  %v11885 = vunpack.c.l.b16 %v10854
  %v11886 = vunpack.c.l.b16 %v10855
  %v11887 = vunpack.c.l.b16 %v10856
  %v11888 = vunpack.c.l.b16 %v10857
  %v11889 = vunpack.c.l.b16 %v10858
  %v11890 = vunpack.c.l.b16 %v10859
  %v11891 = vunpack.c.l.b16 %v10860
  %v11892 = vunpack.c.l.b16 %v10861
  %v11893 = vunpack.c.l.b16 %v10862
  %v11894 = vunpack.c.l.b16 %v10863
  %v11895 = vunpack.c.l.b16 %v10864
  %v11896 = vunpack.c.l.b16 %v10865
  %v11897 = vunpack.c.l.b16 %v10866
  %v11898 = vunpack.c.l.b16 %v10867
  %v11899 = vunpack.c.l.b16 %v10868
  %v11900 = vunpack.c.l.b16 %v10869
  %v11901 = vunpack.c.l.b16 %v10870
  %v11902 = vunpack.c.l.b16 %v10871
  %v11903 = vunpack.c.l.b16 %v10872
  %v11904 = vunpack.c.l.b16 %v10873
  %v11905 = vunpack.c.l.b16 %v10874
  %v11906 = vunpack.c.l.b16 %v10875
  %v11907 = vunpack.c.l.b16 %v10876
  %v11908 = vunpack.c.l.b16 %v10877
  %v11909 = vunpack.c.l.b16 %v10878
  %v11910 = vunpack.c.l.b16 %v10879
  %v11911 = vunpack.c.l.b16 %v10880
  %v11912 = vunpack.c.l.b16 %v10881
  %v11913 = vunpack.c.l.b16 %v10882
  %v11914 = vunpack.c.l.b16 %v10883
  %v11915 = vunpack.c.l.b16 %v10884
  %v11916 = vunpack.c.l.b16 %v10885
  %v11917 = vunpack.c.l.b16 %v10886
  %v11918 = vunpack.c.l.b16 %v10887
  %v11919 = vunpack.c.l.b16 %v10888
  %v11920 = vunpack.c.l.b16 %v10889
  %v11921 = vunpack.c.l.b16 %v10890
  %v11922 = vunpack.c.l.b16 %v10891
  %v11923 = vunpack.c.l.b16 %v10892
  %v11924 = vunpack.c.l.b16 %v10893
  %v11925 = vunpack.c.l.b16 %v10894
  %v11926 = vunpack.c.l.b16 %v10895
  %v11927 = vunpack.c.l.b16 %v10896
  %v11928 = vunpack.c.l.b16 %v10897
  %v11929 = vunpack.c.l.b16 %v10898
  %v11930 = vunpack.c.l.b16 %v10899
  %v11931 = vunpack.c.l.b16 %v10900
  %v11932 = vunpack.c.l.b16 %v10901
  %v11933 = vunpack.c.l.b16 %v10902
  %v11934 = vunpack.c.l.b16 %v10903
  %v11935 = vunpack.c.l.b16 %v10904
  %v11936 = vunpack.c.l.b16 %v10905
  %v11937 = vunpack.c.l.b16 %v10906
  %v11938 = vunpack.c.l.b16 %v10907
  %v11939 = vunpack.c.l.b16 %v10908
  %v11940 = vunpack.c.l.b16 %v10909
  %v11941 = vunpack.c.l.b16 %v10910
  %v11942 = vunpack.c.l.b16 %v10911
  %v11943 = vunpack.c.l.b16 %v10912
  %v11944 = vunpack.c.l.b16 %v10913
  %v11945 = vunpack.c.l.b16 %v10914
  %v11946 = vunpack.c.l.b16 %v10915
  %v11947 = vunpack.c.l.b16 %v10916
  %v11948 = vunpack.c.l.b16 %v10917
  %v11949 = vunpack.c.l.b16 %v10918
  %v11950 = vunpack.c.l.b16 %v10919
  %v11951 = vunpack.c.l.b16 %v10920
  %v11952 = vunpack.c.l.b16 %v10921
  %v11953 = vunpack.c.l.b16 %v10922
  %v11954 = vunpack.c.l.b16 %v10923
  %v11955 = vunpack.c.l.b16 %v10924
  %v11956 = vunpack.c.l.b16 %v10925
  %v11957 = vunpack.c.l.b16 %v10926
  %v11958 = vunpack.c.l.b16 %v10927
  %v11959 = vunpack.c.l.b16 %v10928
  %v11960 = vunpack.c.l.b16 %v10929
  %v11961 = vunpack.c.l.b16 %v10930
  %v11962 = vunpack.c.l.b16 %v10931
  %v11963 = vunpack.c.l.b16 %v10932
  %v11964 = vunpack.c.l.b16 %v10933
  %v11965 = vunpack.c.l.b16 %v10934
  %v11966 = vunpack.c.l.b16 %v10935
  %v11967 = vunpack.c.l.b16 %v10936
  %v11968 = vunpack.c.l.b16 %v10937
  %v11969 = vunpack.c.l.b16 %v10938
  %v11970 = vunpack.c.l.b16 %v10939
  %v11971 = vunpack.c.l.b16 %v10940
  %v11972 = vunpack.c.l.b16 %v10941
  %v11973 = vunpack.c.l.b16 %v10942
  %v11974 = vunpack.c.l.b16 %v10943
  %v11975 = vunpack.c.l.b16 %v10944
  %v11976 = vunpack.c.l.b16 %v10945
  %v11977 = vunpack.c.l.b16 %v10946
  %v11978 = vunpack.c.l.b16 %v10947
  %v11979 = vunpack.c.l.b16 %v10948
  %v11980 = vunpack.c.l.b16 %v10949
  %v11981 = vunpack.c.l.b16 %v10950
  %v11982 = vunpack.c.l.b16 %v10951
  %v11983 = vunpack.c.l.b16 %v10952
  %v11984 = vunpack.c.l.b16 %v10953
  %v11985 = vunpack.c.l.b16 %v10954
  %v11986 = vunpack.c.l.b16 %v10955
  %v11987 = vunpack.c.l.b16 %v10956
  %v11988 = vunpack.c.l.b16 %v10957
  %v11989 = vunpack.c.l.b16 %v10958
  %v11990 = vunpack.c.l.b16 %v10959
  %v11991 = vunpack.c.l.b16 %v10960
  %v11992 = vunpack.c.l.b16 %v10961
  %v11993 = vunpack.c.l.b16 %v10962
  %v11994 = vunpack.c.l.b16 %v10963
  %v11995 = vunpack.c.l.b16 %v10964
  %v11996 = vunpack.c.l.b16 %v10965
  %v11997 = vunpack.c.l.b16 %v10966
  %v11998 = vunpack.c.l.b16 %v10967
  %v11999 = vunpack.c.l.b16 %v10968
  %v12000 = vunpack.c.l.b16 %v10969
  %v12001 = vunpack.c.l.b16 %v10970
  %v12002 = vunpack.c.l.b16 %v10971
  %v12003 = vunpack.c.l.b16 %v10972
  %v12004 = vunpack.c.l.b16 %v10973
  %v12005 = vunpack.c.l.b16 %v10974
  %v12006 = vunpack.c.l.b16 %v10975
  %v12007 = vunpack.c.l.b16 %v10976
  %v12008 = vunpack.c.l.b16 %v10977
  %v12009 = vunpack.c.l.b16 %v10978
  %v12010 = vunpack.c.l.b16 %v10979
  %v12011 = vunpack.c.l.b16 %v10980
  %v12012 = vunpack.c.l.b16 %v10981
  %v12013 = vunpack.c.l.b16 %v10982
  %v12014 = vunpack.c.l.b16 %v10983
  %v12015 = vunpack.c.l.b16 %v10984
  %v12016 = vunpack.c.l.b16 %v10985
  %v12017 = vunpack.c.l.b16 %v10986
  %v12018 = vunpack.c.l.b16 %v10987
  %v12019 = vunpack.c.l.b16 %v10988
  %v12020 = vunpack.c.l.b16 %v10989
  %v12021 = vunpack.c.l.b16 %v10990
  %v12022 = vunpack.c.l.b16 %v10991
  %v12023 = vunpack.c.l.b16 %v10992
  %v12024 = vunpack.c.l.b16 %v10993
  %v12025 = vunpack.c.l.b16 %v10994
  %v12026 = vunpack.c.l.b16 %v10995
  %v12027 = vunpack.c.l.b16 %v10996
  %v12028 = vunpack.c.l.b16 %v10997
  %v12029 = vunpack.c.l.b16 %v10998
  %v12030 = vunpack.c.l.b16 %v10999
  %v12031 = vunpack.c.l.b16 %v11000
  %v12032 = vunpack.c.l.b16 %v11001
  %v12033 = vunpack.c.l.b16 %v11002
  %v12034 = vunpack.c.l.b16 %v11003
  %v12035 = vunpack.c.l.b16 %v11004
  %v12036 = vunpack.c.l.b16 %v11005
  %v12037 = vunpack.c.l.b16 %v11006
  %v12038 = vunpack.c.l.b16 %v11007
  %v12039 = vunpack.c.l.b16 %v11008
  %v12040 = vunpack.c.l.b16 %v11009
  %v12041 = vunpack.c.l.b16 %v11010
  %v12042 = vunpack.c.l.b16 %v11011
  %v12043 = vunpack.c.l.b16 %v11012
  %v12044 = vunpack.c.l.b16 %v11013
  %v12045 = vunpack.c.l.b16 %v11014
  %v12046 = vunpack.c.l.b16 %v11015
  %v12047 = vunpack.c.l.b16 %v11016
  %v12048 = vunpack.c.l.b16 %v11017
  %v12049 = vunpack.c.l.b16 %v11018
  %v12050 = vunpack.c.l.b16 %v11019
  %v12051 = vunpack.c.l.b16 %v11020
  %v12052 = vunpack.c.l.b16 %v11021
  %v12053 = vunpack.c.l.b16 %v11022
  %v12054 = vunpack.c.l.b16 %v11023
  %v12055 = vunpack.c.l.b16 %v11024
  %v12056 = vunpack.c.l.b16 %v11025
  %v12057 = vunpack.c.l.b16 %v11026
  %v12058 = vunpack.c.l.b16 %v11027
  %v12059 = vunpack.c.l.b16 %v11028
  %v12060 = vunpack.c.l.b16 %v11029
  %v12061 = vunpack.c.l.b16 %v11030
  %v12062 = vunpack.c.l.b16 %v11031
  %v12063 = vunpack.c.l.b16 %v11032
  %v12064 = vunpack.c.l.b16 %v11033
  %v12065 = vunpack.c.l.b16 %v11034
  %v12066 = vunpack.c.l.b16 %v11035
  %v12067 = vunpack.c.l.b16 %v11036
  %v12068 = vunpack.c.l.b16 %v11037
  %v12069 = vunpack.c.l.b16 %v11038
  %v12070 = vunpack.c.l.b16 %v11039
  %v12071 = vunpack.c.l.b16 %v11040
  %v12072 = vunpack.c.l.b16 %v11041
  %v12073 = vunpack.c.l.b16 %v11042
  %v12074 = vunpack.c.l.b16 %v11043
  %v12075 = vunpack.c.l.b16 %v11044
  %v12076 = vunpack.c.l.b16 %v11045
  %v12077 = vunpack.c.l.b16 %v11046
  %v12078 = vunpack.c.l.b16 %v11047
  %v12079 = vunpack.c.l.b16 %v11048
  %v12080 = vunpack.c.l.b16 %v11049
  %v12081 = vunpack.c.l.b16 %v11050
  %v12082 = vunpack.c.l.b16 %v11051
  %v12083 = vunpack.c.l.b16 %v11052
  %v12084 = vunpack.c.l.b16 %v11053
  %v12085 = vunpack.c.l.b16 %v11054
  %v12086 = vunpack.c.l.b16 %v11055
  %v12087 = vunpack.c.l.b16 %v11056
  %v12088 = vunpack.c.l.b16 %v11057
  %v12089 = vunpack.c.l.b16 %v11058
  %v12090 = vunpack.c.l.b16 %v11059
  %v12091 = vunpack.c.l.b16 %v11060
  %v12092 = vunpack.c.l.b16 %v11061
  %v12093 = vunpack.c.l.b16 %v11062
  %v12094 = vunpack.c.l.b16 %v11063
  %v12095 = vunpack.c.l.b16 %v11064
  %v12096 = vunpack.c.l.b16 %v11065
  %v12097 = vunpack.c.l.b16 %v11066
  %v12098 = vunpack.c.l.b16 %v11067
  %v12099 = vunpack.c.l.b16 %v11068
  %v12100 = vunpack.c.l.b16 %v11069
  %v12101 = vunpack.c.l.b16 %v11070
  %v12102 = vunpack.c.l.b16 %v11071
  %v12103 = vunpack.c.l.b16 %v11072
  %v12104 = vunpack.c.l.b16 %v11073
  %v12105 = vunpack.c.l.b16 %v11074
  %v12106 = vunpack.c.l.b16 %v11075
  %v12107 = vunpack.c.l.b16 %v11076
  %v12108 = vunpack.c.l.b16 %v11077
  %v12109 = vunpack.c.l.b16 %v11078
  %v12110 = vunpack.c.l.b16 %v11079
  %v12111 = vunpack.c.l.b16 %v11080
  %v12112 = vunpack.c.l.b16 %v11081
  %v12113 = vunpack.c.l.b16 %v11082
  %v12114 = vunpack.c.l.b16 %v11083
  %v12115 = vunpack.c.l.b16 %v11084
  %v12116 = vunpack.c.l.b16 %v11085
  %v12117 = vunpack.c.l.b16 %v11086
  %v12118 = vunpack.c.l.b16 %v11087
  %v12119 = vunpack.c.l.b16 %v11088
  %v12120 = vunpack.c.l.b16 %v11089
  %v12121 = vunpack.c.l.b16 %v11090
  %v12122 = vunpack.c.l.b16 %v11091
  %v12123 = vunpack.c.l.b16 %v11092
  %v12124 = vunpack.c.l.b16 %v11093
  %v12125 = vunpack.c.l.b16 %v11094
  %v12126 = vunpack.c.l.b16 %v11095
  %v12127 = vunpack.c.l.b16 %v11096
  %v12128 = vunpack.c.l.b16 %v11097
  %v12129 = vunpack.c.l.b16 %v11098
  %v12130 = vunpack.c.l.b16 %v11099
  %v12131 = vunpack.c.l.b16 %v11100
  %v12132 = vunpack.c.l.b16 %v11101
  %v12133 = vunpack.c.l.b16 %v11102
  %v12134 = vunpack.c.l.b16 %v11103
  %v12135 = vunpack.c.l.b16 %v11104
  %v12136 = vunpack.c.l.b16 %v11105
  %v12137 = vunpack.c.l.b16 %v11106
  %v12138 = vunpack.c.l.b16 %v11107
  %v12139 = vunpack.c.l.b16 %v11108
  %v12140 = vunpack.c.l.b16 %v11109
  %v12141 = vunpack.c.l.b16 %v11110
  %v12142 = vunpack.c.l.b16 %v11111
  %v12143 = vunpack.c.l.b16 %v11112
  %v12144 = vunpack.c.l.b16 %v11113
  %v12145 = vunpack.c.l.b16 %v11114
  %v12146 = vunpack.c.l.b16 %v11115
  %v12147 = vunpack.c.l.b16 %v11116
  %v12148 = vunpack.c.l.b16 %v11117
  %v12149 = vunpack.c.l.b16 %v11118
  %v12150 = vunpack.c.l.b16 %v11119
  %v12151 = vunpack.c.l.b16 %v11120
  %v12152 = vunpack.c.l.b16 %v11121
  %v12153 = vunpack.c.l.b16 %v11122
  %v12154 = vunpack.c.l.b16 %v11123
  %v12155 = vunpack.c.l.b16 %v11124
  %v12156 = vunpack.c.l.b16 %v11125
  %v12157 = vunpack.c.l.b16 %v11126
  %v12158 = vunpack.c.l.b16 %v11127
  %v12159 = vunpack.c.l.b16 %v11128
  %v12160 = vunpack.c.l.b16 %v11129
  %v12161 = vunpack.c.l.b16 %v11130
  %v12162 = vunpack.c.l.b16 %v11131
  %v12163 = vunpack.c.l.b16 %v11132
  %v12164 = vunpack.c.l.b16 %v11133
  %v12165 = vunpack.c.l.b16 %v11134
  %v12166 = vunpack.c.l.b16 %v11135
  %v12167 = vunpack.c.l.b16 %v11136
  %v12168 = vunpack.c.l.b16 %v11137
  %v12169 = vunpack.c.l.b16 %v11138
  %v12170 = vunpack.c.l.b16 %v11139
  %v12171 = vunpack.c.l.b16 %v11140
  %v12172 = vunpack.c.l.b16 %v11141
  %v12173 = vunpack.c.l.b16 %v11142
  %v12174 = vunpack.c.l.b16 %v11143
  %v12175 = vunpack.c.l.b16 %v11144
  %v12176 = vunpack.c.l.b16 %v11145
  %v12177 = vunpack.c.l.b16 %v11146
  %v12178 = vunpack.c.l.b16 %v11147
  %v12179 = vunpack.c.l.b16 %v11148
  %v12180 = vunpack.c.l.b16 %v11149
  %v12181 = vunpack.c.l.b16 %v11150
  %v12182 = vunpack.c.l.b16 %v11151
  %v12183 = vunpack.c.l.b16 %v11152
  %v12184 = vunpack.c.l.b16 %v11153
  %v12185 = vunpack.c.l.b16 %v11154
  %v12186 = vunpack.c.l.b16 %v11155
  %v12187 = vunpack.c.l.b16 %v11156
  %v12188 = vunpack.c.l.b16 %v11157
  %v12189 = vunpack.c.l.b16 %v11158
  %v12190 = vunpack.c.l.b16 %v11159
  %v12191 = vunpack.c.l.b16 %v11160
  %v12192 = vunpack.c.l.b16 %v11161
  %v12193 = vunpack.c.l.b16 %v11162
  %v12194 = vunpack.c.l.b16 %v11163
  %v12195 = vunpack.c.l.b16 %v11164
  %v12196 = vunpack.c.l.b16 %v11165
  %v12197 = vunpack.c.l.b16 %v11166
  %v12198 = vunpack.c.l.b16 %v11167
  %v12199 = vunpack.c.l.b16 %v11168
  %v12200 = vunpack.c.l.b16 %v11169
  %v12201 = vunpack.c.l.b16 %v11170
  %v12202 = vunpack.c.l.b16 %v11171
  %v12203 = vunpack.c.l.b16 %v11172
  %v12204 = vunpack.c.l.b16 %v11173
  %v12205 = vunpack.c.l.b16 %v11174
  %v12206 = vunpack.c.l.b16 %v11175
  %v12207 = vunpack.c.l.b16 %v11176
  %v12208 = vunpack.c.l.b16 %v11177
  %v12209 = vunpack.c.l.b16 %v11178
  %v12210 = vunpack.c.l.b16 %v11179
  %v12211 = vunpack.c.l.b16 %v11180
  %v12212 = vunpack.c.l.b16 %v11181
  %v12213 = vunpack.c.l.b16 %v11182
  %v12214 = vunpack.c.l.b16 %v11183
  %v12215 = vunpack.c.l.b16 %v11184
  %v12216 = vunpack.c.l.b16 %v11185
  %v12217 = vunpack.c.l.b16 %v11186
  %v12218 = vunpack.c.l.b16 %v11187
  %v12219 = vunpack.c.l.b16 %v11188
  %v12220 = vunpack.c.l.b16 %v11189
  %v12221 = vunpack.c.l.b16 %v11190
  %v12222 = vunpack.c.l.b16 %v11191
  %v12223 = vunpack.c.l.b16 %v11192
  %v12224 = vunpack.c.l.b16 %v11193
  %v12225 = vunpack.c.l.b16 %v11194
  %v12226 = vunpack.c.l.b16 %v11195
  %v12227 = vunpack.c.l.b16 %v11196
  %v12228 = vunpack.c.l.b16 %v11197
  %v12229 = vunpack.c.l.b16 %v11198
  %v12230 = vunpack.c.l.b16 %v11199
  %v12231 = vunpack.c.l.b16 %v11200
  %v12232 = vunpack.c.l.b16 %v11201
  %v12233 = vunpack.c.l.b16 %v11202
  %v12234 = vunpack.c.l.b16 %v11203
  %v12235 = vunpack.c.l.b16 %v11204
  %v12236 = vunpack.c.l.b16 %v11205
  %v12237 = vunpack.c.l.b16 %v11206
  %v12238 = vunpack.c.l.b16 %v11207
  %v12239 = vunpack.c.l.b16 %v11208
  %v12240 = vunpack.c.l.b16 %v11209
  %v12241 = vunpack.c.l.b16 %v11210
  %v12242 = vunpack.c.l.b16 %v11211
  %v12243 = vunpack.c.l.b16 %v11212
  %v12244 = vunpack.c.l.b16 %v11213
  %v12245 = vunpack.c.l.b16 %v11214
  %v12246 = vunpack.c.l.b16 %v11215
  %v12247 = vunpack.c.l.b16 %v11216
  %v12248 = vunpack.c.l.b16 %v11217
  %v12249 = vunpack.c.l.b16 %v11218
  %v12250 = vunpack.c.l.b16 %v11219
  %v12251 = vunpack.c.l.b16 %v11220
  %v12252 = vunpack.c.l.b16 %v11221
  %v12253 = vunpack.c.l.b16 %v11222
  %v12254 = vunpack.c.l.b16 %v11223
  %v12255 = vunpack.c.l.b16 %v11224
  %v12256 = vunpack.c.l.b16 %v11225
  %v12257 = vunpack.c.l.b16 %v11226
  %v12258 = vunpack.c.l.b16 %v11227
  %v12259 = vunpack.c.l.b16 %v11228
  %v12260 = vunpack.c.l.b16 %v11229
  %v12261 = vunpack.c.l.b16 %v11230
  %v12262 = vunpack.c.l.b16 %v11231
  %v12263 = vunpack.c.l.b16 %v11232
  %v12264 = vunpack.c.l.b16 %v11233
  %v12265 = vunpack.c.l.b16 %v11234
  %v12266 = vpack.c.b16 %v11755, %v11754
  %v12267 = vpack.c.b16 %v11757, %v11756
  %v12268 = vpack.c.b16 %v11759, %v11758
  %v12269 = vpack.c.b16 %v11761, %v11760
  %v12270 = vpack.c.b16 %v11763, %v11762
  %v12271 = vpack.c.b16 %v11765, %v11764
  %v12272 = vpack.c.b16 %v11767, %v11766
  %v12273 = vpack.c.b16 %v11769, %v11768
  %v12274 = vpack.c.b16 %v11771, %v11770
  %v12275 = vpack.c.b16 %v11773, %v11772
  %v12276 = vpack.c.b16 %v11775, %v11774
  %v12277 = vpack.c.b16 %v11777, %v11776
  %v12278 = vpack.c.b16 %v11779, %v11778
  %v12279 = vpack.c.b16 %v11781, %v11780
  %v12280 = vpack.c.b16 %v11783, %v11782
  %v12281 = vpack.c.b16 %v11785, %v11784
  %v12282 = vpack.c.b16 %v11787, %v11786
  %v12283 = vpack.c.b16 %v11789, %v11788
  %v12284 = vpack.c.b16 %v11791, %v11790
  %v12285 = vpack.c.b16 %v11793, %v11792
  %v12286 = vpack.c.b16 %v11795, %v11794
  %v12287 = vpack.c.b16 %v11797, %v11796
  %v12288 = vpack.c.b16 %v11799, %v11798
  %v12289 = vpack.c.b16 %v11801, %v11800
  %v12290 = vpack.c.b16 %v11803, %v11802
  %v12291 = vpack.c.b16 %v11805, %v11804
  %v12292 = vpack.c.b16 %v11807, %v11806
  %v12293 = vpack.c.b16 %v11809, %v11808
  %v12294 = vpack.c.b16 %v11811, %v11810
  %v12295 = vpack.c.b16 %v11813, %v11812
  %v12296 = vpack.c.b16 %v11815, %v11814
  %v12297 = vpack.c.b16 %v11817, %v11816
  %v12298 = vpack.c.b16 %v11819, %v11818
  %v12299 = vpack.c.b16 %v11821, %v11820
  %v12300 = vpack.c.b16 %v11823, %v11822
  %v12301 = vpack.c.b16 %v11825, %v11824
  %v12302 = vpack.c.b16 %v11827, %v11826
  %v12303 = vpack.c.b16 %v11829, %v11828
  %v12304 = vpack.c.b16 %v11831, %v11830
  %v12305 = vpack.c.b16 %v11833, %v11832
  %v12306 = vpack.c.b16 %v11835, %v11834
  %v12307 = vpack.c.b16 %v11837, %v11836
  %v12308 = vpack.c.b16 %v11839, %v11838
  %v12309 = vpack.c.b16 %v11841, %v11840
  %v12310 = vpack.c.b16 %v11843, %v11842
  %v12311 = vpack.c.b16 %v11845, %v11844
  %v12312 = vpack.c.b16 %v11847, %v11846
  %v12313 = vpack.c.b16 %v11849, %v11848
  %v12314 = vpack.c.b16 %v11851, %v11850
  %v12315 = vpack.c.b16 %v11853, %v11852
  %v12316 = vpack.c.b16 %v11855, %v11854
  %v12317 = vpack.c.b16 %v11857, %v11856
  %v12318 = vpack.c.b16 %v11859, %v11858
  %v12319 = vpack.c.b16 %v11861, %v11860
  %v12320 = vpack.c.b16 %v11863, %v11862
  %v12321 = vpack.c.b16 %v11865, %v11864
  %v12322 = vpack.c.b16 %v11867, %v11866
  %v12323 = vpack.c.b16 %v11869, %v11868
  %v12324 = vpack.c.b16 %v11871, %v11870
  %v12325 = vpack.c.b16 %v11873, %v11872
  %v12326 = vpack.c.b16 %v11875, %v11874
  %v12327 = vpack.c.b16 %v11877, %v11876
  %v12328 = vpack.c.b16 %v11879, %v11878
  %v12329 = vpack.c.b16 %v11881, %v11880
  %v12330 = vpack.c.b16 %v11883, %v11882
  %v12331 = vpack.c.b16 %v11885, %v11884
  %v12332 = vpack.c.b16 %v11887, %v11886
  %v12333 = vpack.c.b16 %v11889, %v11888
  %v12334 = vpack.c.b16 %v11891, %v11890
  %v12335 = vpack.c.b16 %v11893, %v11892
  %v12336 = vpack.c.b16 %v11895, %v11894
  %v12337 = vpack.c.b16 %v11897, %v11896
  %v12338 = vpack.c.b16 %v11899, %v11898
  %v12339 = vpack.c.b16 %v11901, %v11900
  %v12340 = vpack.c.b16 %v11903, %v11902
  %v12341 = vpack.c.b16 %v11905, %v11904
  %v12342 = vpack.c.b16 %v11907, %v11906
  %v12343 = vpack.c.b16 %v11909, %v11908
  %v12344 = vpack.c.b16 %v11911, %v11910
  %v12345 = vpack.c.b16 %v11913, %v11912
  %v12346 = vpack.c.b16 %v11915, %v11914
  %v12347 = vpack.c.b16 %v11917, %v11916
  %v12348 = vpack.c.b16 %v11919, %v11918
  %v12349 = vpack.c.b16 %v11921, %v11920
  %v12350 = vpack.c.b16 %v11923, %v11922
  %v12351 = vpack.c.b16 %v11925, %v11924
  %v12352 = vpack.c.b16 %v11927, %v11926
  %v12353 = vpack.c.b16 %v11929, %v11928
  %v12354 = vpack.c.b16 %v11931, %v11930
  %v12355 = vpack.c.b16 %v11933, %v11932
  %v12356 = vpack.c.b16 %v11935, %v11934
  %v12357 = vpack.c.b16 %v11937, %v11936
  %v12358 = vpack.c.b16 %v11939, %v11938
  %v12359 = vpack.c.b16 %v11941, %v11940
  %v12360 = vpack.c.b16 %v11943, %v11942
  %v12361 = vpack.c.b16 %v11945, %v11944
  %v12362 = vpack.c.b16 %v11947, %v11946
  %v12363 = vpack.c.b16 %v11949, %v11948
  %v12364 = vpack.c.b16 %v11951, %v11950
  %v12365 = vpack.c.b16 %v11953, %v11952
  %v12366 = vpack.c.b16 %v11955, %v11954
  %v12367 = vpack.c.b16 %v11957, %v11956
  %v12368 = vpack.c.b16 %v11959, %v11958
  %v12369 = vpack.c.b16 %v11961, %v11960
  %v12370 = vpack.c.b16 %v11963, %v11962
  %v12371 = vpack.c.b16 %v11965, %v11964
  %v12372 = vpack.c.b16 %v11967, %v11966
  %v12373 = vpack.c.b16 %v11969, %v11968
  %v12374 = vpack.c.b16 %v11971, %v11970
  %v12375 = vpack.c.b16 %v11973, %v11972
  %v12376 = vpack.c.b16 %v11975, %v11974
  %v12377 = vpack.c.b16 %v11977, %v11976
  %v12378 = vpack.c.b16 %v11979, %v11978
  %v12379 = vpack.c.b16 %v11981, %v11980
  %v12380 = vpack.c.b16 %v11983, %v11982
  %v12381 = vpack.c.b16 %v11985, %v11984
  %v12382 = vpack.c.b16 %v11987, %v11986
  %v12383 = vpack.c.b16 %v11989, %v11988
  %v12384 = vpack.c.b16 %v11991, %v11990
  %v12385 = vpack.c.b16 %v11993, %v11992
  %v12386 = vpack.c.b16 %v11995, %v11994
  %v12387 = vpack.c.b16 %v11997, %v11996
  %v12388 = vpack.c.b16 %v11999, %v11998
  %v12389 = vpack.c.b16 %v12001, %v12000
  %v12390 = vpack.c.b16 %v12003, %v12002
  %v12391 = vpack.c.b16 %v12005, %v12004
  %v12392 = vpack.c.b16 %v12007, %v12006
  %v12393 = vpack.c.b16 %v12009, %v12008
  %v12394 = vpack.c.b16 %v12011, %v12010
  %v12395 = vpack.c.b16 %v12013, %v12012
  %v12396 = vpack.c.b16 %v12015, %v12014
  %v12397 = vpack.c.b16 %v12017, %v12016
  %v12398 = vpack.c.b16 %v12019, %v12018
  %v12399 = vpack.c.b16 %v12021, %v12020
  %v12400 = vpack.c.b16 %v12023, %v12022
  %v12401 = vpack.c.b16 %v12025, %v12024
  %v12402 = vpack.c.b16 %v12027, %v12026
  %v12403 = vpack.c.b16 %v12029, %v12028
  %v12404 = vpack.c.b16 %v12031, %v12030
  %v12405 = vpack.c.b16 %v12033, %v12032
  %v12406 = vpack.c.b16 %v12035, %v12034
  %v12407 = vpack.c.b16 %v12037, %v12036
  %v12408 = vpack.c.b16 %v12039, %v12038
  %v12409 = vpack.c.b16 %v12041, %v12040
  %v12410 = vpack.c.b16 %v12043, %v12042
  %v12411 = vpack.c.b16 %v12045, %v12044
  %v12412 = vpack.c.b16 %v12047, %v12046
  %v12413 = vpack.c.b16 %v12049, %v12048
  %v12414 = vpack.c.b16 %v12051, %v12050
  %v12415 = vpack.c.b16 %v12053, %v12052
  %v12416 = vpack.c.b16 %v12055, %v12054
  %v12417 = vpack.c.b16 %v12057, %v12056
  %v12418 = vpack.c.b16 %v12059, %v12058
  %v12419 = vpack.c.b16 %v12061, %v12060
  %v12420 = vpack.c.b16 %v12063, %v12062
  %v12421 = vpack.c.b16 %v12065, %v12064
  %v12422 = vpack.c.b16 %v12067, %v12066
  %v12423 = vpack.c.b16 %v12069, %v12068
  %v12424 = vpack.c.b16 %v12071, %v12070
  %v12425 = vpack.c.b16 %v12073, %v12072
  %v12426 = vpack.c.b16 %v12075, %v12074
  %v12427 = vpack.c.b16 %v12077, %v12076
  %v12428 = vpack.c.b16 %v12079, %v12078
  %v12429 = vpack.c.b16 %v12081, %v12080
  %v12430 = vpack.c.b16 %v12083, %v12082
  %v12431 = vpack.c.b16 %v12085, %v12084
  %v12432 = vpack.c.b16 %v12087, %v12086
  %v12433 = vpack.c.b16 %v12089, %v12088
  %v12434 = vpack.c.b16 %v12091, %v12090
  %v12435 = vpack.c.b16 %v12093, %v12092
  %v12436 = vpack.c.b16 %v12095, %v12094
  %v12437 = vpack.c.b16 %v12097, %v12096
  %v12438 = vpack.c.b16 %v12099, %v12098
  %v12439 = vpack.c.b16 %v12101, %v12100
  %v12440 = vpack.c.b16 %v12103, %v12102
  %v12441 = vpack.c.b16 %v12105, %v12104
  %v12442 = vpack.c.b16 %v12107, %v12106
  %v12443 = vpack.c.b16 %v12109, %v12108
  %v12444 = vpack.c.b16 %v12111, %v12110
  %v12445 = vpack.c.b16 %v12113, %v12112
  %v12446 = vpack.c.b16 %v12115, %v12114
  %v12447 = vpack.c.b16 %v12117, %v12116
  %v12448 = vpack.c.b16 %v12119, %v12118
  %v12449 = vpack.c.b16 %v12121, %v12120
  %v12450 = vpack.c.b16 %v12123, %v12122
  %v12451 = vpack.c.b16 %v12125, %v12124
  %v12452 = vpack.c.b16 %v12127, %v12126
  %v12453 = vpack.c.b16 %v12129, %v12128
  %v12454 = vpack.c.b16 %v12131, %v12130
  %v12455 = vpack.c.b16 %v12133, %v12132
  %v12456 = vpack.c.b16 %v12135, %v12134
  %v12457 = vpack.c.b16 %v12137, %v12136
  %v12458 = vpack.c.b16 %v12139, %v12138
  %v12459 = vpack.c.b16 %v12141, %v12140
  %v12460 = vpack.c.b16 %v12143, %v12142
  %v12461 = vpack.c.b16 %v12145, %v12144
  %v12462 = vpack.c.b16 %v12147, %v12146
  %v12463 = vpack.c.b16 %v12149, %v12148
  %v12464 = vpack.c.b16 %v12151, %v12150
  %v12465 = vpack.c.b16 %v12153, %v12152
  %v12466 = vpack.c.b16 %v12155, %v12154
  %v12467 = vpack.c.b16 %v12157, %v12156
  %v12468 = vpack.c.b16 %v12159, %v12158
  %v12469 = vpack.c.b16 %v12161, %v12160
  %v12470 = vpack.c.b16 %v12163, %v12162
  %v12471 = vpack.c.b16 %v12165, %v12164
  %v12472 = vpack.c.b16 %v12167, %v12166
  %v12473 = vpack.c.b16 %v12169, %v12168
  %v12474 = vpack.c.b16 %v12171, %v12170
  %v12475 = vpack.c.b16 %v12173, %v12172
  %v12476 = vpack.c.b16 %v12175, %v12174
  %v12477 = vpack.c.b16 %v12177, %v12176
  %v12478 = vpack.c.b16 %v12179, %v12178
  %v12479 = vpack.c.b16 %v12181, %v12180
  %v12480 = vpack.c.b16 %v12183, %v12182
  %v12481 = vpack.c.b16 %v12185, %v12184
  %v12482 = vpack.c.b16 %v12187, %v12186
  %v12483 = vpack.c.b16 %v12189, %v12188
  %v12484 = vpack.c.b16 %v12191, %v12190
  %v12485 = vpack.c.b16 %v12193, %v12192
  %v12486 = vpack.c.b16 %v12195, %v12194
  %v12487 = vpack.c.b16 %v12197, %v12196
  %v12488 = vpack.c.b16 %v12199, %v12198
  %v12489 = vpack.c.b16 %v12201, %v12200
  %v12490 = vpack.c.b16 %v12203, %v12202
  %v12491 = vpack.c.b16 %v12205, %v12204
  %v12492 = vpack.c.b16 %v12207, %v12206
  %v12493 = vpack.c.b16 %v12209, %v12208
  %v12494 = vpack.c.b16 %v12211, %v12210
  %v12495 = vpack.c.b16 %v12213, %v12212
  %v12496 = vpack.c.b16 %v12215, %v12214
  %v12497 = vpack.c.b16 %v12217, %v12216
  %v12498 = vpack.c.b16 %v12219, %v12218
  %v12499 = vpack.c.b16 %v12221, %v12220
  %v12500 = vpack.c.b16 %v12223, %v12222
  %v12501 = vpack.c.b16 %v12225, %v12224
  %v12502 = vpack.c.b16 %v12227, %v12226
  %v12503 = vpack.c.b16 %v12229, %v12228
  %v12504 = vpack.c.b16 %v12231, %v12230
  %v12505 = vpack.c.b16 %v12233, %v12232
  %v12506 = vpack.c.b16 %v12235, %v12234
  %v12507 = vpack.c.b16 %v12237, %v12236
  %v12508 = vpack.c.b16 %v12239, %v12238
  %v12509 = vpack.c.b16 %v12241, %v12240
  %v12510 = vpack.c.b16 %v12243, %v12242
  %v12511 = vpack.c.b16 %v12245, %v12244
  %v12512 = vpack.c.b16 %v12247, %v12246
  %v12513 = vpack.c.b16 %v12249, %v12248
  %v12514 = vpack.c.b16 %v12251, %v12250
  %v12515 = vpack.c.b16 %v12253, %v12252
  %v12516 = vpack.c.b16 %v12255, %v12254
  %v12517 = vpack.c.b16 %v12257, %v12256
  %v12518 = vpack.c.b16 %v12259, %v12258
  %v12519 = vpack.c.b16 %v12261, %v12260
  %v12520 = vpack.c.b16 %v12263, %v12262
  %v12521 = vpack.c.b16 %v12265, %v12264
  %12778 = vmatprep.subr.bf16.mxu0 0
  %12779 = vmatpush1.bf16.msra.mxu0 %v12266
  %12780 = vmatprep.subr.bf16.mxu0 0
  %12781 = vmatpush1.bf16.msra.mxu0 %v12267
  %12782 = vmatprep.subr.bf16.mxu0 0
  %12783 = vmatpush1.bf16.msra.mxu0 %v12268
  %12784 = vmatprep.subr.bf16.mxu0 0
  %12785 = vmatpush1.bf16.msra.mxu0 %v12269
  %12786 = vmatprep.subr.bf16.mxu0 0
  %12787 = vmatpush1.bf16.msra.mxu0 %v12270
  %12788 = vmatprep.subr.bf16.mxu0 0
  %12789 = vmatpush1.bf16.msra.mxu0 %v12271
  %12790 = vmatprep.subr.bf16.mxu0 0
  %12791 = vmatpush1.bf16.msra.mxu0 %v12272
  %12792 = vmatprep.subr.bf16.mxu0 0
  %12793 = vmatpush1.bf16.msra.mxu0 %v12273
  %12794 = vmatprep.subr.bf16.mxu0 0
  %12795 = vmatpush1.bf16.msra.mxu0 %v12274
  %12796 = vmatprep.subr.bf16.mxu0 0
  %12797 = vmatpush1.bf16.msra.mxu0 %v12275
  %12798 = vmatprep.subr.bf16.mxu0 0
  %12799 = vmatpush1.bf16.msra.mxu0 %v12276
  %12800 = vmatprep.subr.bf16.mxu0 0
  %12801 = vmatpush1.bf16.msra.mxu0 %v12277
  %12802 = vmatprep.subr.bf16.mxu0 0
  %12803 = vmatpush1.bf16.msra.mxu0 %v12278
  %12804 = vmatprep.subr.bf16.mxu0 0
  %12805 = vmatpush1.bf16.msra.mxu0 %v12279
  %12806 = vmatprep.subr.bf16.mxu0 0
  %12807 = vmatpush1.bf16.msra.mxu0 %v12280
  %12808 = vmatprep.subr.bf16.mxu0 0
  %12809 = vmatpush1.bf16.msra.mxu0 %v12281
  %12810 = vmatprep.mubr.bf16.mxu0 %v10660
  %12811 = vmatmul.mubr.bf16.gmra.mrb[0].mxu0 %v10659
  %v12812 = vpop.f32.mrb[0].mxu0
  %v12813 = vadd.f32 %v11240, %v12812
  %v12814 = vpop.f32.mrb[0].mxu0
  %v12815 = vpop.f32.mrb[0].mxu0
  %v12816 = vpop.f32.mrb[0].mxu0
  %12817 = vdwg.mxu0
  %12818 = vmatprep.subr.bf16.mxu0 0
  %12819 = vmatpush1.bf16.msra.mxu0 %v12282
  %12820 = vmatprep.subr.bf16.mxu0 0
  %12821 = vmatpush1.bf16.msra.mxu0 %v12283
  %12822 = vmatprep.subr.bf16.mxu0 0
  %12823 = vmatpush1.bf16.msra.mxu0 %v12284
  %12824 = vmatprep.subr.bf16.mxu0 0
  %12825 = vmatpush1.bf16.msra.mxu0 %v12285
  %12826 = vmatprep.subr.bf16.mxu0 0
  %12827 = vmatpush1.bf16.msra.mxu0 %v12286
  %12828 = vmatprep.subr.bf16.mxu0 0
  %12829 = vmatpush1.bf16.msra.mxu0 %v12287
  %12830 = vmatprep.subr.bf16.mxu0 0
  %12831 = vmatpush1.bf16.msra.mxu0 %v12288
  %12832 = vmatprep.subr.bf16.mxu0 0
  %12833 = vmatpush1.bf16.msra.mxu0 %v12289
  %12834 = vmatprep.subr.bf16.mxu0 0
  %12835 = vmatpush1.bf16.msra.mxu0 %v12290
  %12836 = vmatprep.subr.bf16.mxu0 0
  %12837 = vmatpush1.bf16.msra.mxu0 %v12291
  %12838 = vmatprep.subr.bf16.mxu0 0
  %12839 = vmatpush1.bf16.msra.mxu0 %v12292
  %12840 = vmatprep.subr.bf16.mxu0 0
  %12841 = vmatpush1.bf16.msra.mxu0 %v12293
  %12842 = vmatprep.subr.bf16.mxu0 0
  %12843 = vmatpush1.bf16.msra.mxu0 %v12294
  %12844 = vmatprep.subr.bf16.mxu0 0
  %12845 = vmatpush1.bf16.msra.mxu0 %v12295
  %12846 = vmatprep.subr.bf16.mxu0 0
  %12847 = vmatpush1.bf16.msra.mxu0 %v12296
  %12848 = vmatprep.subr.bf16.mxu0 0
  %12849 = vmatpush1.bf16.msra.mxu0 %v12297
  %12850 = vmatprep.mubr.bf16.mxu0 %v10662
  %12851 = vmatmul.mubr.bf16.gmra.mrb[0].mxu0 %v10661
  %v12852 = vpop.f32.mrb[0].mxu0
  %v12853 = vadd.f32 %v12813, %v12852
  %v12854 = vpop.f32.mrb[0].mxu0
  %v12855 = vpop.f32.mrb[0].mxu0
  %v12856 = vpop.f32.mrb[0].mxu0
  %12857 = vdwg.mxu0
  %12858 = vmatprep.subr.bf16.mxu0 0
  %12859 = vmatpush1.bf16.msra.mxu0 %v12298
  %12860 = vmatprep.subr.bf16.mxu0 0
  %12861 = vmatpush1.bf16.msra.mxu0 %v12299
  %12862 = vmatprep.subr.bf16.mxu0 0
  %12863 = vmatpush1.bf16.msra.mxu0 %v12300
  %12864 = vmatprep.subr.bf16.mxu0 0
  %12865 = vmatpush1.bf16.msra.mxu0 %v12301
  %12866 = vmatprep.subr.bf16.mxu0 0
  %12867 = vmatpush1.bf16.msra.mxu0 %v12302
  %12868 = vmatprep.subr.bf16.mxu0 0
  %12869 = vmatpush1.bf16.msra.mxu0 %v12303
  %12870 = vmatprep.subr.bf16.mxu0 0
  %12871 = vmatpush1.bf16.msra.mxu0 %v12304
  %12872 = vmatprep.subr.bf16.mxu0 0
  %12873 = vmatpush1.bf16.msra.mxu0 %v12305
  %12874 = vmatprep.subr.bf16.mxu0 0
  %12875 = vmatpush1.bf16.msra.mxu0 %v12306
  %12876 = vmatprep.subr.bf16.mxu0 0
  %12877 = vmatpush1.bf16.msra.mxu0 %v12307
  %12878 = vmatprep.subr.bf16.mxu0 0
  %12879 = vmatpush1.bf16.msra.mxu0 %v12308
  %12880 = vmatprep.subr.bf16.mxu0 0
  %12881 = vmatpush1.bf16.msra.mxu0 %v12309
  %12882 = vmatprep.subr.bf16.mxu0 0
  %12883 = vmatpush1.bf16.msra.mxu0 %v12310
  %12884 = vmatprep.subr.bf16.mxu0 0
  %12885 = vmatpush1.bf16.msra.mxu0 %v12311
  %12886 = vmatprep.subr.bf16.mxu0 0
  %12887 = vmatpush1.bf16.msra.mxu0 %v12312
  %12888 = vmatprep.subr.bf16.mxu0 0
  %12889 = vmatpush1.bf16.msra.mxu0 %v12313
  %12890 = vmatprep.mubr.bf16.mxu0 %v10668
  %12891 = vmatmul.mubr.bf16.gmra.mrb[0].mxu0 %v10667
  %v12892 = vpop.f32.mrb[0].mxu0
  %v12893 = vadd.f32 %v12853, %v12892
  %v12894 = vpop.f32.mrb[0].mxu0
  %v12895 = vpop.f32.mrb[0].mxu0
  %v12896 = vpop.f32.mrb[0].mxu0
  %12897 = vdwg.mxu0
  %12898 = vmatprep.subr.bf16.mxu0 0
  %12899 = vmatpush1.bf16.msra.mxu0 %v12314
  %12900 = vmatprep.subr.bf16.mxu0 0
  %12901 = vmatpush1.bf16.msra.mxu0 %v12315
  %12902 = vmatprep.subr.bf16.mxu0 0
  %12903 = vmatpush1.bf16.msra.mxu0 %v12316
  %12904 = vmatprep.subr.bf16.mxu0 0
  %12905 = vmatpush1.bf16.msra.mxu0 %v12317
  %12906 = vmatprep.subr.bf16.mxu0 0
  %12907 = vmatpush1.bf16.msra.mxu0 %v12318
  %12908 = vmatprep.subr.bf16.mxu0 0
  %12909 = vmatpush1.bf16.msra.mxu0 %v12319
  %12910 = vmatprep.subr.bf16.mxu0 0
  %12911 = vmatpush1.bf16.msra.mxu0 %v12320
  %12912 = vmatprep.subr.bf16.mxu0 0
  %12913 = vmatpush1.bf16.msra.mxu0 %v12321
  %12914 = vmatprep.subr.bf16.mxu0 0
  %12915 = vmatpush1.bf16.msra.mxu0 %v12322
  %12916 = vmatprep.subr.bf16.mxu0 0
  %12917 = vmatpush1.bf16.msra.mxu0 %v12323
  %12918 = vmatprep.subr.bf16.mxu0 0
  %12919 = vmatpush1.bf16.msra.mxu0 %v12324
  %12920 = vmatprep.subr.bf16.mxu0 0
  %12921 = vmatpush1.bf16.msra.mxu0 %v12325
  %12922 = vmatprep.subr.bf16.mxu0 0
  %12923 = vmatpush1.bf16.msra.mxu0 %v12326
  %12924 = vmatprep.subr.bf16.mxu0 0
  %12925 = vmatpush1.bf16.msra.mxu0 %v12327
  %12926 = vmatprep.subr.bf16.mxu0 0
  %12927 = vmatpush1.bf16.msra.mxu0 %v12328
  %12928 = vmatprep.subr.bf16.mxu0 0
  %12929 = vmatpush1.bf16.msra.mxu0 %v12329
  %12930 = vmatprep.mubr.bf16.mxu0 %v10670
  %12931 = vmatmul.mubr.bf16.gmra.mrb[0].mxu0 %v10669
  %v12932 = vpop.f32.mrb[0].mxu0
  %v12933 = vadd.f32 %v12893, %v12932
  %v12934 = vpop.f32.mrb[0].mxu0
  %v12935 = vpop.f32.mrb[0].mxu0
  %v12936 = vpop.f32.mrb[0].mxu0
  %12937 = vdwg.mxu0
  %12938 = vmatprep.subr.bf16.mxu0 0
  %12939 = vmatpush1.bf16.msra.mxu0 %v12330
  %12940 = vmatprep.subr.bf16.mxu0 0
  %12941 = vmatpush1.bf16.msra.mxu0 %v12331
  %12942 = vmatprep.subr.bf16.mxu0 0
  %12943 = vmatpush1.bf16.msra.mxu0 %v12332
  %12944 = vmatprep.subr.bf16.mxu0 0
  %12945 = vmatpush1.bf16.msra.mxu0 %v12333
  %12946 = vmatprep.subr.bf16.mxu0 0
  %12947 = vmatpush1.bf16.msra.mxu0 %v12334
  %12948 = vmatprep.subr.bf16.mxu0 0
  %12949 = vmatpush1.bf16.msra.mxu0 %v12335
  %12950 = vmatprep.subr.bf16.mxu0 0
  %12951 = vmatpush1.bf16.msra.mxu0 %v12336
  %12952 = vmatprep.subr.bf16.mxu0 0
  %12953 = vmatpush1.bf16.msra.mxu0 %v12337
  %12954 = vmatprep.subr.bf16.mxu0 0
  %12955 = vmatpush1.bf16.msra.mxu0 %v12338
  %12956 = vmatprep.subr.bf16.mxu0 0
  %12957 = vmatpush1.bf16.msra.mxu0 %v12339
  %12958 = vmatprep.subr.bf16.mxu0 0
  %12959 = vmatpush1.bf16.msra.mxu0 %v12340
  %12960 = vmatprep.subr.bf16.mxu0 0
  %12961 = vmatpush1.bf16.msra.mxu0 %v12341
  %12962 = vmatprep.subr.bf16.mxu0 0
  %12963 = vmatpush1.bf16.msra.mxu0 %v12342
  %12964 = vmatprep.subr.bf16.mxu0 0
  %12965 = vmatpush1.bf16.msra.mxu0 %v12343
  %12966 = vmatprep.subr.bf16.mxu0 0
  %12967 = vmatpush1.bf16.msra.mxu0 %v12344
  %12968 = vmatprep.subr.bf16.mxu0 0
  %12969 = vmatpush1.bf16.msra.mxu0 %v12345
  %12970 = vmatprep.mubr.bf16.mxu0 %v10676
  %12971 = vmatmul.mubr.bf16.gmra.mrb[0].mxu0 %v10675
  %v12972 = vpop.f32.mrb[0].mxu0
  %v12973 = vadd.f32 %v12933, %v12972
  %v12974 = vpop.f32.mrb[0].mxu0
  %v12975 = vpop.f32.mrb[0].mxu0
  %v12976 = vpop.f32.mrb[0].mxu0
  %12977 = vdwg.mxu0
  %12978 = vmatprep.subr.bf16.mxu0 0
  %12979 = vmatpush1.bf16.msra.mxu0 %v12346
  %12980 = vmatprep.subr.bf16.mxu0 0
  %12981 = vmatpush1.bf16.msra.mxu0 %v12347
  %12982 = vmatprep.subr.bf16.mxu0 0
  %12983 = vmatpush1.bf16.msra.mxu0 %v12348
  %12984 = vmatprep.subr.bf16.mxu0 0
  %12985 = vmatpush1.bf16.msra.mxu0 %v12349
  %12986 = vmatprep.subr.bf16.mxu0 0
  %12987 = vmatpush1.bf16.msra.mxu0 %v12350
  %12988 = vmatprep.subr.bf16.mxu0 0
  %12989 = vmatpush1.bf16.msra.mxu0 %v12351
  %12990 = vmatprep.subr.bf16.mxu0 0
  %12991 = vmatpush1.bf16.msra.mxu0 %v12352
  %12992 = vmatprep.subr.bf16.mxu0 0
  %12993 = vmatpush1.bf16.msra.mxu0 %v12353
  %12994 = vmatprep.subr.bf16.mxu0 0
  %12995 = vmatpush1.bf16.msra.mxu0 %v12354
  %12996 = vmatprep.subr.bf16.mxu0 0
  %12997 = vmatpush1.bf16.msra.mxu0 %v12355
  %12998 = vmatprep.subr.bf16.mxu0 0
  %12999 = vmatpush1.bf16.msra.mxu0 %v12356
  %13000 = vmatprep.subr.bf16.mxu0 0
  %13001 = vmatpush1.bf16.msra.mxu0 %v12357
  %13002 = vmatprep.subr.bf16.mxu0 0
  %13003 = vmatpush1.bf16.msra.mxu0 %v12358
  %13004 = vmatprep.subr.bf16.mxu0 0
  %13005 = vmatpush1.bf16.msra.mxu0 %v12359
  %13006 = vmatprep.subr.bf16.mxu0 0
  %13007 = vmatpush1.bf16.msra.mxu0 %v12360
  %13008 = vmatprep.subr.bf16.mxu0 0
  %13009 = vmatpush1.bf16.msra.mxu0 %v12361
  %13010 = vmatprep.mubr.bf16.mxu0 %v10678
  %13011 = vmatmul.mubr.bf16.gmra.mrb[0].mxu0 %v10677
  %v13012 = vpop.f32.mrb[0].mxu0
  %v13013 = vadd.f32 %v12973, %v13012
  %v13014 = vpop.f32.mrb[0].mxu0
  %v13015 = vpop.f32.mrb[0].mxu0
  %v13016 = vpop.f32.mrb[0].mxu0
  %13017 = vdwg.mxu0
  %13018 = vmatprep.subr.bf16.mxu0 0
  %13019 = vmatpush1.bf16.msra.mxu0 %v12362
  %13020 = vmatprep.subr.bf16.mxu0 0
  %13021 = vmatpush1.bf16.msra.mxu0 %v12363
  %13022 = vmatprep.subr.bf16.mxu0 0
  %13023 = vmatpush1.bf16.msra.mxu0 %v12364
  %13024 = vmatprep.subr.bf16.mxu0 0
  %13025 = vmatpush1.bf16.msra.mxu0 %v12365
  %13026 = vmatprep.subr.bf16.mxu0 0
  %13027 = vmatpush1.bf16.msra.mxu0 %v12366
  %13028 = vmatprep.subr.bf16.mxu0 0
  %13029 = vmatpush1.bf16.msra.mxu0 %v12367
  %13030 = vmatprep.subr.bf16.mxu0 0
  %13031 = vmatpush1.bf16.msra.mxu0 %v12368
  %13032 = vmatprep.subr.bf16.mxu0 0
  %13033 = vmatpush1.bf16.msra.mxu0 %v12369
  %13034 = vmatprep.subr.bf16.mxu0 0
  %13035 = vmatpush1.bf16.msra.mxu0 %v12370
  %13036 = vmatprep.subr.bf16.mxu0 0
  %13037 = vmatpush1.bf16.msra.mxu0 %v12371
  %13038 = vmatprep.subr.bf16.mxu0 0
  %13039 = vmatpush1.bf16.msra.mxu0 %v12372
  %13040 = vmatprep.subr.bf16.mxu0 0
  %13041 = vmatpush1.bf16.msra.mxu0 %v12373
  %13042 = vmatprep.subr.bf16.mxu0 0
  %13043 = vmatpush1.bf16.msra.mxu0 %v12374
  %13044 = vmatprep.subr.bf16.mxu0 0
  %13045 = vmatpush1.bf16.msra.mxu0 %v12375
  %13046 = vmatprep.subr.bf16.mxu0 0
  %13047 = vmatpush1.bf16.msra.mxu0 %v12376
  %13048 = vmatprep.subr.bf16.mxu0 0
  %13049 = vmatpush1.bf16.msra.mxu0 %v12377
  %13050 = vmatprep.mubr.bf16.mxu0 %v10684
  %13051 = vmatmul.mubr.bf16.gmra.mrb[0].mxu0 %v10683
  %v13052 = vpop.f32.mrb[0].mxu0
  %v13053 = vadd.f32 %v13013, %v13052
  %v13054 = vpop.f32.mrb[0].mxu0
  %v13055 = vpop.f32.mrb[0].mxu0
  %v13056 = vpop.f32.mrb[0].mxu0
  %13057 = vdwg.mxu0
  %13058 = vmatprep.subr.bf16.mxu0 0
  %13059 = vmatpush1.bf16.msra.mxu0 %v12378
  %13060 = vmatprep.subr.bf16.mxu0 0
  %13061 = vmatpush1.bf16.msra.mxu0 %v12379
  %13062 = vmatprep.subr.bf16.mxu0 0
  %13063 = vmatpush1.bf16.msra.mxu0 %v12380
  %13064 = vmatprep.subr.bf16.mxu0 0
  %13065 = vmatpush1.bf16.msra.mxu0 %v12381
  %13066 = vmatprep.subr.bf16.mxu0 0
  %13067 = vmatpush1.bf16.msra.mxu0 %v12382
  %13068 = vmatprep.subr.bf16.mxu0 0
  %13069 = vmatpush1.bf16.msra.mxu0 %v12383
  %13070 = vmatprep.subr.bf16.mxu0 0
  %13071 = vmatpush1.bf16.msra.mxu0 %v12384
  %13072 = vmatprep.subr.bf16.mxu0 0
  %13073 = vmatpush1.bf16.msra.mxu0 %v12385
  %13074 = vmatprep.subr.bf16.mxu0 0
  %13075 = vmatpush1.bf16.msra.mxu0 %v12386
  %13076 = vmatprep.subr.bf16.mxu0 0
  %13077 = vmatpush1.bf16.msra.mxu0 %v12387
  %13078 = vmatprep.subr.bf16.mxu0 0
  %13079 = vmatpush1.bf16.msra.mxu0 %v12388
  %13080 = vmatprep.subr.bf16.mxu0 0
  %13081 = vmatpush1.bf16.msra.mxu0 %v12389
  %13082 = vmatprep.subr.bf16.mxu0 0
  %13083 = vmatpush1.bf16.msra.mxu0 %v12390
  %13084 = vmatprep.subr.bf16.mxu0 0
  %13085 = vmatpush1.bf16.msra.mxu0 %v12391
  %13086 = vmatprep.subr.bf16.mxu0 0
  %13087 = vmatpush1.bf16.msra.mxu0 %v12392
  %13088 = vmatprep.subr.bf16.mxu0 0
  %13089 = vmatpush1.bf16.msra.mxu0 %v12393
  %13090 = vmatprep.mubr.bf16.mxu0 %v10686
  %13091 = vmatmul.mubr.bf16.gmra.mrb[0].mxu0 %v10685
  %v13092 = vpop.f32.mrb[0].mxu0
  %v13093 = vadd.f32 %v13053, %v13092
  %v13094 = vpop.f32.mrb[0].mxu0
  %v13095 = vpop.f32.mrb[0].mxu0
  %v13096 = vpop.f32.mrb[0].mxu0
  %13097 = vdwg.mxu0
  %13098 = vmatprep.subr.bf16.mxu0 0
  %13099 = vmatpush1.bf16.msra.mxu0 %v12394
  %13100 = vmatprep.subr.bf16.mxu0 0
  %13101 = vmatpush1.bf16.msra.mxu0 %v12395
  %13102 = vmatprep.subr.bf16.mxu0 0
  %13103 = vmatpush1.bf16.msra.mxu0 %v12396
  %13104 = vmatprep.subr.bf16.mxu0 0
  %13105 = vmatpush1.bf16.msra.mxu0 %v12397
  %13106 = vmatprep.subr.bf16.mxu0 0
  %13107 = vmatpush1.bf16.msra.mxu0 %v12398
  %13108 = vmatprep.subr.bf16.mxu0 0
  %13109 = vmatpush1.bf16.msra.mxu0 %v12399
  %13110 = vmatprep.subr.bf16.mxu0 0
  %13111 = vmatpush1.bf16.msra.mxu0 %v12400
  %13112 = vmatprep.subr.bf16.mxu0 0
  %13113 = vmatpush1.bf16.msra.mxu0 %v12401
  %13114 = vmatprep.subr.bf16.mxu0 0
  %13115 = vmatpush1.bf16.msra.mxu0 %v12402
  %13116 = vmatprep.subr.bf16.mxu0 0
  %13117 = vmatpush1.bf16.msra.mxu0 %v12403
  %13118 = vmatprep.subr.bf16.mxu0 0
  %13119 = vmatpush1.bf16.msra.mxu0 %v12404
  %13120 = vmatprep.subr.bf16.mxu0 0
  %13121 = vmatpush1.bf16.msra.mxu0 %v12405
  %13122 = vmatprep.subr.bf16.mxu0 0
  %13123 = vmatpush1.bf16.msra.mxu0 %v12406
  %13124 = vmatprep.subr.bf16.mxu0 0
  %13125 = vmatpush1.bf16.msra.mxu0 %v12407
  %13126 = vmatprep.subr.bf16.mxu0 0
  %13127 = vmatpush1.bf16.msra.mxu0 %v12408
  %13128 = vmatprep.subr.bf16.mxu0 0
  %13129 = vmatpush1.bf16.msra.mxu0 %v12409
  %13130 = vmatprep.mubr.bf16.mxu0 %v10692
  %13131 = vmatmul.mubr.bf16.gmra.mrb[0].mxu0 %v10691
  %v13132 = vpop.f32.mrb[0].mxu0
  %v13133 = vadd.f32 %v13093, %v13132
  %v13134 = vpop.f32.mrb[0].mxu0
  %v13135 = vpop.f32.mrb[0].mxu0
  %v13136 = vpop.f32.mrb[0].mxu0
  %13137 = vdwg.mxu0
  %13138 = vmatprep.subr.bf16.mxu0 0
  %13139 = vmatpush1.bf16.msra.mxu0 %v12410
  %13140 = vmatprep.subr.bf16.mxu0 0
  %13141 = vmatpush1.bf16.msra.mxu0 %v12411
  %13142 = vmatprep.subr.bf16.mxu0 0
  %13143 = vmatpush1.bf16.msra.mxu0 %v12412
  %13144 = vmatprep.subr.bf16.mxu0 0
  %13145 = vmatpush1.bf16.msra.mxu0 %v12413
  %13146 = vmatprep.subr.bf16.mxu0 0
  %13147 = vmatpush1.bf16.msra.mxu0 %v12414
  %13148 = vmatprep.subr.bf16.mxu0 0
  %13149 = vmatpush1.bf16.msra.mxu0 %v12415
  %13150 = vmatprep.subr.bf16.mxu0 0
  %13151 = vmatpush1.bf16.msra.mxu0 %v12416
  %13152 = vmatprep.subr.bf16.mxu0 0
  %13153 = vmatpush1.bf16.msra.mxu0 %v12417
  %13154 = vmatprep.subr.bf16.mxu0 0
  %13155 = vmatpush1.bf16.msra.mxu0 %v12418
  %13156 = vmatprep.subr.bf16.mxu0 0
  %13157 = vmatpush1.bf16.msra.mxu0 %v12419
  %13158 = vmatprep.subr.bf16.mxu0 0
  %13159 = vmatpush1.bf16.msra.mxu0 %v12420
  %13160 = vmatprep.subr.bf16.mxu0 0
  %13161 = vmatpush1.bf16.msra.mxu0 %v12421
  %13162 = vmatprep.subr.bf16.mxu0 0
  %13163 = vmatpush1.bf16.msra.mxu0 %v12422
  %13164 = vmatprep.subr.bf16.mxu0 0
  %13165 = vmatpush1.bf16.msra.mxu0 %v12423
  %13166 = vmatprep.subr.bf16.mxu0 0
  %13167 = vmatpush1.bf16.msra.mxu0 %v12424
  %13168 = vmatprep.subr.bf16.mxu0 0
  %13169 = vmatpush1.bf16.msra.mxu0 %v12425
  %13170 = vmatprep.mubr.bf16.mxu0 %v10694
  %13171 = vmatmul.mubr.bf16.gmra.mrb[0].mxu0 %v10693
  %v13172 = vpop.f32.mrb[0].mxu0
  %v13173 = vadd.f32 %v13133, %v13172
  %v13174 = vpop.f32.mrb[0].mxu0
  %v13175 = vpop.f32.mrb[0].mxu0
  %v13176 = vpop.f32.mrb[0].mxu0
  %13177 = vdwg.mxu0
  %13178 = vmatprep.subr.bf16.mxu0 0
  %13179 = vmatpush1.bf16.msra.mxu0 %v12426
  %13180 = vmatprep.subr.bf16.mxu0 0
  %13181 = vmatpush1.bf16.msra.mxu0 %v12427
  %13182 = vmatprep.subr.bf16.mxu0 0
  %13183 = vmatpush1.bf16.msra.mxu0 %v12428
  %13184 = vmatprep.subr.bf16.mxu0 0
  %13185 = vmatpush1.bf16.msra.mxu0 %v12429
  %13186 = vmatprep.subr.bf16.mxu0 0
  %13187 = vmatpush1.bf16.msra.mxu0 %v12430
  %13188 = vmatprep.subr.bf16.mxu0 0
  %13189 = vmatpush1.bf16.msra.mxu0 %v12431
  %13190 = vmatprep.subr.bf16.mxu0 0
  %13191 = vmatpush1.bf16.msra.mxu0 %v12432
  %13192 = vmatprep.subr.bf16.mxu0 0
  %13193 = vmatpush1.bf16.msra.mxu0 %v12433
  %13194 = vmatprep.subr.bf16.mxu0 0
  %13195 = vmatpush1.bf16.msra.mxu0 %v12434
  %13196 = vmatprep.subr.bf16.mxu0 0
  %13197 = vmatpush1.bf16.msra.mxu0 %v12435
  %13198 = vmatprep.subr.bf16.mxu0 0
  %13199 = vmatpush1.bf16.msra.mxu0 %v12436
  %13200 = vmatprep.subr.bf16.mxu0 0
  %13201 = vmatpush1.bf16.msra.mxu0 %v12437
  %13202 = vmatprep.subr.bf16.mxu0 0
  %13203 = vmatpush1.bf16.msra.mxu0 %v12438
  %13204 = vmatprep.subr.bf16.mxu0 0
  %13205 = vmatpush1.bf16.msra.mxu0 %v12439
  %13206 = vmatprep.subr.bf16.mxu0 0
  %13207 = vmatpush1.bf16.msra.mxu0 %v12440
  %13208 = vmatprep.subr.bf16.mxu0 0
  %13209 = vmatpush1.bf16.msra.mxu0 %v12441
  %13210 = vmatprep.mubr.bf16.mxu0 %v10700
  %13211 = vmatmul.mubr.bf16.gmra.mrb[0].mxu0 %v10699
  %v13212 = vpop.f32.mrb[0].mxu0
  %v13213 = vadd.f32 %v13173, %v13212
  %v13214 = vpop.f32.mrb[0].mxu0
  %v13215 = vpop.f32.mrb[0].mxu0
  %v13216 = vpop.f32.mrb[0].mxu0
  %13217 = vdwg.mxu0
  %13218 = vmatprep.subr.bf16.mxu0 0
  %13219 = vmatpush1.bf16.msra.mxu0 %v12442
  %13220 = vmatprep.subr.bf16.mxu0 0
  %13221 = vmatpush1.bf16.msra.mxu0 %v12443
  %13222 = vmatprep.subr.bf16.mxu0 0
  %13223 = vmatpush1.bf16.msra.mxu0 %v12444
  %13224 = vmatprep.subr.bf16.mxu0 0
  %13225 = vmatpush1.bf16.msra.mxu0 %v12445
  %13226 = vmatprep.subr.bf16.mxu0 0
  %13227 = vmatpush1.bf16.msra.mxu0 %v12446
  %13228 = vmatprep.subr.bf16.mxu0 0
  %13229 = vmatpush1.bf16.msra.mxu0 %v12447
  %13230 = vmatprep.subr.bf16.mxu0 0
  %13231 = vmatpush1.bf16.msra.mxu0 %v12448
  %13232 = vmatprep.subr.bf16.mxu0 0
  %13233 = vmatpush1.bf16.msra.mxu0 %v12449
  %13234 = vmatprep.subr.bf16.mxu0 0
  %13235 = vmatpush1.bf16.msra.mxu0 %v12450
  %13236 = vmatprep.subr.bf16.mxu0 0
  %13237 = vmatpush1.bf16.msra.mxu0 %v12451
  %13238 = vmatprep.subr.bf16.mxu0 0
  %13239 = vmatpush1.bf16.msra.mxu0 %v12452
  %13240 = vmatprep.subr.bf16.mxu0 0
  %13241 = vmatpush1.bf16.msra.mxu0 %v12453
  %13242 = vmatprep.subr.bf16.mxu0 0
  %13243 = vmatpush1.bf16.msra.mxu0 %v12454
  %13244 = vmatprep.subr.bf16.mxu0 0
  %13245 = vmatpush1.bf16.msra.mxu0 %v12455
  %13246 = vmatprep.subr.bf16.mxu0 0
  %13247 = vmatpush1.bf16.msra.mxu0 %v12456
  %13248 = vmatprep.subr.bf16.mxu0 0
  %13249 = vmatpush1.bf16.msra.mxu0 %v12457
  %13250 = vmatprep.mubr.bf16.mxu0 %v10702
  %13251 = vmatmul.mubr.bf16.gmra.mrb[0].mxu0 %v10701
  %v13252 = vpop.f32.mrb[0].mxu0
  %v13253 = vadd.f32 %v13213, %v13252
  %v13254 = vpop.f32.mrb[0].mxu0
  %v13255 = vpop.f32.mrb[0].mxu0
  %v13256 = vpop.f32.mrb[0].mxu0
  %13257 = vdwg.mxu0
  %13258 = vmatprep.subr.bf16.mxu0 0
  %13259 = vmatpush1.bf16.msra.mxu0 %v12458
  %13260 = vmatprep.subr.bf16.mxu0 0
  %13261 = vmatpush1.bf16.msra.mxu0 %v12459
  %13262 = vmatprep.subr.bf16.mxu0 0
  %13263 = vmatpush1.bf16.msra.mxu0 %v12460
  %13264 = vmatprep.subr.bf16.mxu0 0
  %13265 = vmatpush1.bf16.msra.mxu0 %v12461
  %13266 = vmatprep.subr.bf16.mxu0 0
  %13267 = vmatpush1.bf16.msra.mxu0 %v12462
  %13268 = vmatprep.subr.bf16.mxu0 0
  %13269 = vmatpush1.bf16.msra.mxu0 %v12463
  %13270 = vmatprep.subr.bf16.mxu0 0
  %13271 = vmatpush1.bf16.msra.mxu0 %v12464
  %13272 = vmatprep.subr.bf16.mxu0 0
  %13273 = vmatpush1.bf16.msra.mxu0 %v12465
  %13274 = vmatprep.subr.bf16.mxu0 0
  %13275 = vmatpush1.bf16.msra.mxu0 %v12466
  %13276 = vmatprep.subr.bf16.mxu0 0
  %13277 = vmatpush1.bf16.msra.mxu0 %v12467
  %13278 = vmatprep.subr.bf16.mxu0 0
  %13279 = vmatpush1.bf16.msra.mxu0 %v12468
  %13280 = vmatprep.subr.bf16.mxu0 0
  %13281 = vmatpush1.bf16.msra.mxu0 %v12469
  %13282 = vmatprep.subr.bf16.mxu0 0
  %13283 = vmatpush1.bf16.msra.mxu0 %v12470
  %13284 = vmatprep.subr.bf16.mxu0 0
  %13285 = vmatpush1.bf16.msra.mxu0 %v12471
  %13286 = vmatprep.subr.bf16.mxu0 0
  %13287 = vmatpush1.bf16.msra.mxu0 %v12472
  %13288 = vmatprep.subr.bf16.mxu0 0
  %13289 = vmatpush1.bf16.msra.mxu0 %v12473
  %13290 = vmatprep.mubr.bf16.mxu0 %v10708
  %13291 = vmatmul.mubr.bf16.gmra.mrb[0].mxu0 %v10707
  %v13292 = vpop.f32.mrb[0].mxu0
  %v13293 = vadd.f32 %v13253, %v13292
  %v13294 = vpop.f32.mrb[0].mxu0
  %v13295 = vpop.f32.mrb[0].mxu0
  %v13296 = vpop.f32.mrb[0].mxu0
  %13297 = vdwg.mxu0
  %13298 = vmatprep.subr.bf16.mxu0 0
  %13299 = vmatpush1.bf16.msra.mxu0 %v12474
  %13300 = vmatprep.subr.bf16.mxu0 0
  %13301 = vmatpush1.bf16.msra.mxu0 %v12475
  %13302 = vmatprep.subr.bf16.mxu0 0
  %13303 = vmatpush1.bf16.msra.mxu0 %v12476
  %13304 = vmatprep.subr.bf16.mxu0 0
  %13305 = vmatpush1.bf16.msra.mxu0 %v12477
  %13306 = vmatprep.subr.bf16.mxu0 0
  %13307 = vmatpush1.bf16.msra.mxu0 %v12478
  %13308 = vmatprep.subr.bf16.mxu0 0
  %13309 = vmatpush1.bf16.msra.mxu0 %v12479
  %13310 = vmatprep.subr.bf16.mxu0 0
  %13311 = vmatpush1.bf16.msra.mxu0 %v12480
  %13312 = vmatprep.subr.bf16.mxu0 0
  %13313 = vmatpush1.bf16.msra.mxu0 %v12481
  %13314 = vmatprep.subr.bf16.mxu0 0
  %13315 = vmatpush1.bf16.msra.mxu0 %v12482
  %13316 = vmatprep.subr.bf16.mxu0 0
  %13317 = vmatpush1.bf16.msra.mxu0 %v12483
  %13318 = vmatprep.subr.bf16.mxu0 0
  %13319 = vmatpush1.bf16.msra.mxu0 %v12484
  %13320 = vmatprep.subr.bf16.mxu0 0
  %13321 = vmatpush1.bf16.msra.mxu0 %v12485
  %13322 = vmatprep.subr.bf16.mxu0 0
  %13323 = vmatpush1.bf16.msra.mxu0 %v12486
  %13324 = vmatprep.subr.bf16.mxu0 0
  %13325 = vmatpush1.bf16.msra.mxu0 %v12487
  %13326 = vmatprep.subr.bf16.mxu0 0
  %13327 = vmatpush1.bf16.msra.mxu0 %v12488
  %13328 = vmatprep.subr.bf16.mxu0 0
  %13329 = vmatpush1.bf16.msra.mxu0 %v12489
  %13330 = vmatprep.mubr.bf16.mxu0 %v10710
  %13331 = vmatmul.mubr.bf16.gmra.mrb[0].mxu0 %v10709
  %v13332 = vpop.f32.mrb[0].mxu0
  %v13333 = vadd.f32 %v13293, %v13332
  %v13334 = vpop.f32.mrb[0].mxu0
  %v13335 = vpop.f32.mrb[0].mxu0
  %v13336 = vpop.f32.mrb[0].mxu0
  %13337 = vdwg.mxu0
  %13338 = vmatprep.subr.bf16.mxu0 0
  %13339 = vmatpush1.bf16.msra.mxu0 %v12490
  %13340 = vmatprep.subr.bf16.mxu0 0
  %13341 = vmatpush1.bf16.msra.mxu0 %v12491
  %13342 = vmatprep.subr.bf16.mxu0 0
  %13343 = vmatpush1.bf16.msra.mxu0 %v12492
  %13344 = vmatprep.subr.bf16.mxu0 0
  %13345 = vmatpush1.bf16.msra.mxu0 %v12493
  %13346 = vmatprep.subr.bf16.mxu0 0
  %13347 = vmatpush1.bf16.msra.mxu0 %v12494
  %13348 = vmatprep.subr.bf16.mxu0 0
  %13349 = vmatpush1.bf16.msra.mxu0 %v12495
  %13350 = vmatprep.subr.bf16.mxu0 0
  %13351 = vmatpush1.bf16.msra.mxu0 %v12496
  %13352 = vmatprep.subr.bf16.mxu0 0
  %13353 = vmatpush1.bf16.msra.mxu0 %v12497
  %13354 = vmatprep.subr.bf16.mxu0 0
  %13355 = vmatpush1.bf16.msra.mxu0 %v12498
  %13356 = vmatprep.subr.bf16.mxu0 0
  %13357 = vmatpush1.bf16.msra.mxu0 %v12499
  %13358 = vmatprep.subr.bf16.mxu0 0
  %13359 = vmatpush1.bf16.msra.mxu0 %v12500
  %13360 = vmatprep.subr.bf16.mxu0 0
  %13361 = vmatpush1.bf16.msra.mxu0 %v12501
  %13362 = vmatprep.subr.bf16.mxu0 0
  %13363 = vmatpush1.bf16.msra.mxu0 %v12502
  %13364 = vmatprep.subr.bf16.mxu0 0
  %13365 = vmatpush1.bf16.msra.mxu0 %v12503
  %13366 = vmatprep.subr.bf16.mxu0 0
  %13367 = vmatpush1.bf16.msra.mxu0 %v12504
  %13368 = vmatprep.subr.bf16.mxu0 0
  %13369 = vmatpush1.bf16.msra.mxu0 %v12505
  %13370 = vmatprep.mubr.bf16.mxu0 %v10716
  %13371 = vmatmul.mubr.bf16.gmra.mrb[0].mxu0 %v10715
  %v13372 = vpop.f32.mrb[0].mxu0
  %v13373 = vadd.f32 %v13333, %v13372
  %v13374 = vpop.f32.mrb[0].mxu0
  %v13375 = vpop.f32.mrb[0].mxu0
  %v13376 = vpop.f32.mrb[0].mxu0
  %13377 = vdwg.mxu0
  %13378 = vmatprep.subr.bf16.mxu0 0
  %13379 = vmatpush1.bf16.msra.mxu0 %v12506
  %13380 = vmatprep.subr.bf16.mxu0 0
  %13381 = vmatpush1.bf16.msra.mxu0 %v12507
  %13382 = vmatprep.subr.bf16.mxu0 0
  %13383 = vmatpush1.bf16.msra.mxu0 %v12508
  %13384 = vmatprep.subr.bf16.mxu0 0
  %13385 = vmatpush1.bf16.msra.mxu0 %v12509
  %13386 = vmatprep.subr.bf16.mxu0 0
  %13387 = vmatpush1.bf16.msra.mxu0 %v12510
  %13388 = vmatprep.subr.bf16.mxu0 0
  %13389 = vmatpush1.bf16.msra.mxu0 %v12511
  %13390 = vmatprep.subr.bf16.mxu0 0
  %13391 = vmatpush1.bf16.msra.mxu0 %v12512
  %13392 = vmatprep.subr.bf16.mxu0 0
  %13393 = vmatpush1.bf16.msra.mxu0 %v12513
  %13394 = vmatprep.subr.bf16.mxu0 0
  %13395 = vmatpush1.bf16.msra.mxu0 %v12514
  %13396 = vmatprep.subr.bf16.mxu0 0
  %13397 = vmatpush1.bf16.msra.mxu0 %v12515
  %13398 = vmatprep.subr.bf16.mxu0 0
  %13399 = vmatpush1.bf16.msra.mxu0 %v12516
  %13400 = vmatprep.subr.bf16.mxu0 0
  %13401 = vmatpush1.bf16.msra.mxu0 %v12517
  %13402 = vmatprep.subr.bf16.mxu0 0
  %13403 = vmatpush1.bf16.msra.mxu0 %v12518
  %13404 = vmatprep.subr.bf16.mxu0 0
  %13405 = vmatpush1.bf16.msra.mxu0 %v12519
  %13406 = vmatprep.subr.bf16.mxu0 0
  %13407 = vmatpush1.bf16.msra.mxu0 %v12520
  %13408 = vmatprep.subr.bf16.mxu0 0
  %13409 = vmatpush1.bf16.msra.mxu0 %v12521
  %13410 = vmatprep.mubr.bf16.mxu0 %v10718
  %13411 = vmatmul.mubr.bf16.gmra.mrb[0].mxu0 %v10717
  %v13412 = vpop.f32.mrb[0].mxu0
  %v13413 = vadd.f32 %v13373, %v13412
  %v13414 = vpop.f32.mrb[0].mxu0
  %v13415 = vpop.f32.mrb[0].mxu0
  %v13416 = vpop.f32.mrb[0].mxu0
  %13417 = vdwg.mxu0
  %vm13418 = vcmp.gt.f32.partialorder %v13413, 0.0
  %v13419 = vsel %vm13418, 1, 0
  %13420 = vst [vmem:[%s9] sm:$0xff] %v13419
  // Predicated region
  $region38: #{watermark_extractor.1} parent=0 // pred_check
    _
  $region39: #{watermark_extractor.1} parent=0 // pred_check_branch
    %13422 = sbr.rel (0) target = $region41
  $region40: #{watermark_extractor.1} parent=0 // pred_region
    _
  $region41: #{watermark_extractor.1} parent=0 // pred_fallthru
    _
  // Predicated region
  $region42: #{watermark_extractor.1} parent=0 // pred_check
    _
  $region43: #{watermark_extractor.1} parent=0 // pred_check_branch
    %13424 = sbr.rel (0) target = $region45
  $region44: #{watermark_extractor.1} parent=0 // pred_region
    _
  $region45: #{watermark_extractor.1} parent=0 // pred_fallthru
    _

</llo_original>
